<compile_context>
chip_gen: v6e
topology: v6e:2x2x1
jax: 0.10.0
libtpu: 0.0.40
codegen_flags: <defaults>
</compile_context>

<pallas_src>
import math

import jax
import jax.numpy as jnp
from jax import lax
from jax.experimental import pallas as pl
from jax.experimental.pallas import tpu as pltpu


# -----------------------------------------------------------------------------
# helpers
# -----------------------------------------------------------------------------
def _full_spec(shape):
    """Full-extent block with a constant index map (grid-invariant)."""
    nd = len(shape)
    maps = {
        2: lambda i: (0, 0),
        3: lambda i: (0, 0, 0),
        4: lambda i: (0, 0, 0, 0),
        5: lambda i: (0, 0, 0, 0, 0),
    }
    return pl.BlockSpec(shape, maps[nd])


def _row_tile(rows):
    """Prefer >=2 sublane-aligned row tiles (v7x has 2 TensorCores)."""
    for cand in (rows // 2, rows):
        if cand > 0 and rows % cand == 0 and (cand % 8 == 0 or cand == rows):
            return cand
    return rows


# -----------------------------------------------------------------------------
# Kernel 1: recurrent core (AttnPool basket pooling + per-task GRU + meta GRU)
# One grid step; all timesteps run in an unrolled in-kernel loop.
# -----------------------------------------------------------------------------
def _recurrence_kernel(e_ref, valid_ref,
                       wk_ref, bk_ref, wq_ref, wo_ref,
                       wih_ref, whh_ref, bih_ref, bhh_ref,
                       wihm_ref, whhm_ref, bihm_ref, bhhm_ref,
                       ht_tasks_ref, ht_meta_ref):
    f32 = jnp.float32
    bf16 = jnp.bfloat16

    n_tasks, B, T, S, d_item = e_ref.shape
    R = whh_ref.shape[1]
    A = wk_ref.shape[1]
    G = n_tasks * B

    # weights loaded (hoisted) once, reused across the unrolled time loop
    wk = wk_ref[...]
    bk = bk_ref[...]
    wq = wq_ref[...]
    wo = wo_ref[...]
    wih = wih_ref[...]
    whh = whh_ref[...]
    bih = bih_ref[...]
    bhh = bhh_ref[...]
    wihm = wihm_ref[...]
    whhm = whhm_ref[...]
    bihm = bihm_ref[...]
    bhhm = bhhm_ref[...]

    def step(t, carry):
        h_prev, hm_prev = carry                      # f32 [n_tasks,B,R], [B,R]

        # leading-axis dynamic slice of the resident input (address offset only)
        e_t = e_ref[:, :, pl.ds(t, 1), :, :]         # bf16 [n_tasks,B,1,S,d_item]
        e_flat = e_t.reshape(G * S, d_item)          # lane-preserving reshapes
        e_3d = e_t.reshape(G, S, d_item)
        valid = valid_ref[pl.ds(t, 1), :, :, :].reshape(G, S, 1)   # f32

        # ---- AttnPool (shared basket_attn), all tasks & batch rows fused ----
        h_prev_bf = h_prev.reshape(G, R).astype(bf16)
        key_tmp = jnp.dot(e_flat, wk,
                          preferred_element_type=f32).reshape(G, S, A) + bk
        q = jnp.dot(h_prev_bf, wq, preferred_element_type=f32)       # [G, A]
        tmp2 = jnp.tanh(key_tmp + q[:, None, :])                     # [G, S, A]
        attn = jnp.sum(tmp2 * wo, axis=-1, keepdims=True)            # [G, S, 1]
        m = jnp.max(attn, axis=1, keepdims=True)                     # [G, 1, 1]
        attn_exp = jnp.exp(attn - m) * valid
        den = jnp.sum(attn_exp, axis=1, keepdims=True)               # [G, 1, 1]
        den = den + (den == 0).astype(f32)                           # empty-basket guard
        attn_sm = attn_exp * pl.reciprocal(den, approx=True)
        cell = jnp.sum(e_3d.astype(f32) * attn_sm, axis=1)           # [G, d_item]

        # cell (basket) mask derived in-kernel from the item validity mask
        n_basket = jnp.sum(valid, axis=1)                            # [G, 1]
        cmask = (n_basket > 0).astype(f32).reshape(n_tasks, B, 1)

        # ---- per-task GRU cells: task-batched GEMMs (bf16 operands, f32 acc)
        cell_bf = cell.reshape(n_tasks, B, d_item).astype(bf16)
        h_bf = h_prev.astype(bf16)
        gi = jnp.einsum('tbi,tij->tbj', cell_bf, wih,
                        preferred_element_type=f32) + bih
        gh = jnp.einsum('tbr,trj->tbj', h_bf, whh,
                        preferred_element_type=f32) + bhh
        r = jax.nn.sigmoid(gi[..., :R] + gh[..., :R])
        z = jax.nn.sigmoid(gi[..., R:2 * R] + gh[..., R:2 * R])
        ng = jnp.tanh(gi[..., 2 * R:] + r * gh[..., 2 * R:])
        h_new = (1.0 - z) * ng + z * h_prev
        h_task = h_new * cmask + h_prev * (1.0 - cmask)   # empty basket keeps state

        # ---- meta GRU over concat(h_tasks), as a summed task-batched GEMM ---
        gim = jnp.sum(jnp.einsum('tbr,trj->tbj', h_task.astype(bf16), wihm,
                                 preferred_element_type=f32), axis=0) + bihm
        ghm = jnp.dot(hm_prev.astype(bf16), whhm,
                      preferred_element_type=f32) + bhhm
        rm = jax.nn.sigmoid(gim[..., :R] + ghm[..., :R])
        zm = jax.nn.sigmoid(gim[..., R:2 * R] + ghm[..., R:2 * R])
        nm = jnp.tanh(gim[..., 2 * R:] + rm * ghm[..., 2 * R:])
        h_meta = (1.0 - zm) * nm + zm * hm_prev

        # resident, time-leading outputs: cheap leading-axis stores, single
        # write-back DMA after the kernel finishes.
        ht_tasks_ref[:, pl.ds(t, 1), :, :] = (
            h_task[:, None, :, :].astype(ht_tasks_ref.dtype))
        ht_meta_ref[pl.ds(t, 1), :, :] = h_meta[None, :, :].astype(ht_meta_ref.dtype)
        return h_task, h_meta

    h0 = jnp.zeros((n_tasks, B, R), f32)
    hm0 = jnp.zeros((B, R), f32)
    lax.fori_loop(0, T, step, (h0, hm0), unroll=True)


def mbn_recurrence(e_items, item_valid, attn_params, gru_params, meta_params):
    """e_items: [n_tasks, B, T, S, d_item] (bf16); item_valid: [n_tasks, B, T, S]."""
    n_tasks, B, T, S, d_item = e_items.shape
    wk, bk, wq, wo = attn_params
    wih, whh, bih, bhh = gru_params
    wihm, whhm, bihm, bhhm = meta_params
    d_rnn = whhm.shape[0]
    G = n_tasks * B
    bf16 = jnp.bfloat16

    e_bf = e_items.astype(bf16)
    # tiny mask tensor (KB-scale): time-leading, (task,batch) rows flattened
    valid_t = jnp.transpose(item_valid, (2, 0, 1, 3)).reshape(
        T, G, S, 1).astype(jnp.float32)

    inputs = (e_bf, valid_t,
              wk.astype(bf16), bk, wq.astype(bf16), wo,
              wih.astype(bf16), whh.astype(bf16), bih, bhh,
              wihm.astype(bf16), whhm.astype(bf16), bihm, bhhm)

    ht_tasks, ht_meta = pl.pallas_call(
        _recurrence_kernel,
        out_shape=(jax.ShapeDtypeStruct((n_tasks, T, B, d_rnn), bf16),
                   jax.ShapeDtypeStruct((T, B, d_rnn), bf16)),
        grid_spec=pltpu.PrefetchScalarGridSpec(
            num_scalar_prefetch=0,
            grid=(1,),                      # whole recurrence in one grid step
            in_specs=[_full_spec(x.shape) for x in inputs],
            out_specs=[_full_spec((n_tasks, T, B, d_rnn)),
                       _full_spec((T, B, d_rnn))],
        ),
        compiler_params=pltpu.CompilerParams(
            dimension_semantics=("arbitrary",)),   # sequential recurrence
    )(*inputs)
    return ht_tasks, ht_meta


# -----------------------------------------------------------------------------
# Kernel 2: output scoring (repeat=0, meta_rnn=True, mix_mode=sum)
# Tiled over rows (B*T); copy mask generated in-kernel from int32 indices.
# -----------------------------------------------------------------------------
def _scoring_kernel(meta_ref, task_ref, cvec_ref,
                    wnew_ref, bnew_ref, wcopy_ref, bcopy_ref,
                    sall_ref, scopy_ref, snew_ref, scopys_ref):
    f32 = jnp.float32
    n_tasks, tr, copy_size = cvec_ref.shape
    n_items = wnew_ref.shape[-1]

    # bf16 MXU operands, f32 accumulation; n_items (last dim) is lane-dense
    score_new_all = (jnp.dot(meta_ref[...], wnew_ref[...],
                             preferred_element_type=f32) + bnew_ref[...])
    score_copy_t = (jnp.einsum('tbr,trn->tbn', task_ref[...], wcopy_ref[...],
                               preferred_element_type=f32) + bcopy_ref[...])

    # 0/1 copy mask from the int32 indices (== torch scatter_(-1, copy_vectors, 1))
    cvec = cvec_ref[...]                                              # int32
    iota = lax.broadcasted_iota(jnp.int32, (1, 1, n_items), 2)
    copy_mask = jnp.zeros((n_tasks, tr, n_items), f32)
    for k in range(copy_size):                                        # static, tiny
        copy_mask = jnp.maximum(copy_mask,
                                (cvec[:, :, k:k + 1] == iota).astype(f32))

    score_copy_t = score_copy_t * copy_mask
    score_copy = jnp.sum(score_copy_t, axis=0)            # mix_mode = 0 (sum)
    any_copy = jnp.sum(copy_mask, axis=0)                 # "all_zeros" in torch
    new_mask = (any_copy == 0).astype(f32)
    score_new = score_new_all * new_mask
    score_unlog = score_copy + score_new

    # stable log_softmax over the item axis (all f32)
    m = jnp.max(score_unlog, axis=-1, keepdims=True)
    shifted = score_unlog - m
    lse = jnp.log(jnp.sum(jnp.exp(shifted), axis=-1, keepdims=True))

    sall_ref[...] = (shifted - lse).astype(sall_ref.dtype)
    scopy_ref[...] = (score_copy + (-1000.0) * new_mask).astype(scopy_ref.dtype)
    snew_ref[...] = score_new.astype(snew_ref.dtype)
    scopys_ref[...] = score_copy_t.astype(scopys_ref.dtype)


def mbn_scoring(e_rnn_meta, e_rnn_tasks, copy_vectors, new_params, copy_params):
    """e_rnn_meta: [B, T, R]; e_rnn_tasks: [n_tasks, B, T, R];
    copy_vectors: [n_tasks, B, T, copy_size] int ids."""
    n_tasks, B, T, d_rnn = e_rnn_tasks.shape
    copy_size = copy_vectors.shape[-1]
    rows = B * T
    w_new, b_new = new_params
    w_copy, b_copy = copy_params
    n_items = w_new.shape[-1]
    bf16 = jnp.bfloat16

    meta_h = e_rnn_meta.reshape(rows, d_rnn).astype(bf16)
    task_h = e_rnn_tasks.reshape(n_tasks, rows, d_rnn).astype(bf16)
    cvec = copy_vectors.reshape(n_tasks, rows, copy_size).astype(jnp.int32)

    tr = _row_tile(rows)
    grid = (rows // tr,)

    outs = pl.pallas_call(
        _scoring_kernel,
        out_shape=(jax.ShapeDtypeStruct((rows, n_items), jnp.float32),
                   jax.ShapeDtypeStruct((rows, n_items), jnp.float32),
                   jax.ShapeDtypeStruct((rows, n_items), jnp.float32),
                   jax.ShapeDtypeStruct((n_tasks, rows, n_items), jnp.float32)),
        grid_spec=pltpu.PrefetchScalarGridSpec(
            num_scalar_prefetch=0,
            grid=grid,
            in_specs=[
                pl.BlockSpec((tr, d_rnn), lambda i: (i, 0)),
                pl.BlockSpec((n_tasks, tr, d_rnn), lambda i: (0, i, 0)),
                pl.BlockSpec((n_tasks, tr, copy_size), lambda i: (0, i, 0)),
                pl.BlockSpec(w_new.shape, lambda i: (0, 0)),
                pl.BlockSpec(b_new.shape, lambda i: (0, 0)),
                pl.BlockSpec(w_copy.shape, lambda i: (0, 0, 0)),
                pl.BlockSpec(b_copy.shape, lambda i: (0, 0, 0)),
            ],
            out_specs=[
                pl.BlockSpec((tr, n_items), lambda i: (i, 0)),
                pl.BlockSpec((tr, n_items), lambda i: (i, 0)),
                pl.BlockSpec((tr, n_items), lambda i: (i, 0)),
                pl.BlockSpec((n_tasks, tr, n_items), lambda i: (0, i, 0)),
            ],
        ),
        compiler_params=pltpu.CompilerParams(
            dimension_semantics=("parallel",)),    # row tiles are independent
    )(meta_h, task_h, cvec, w_new.astype(bf16), b_new, w_copy.astype(bf16), b_copy)

    score_all, score_copy_tasks, score_new, score_copys_t = outs
    score_all = score_all.reshape(B, T, n_items)
    score_copy_tasks = score_copy_tasks.reshape(B, T, n_items)
    score_new = score_new.reshape(B, T, n_items)
    score_copys = [score_copys_t[ti].reshape(1, B, T, n_items)
                   for ti in range(n_tasks)]
    return score_all, score_copy_tasks, score_new, score_copys


# -----------------------------------------------------------------------------
# Full forward
# -----------------------------------------------------------------------------
def mbn_forward(user_vectors, item_vectors, copy_vectors, params):
    """item_vectors: [n_tasks, B, T, basket_size] int ids (0 = padding);
    copy_vectors: [n_tasks, B, T, copy_size] int ids.
    user_vectors only contributes batch_size in the reference module."""
    del user_vectors
    emb = params['item_emb']                              # [n_items, d_item], row0 = 0

    # TODO(synk): nn.Embedding gather is a data-dependent gather kept in JAX.
    e_items = jnp.take(emb.astype(jnp.bfloat16), item_vectors, axis=0)
    item_valid = (item_vectors > 0).astype(jnp.float32)

    ht_tasks, ht_meta = mbn_recurrence(
        e_items, item_valid,
        params['basket_attn'], params['gru'], params['meta'])

    # tiny (KB-scale) hidden-state layout fix-up between the two kernels
    e_rnn_tasks = jnp.transpose(ht_tasks, (0, 2, 1, 3))   # [n_tasks, B, T, R]
    e_rnn_meta = jnp.transpose(ht_meta, (1, 0, 2))        # [B, T, R]

    return mbn_scoring(e_rnn_meta, e_rnn_tasks, copy_vectors,
                       params['new_linear'], params['copy_linear'])


# -----------------------------------------------------------------------------
# Deterministic parameter init (nn.Linear / GRUCell style; weights as [in, out])
# -----------------------------------------------------------------------------
def init_params(key, *, n_items, d_item, d_rnn, d_attn, n_tasks):
    keys = jax.random.split(key, 17)

    def u(k, shape, fan_in):
        b = 1.0 / math.sqrt(fan_in)
        return jax.random.uniform(k, shape, jnp.float32, -b, b)

    emb = 0.1 * jax.random.normal(keys[0], (n_items, d_item), jnp.float32)
    emb = emb.at[0].set(0.0)                               # padding_idx = 0

    basket_attn = (u(keys[1], (d_item, d_attn), d_item),   # attn_key_linear.W^T
                   u(keys[2], (1, d_attn), d_item),        # attn_key_linear.bias
                   u(keys[3], (d_rnn, d_attn), d_rnn),     # attn_query_linear (no bias)
                   u(keys[4], (1, d_attn), d_attn))        # attn_outer_linear (no bias)

    gru = (u(keys[5], (n_tasks, d_item, 3 * d_rnn), d_rnn),   # W_ih per task
           u(keys[6], (n_tasks, d_rnn, 3 * d_rnn), d_rnn),    # W_hh per task
           u(keys[7], (n_tasks, 1, 3 * d_rnn), d_rnn),        # b_ih per task
           u(keys[8], (n_tasks, 1, 3 * d_rnn), d_rnn))        # b_hh per task

    meta = (u(keys[9], (n_tasks, d_rnn, 3 * d_rnn), d_rnn),   # W_ih (per-task block rows)
            u(keys[10], (d_rnn, 3 * d_rnn), d_rnn),           # W_hh
            u(keys[11], (1, 3 * d_rnn), d_rnn),
            u(keys[12], (1, 3 * d_rnn), d_rnn))

    new_linear = (u(keys[13], (d_rnn, n_items), d_rnn),
                  u(keys[14], (1, n_items), d_rnn))
    copy_linear = (u(keys[15], (n_tasks, d_rnn, n_items), d_rnn),
                   u(keys[16], (n_tasks, 1, n_items), d_rnn))

    return dict(item_emb=emb, basket_attn=basket_attn, gru=gru, meta=meta,
                new_linear=new_linear, copy_linear=copy_linear)


if __name__ == "__main__":
    n_tasks, B, T, S, copy_size = 2, 8, 4, 8, 4
    n_items, d_item, d_rnn, d_attn = 256, 32, 32, 32

    root = jax.random.PRNGKey(0)
    k_p, k_items, k_copy = jax.random.split(root, 3)
    params = init_params(k_p, n_items=n_items, d_item=d_item,
                         d_rnn=d_rnn, d_attn=d_attn, n_tasks=n_tasks)

    user_vectors = jnp.arange(B, dtype=jnp.int32)
    item_vectors = jax.random.randint(k_items, (n_tasks, B, T, S), 0, n_items,
                                      dtype=jnp.int32)
    item_vectors = item_vectors.at[0, 1, 2, :].set(0)   # one fully empty basket
    copy_vectors = jax.random.randint(k_copy, (n_tasks, B, T, copy_size), 0,
                                      n_items, dtype=jnp.int32)

    score_all, score_copy_tasks, score_new, score_copys = mbn_forward(
        user_vectors, item_vectors, copy_vectors, params)
    jax.block_until_ready((score_all, score_copy_tasks, score_new))

    assert score_all.shape == (B, T, n_items)
    assert score_copy_tasks.shape == (B, T, n_items)
    assert score_new.shape == (B, T, n_items)
    assert len(score_copys) == n_tasks
    assert score_copys[0].shape == (1, B, T, n_items)
    assert bool(jnp.all(jnp.isfinite(score_all)))
    assert bool(jnp.all(jnp.abs(jnp.exp(score_all).sum(-1) - 1.0) < 1e-3))
    print("KERNEL_OK")
</pallas_src>

<mosaic_0001>
module attributes {stable_mosaic.version = 11 : i64} {
  func.func @_recurrence_kernel(%arg0: i32, %arg1: memref<2x8x4x8x32xbf16, #tpu.memory_space<vmem>>, %arg2: memref<4x16x8x1xf32, #tpu.memory_space<vmem>>, %arg3: memref<32x32xbf16, #tpu.memory_space<vmem>>, %arg4: memref<1x32xf32, #tpu.memory_space<vmem>>, %arg5: memref<32x32xbf16, #tpu.memory_space<vmem>>, %arg6: memref<1x32xf32, #tpu.memory_space<vmem>>, %arg7: memref<2x32x96xbf16, #tpu.memory_space<vmem>>, %arg8: memref<2x32x96xbf16, #tpu.memory_space<vmem>>, %arg9: memref<2x1x96xf32, #tpu.memory_space<vmem>>, %arg10: memref<2x1x96xf32, #tpu.memory_space<vmem>>, %arg11: memref<2x32x96xbf16, #tpu.memory_space<vmem>>, %arg12: memref<32x96xbf16, #tpu.memory_space<vmem>>, %arg13: memref<1x96xf32, #tpu.memory_space<vmem>>, %arg14: memref<1x96xf32, #tpu.memory_space<vmem>>, %arg15: memref<2x4x8x32xbf16, #tpu.memory_space<vmem>>, %arg16: memref<4x8x32xbf16, #tpu.memory_space<vmem>>) attributes {dimension_semantics = [#tpu.dimension_semantics<arbitrary>], iteration_bounds = array<i64: 1>, scalar_prefetch = 0 : i64, scratch_operands = 0 : i64, tpu.core_type = #tpu.core_type<tc>, window_params = [{pipeline_mode = #tpu.pipeline_mode<synchronous>, transform_indices = @transform_0, window_bounds = array<i64: 2, 8, 4, 8, 32>}, {pipeline_mode = #tpu.pipeline_mode<synchronous>, transform_indices = @transform_1, window_bounds = array<i64: 4, 16, 8, 1>}, {pipeline_mode = #tpu.pipeline_mode<synchronous>, transform_indices = @transform_2, window_bounds = array<i64: 32, 32>}, {pipeline_mode = #tpu.pipeline_mode<synchronous>, transform_indices = @transform_3, window_bounds = array<i64: 1, 32>}, {pipeline_mode = #tpu.pipeline_mode<synchronous>, transform_indices = @transform_4, window_bounds = array<i64: 32, 32>}, {pipeline_mode = #tpu.pipeline_mode<synchronous>, transform_indices = @transform_5, window_bounds = array<i64: 1, 32>}, {pipeline_mode = #tpu.pipeline_mode<synchronous>, transform_indices = @transform_6, window_bounds = array<i64: 2, 32, 96>}, {pipeline_mode = #tpu.pipeline_mode<synchronous>, transform_indices = @transform_7, window_bounds = array<i64: 2, 32, 96>}, {pipeline_mode = #tpu.pipeline_mode<synchronous>, transform_indices = @transform_8, window_bounds = array<i64: 2, 1, 96>}, {pipeline_mode = #tpu.pipeline_mode<synchronous>, transform_indices = @transform_9, window_bounds = array<i64: 2, 1, 96>}, {pipeline_mode = #tpu.pipeline_mode<synchronous>, transform_indices = @transform_10, window_bounds = array<i64: 2, 32, 96>}, {pipeline_mode = #tpu.pipeline_mode<synchronous>, transform_indices = @transform_11, window_bounds = array<i64: 32, 96>}, {pipeline_mode = #tpu.pipeline_mode<synchronous>, transform_indices = @transform_12, window_bounds = array<i64: 1, 96>}, {pipeline_mode = #tpu.pipeline_mode<synchronous>, transform_indices = @transform_13, window_bounds = array<i64: 1, 96>}, {pipeline_mode = #tpu.pipeline_mode<synchronous>, transform_indices = @transform_14, window_bounds = array<i64: 2, 4, 8, 32>}, {pipeline_mode = #tpu.pipeline_mode<synchronous>, transform_indices = @transform_15, window_bounds = array<i64: 4, 8, 32>}]} {
    %c0 = arith.constant 0 : index
    %c0_0 = arith.constant 0 : index
    %0 = vector.load %arg3[%c0, %c0_0] : memref<32x32xbf16, #tpu.memory_space<vmem>>, vector<32x32xbf16>
    %c0_1 = arith.constant 0 : index
    %c0_2 = arith.constant 0 : index
    %1 = vector.load %arg4[%c0_1, %c0_2] : memref<1x32xf32, #tpu.memory_space<vmem>>, vector<1x32xf32>
    %c0_3 = arith.constant 0 : index
    %c0_4 = arith.constant 0 : index
    %2 = vector.load %arg5[%c0_3, %c0_4] : memref<32x32xbf16, #tpu.memory_space<vmem>>, vector<32x32xbf16>
    %c0_5 = arith.constant 0 : index
    %c0_6 = arith.constant 0 : index
    %3 = vector.load %arg6[%c0_5, %c0_6] : memref<1x32xf32, #tpu.memory_space<vmem>>, vector<1x32xf32>
    %c0_7 = arith.constant 0 : index
    %c0_8 = arith.constant 0 : index
    %c0_9 = arith.constant 0 : index
    %4 = vector.load %arg7[%c0_7, %c0_8, %c0_9] : memref<2x32x96xbf16, #tpu.memory_space<vmem>>, vector<2x32x96xbf16>
    %c0_10 = arith.constant 0 : index
    %c0_11 = arith.constant 0 : index
    %c0_12 = arith.constant 0 : index
    %5 = vector.load %arg8[%c0_10, %c0_11, %c0_12] : memref<2x32x96xbf16, #tpu.memory_space<vmem>>, vector<2x32x96xbf16>
    %c0_13 = arith.constant 0 : index
    %c0_14 = arith.constant 0 : index
    %c0_15 = arith.constant 0 : index
    %6 = vector.load %arg9[%c0_13, %c0_14, %c0_15] : memref<2x1x96xf32, #tpu.memory_space<vmem>>, vector<2x1x96xf32>
    %c0_16 = arith.constant 0 : index
    %c0_17 = arith.constant 0 : index
    %c0_18 = arith.constant 0 : index
    %7 = vector.load %arg10[%c0_16, %c0_17, %c0_18] : memref<2x1x96xf32, #tpu.memory_space<vmem>>, vector<2x1x96xf32>
    %c0_19 = arith.constant 0 : index
    %c0_20 = arith.constant 0 : index
    %c0_21 = arith.constant 0 : index
    %8 = vector.load %arg11[%c0_19, %c0_20, %c0_21] : memref<2x32x96xbf16, #tpu.memory_space<vmem>>, vector<2x32x96xbf16>
    %c0_22 = arith.constant 0 : index
    %c0_23 = arith.constant 0 : index
    %9 = vector.load %arg12[%c0_22, %c0_23] : memref<32x96xbf16, #tpu.memory_space<vmem>>, vector<32x96xbf16>
    %c0_24 = arith.constant 0 : index
    %c0_25 = arith.constant 0 : index
    %10 = vector.load %arg13[%c0_24, %c0_25] : memref<1x96xf32, #tpu.memory_space<vmem>>, vector<1x96xf32>
    %c0_26 = arith.constant 0 : index
    %c0_27 = arith.constant 0 : index
    %11 = vector.load %arg14[%c0_26, %c0_27] : memref<1x96xf32, #tpu.memory_space<vmem>>, vector<1x96xf32>
    %cst = arith.constant 0.000000e+00 : f32
    %12 = vector.broadcast %cst : f32 to vector<2x8x32xf32>
    %cst_28 = arith.constant 0.000000e+00 : f32
    %13 = vector.broadcast %cst_28 : f32 to vector<8x32xf32>
    %c0_i32 = arith.constant 0 : i32
    %c0_29 = arith.constant 0 : index
    %c0_30 = arith.constant 0 : index
    %14 = arith.index_cast %c0_i32 : i32 to index
    %c0_31 = arith.constant 0 : index
    %c0_32 = arith.constant 0 : index
    %15 = vector.load %arg1[%c0_29, %c0_30, %14, %c0_31, %c0_32] : memref<2x8x4x8x32xbf16, #tpu.memory_space<vmem>>, vector<2x8x1x8x32xbf16>
    %16 = vector.shape_cast %15 : vector<2x8x1x8x32xbf16> to vector<128x32xbf16>
    %17 = vector.shape_cast %15 : vector<2x8x1x8x32xbf16> to vector<16x8x32xbf16>
    %18 = arith.index_cast %c0_i32 : i32 to index
    %c0_33 = arith.constant 0 : index
    %c0_34 = arith.constant 0 : index
    %c0_35 = arith.constant 0 : index
    %19 = vector.load %arg2[%18, %c0_33, %c0_34, %c0_35] : memref<4x16x8x1xf32, #tpu.memory_space<vmem>>, vector<1x16x8x1xf32>
    %20 = vector.shape_cast %19 : vector<1x16x8x1xf32> to vector<16x8x1xf32>
    %21 = vector.shape_cast %12 : vector<2x8x32xf32> to vector<16x32xf32>
    %22 = arith.truncf %21 : vector<16x32xf32> to vector<16x32xbf16>
    %cst_36 = arith.constant dense<0.000000e+00> : vector<128x32xf32>
    %23 = tpu.matmul %16, %0, %cst_36 {dimension_numbers = #tpu.dot_dimension_numbers<[1], [0], [0], [1], [0, 0, 1, 1], [], []>} : vector<128x32xbf16>, vector<32x32xbf16>, vector<128x32xf32> -> vector<128x32xf32>
    %24 = vector.shape_cast %23 : vector<128x32xf32> to vector<16x8x32xf32>
    %25 = vector.shape_cast %1 : vector<1x32xf32> to vector<1x1x32xf32>
    %26 = vector.broadcast %25 : vector<1x1x32xf32> to vector<16x8x32xf32>
    %27 = arith.addf %24, %26 : vector<16x8x32xf32>
    %cst_37 = arith.constant dense<0.000000e+00> : vector<16x32xf32>
    %28 = tpu.matmul %22, %2, %cst_37 {dimension_numbers = #tpu.dot_dimension_numbers<[1], [0], [0], [1], [0, 0, 1, 1], [], []>} : vector<16x32xbf16>, vector<32x32xbf16>, vector<16x32xf32> -> vector<16x32xf32>
    %29 = vector.shape_cast %28 : vector<16x32xf32> to vector<16x1x32xf32>
    %30 = vector.broadcast %29 : vector<16x1x32xf32> to vector<16x8x32xf32>
    %31 = arith.addf %27, %30 : vector<16x8x32xf32>
    %32 = math.tanh %31 : vector<16x8x32xf32>
    %33 = vector.shape_cast %3 : vector<1x32xf32> to vector<1x1x32xf32>
    %34 = vector.broadcast %33 : vector<1x1x32xf32> to vector<16x8x32xf32>
    %35 = arith.mulf %32, %34 : vector<16x8x32xf32>
    %cst_38 = arith.constant dense<0.000000e+00> : vector<16x8xf32>
    %36 = vector.multi_reduction <add>, %35, %cst_38 [2] : vector<16x8x32xf32> to vector<16x8xf32>
    %37 = vector.shape_cast %36 : vector<16x8xf32> to vector<16x8x1xf32>
    %cst_39 = arith.constant dense<0xFF800000> : vector<16x1xf32>
    %38 = vector.multi_reduction <maximumf>, %37, %cst_39 [1] : vector<16x8x1xf32> to vector<16x1xf32>
    %39 = vector.shape_cast %38 : vector<16x1xf32> to vector<16x1x1xf32>
    %40 = vector.broadcast %39 : vector<16x1x1xf32> to vector<16x8x1xf32>
    %41 = arith.subf %37, %40 : vector<16x8x1xf32>
    %42 = math.exp %41 : vector<16x8x1xf32>
    %43 = arith.mulf %42, %20 : vector<16x8x1xf32>
    %cst_40 = arith.constant dense<0.000000e+00> : vector<16x1xf32>
    %44 = vector.multi_reduction <add>, %43, %cst_40 [1] : vector<16x8x1xf32> to vector<16x1xf32>
    %45 = vector.shape_cast %44 : vector<16x1xf32> to vector<16x1x1xf32>
    %cst_41 = arith.constant 0.000000e+00 : f32
    %46 = vector.broadcast %cst_41 : f32 to vector<16x1x1xf32>
    %47 = arith.cmpf oeq, %45, %46 : vector<16x1x1xf32>
    %48 = arith.extui %47 : vector<16x1x1xi1> to vector<16x1x1xi32>
    %49 = arith.sitofp %48 : vector<16x1x1xi32> to vector<16x1x1xf32>
    %50 = arith.addf %45, %49 : vector<16x1x1xf32>
    %51 = tpu.reciprocal %50 {approx = true} : vector<16x1x1xf32> -> vector<16x1x1xf32>
    %52 = vector.broadcast %51 : vector<16x1x1xf32> to vector<16x8x1xf32>
    %53 = arith.mulf %43, %52 : vector<16x8x1xf32>
    %54 = arith.extf %17 : vector<16x8x32xbf16> to vector<16x8x32xf32>
    %55 = vector.broadcast %53 : vector<16x8x1xf32> to vector<16x8x32xf32>
    %56 = arith.mulf %54, %55 : vector<16x8x32xf32>
    %cst_42 = arith.constant dense<0.000000e+00> : vector<16x32xf32>
    %57 = vector.multi_reduction <add>, %56, %cst_42 [1] : vector<16x8x32xf32> to vector<16x32xf32>
    %cst_43 = arith.constant dense<0.000000e+00> : vector<16x1xf32>
    %58 = vector.multi_reduction <add>, %20, %cst_43 [1] : vector<16x8x1xf32> to vector<16x1xf32>
    %cst_44 = arith.constant 0.000000e+00 : f32
    %59 = vector.broadcast %cst_44 : f32 to vector<16x1xf32>
    %60 = arith.cmpf ogt, %58, %59 : vector<16x1xf32>
    %61 = arith.extui %60 : vector<16x1xi1> to vector<16x1xi32>
    %62 = arith.sitofp %61 : vector<16x1xi32> to vector<16x1xf32>
    %63 = vector.shape_cast %62 : vector<16x1xf32> to vector<2x8x1xf32>
    %64 = vector.shape_cast %57 : vector<16x32xf32> to vector<2x8x32xf32>
    %65 = arith.truncf %64 : vector<2x8x32xf32> to vector<2x8x32xbf16>
    %66 = arith.truncf %12 : vector<2x8x32xf32> to vector<2x8x32xbf16>
    "tpu.trace_start"() <{level = 10 : i32, message = "tbi,tij->tbj"}> : () -> ()
    %cst_45 = arith.constant dense<0.000000e+00> : vector<2x8x96xf32>
    %67 = tpu.matmul %65, %4, %cst_45 {dimension_numbers = #tpu.dot_dimension_numbers<[2], [1], [1], [2], [0, 0, 0, 1, 1, 2], [0], [0]>} : vector<2x8x32xbf16>, vector<2x32x96xbf16>, vector<2x8x96xf32> -> vector<2x8x96xf32>
    "tpu.trace_stop"() : () -> ()
    %68 = vector.broadcast %6 : vector<2x1x96xf32> to vector<2x8x96xf32>
    %69 = arith.addf %67, %68 : vector<2x8x96xf32>
    "tpu.trace_start"() <{level = 10 : i32, message = "tbr,trj->tbj"}> : () -> ()
    %cst_46 = arith.constant dense<0.000000e+00> : vector<2x8x96xf32>
    %70 = tpu.matmul %66, %5, %cst_46 {dimension_numbers = #tpu.dot_dimension_numbers<[2], [1], [1], [2], [0, 0, 0, 1, 1, 2], [0], [0]>} : vector<2x8x32xbf16>, vector<2x32x96xbf16>, vector<2x8x96xf32> -> vector<2x8x96xf32>
    "tpu.trace_stop"() : () -> ()
    %71 = vector.broadcast %7 : vector<2x1x96xf32> to vector<2x8x96xf32>
    %72 = arith.addf %70, %71 : vector<2x8x96xf32>
    %73 = vector.extract_strided_slice %69 {offsets = [0, 0, 0], sizes = [2, 8, 32], strides = [1, 1, 1]} : vector<2x8x96xf32> to vector<2x8x32xf32>
    %74 = vector.extract_strided_slice %72 {offsets = [0, 0, 0], sizes = [2, 8, 32], strides = [1, 1, 1]} : vector<2x8x96xf32> to vector<2x8x32xf32>
    %75 = arith.addf %73, %74 : vector<2x8x32xf32>
    %76 = arith.negf %75 : vector<2x8x32xf32>
    %77 = math.exp %76 : vector<2x8x32xf32>
    %cst_47 = arith.constant 1.000000e+00 : f32
    %78 = vector.broadcast %cst_47 : f32 to vector<2x8x32xf32>
    %79 = arith.addf %78, %77 : vector<2x8x32xf32>
    %80 = arith.divf %78, %79 : vector<2x8x32xf32>
    %81 = vector.extract_strided_slice %69 {offsets = [0, 0, 32], sizes = [2, 8, 32], strides = [1, 1, 1]} : vector<2x8x96xf32> to vector<2x8x32xf32>
    %82 = vector.extract_strided_slice %72 {offsets = [0, 0, 32], sizes = [2, 8, 32], strides = [1, 1, 1]} : vector<2x8x96xf32> to vector<2x8x32xf32>
    %83 = arith.addf %81, %82 : vector<2x8x32xf32>
    %84 = arith.negf %83 : vector<2x8x32xf32>
    %85 = math.exp %84 : vector<2x8x32xf32>
    %cst_48 = arith.constant 1.000000e+00 : f32
    %86 = vector.broadcast %cst_48 : f32 to vector<2x8x32xf32>
    %87 = arith.addf %86, %85 : vector<2x8x32xf32>
    %88 = arith.divf %86, %87 : vector<2x8x32xf32>
    %89 = vector.extract_strided_slice %69 {offsets = [0, 0, 64], sizes = [2, 8, 32], strides = [1, 1, 1]} : vector<2x8x96xf32> to vector<2x8x32xf32>
    %90 = vector.extract_strided_slice %72 {offsets = [0, 0, 64], sizes = [2, 8, 32], strides = [1, 1, 1]} : vector<2x8x96xf32> to vector<2x8x32xf32>
    %91 = arith.mulf %80, %90 : vector<2x8x32xf32>
    %92 = arith.addf %89, %91 : vector<2x8x32xf32>
    %93 = math.tanh %92 : vector<2x8x32xf32>
    %cst_49 = arith.constant 1.000000e+00 : f32
    %94 = vector.broadcast %cst_49 : f32 to vector<2x8x32xf32>
    %95 = arith.subf %94, %88 : vector<2x8x32xf32>
    %96 = arith.mulf %95, %93 : vector<2x8x32xf32>
    %97 = arith.mulf %88, %12 : vector<2x8x32xf32>
    %98 = arith.addf %96, %97 : vector<2x8x32xf32>
    %99 = vector.broadcast %63 : vector<2x8x1xf32> to vector<2x8x32xf32>
    %100 = arith.mulf %98, %99 : vector<2x8x32xf32>
    %cst_50 = arith.constant 1.000000e+00 : f32
    %101 = vector.broadcast %cst_50 : f32 to vector<2x8x1xf32>
    %102 = arith.subf %101, %63 : vector<2x8x1xf32>
    %103 = vector.broadcast %102 : vector<2x8x1xf32> to vector<2x8x32xf32>
    %104 = arith.mulf %12, %103 : vector<2x8x32xf32>
    %105 = arith.addf %100, %104 : vector<2x8x32xf32>
    %106 = arith.truncf %105 : vector<2x8x32xf32> to vector<2x8x32xbf16>
    "tpu.trace_start"() <{level = 10 : i32, message = "tbr,trj->tbj"}> : () -> ()
    %cst_51 = arith.constant dense<0.000000e+00> : vector<2x8x96xf32>
    %107 = tpu.matmul %106, %8, %cst_51 {dimension_numbers = #tpu.dot_dimension_numbers<[2], [1], [1], [2], [0, 0, 0, 1, 1, 2], [0], [0]>} : vector<2x8x32xbf16>, vector<2x32x96xbf16>, vector<2x8x96xf32> -> vector<2x8x96xf32>
    "tpu.trace_stop"() : () -> ()
    %cst_52 = arith.constant dense<0.000000e+00> : vector<8x96xf32>
    %108 = vector.multi_reduction <add>, %107, %cst_52 [0] : vector<2x8x96xf32> to vector<8x96xf32>
    %109 = vector.broadcast %10 : vector<1x96xf32> to vector<8x96xf32>
    %110 = arith.addf %108, %109 : vector<8x96xf32>
    %111 = arith.truncf %13 : vector<8x32xf32> to vector<8x32xbf16>
    %cst_53 = arith.constant dense<0.000000e+00> : vector<8x96xf32>
    %112 = tpu.matmul %111, %9, %cst_53 {dimension_numbers = #tpu.dot_dimension_numbers<[1], [0], [0], [1], [0, 0, 1, 1], [], []>} : vector<8x32xbf16>, vector<32x96xbf16>, vector<8x96xf32> -> vector<8x96xf32>
    %113 = vector.broadcast %11 : vector<1x96xf32> to vector<8x96xf32>
    %114 = arith.addf %112, %113 : vector<8x96xf32>
    %115 = vector.extract_strided_slice %110 {offsets = [0, 0], sizes = [8, 32], strides = [1, 1]} : vector<8x96xf32> to vector<8x32xf32>
    %116 = vector.extract_strided_slice %114 {offsets = [0, 0], sizes = [8, 32], strides = [1, 1]} : vector<8x96xf32> to vector<8x32xf32>
    %117 = arith.addf %115, %116 : vector<8x32xf32>
    %118 = arith.negf %117 : vector<8x32xf32>
    %119 = math.exp %118 : vector<8x32xf32>
    %cst_54 = arith.constant 1.000000e+00 : f32
    %120 = vector.broadcast %cst_54 : f32 to vector<8x32xf32>
    %121 = arith.addf %120, %119 : vector<8x32xf32>
    %122 = arith.divf %120, %121 : vector<8x32xf32>
    %123 = vector.extract_strided_slice %110 {offsets = [0, 32], sizes = [8, 32], strides = [1, 1]} : vector<8x96xf32> to vector<8x32xf32>
    %124 = vector.extract_strided_slice %114 {offsets = [0, 32], sizes = [8, 32], strides = [1, 1]} : vector<8x96xf32> to vector<8x32xf32>
    %125 = arith.addf %123, %124 : vector<8x32xf32>
    %126 = arith.negf %125 : vector<8x32xf32>
    %127 = math.exp %126 : vector<8x32xf32>
    %cst_55 = arith.constant 1.000000e+00 : f32
    %128 = vector.broadcast %cst_55 : f32 to vector<8x32xf32>
    %129 = arith.addf %128, %127 : vector<8x32xf32>
    %130 = arith.divf %128, %129 : vector<8x32xf32>
    %131 = vector.extract_strided_slice %110 {offsets = [0, 64], sizes = [8, 32], strides = [1, 1]} : vector<8x96xf32> to vector<8x32xf32>
    %132 = vector.extract_strided_slice %114 {offsets = [0, 64], sizes = [8, 32], strides = [1, 1]} : vector<8x96xf32> to vector<8x32xf32>
    %133 = arith.mulf %122, %132 : vector<8x32xf32>
    %134 = arith.addf %131, %133 : vector<8x32xf32>
    %135 = math.tanh %134 : vector<8x32xf32>
    %cst_56 = arith.constant 1.000000e+00 : f32
    %136 = vector.broadcast %cst_56 : f32 to vector<8x32xf32>
    %137 = arith.subf %136, %130 : vector<8x32xf32>
    %138 = arith.mulf %137, %135 : vector<8x32xf32>
    %139 = arith.mulf %130, %13 : vector<8x32xf32>
    %140 = arith.addf %138, %139 : vector<8x32xf32>
    %141 = vector.shape_cast %105 : vector<2x8x32xf32> to vector<2x1x8x32xf32>
    %142 = arith.truncf %141 : vector<2x1x8x32xf32> to vector<2x1x8x32xbf16>
    %c0_57 = arith.constant 0 : index
    %143 = arith.index_cast %c0_i32 : i32 to index
    %c0_58 = arith.constant 0 : index
    %c0_59 = arith.constant 0 : index
    %144 = vector.load %arg15[%c0_57, %143, %c0_58, %c0_59] : memref<2x4x8x32xbf16, #tpu.memory_space<vmem>>, vector<2x1x8x32xbf16>
    tpu.vector_store %arg15[%c0_57, %143, %c0_58, %c0_59], %142 {strides = array<i32>} : memref<2x4x8x32xbf16, #tpu.memory_space<vmem>>, vector<2x1x8x32xbf16>,
    %145 = vector.shape_cast %140 : vector<8x32xf32> to vector<1x8x32xf32>
    %146 = arith.truncf %145 : vector<1x8x32xf32> to vector<1x8x32xbf16>
    %147 = arith.index_cast %c0_i32 : i32 to index
    %c0_60 = arith.constant 0 : index
    %c0_61 = arith.constant 0 : index
    %148 = vector.load %arg16[%147, %c0_60, %c0_61] : memref<4x8x32xbf16, #tpu.memory_space<vmem>>, vector<1x8x32xbf16>
    tpu.vector_store %arg16[%147, %c0_60, %c0_61], %146 {strides = array<i32>} : memref<4x8x32xbf16, #tpu.memory_space<vmem>>, vector<1x8x32xbf16>,
    %c1_i32 = arith.constant 1 : i32
    %c0_62 = arith.constant 0 : index
    %c0_63 = arith.constant 0 : index
    %149 = arith.index_cast %c1_i32 : i32 to index
    %c0_64 = arith.constant 0 : index
    %c0_65 = arith.constant 0 : index
    %150 = vector.load %arg1[%c0_62, %c0_63, %149, %c0_64, %c0_65] : memref<2x8x4x8x32xbf16, #tpu.memory_space<vmem>>, vector<2x8x1x8x32xbf16>
    %151 = vector.shape_cast %150 : vector<2x8x1x8x32xbf16> to vector<128x32xbf16>
    %152 = vector.shape_cast %150 : vector<2x8x1x8x32xbf16> to vector<16x8x32xbf16>
    %153 = arith.index_cast %c1_i32 : i32 to index
    %c0_66 = arith.constant 0 : index
    %c0_67 = arith.constant 0 : index
    %c0_68 = arith.constant 0 : index
    %154 = vector.load %arg2[%153, %c0_66, %c0_67, %c0_68] : memref<4x16x8x1xf32, #tpu.memory_space<vmem>>, vector<1x16x8x1xf32>
    %155 = vector.shape_cast %154 : vector<1x16x8x1xf32> to vector<16x8x1xf32>
    %156 = vector.shape_cast %105 : vector<2x8x32xf32> to vector<16x32xf32>
    %157 = arith.truncf %156 : vector<16x32xf32> to vector<16x32xbf16>
    %cst_69 = arith.constant dense<0.000000e+00> : vector<128x32xf32>
    %158 = tpu.matmul %151, %0, %cst_69 {dimension_numbers = #tpu.dot_dimension_numbers<[1], [0], [0], [1], [0, 0, 1, 1], [], []>} : vector<128x32xbf16>, vector<32x32xbf16>, vector<128x32xf32> -> vector<128x32xf32>
    %159 = vector.shape_cast %158 : vector<128x32xf32> to vector<16x8x32xf32>
    %160 = vector.shape_cast %1 : vector<1x32xf32> to vector<1x1x32xf32>
    %161 = vector.broadcast %160 : vector<1x1x32xf32> to vector<16x8x32xf32>
    %162 = arith.addf %159, %161 : vector<16x8x32xf32>
    %cst_70 = arith.constant dense<0.000000e+00> : vector<16x32xf32>
    %163 = tpu.matmul %157, %2, %cst_70 {dimension_numbers = #tpu.dot_dimension_numbers<[1], [0], [0], [1], [0, 0, 1, 1], [], []>} : vector<16x32xbf16>, vector<32x32xbf16>, vector<16x32xf32> -> vector<16x32xf32>
    %164 = vector.shape_cast %163 : vector<16x32xf32> to vector<16x1x32xf32>
    %165 = vector.broadcast %164 : vector<16x1x32xf32> to vector<16x8x32xf32>
    %166 = arith.addf %162, %165 : vector<16x8x32xf32>
    %167 = math.tanh %166 : vector<16x8x32xf32>
    %168 = vector.shape_cast %3 : vector<1x32xf32> to vector<1x1x32xf32>
    %169 = vector.broadcast %168 : vector<1x1x32xf32> to vector<16x8x32xf32>
    %170 = arith.mulf %167, %169 : vector<16x8x32xf32>
    %cst_71 = arith.constant dense<0.000000e+00> : vector<16x8xf32>
    %171 = vector.multi_reduction <add>, %170, %cst_71 [2] : vector<16x8x32xf32> to vector<16x8xf32>
    %172 = vector.shape_cast %171 : vector<16x8xf32> to vector<16x8x1xf32>
    %cst_72 = arith.constant dense<0xFF800000> : vector<16x1xf32>
    %173 = vector.multi_reduction <maximumf>, %172, %cst_72 [1] : vector<16x8x1xf32> to vector<16x1xf32>
    %174 = vector.shape_cast %173 : vector<16x1xf32> to vector<16x1x1xf32>
    %175 = vector.broadcast %174 : vector<16x1x1xf32> to vector<16x8x1xf32>
    %176 = arith.subf %172, %175 : vector<16x8x1xf32>
    %177 = math.exp %176 : vector<16x8x1xf32>
    %178 = arith.mulf %177, %155 : vector<16x8x1xf32>
    %cst_73 = arith.constant dense<0.000000e+00> : vector<16x1xf32>
    %179 = vector.multi_reduction <add>, %178, %cst_73 [1] : vector<16x8x1xf32> to vector<16x1xf32>
    %180 = vector.shape_cast %179 : vector<16x1xf32> to vector<16x1x1xf32>
    %cst_74 = arith.constant 0.000000e+00 : f32
    %181 = vector.broadcast %cst_74 : f32 to vector<16x1x1xf32>
    %182 = arith.cmpf oeq, %180, %181 : vector<16x1x1xf32>
    %183 = arith.extui %182 : vector<16x1x1xi1> to vector<16x1x1xi32>
    %184 = arith.sitofp %183 : vector<16x1x1xi32> to vector<16x1x1xf32>
    %185 = arith.addf %180, %184 : vector<16x1x1xf32>
    %186 = tpu.reciprocal %185 {approx = true} : vector<16x1x1xf32> -> vector<16x1x1xf32>
    %187 = vector.broadcast %186 : vector<16x1x1xf32> to vector<16x8x1xf32>
    %188 = arith.mulf %178, %187 : vector<16x8x1xf32>
    %189 = arith.extf %152 : vector<16x8x32xbf16> to vector<16x8x32xf32>
    %190 = vector.broadcast %188 : vector<16x8x1xf32> to vector<16x8x32xf32>
    %191 = arith.mulf %189, %190 : vector<16x8x32xf32>
    %cst_75 = arith.constant dense<0.000000e+00> : vector<16x32xf32>
    %192 = vector.multi_reduction <add>, %191, %cst_75 [1] : vector<16x8x32xf32> to vector<16x32xf32>
    %cst_76 = arith.constant dense<0.000000e+00> : vector<16x1xf32>
    %193 = vector.multi_reduction <add>, %155, %cst_76 [1] : vector<16x8x1xf32> to vector<16x1xf32>
    %cst_77 = arith.constant 0.000000e+00 : f32
    %194 = vector.broadcast %cst_77 : f32 to vector<16x1xf32>
    %195 = arith.cmpf ogt, %193, %194 : vector<16x1xf32>
    %196 = arith.extui %195 : vector<16x1xi1> to vector<16x1xi32>
    %197 = arith.sitofp %196 : vector<16x1xi32> to vector<16x1xf32>
    %198 = vector.shape_cast %197 : vector<16x1xf32> to vector<2x8x1xf32>
    %199 = vector.shape_cast %192 : vector<16x32xf32> to vector<2x8x32xf32>
    %200 = arith.truncf %199 : vector<2x8x32xf32> to vector<2x8x32xbf16>
    %201 = arith.truncf %105 : vector<2x8x32xf32> to vector<2x8x32xbf16>
    "tpu.trace_start"() <{level = 10 : i32, message = "tbi,tij->tbj"}> : () -> ()
    %cst_78 = arith.constant dense<0.000000e+00> : vector<2x8x96xf32>
    %202 = tpu.matmul %200, %4, %cst_78 {dimension_numbers = #tpu.dot_dimension_numbers<[2], [1], [1], [2], [0, 0, 0, 1, 1, 2], [0], [0]>} : vector<2x8x32xbf16>, vector<2x32x96xbf16>, vector<2x8x96xf32> -> vector<2x8x96xf32>
    "tpu.trace_stop"() : () -> ()
    %203 = vector.broadcast %6 : vector<2x1x96xf32> to vector<2x8x96xf32>
    %204 = arith.addf %202, %203 : vector<2x8x96xf32>
    "tpu.trace_start"() <{level = 10 : i32, message = "tbr,trj->tbj"}> : () -> ()
    %cst_79 = arith.constant dense<0.000000e+00> : vector<2x8x96xf32>
    %205 = tpu.matmul %201, %5, %cst_79 {dimension_numbers = #tpu.dot_dimension_numbers<[2], [1], [1], [2], [0, 0, 0, 1, 1, 2], [0], [0]>} : vector<2x8x32xbf16>, vector<2x32x96xbf16>, vector<2x8x96xf32> -> vector<2x8x96xf32>
    "tpu.trace_stop"() : () -> ()
    %206 = vector.broadcast %7 : vector<2x1x96xf32> to vector<2x8x96xf32>
    %207 = arith.addf %205, %206 : vector<2x8x96xf32>
    %208 = vector.extract_strided_slice %204 {offsets = [0, 0, 0], sizes = [2, 8, 32], strides = [1, 1, 1]} : vector<2x8x96xf32> to vector<2x8x32xf32>
    %209 = vector.extract_strided_slice %207 {offsets = [0, 0, 0], sizes = [2, 8, 32], strides = [1, 1, 1]} : vector<2x8x96xf32> to vector<2x8x32xf32>
    %210 = arith.addf %208, %209 : vector<2x8x32xf32>
    %211 = arith.negf %210 : vector<2x8x32xf32>
    %212 = math.exp %211 : vector<2x8x32xf32>
    %cst_80 = arith.constant 1.000000e+00 : f32
    %213 = vector.broadcast %cst_80 : f32 to vector<2x8x32xf32>
    %214 = arith.addf %213, %212 : vector<2x8x32xf32>
    %215 = arith.divf %213, %214 : vector<2x8x32xf32>
    %216 = vector.extract_strided_slice %204 {offsets = [0, 0, 32], sizes = [2, 8, 32], strides = [1, 1, 1]} : vector<2x8x96xf32> to vector<2x8x32xf32>
    %217 = vector.extract_strided_slice %207 {offsets = [0, 0, 32], sizes = [2, 8, 32], strides = [1, 1, 1]} : vector<2x8x96xf32> to vector<2x8x32xf32>
    %218 = arith.addf %216, %217 : vector<2x8x32xf32>
    %219 = arith.negf %218 : vector<2x8x32xf32>
    %220 = math.exp %219 : vector<2x8x32xf32>
    %cst_81 = arith.constant 1.000000e+00 : f32
    %221 = vector.broadcast %cst_81 : f32 to vector<2x8x32xf32>
    %222 = arith.addf %221, %220 : vector<2x8x32xf32>
    %223 = arith.divf %221, %222 : vector<2x8x32xf32>
    %224 = vector.extract_strided_slice %204 {offsets = [0, 0, 64], sizes = [2, 8, 32], strides = [1, 1, 1]} : vector<2x8x96xf32> to vector<2x8x32xf32>
    %225 = vector.extract_strided_slice %207 {offsets = [0, 0, 64], sizes = [2, 8, 32], strides = [1, 1, 1]} : vector<2x8x96xf32> to vector<2x8x32xf32>
    %226 = arith.mulf %215, %225 : vector<2x8x32xf32>
    %227 = arith.addf %224, %226 : vector<2x8x32xf32>
    %228 = math.tanh %227 : vector<2x8x32xf32>
    %cst_82 = arith.constant 1.000000e+00 : f32
    %229 = vector.broadcast %cst_82 : f32 to vector<2x8x32xf32>
    %230 = arith.subf %229, %223 : vector<2x8x32xf32>
    %231 = arith.mulf %230, %228 : vector<2x8x32xf32>
    %232 = arith.mulf %223, %105 : vector<2x8x32xf32>
    %233 = arith.addf %231, %232 : vector<2x8x32xf32>
    %234 = vector.broadcast %198 : vector<2x8x1xf32> to vector<2x8x32xf32>
    %235 = arith.mulf %233, %234 : vector<2x8x32xf32>
    %cst_83 = arith.constant 1.000000e+00 : f32
    %236 = vector.broadcast %cst_83 : f32 to vector<2x8x1xf32>
    %237 = arith.subf %236, %198 : vector<2x8x1xf32>
    %238 = vector.broadcast %237 : vector<2x8x1xf32> to vector<2x8x32xf32>
    %239 = arith.mulf %105, %238 : vector<2x8x32xf32>
    %240 = arith.addf %235, %239 : vector<2x8x32xf32>
    %241 = arith.truncf %240 : vector<2x8x32xf32> to vector<2x8x32xbf16>
    "tpu.trace_start"() <{level = 10 : i32, message = "tbr,trj->tbj"}> : () -> ()
    %cst_84 = arith.constant dense<0.000000e+00> : vector<2x8x96xf32>
    %242 = tpu.matmul %241, %8, %cst_84 {dimension_numbers = #tpu.dot_dimension_numbers<[2], [1], [1], [2], [0, 0, 0, 1, 1, 2], [0], [0]>} : vector<2x8x32xbf16>, vector<2x32x96xbf16>, vector<2x8x96xf32> -> vector<2x8x96xf32>
    "tpu.trace_stop"() : () -> ()
    %cst_85 = arith.constant dense<0.000000e+00> : vector<8x96xf32>
    %243 = vector.multi_reduction <add>, %242, %cst_85 [0] : vector<2x8x96xf32> to vector<8x96xf32>
    %244 = vector.broadcast %10 : vector<1x96xf32> to vector<8x96xf32>
    %245 = arith.addf %243, %244 : vector<8x96xf32>
    %246 = arith.truncf %140 : vector<8x32xf32> to vector<8x32xbf16>
    %cst_86 = arith.constant dense<0.000000e+00> : vector<8x96xf32>
    %247 = tpu.matmul %246, %9, %cst_86 {dimension_numbers = #tpu.dot_dimension_numbers<[1], [0], [0], [1], [0, 0, 1, 1], [], []>} : vector<8x32xbf16>, vector<32x96xbf16>, vector<8x96xf32> -> vector<8x96xf32>
    %248 = vector.broadcast %11 : vector<1x96xf32> to vector<8x96xf32>
    %249 = arith.addf %247, %248 : vector<8x96xf32>
    %250 = vector.extract_strided_slice %245 {offsets = [0, 0], sizes = [8, 32], strides = [1, 1]} : vector<8x96xf32> to vector<8x32xf32>
    %251 = vector.extract_strided_slice %249 {offsets = [0, 0], sizes = [8, 32], strides = [1, 1]} : vector<8x96xf32> to vector<8x32xf32>
    %252 = arith.addf %250, %251 : vector<8x32xf32>
    %253 = arith.negf %252 : vector<8x32xf32>
    %254 = math.exp %253 : vector<8x32xf32>
    %cst_87 = arith.constant 1.000000e+00 : f32
    %255 = vector.broadcast %cst_87 : f32 to vector<8x32xf32>
    %256 = arith.addf %255, %254 : vector<8x32xf32>
    %257 = arith.divf %255, %256 : vector<8x32xf32>
    %258 = vector.extract_strided_slice %245 {offsets = [0, 32], sizes = [8, 32], strides = [1, 1]} : vector<8x96xf32> to vector<8x32xf32>
    %259 = vector.extract_strided_slice %249 {offsets = [0, 32], sizes = [8, 32], strides = [1, 1]} : vector<8x96xf32> to vector<8x32xf32>
    %260 = arith.addf %258, %259 : vector<8x32xf32>
    %261 = arith.negf %260 : vector<8x32xf32>
    %262 = math.exp %261 : vector<8x32xf32>
    %cst_88 = arith.constant 1.000000e+00 : f32
    %263 = vector.broadcast %cst_88 : f32 to vector<8x32xf32>
    %264 = arith.addf %263, %262 : vector<8x32xf32>
    %265 = arith.divf %263, %264 : vector<8x32xf32>
    %266 = vector.extract_strided_slice %245 {offsets = [0, 64], sizes = [8, 32], strides = [1, 1]} : vector<8x96xf32> to vector<8x32xf32>
    %267 = vector.extract_strided_slice %249 {offsets = [0, 64], sizes = [8, 32], strides = [1, 1]} : vector<8x96xf32> to vector<8x32xf32>
    %268 = arith.mulf %257, %267 : vector<8x32xf32>
    %269 = arith.addf %266, %268 : vector<8x32xf32>
    %270 = math.tanh %269 : vector<8x32xf32>
    %cst_89 = arith.constant 1.000000e+00 : f32
    %271 = vector.broadcast %cst_89 : f32 to vector<8x32xf32>
    %272 = arith.subf %271, %265 : vector<8x32xf32>
    %273 = arith.mulf %272, %270 : vector<8x32xf32>
    %274 = arith.mulf %265, %140 : vector<8x32xf32>
    %275 = arith.addf %273, %274 : vector<8x32xf32>
    %276 = vector.shape_cast %240 : vector<2x8x32xf32> to vector<2x1x8x32xf32>
    %277 = arith.truncf %276 : vector<2x1x8x32xf32> to vector<2x1x8x32xbf16>
    %c0_90 = arith.constant 0 : index
    %278 = arith.index_cast %c1_i32 : i32 to index
    %c0_91 = arith.constant 0 : index
    %c0_92 = arith.constant 0 : index
    %279 = vector.load %arg15[%c0_90, %278, %c0_91, %c0_92] : memref<2x4x8x32xbf16, #tpu.memory_space<vmem>>, vector<2x1x8x32xbf16>
    tpu.vector_store %arg15[%c0_90, %278, %c0_91, %c0_92], %277 {strides = array<i32>} : memref<2x4x8x32xbf16, #tpu.memory_space<vmem>>, vector<2x1x8x32xbf16>,
    %280 = vector.shape_cast %275 : vector<8x32xf32> to vector<1x8x32xf32>
    %281 = arith.truncf %280 : vector<1x8x32xf32> to vector<1x8x32xbf16>
    %282 = arith.index_cast %c1_i32 : i32 to index
    %c0_93 = arith.constant 0 : index
    %c0_94 = arith.constant 0 : index
    %283 = vector.load %arg16[%282, %c0_93, %c0_94] : memref<4x8x32xbf16, #tpu.memory_space<vmem>>, vector<1x8x32xbf16>
    tpu.vector_store %arg16[%282, %c0_93, %c0_94], %281 {strides = array<i32>} : memref<4x8x32xbf16, #tpu.memory_space<vmem>>, vector<1x8x32xbf16>,
    %c2_i32 = arith.constant 2 : i32
    %c0_95 = arith.constant 0 : index
    %c0_96 = arith.constant 0 : index
    %284 = arith.index_cast %c2_i32 : i32 to index
    %c0_97 = arith.constant 0 : index
    %c0_98 = arith.constant 0 : index
    %285 = vector.load %arg1[%c0_95, %c0_96, %284, %c0_97, %c0_98] : memref<2x8x4x8x32xbf16, #tpu.memory_space<vmem>>, vector<2x8x1x8x32xbf16>
    %286 = vector.shape_cast %285 : vector<2x8x1x8x32xbf16> to vector<128x32xbf16>
    %287 = vector.shape_cast %285 : vector<2x8x1x8x32xbf16> to vector<16x8x32xbf16>
    %288 = arith.index_cast %c2_i32 : i32 to index
    %c0_99 = arith.constant 0 : index
    %c0_100 = arith.constant 0 : index
    %c0_101 = arith.constant 0 : index
    %289 = vector.load %arg2[%288, %c0_99, %c0_100, %c0_101] : memref<4x16x8x1xf32, #tpu.memory_space<vmem>>, vector<1x16x8x1xf32>
    %290 = vector.shape_cast %289 : vector<1x16x8x1xf32> to vector<16x8x1xf32>
    %291 = vector.shape_cast %240 : vector<2x8x32xf32> to vector<16x32xf32>
    %292 = arith.truncf %291 : vector<16x32xf32> to vector<16x32xbf16>
    %cst_102 = arith.constant dense<0.000000e+00> : vector<128x32xf32>
    %293 = tpu.matmul %286, %0, %cst_102 {dimension_numbers = #tpu.dot_dimension_numbers<[1], [0], [0], [1], [0, 0, 1, 1], [], []>} : vector<128x32xbf16>, vector<32x32xbf16>, vector<128x32xf32> -> vector<128x32xf32>
    %294 = vector.shape_cast %293 : vector<128x32xf32> to vector<16x8x32xf32>
    %295 = vector.shape_cast %1 : vector<1x32xf32> to vector<1x1x32xf32>
    %296 = vector.broadcast %295 : vector<1x1x32xf32> to vector<16x8x32xf32>
    %297 = arith.addf %294, %296 : vector<16x8x32xf32>
    %cst_103 = arith.constant dense<0.000000e+00> : vector<16x32xf32>
    %298 = tpu.matmul %292, %2, %cst_103 {dimension_numbers = #tpu.dot_dimension_numbers<[1], [0], [0], [1], [0, 0, 1, 1], [], []>} : vector<16x32xbf16>, vector<32x32xbf16>, vector<16x32xf32> -> vector<16x32xf32>
    %299 = vector.shape_cast %298 : vector<16x32xf32> to vector<16x1x32xf32>
    %300 = vector.broadcast %299 : vector<16x1x32xf32> to vector<16x8x32xf32>
    %301 = arith.addf %297, %300 : vector<16x8x32xf32>
    %302 = math.tanh %301 : vector<16x8x32xf32>
    %303 = vector.shape_cast %3 : vector<1x32xf32> to vector<1x1x32xf32>
    %304 = vector.broadcast %303 : vector<1x1x32xf32> to vector<16x8x32xf32>
    %305 = arith.mulf %302, %304 : vector<16x8x32xf32>
    %cst_104 = arith.constant dense<0.000000e+00> : vector<16x8xf32>
    %306 = vector.multi_reduction <add>, %305, %cst_104 [2] : vector<16x8x32xf32> to vector<16x8xf32>
    %307 = vector.shape_cast %306 : vector<16x8xf32> to vector<16x8x1xf32>
    %cst_105 = arith.constant dense<0xFF800000> : vector<16x1xf32>
    %308 = vector.multi_reduction <maximumf>, %307, %cst_105 [1] : vector<16x8x1xf32> to vector<16x1xf32>
    %309 = vector.shape_cast %308 : vector<16x1xf32> to vector<16x1x1xf32>
    %310 = vector.broadcast %309 : vector<16x1x1xf32> to vector<16x8x1xf32>
    %311 = arith.subf %307, %310 : vector<16x8x1xf32>
    %312 = math.exp %311 : vector<16x8x1xf32>
    %313 = arith.mulf %312, %290 : vector<16x8x1xf32>
    %cst_106 = arith.constant dense<0.000000e+00> : vector<16x1xf32>
    %314 = vector.multi_reduction <add>, %313, %cst_106 [1] : vector<16x8x1xf32> to vector<16x1xf32>
    %315 = vector.shape_cast %314 : vector<16x1xf32> to vector<16x1x1xf32>
    %cst_107 = arith.constant 0.000000e+00 : f32
    %316 = vector.broadcast %cst_107 : f32 to vector<16x1x1xf32>
    %317 = arith.cmpf oeq, %315, %316 : vector<16x1x1xf32>
    %318 = arith.extui %317 : vector<16x1x1xi1> to vector<16x1x1xi32>
    %319 = arith.sitofp %318 : vector<16x1x1xi32> to vector<16x1x1xf32>
    %320 = arith.addf %315, %319 : vector<16x1x1xf32>
    %321 = tpu.reciprocal %320 {approx = true} : vector<16x1x1xf32> -> vector<16x1x1xf32>
    %322 = vector.broadcast %321 : vector<16x1x1xf32> to vector<16x8x1xf32>
    %323 = arith.mulf %313, %322 : vector<16x8x1xf32>
    %324 = arith.extf %287 : vector<16x8x32xbf16> to vector<16x8x32xf32>
    %325 = vector.broadcast %323 : vector<16x8x1xf32> to vector<16x8x32xf32>
    %326 = arith.mulf %324, %325 : vector<16x8x32xf32>
    %cst_108 = arith.constant dense<0.000000e+00> : vector<16x32xf32>
    %327 = vector.multi_reduction <add>, %326, %cst_108 [1] : vector<16x8x32xf32> to vector<16x32xf32>
    %cst_109 = arith.constant dense<0.000000e+00> : vector<16x1xf32>
    %328 = vector.multi_reduction <add>, %290, %cst_109 [1] : vector<16x8x1xf32> to vector<16x1xf32>
    %cst_110 = arith.constant 0.000000e+00 : f32
    %329 = vector.broadcast %cst_110 : f32 to vector<16x1xf32>
    %330 = arith.cmpf ogt, %328, %329 : vector<16x1xf32>
    %331 = arith.extui %330 : vector<16x1xi1> to vector<16x1xi32>
    %332 = arith.sitofp %331 : vector<16x1xi32> to vector<16x1xf32>
    %333 = vector.shape_cast %332 : vector<16x1xf32> to vector<2x8x1xf32>
    %334 = vector.shape_cast %327 : vector<16x32xf32> to vector<2x8x32xf32>
    %335 = arith.truncf %334 : vector<2x8x32xf32> to vector<2x8x32xbf16>
    %336 = arith.truncf %240 : vector<2x8x32xf32> to vector<2x8x32xbf16>
    "tpu.trace_start"() <{level = 10 : i32, message = "tbi,tij->tbj"}> : () -> ()
    %cst_111 = arith.constant dense<0.000000e+00> : vector<2x8x96xf32>
    %337 = tpu.matmul %335, %4, %cst_111 {dimension_numbers = #tpu.dot_dimension_numbers<[2], [1], [1], [2], [0, 0, 0, 1, 1, 2], [0], [0]>} : vector<2x8x32xbf16>, vector<2x32x96xbf16>, vector<2x8x96xf32> -> vector<2x8x96xf32>
    "tpu.trace_stop"() : () -> ()
    %338 = vector.broadcast %6 : vector<2x1x96xf32> to vector<2x8x96xf32>
    %339 = arith.addf %337, %338 : vector<2x8x96xf32>
    "tpu.trace_start"() <{level = 10 : i32, message = "tbr,trj->tbj"}> : () -> ()
    %cst_112 = arith.constant dense<0.000000e+00> : vector<2x8x96xf32>
    %340 = tpu.matmul %336, %5, %cst_112 {dimension_numbers = #tpu.dot_dimension_numbers<[2], [1], [1], [2], [0, 0, 0, 1, 1, 2], [0], [0]>} : vector<2x8x32xbf16>, vector<2x32x96xbf16>, vector<2x8x96xf32> -> vector<2x8x96xf32>
    "tpu.trace_stop"() : () -> ()
    %341 = vector.broadcast %7 : vector<2x1x96xf32> to vector<2x8x96xf32>
    %342 = arith.addf %340, %341 : vector<2x8x96xf32>
    %343 = vector.extract_strided_slice %339 {offsets = [0, 0, 0], sizes = [2, 8, 32], strides = [1, 1, 1]} : vector<2x8x96xf32> to vector<2x8x32xf32>
    %344 = vector.extract_strided_slice %342 {offsets = [0, 0, 0], sizes = [2, 8, 32], strides = [1, 1, 1]} : vector<2x8x96xf32> to vector<2x8x32xf32>
    %345 = arith.addf %343, %344 : vector<2x8x32xf32>
    %346 = arith.negf %345 : vector<2x8x32xf32>
    %347 = math.exp %346 : vector<2x8x32xf32>
    %cst_113 = arith.constant 1.000000e+00 : f32
    %348 = vector.broadcast %cst_113 : f32 to vector<2x8x32xf32>
    %349 = arith.addf %348, %347 : vector<2x8x32xf32>
    %350 = arith.divf %348, %349 : vector<2x8x32xf32>
    %351 = vector.extract_strided_slice %339 {offsets = [0, 0, 32], sizes = [2, 8, 32], strides = [1, 1, 1]} : vector<2x8x96xf32> to vector<2x8x32xf32>
    %352 = vector.extract_strided_slice %342 {offsets = [0, 0, 32], sizes = [2, 8, 32], strides = [1, 1, 1]} : vector<2x8x96xf32> to vector<2x8x32xf32>
    %353 = arith.addf %351, %352 : vector<2x8x32xf32>
    %354 = arith.negf %353 : vector<2x8x32xf32>
    %355 = math.exp %354 : vector<2x8x32xf32>
    %cst_114 = arith.constant 1.000000e+00 : f32
    %356 = vector.broadcast %cst_114 : f32 to vector<2x8x32xf32>
    %357 = arith.addf %356, %355 : vector<2x8x32xf32>
    %358 = arith.divf %356, %357 : vector<2x8x32xf32>
    %359 = vector.extract_strided_slice %339 {offsets = [0, 0, 64], sizes = [2, 8, 32], strides = [1, 1, 1]} : vector<2x8x96xf32> to vector<2x8x32xf32>
    %360 = vector.extract_strided_slice %342 {offsets = [0, 0, 64], sizes = [2, 8, 32], strides = [1, 1, 1]} : vector<2x8x96xf32> to vector<2x8x32xf32>
    %361 = arith.mulf %350, %360 : vector<2x8x32xf32>
    %362 = arith.addf %359, %361 : vector<2x8x32xf32>
    %363 = math.tanh %362 : vector<2x8x32xf32>
    %cst_115 = arith.constant 1.000000e+00 : f32
    %364 = vector.broadcast %cst_115 : f32 to vector<2x8x32xf32>
    %365 = arith.subf %364, %358 : vector<2x8x32xf32>
    %366 = arith.mulf %365, %363 : vector<2x8x32xf32>
    %367 = arith.mulf %358, %240 : vector<2x8x32xf32>
    %368 = arith.addf %366, %367 : vector<2x8x32xf32>
    %369 = vector.broadcast %333 : vector<2x8x1xf32> to vector<2x8x32xf32>
    %370 = arith.mulf %368, %369 : vector<2x8x32xf32>
    %cst_116 = arith.constant 1.000000e+00 : f32
    %371 = vector.broadcast %cst_116 : f32 to vector<2x8x1xf32>
    %372 = arith.subf %371, %333 : vector<2x8x1xf32>
    %373 = vector.broadcast %372 : vector<2x8x1xf32> to vector<2x8x32xf32>
    %374 = arith.mulf %240, %373 : vector<2x8x32xf32>
    %375 = arith.addf %370, %374 : vector<2x8x32xf32>
    %376 = arith.truncf %375 : vector<2x8x32xf32> to vector<2x8x32xbf16>
    "tpu.trace_start"() <{level = 10 : i32, message = "tbr,trj->tbj"}> : () -> ()
    %cst_117 = arith.constant dense<0.000000e+00> : vector<2x8x96xf32>
    %377 = tpu.matmul %376, %8, %cst_117 {dimension_numbers = #tpu.dot_dimension_numbers<[2], [1], [1], [2], [0, 0, 0, 1, 1, 2], [0], [0]>} : vector<2x8x32xbf16>, vector<2x32x96xbf16>, vector<2x8x96xf32> -> vector<2x8x96xf32>
    "tpu.trace_stop"() : () -> ()
    %cst_118 = arith.constant dense<0.000000e+00> : vector<8x96xf32>
    %378 = vector.multi_reduction <add>, %377, %cst_118 [0] : vector<2x8x96xf32> to vector<8x96xf32>
    %379 = vector.broadcast %10 : vector<1x96xf32> to vector<8x96xf32>
    %380 = arith.addf %378, %379 : vector<8x96xf32>
    %381 = arith.truncf %275 : vector<8x32xf32> to vector<8x32xbf16>
    %cst_119 = arith.constant dense<0.000000e+00> : vector<8x96xf32>
    %382 = tpu.matmul %381, %9, %cst_119 {dimension_numbers = #tpu.dot_dimension_numbers<[1], [0], [0], [1], [0, 0, 1, 1], [], []>} : vector<8x32xbf16>, vector<32x96xbf16>, vector<8x96xf32> -> vector<8x96xf32>
    %383 = vector.broadcast %11 : vector<1x96xf32> to vector<8x96xf32>
    %384 = arith.addf %382, %383 : vector<8x96xf32>
    %385 = vector.extract_strided_slice %380 {offsets = [0, 0], sizes = [8, 32], strides = [1, 1]} : vector<8x96xf32> to vector<8x32xf32>
    %386 = vector.extract_strided_slice %384 {offsets = [0, 0], sizes = [8, 32], strides = [1, 1]} : vector<8x96xf32> to vector<8x32xf32>
    %387 = arith.addf %385, %386 : vector<8x32xf32>
    %388 = arith.negf %387 : vector<8x32xf32>
    %389 = math.exp %388 : vector<8x32xf32>
    %cst_120 = arith.constant 1.000000e+00 : f32
    %390 = vector.broadcast %cst_120 : f32 to vector<8x32xf32>
    %391 = arith.addf %390, %389 : vector<8x32xf32>
    %392 = arith.divf %390, %391 : vector<8x32xf32>
    %393 = vector.extract_strided_slice %380 {offsets = [0, 32], sizes = [8, 32], strides = [1, 1]} : vector<8x96xf32> to vector<8x32xf32>
    %394 = vector.extract_strided_slice %384 {offsets = [0, 32], sizes = [8, 32], strides = [1, 1]} : vector<8x96xf32> to vector<8x32xf32>
    %395 = arith.addf %393, %394 : vector<8x32xf32>
    %396 = arith.negf %395 : vector<8x32xf32>
    %397 = math.exp %396 : vector<8x32xf32>
    %cst_121 = arith.constant 1.000000e+00 : f32
    %398 = vector.broadcast %cst_121 : f32 to vector<8x32xf32>
    %399 = arith.addf %398, %397 : vector<8x32xf32>
    %400 = arith.divf %398, %399 : vector<8x32xf32>
    %401 = vector.extract_strided_slice %380 {offsets = [0, 64], sizes = [8, 32], strides = [1, 1]} : vector<8x96xf32> to vector<8x32xf32>
    %402 = vector.extract_strided_slice %384 {offsets = [0, 64], sizes = [8, 32], strides = [1, 1]} : vector<8x96xf32> to vector<8x32xf32>
    %403 = arith.mulf %392, %402 : vector<8x32xf32>
    %404 = arith.addf %401, %403 : vector<8x32xf32>
    %405 = math.tanh %404 : vector<8x32xf32>
    %cst_122 = arith.constant 1.000000e+00 : f32
    %406 = vector.broadcast %cst_122 : f32 to vector<8x32xf32>
    %407 = arith.subf %406, %400 : vector<8x32xf32>
    %408 = arith.mulf %407, %405 : vector<8x32xf32>
    %409 = arith.mulf %400, %275 : vector<8x32xf32>
    %410 = arith.addf %408, %409 : vector<8x32xf32>
    %411 = vector.shape_cast %375 : vector<2x8x32xf32> to vector<2x1x8x32xf32>
    %412 = arith.truncf %411 : vector<2x1x8x32xf32> to vector<2x1x8x32xbf16>
    %c0_123 = arith.constant 0 : index
    %413 = arith.index_cast %c2_i32 : i32 to index
    %c0_124 = arith.constant 0 : index
    %c0_125 = arith.constant 0 : index
    %414 = vector.load %arg15[%c0_123, %413, %c0_124, %c0_125] : memref<2x4x8x32xbf16, #tpu.memory_space<vmem>>, vector<2x1x8x32xbf16>
    tpu.vector_store %arg15[%c0_123, %413, %c0_124, %c0_125], %412 {strides = array<i32>} : memref<2x4x8x32xbf16, #tpu.memory_space<vmem>>, vector<2x1x8x32xbf16>,
    %415 = vector.shape_cast %410 : vector<8x32xf32> to vector<1x8x32xf32>
    %416 = arith.truncf %415 : vector<1x8x32xf32> to vector<1x8x32xbf16>
    %417 = arith.index_cast %c2_i32 : i32 to index
    %c0_126 = arith.constant 0 : index
    %c0_127 = arith.constant 0 : index
    %418 = vector.load %arg16[%417, %c0_126, %c0_127] : memref<4x8x32xbf16, #tpu.memory_space<vmem>>, vector<1x8x32xbf16>
    tpu.vector_store %arg16[%417, %c0_126, %c0_127], %416 {strides = array<i32>} : memref<4x8x32xbf16, #tpu.memory_space<vmem>>, vector<1x8x32xbf16>,
    %c3_i32 = arith.constant 3 : i32
    %c0_128 = arith.constant 0 : index
    %c0_129 = arith.constant 0 : index
    %419 = arith.index_cast %c3_i32 : i32 to index
    %c0_130 = arith.constant 0 : index
    %c0_131 = arith.constant 0 : index
    %420 = vector.load %arg1[%c0_128, %c0_129, %419, %c0_130, %c0_131] : memref<2x8x4x8x32xbf16, #tpu.memory_space<vmem>>, vector<2x8x1x8x32xbf16>
    %421 = vector.shape_cast %420 : vector<2x8x1x8x32xbf16> to vector<128x32xbf16>
    %422 = vector.shape_cast %420 : vector<2x8x1x8x32xbf16> to vector<16x8x32xbf16>
    %423 = arith.index_cast %c3_i32 : i32 to index
    %c0_132 = arith.constant 0 : index
    %c0_133 = arith.constant 0 : index
    %c0_134 = arith.constant 0 : index
    %424 = vector.load %arg2[%423, %c0_132, %c0_133, %c0_134] : memref<4x16x8x1xf32, #tpu.memory_space<vmem>>, vector<1x16x8x1xf32>
    %425 = vector.shape_cast %424 : vector<1x16x8x1xf32> to vector<16x8x1xf32>
    %426 = vector.shape_cast %375 : vector<2x8x32xf32> to vector<16x32xf32>
    %427 = arith.truncf %426 : vector<16x32xf32> to vector<16x32xbf16>
    %cst_135 = arith.constant dense<0.000000e+00> : vector<128x32xf32>
    %428 = tpu.matmul %421, %0, %cst_135 {dimension_numbers = #tpu.dot_dimension_numbers<[1], [0], [0], [1], [0, 0, 1, 1], [], []>} : vector<128x32xbf16>, vector<32x32xbf16>, vector<128x32xf32> -> vector<128x32xf32>
    %429 = vector.shape_cast %428 : vector<128x32xf32> to vector<16x8x32xf32>
    %430 = vector.shape_cast %1 : vector<1x32xf32> to vector<1x1x32xf32>
    %431 = vector.broadcast %430 : vector<1x1x32xf32> to vector<16x8x32xf32>
    %432 = arith.addf %429, %431 : vector<16x8x32xf32>
    %cst_136 = arith.constant dense<0.000000e+00> : vector<16x32xf32>
    %433 = tpu.matmul %427, %2, %cst_136 {dimension_numbers = #tpu.dot_dimension_numbers<[1], [0], [0], [1], [0, 0, 1, 1], [], []>} : vector<16x32xbf16>, vector<32x32xbf16>, vector<16x32xf32> -> vector<16x32xf32>
    %434 = vector.shape_cast %433 : vector<16x32xf32> to vector<16x1x32xf32>
    %435 = vector.broadcast %434 : vector<16x1x32xf32> to vector<16x8x32xf32>
    %436 = arith.addf %432, %435 : vector<16x8x32xf32>
    %437 = math.tanh %436 : vector<16x8x32xf32>
    %438 = vector.shape_cast %3 : vector<1x32xf32> to vector<1x1x32xf32>
    %439 = vector.broadcast %438 : vector<1x1x32xf32> to vector<16x8x32xf32>
    %440 = arith.mulf %437, %439 : vector<16x8x32xf32>
    %cst_137 = arith.constant dense<0.000000e+00> : vector<16x8xf32>
    %441 = vector.multi_reduction <add>, %440, %cst_137 [2] : vector<16x8x32xf32> to vector<16x8xf32>
    %442 = vector.shape_cast %441 : vector<16x8xf32> to vector<16x8x1xf32>
    %cst_138 = arith.constant dense<0xFF800000> : vector<16x1xf32>
    %443 = vector.multi_reduction <maximumf>, %442, %cst_138 [1] : vector<16x8x1xf32> to vector<16x1xf32>
    %444 = vector.shape_cast %443 : vector<16x1xf32> to vector<16x1x1xf32>
    %445 = vector.broadcast %444 : vector<16x1x1xf32> to vector<16x8x1xf32>
    %446 = arith.subf %442, %445 : vector<16x8x1xf32>
    %447 = math.exp %446 : vector<16x8x1xf32>
    %448 = arith.mulf %447, %425 : vector<16x8x1xf32>
    %cst_139 = arith.constant dense<0.000000e+00> : vector<16x1xf32>
    %449 = vector.multi_reduction <add>, %448, %cst_139 [1] : vector<16x8x1xf32> to vector<16x1xf32>
    %450 = vector.shape_cast %449 : vector<16x1xf32> to vector<16x1x1xf32>
    %cst_140 = arith.constant 0.000000e+00 : f32
    %451 = vector.broadcast %cst_140 : f32 to vector<16x1x1xf32>
    %452 = arith.cmpf oeq, %450, %451 : vector<16x1x1xf32>
    %453 = arith.extui %452 : vector<16x1x1xi1> to vector<16x1x1xi32>
    %454 = arith.sitofp %453 : vector<16x1x1xi32> to vector<16x1x1xf32>
    %455 = arith.addf %450, %454 : vector<16x1x1xf32>
    %456 = tpu.reciprocal %455 {approx = true} : vector<16x1x1xf32> -> vector<16x1x1xf32>
    %457 = vector.broadcast %456 : vector<16x1x1xf32> to vector<16x8x1xf32>
    %458 = arith.mulf %448, %457 : vector<16x8x1xf32>
    %459 = arith.extf %422 : vector<16x8x32xbf16> to vector<16x8x32xf32>
    %460 = vector.broadcast %458 : vector<16x8x1xf32> to vector<16x8x32xf32>
    %461 = arith.mulf %459, %460 : vector<16x8x32xf32>
    %cst_141 = arith.constant dense<0.000000e+00> : vector<16x32xf32>
    %462 = vector.multi_reduction <add>, %461, %cst_141 [1] : vector<16x8x32xf32> to vector<16x32xf32>
    %cst_142 = arith.constant dense<0.000000e+00> : vector<16x1xf32>
    %463 = vector.multi_reduction <add>, %425, %cst_142 [1] : vector<16x8x1xf32> to vector<16x1xf32>
    %cst_143 = arith.constant 0.000000e+00 : f32
    %464 = vector.broadcast %cst_143 : f32 to vector<16x1xf32>
    %465 = arith.cmpf ogt, %463, %464 : vector<16x1xf32>
    %466 = arith.extui %465 : vector<16x1xi1> to vector<16x1xi32>
    %467 = arith.sitofp %466 : vector<16x1xi32> to vector<16x1xf32>
    %468 = vector.shape_cast %467 : vector<16x1xf32> to vector<2x8x1xf32>
    %469 = vector.shape_cast %462 : vector<16x32xf32> to vector<2x8x32xf32>
    %470 = arith.truncf %469 : vector<2x8x32xf32> to vector<2x8x32xbf16>
    %471 = arith.truncf %375 : vector<2x8x32xf32> to vector<2x8x32xbf16>
    "tpu.trace_start"() <{level = 10 : i32, message = "tbi,tij->tbj"}> : () -> ()
    %cst_144 = arith.constant dense<0.000000e+00> : vector<2x8x96xf32>
    %472 = tpu.matmul %470, %4, %cst_144 {dimension_numbers = #tpu.dot_dimension_numbers<[2], [1], [1], [2], [0, 0, 0, 1, 1, 2], [0], [0]>} : vector<2x8x32xbf16>, vector<2x32x96xbf16>, vector<2x8x96xf32> -> vector<2x8x96xf32>
    "tpu.trace_stop"() : () -> ()
    %473 = vector.broadcast %6 : vector<2x1x96xf32> to vector<2x8x96xf32>
    %474 = arith.addf %472, %473 : vector<2x8x96xf32>
    "tpu.trace_start"() <{level = 10 : i32, message = "tbr,trj->tbj"}> : () -> ()
    %cst_145 = arith.constant dense<0.000000e+00> : vector<2x8x96xf32>
    %475 = tpu.matmul %471, %5, %cst_145 {dimension_numbers = #tpu.dot_dimension_numbers<[2], [1], [1], [2], [0, 0, 0, 1, 1, 2], [0], [0]>} : vector<2x8x32xbf16>, vector<2x32x96xbf16>, vector<2x8x96xf32> -> vector<2x8x96xf32>
    "tpu.trace_stop"() : () -> ()
    %476 = vector.broadcast %7 : vector<2x1x96xf32> to vector<2x8x96xf32>
    %477 = arith.addf %475, %476 : vector<2x8x96xf32>
    %478 = vector.extract_strided_slice %474 {offsets = [0, 0, 0], sizes = [2, 8, 32], strides = [1, 1, 1]} : vector<2x8x96xf32> to vector<2x8x32xf32>
    %479 = vector.extract_strided_slice %477 {offsets = [0, 0, 0], sizes = [2, 8, 32], strides = [1, 1, 1]} : vector<2x8x96xf32> to vector<2x8x32xf32>
    %480 = arith.addf %478, %479 : vector<2x8x32xf32>
    %481 = arith.negf %480 : vector<2x8x32xf32>
    %482 = math.exp %481 : vector<2x8x32xf32>
    %cst_146 = arith.constant 1.000000e+00 : f32
    %483 = vector.broadcast %cst_146 : f32 to vector<2x8x32xf32>
    %484 = arith.addf %483, %482 : vector<2x8x32xf32>
    %485 = arith.divf %483, %484 : vector<2x8x32xf32>
    %486 = vector.extract_strided_slice %474 {offsets = [0, 0, 32], sizes = [2, 8, 32], strides = [1, 1, 1]} : vector<2x8x96xf32> to vector<2x8x32xf32>
    %487 = vector.extract_strided_slice %477 {offsets = [0, 0, 32], sizes = [2, 8, 32], strides = [1, 1, 1]} : vector<2x8x96xf32> to vector<2x8x32xf32>
    %488 = arith.addf %486, %487 : vector<2x8x32xf32>
    %489 = arith.negf %488 : vector<2x8x32xf32>
    %490 = math.exp %489 : vector<2x8x32xf32>
    %cst_147 = arith.constant 1.000000e+00 : f32
    %491 = vector.broadcast %cst_147 : f32 to vector<2x8x32xf32>
    %492 = arith.addf %491, %490 : vector<2x8x32xf32>
    %493 = arith.divf %491, %492 : vector<2x8x32xf32>
    %494 = vector.extract_strided_slice %474 {offsets = [0, 0, 64], sizes = [2, 8, 32], strides = [1, 1, 1]} : vector<2x8x96xf32> to vector<2x8x32xf32>
    %495 = vector.extract_strided_slice %477 {offsets = [0, 0, 64], sizes = [2, 8, 32], strides = [1, 1, 1]} : vector<2x8x96xf32> to vector<2x8x32xf32>
    %496 = arith.mulf %485, %495 : vector<2x8x32xf32>
    %497 = arith.addf %494, %496 : vector<2x8x32xf32>
    %498 = math.tanh %497 : vector<2x8x32xf32>
    %cst_148 = arith.constant 1.000000e+00 : f32
    %499 = vector.broadcast %cst_148 : f32 to vector<2x8x32xf32>
    %500 = arith.subf %499, %493 : vector<2x8x32xf32>
    %501 = arith.mulf %500, %498 : vector<2x8x32xf32>
    %502 = arith.mulf %493, %375 : vector<2x8x32xf32>
    %503 = arith.addf %501, %502 : vector<2x8x32xf32>
    %504 = vector.broadcast %468 : vector<2x8x1xf32> to vector<2x8x32xf32>
    %505 = arith.mulf %503, %504 : vector<2x8x32xf32>
    %cst_149 = arith.constant 1.000000e+00 : f32
    %506 = vector.broadcast %cst_149 : f32 to vector<2x8x1xf32>
    %507 = arith.subf %506, %468 : vector<2x8x1xf32>
    %508 = vector.broadcast %507 : vector<2x8x1xf32> to vector<2x8x32xf32>
    %509 = arith.mulf %375, %508 : vector<2x8x32xf32>
    %510 = arith.addf %505, %509 : vector<2x8x32xf32>
    %511 = arith.truncf %510 : vector<2x8x32xf32> to vector<2x8x32xbf16>
    "tpu.trace_start"() <{level = 10 : i32, message = "tbr,trj->tbj"}> : () -> ()
    %cst_150 = arith.constant dense<0.000000e+00> : vector<2x8x96xf32>
    %512 = tpu.matmul %511, %8, %cst_150 {dimension_numbers = #tpu.dot_dimension_numbers<[2], [1], [1], [2], [0, 0, 0, 1, 1, 2], [0], [0]>} : vector<2x8x32xbf16>, vector<2x32x96xbf16>, vector<2x8x96xf32> -> vector<2x8x96xf32>
    "tpu.trace_stop"() : () -> ()
    %cst_151 = arith.constant dense<0.000000e+00> : vector<8x96xf32>
    %513 = vector.multi_reduction <add>, %512, %cst_151 [0] : vector<2x8x96xf32> to vector<8x96xf32>
    %514 = vector.broadcast %10 : vector<1x96xf32> to vector<8x96xf32>
    %515 = arith.addf %513, %514 : vector<8x96xf32>
    %516 = arith.truncf %410 : vector<8x32xf32> to vector<8x32xbf16>
    %cst_152 = arith.constant dense<0.000000e+00> : vector<8x96xf32>
    %517 = tpu.matmul %516, %9, %cst_152 {dimension_numbers = #tpu.dot_dimension_numbers<[1], [0], [0], [1], [0, 0, 1, 1], [], []>} : vector<8x32xbf16>, vector<32x96xbf16>, vector<8x96xf32> -> vector<8x96xf32>
    %518 = vector.broadcast %11 : vector<1x96xf32> to vector<8x96xf32>
    %519 = arith.addf %517, %518 : vector<8x96xf32>
    %520 = vector.extract_strided_slice %515 {offsets = [0, 0], sizes = [8, 32], strides = [1, 1]} : vector<8x96xf32> to vector<8x32xf32>
    %521 = vector.extract_strided_slice %519 {offsets = [0, 0], sizes = [8, 32], strides = [1, 1]} : vector<8x96xf32> to vector<8x32xf32>
    %522 = arith.addf %520, %521 : vector<8x32xf32>
    %523 = arith.negf %522 : vector<8x32xf32>
    %524 = math.exp %523 : vector<8x32xf32>
    %cst_153 = arith.constant 1.000000e+00 : f32
    %525 = vector.broadcast %cst_153 : f32 to vector<8x32xf32>
    %526 = arith.addf %525, %524 : vector<8x32xf32>
    %527 = arith.divf %525, %526 : vector<8x32xf32>
    %528 = vector.extract_strided_slice %515 {offsets = [0, 32], sizes = [8, 32], strides = [1, 1]} : vector<8x96xf32> to vector<8x32xf32>
    %529 = vector.extract_strided_slice %519 {offsets = [0, 32], sizes = [8, 32], strides = [1, 1]} : vector<8x96xf32> to vector<8x32xf32>
    %530 = arith.addf %528, %529 : vector<8x32xf32>
    %531 = arith.negf %530 : vector<8x32xf32>
    %532 = math.exp %531 : vector<8x32xf32>
    %cst_154 = arith.constant 1.000000e+00 : f32
    %533 = vector.broadcast %cst_154 : f32 to vector<8x32xf32>
    %534 = arith.addf %533, %532 : vector<8x32xf32>
    %535 = arith.divf %533, %534 : vector<8x32xf32>
    %536 = vector.extract_strided_slice %515 {offsets = [0, 64], sizes = [8, 32], strides = [1, 1]} : vector<8x96xf32> to vector<8x32xf32>
    %537 = vector.extract_strided_slice %519 {offsets = [0, 64], sizes = [8, 32], strides = [1, 1]} : vector<8x96xf32> to vector<8x32xf32>
    %538 = arith.mulf %527, %537 : vector<8x32xf32>
    %539 = arith.addf %536, %538 : vector<8x32xf32>
    %540 = math.tanh %539 : vector<8x32xf32>
    %cst_155 = arith.constant 1.000000e+00 : f32
    %541 = vector.broadcast %cst_155 : f32 to vector<8x32xf32>
    %542 = arith.subf %541, %535 : vector<8x32xf32>
    %543 = arith.mulf %542, %540 : vector<8x32xf32>
    %544 = arith.mulf %535, %410 : vector<8x32xf32>
    %545 = arith.addf %543, %544 : vector<8x32xf32>
    %546 = vector.shape_cast %510 : vector<2x8x32xf32> to vector<2x1x8x32xf32>
    %547 = arith.truncf %546 : vector<2x1x8x32xf32> to vector<2x1x8x32xbf16>
    %c0_156 = arith.constant 0 : index
    %548 = arith.index_cast %c3_i32 : i32 to index
    %c0_157 = arith.constant 0 : index
    %c0_158 = arith.constant 0 : index
    %549 = vector.load %arg15[%c0_156, %548, %c0_157, %c0_158] : memref<2x4x8x32xbf16, #tpu.memory_space<vmem>>, vector<2x1x8x32xbf16>
    tpu.vector_store %arg15[%c0_156, %548, %c0_157, %c0_158], %547 {strides = array<i32>} : memref<2x4x8x32xbf16, #tpu.memory_space<vmem>>, vector<2x1x8x32xbf16>,
    %550 = vector.shape_cast %545 : vector<8x32xf32> to vector<1x8x32xf32>
    %551 = arith.truncf %550 : vector<1x8x32xf32> to vector<1x8x32xbf16>
    %552 = arith.index_cast %c3_i32 : i32 to index
    %c0_159 = arith.constant 0 : index
    %c0_160 = arith.constant 0 : index
    %553 = vector.load %arg16[%552, %c0_159, %c0_160] : memref<4x8x32xbf16, #tpu.memory_space<vmem>>, vector<1x8x32xbf16>
    tpu.vector_store %arg16[%552, %c0_159, %c0_160], %551 {strides = array<i32>} : memref<4x8x32xbf16, #tpu.memory_space<vmem>>, vector<1x8x32xbf16>,
    %c4_i32 = arith.constant 4 : i32
    return
  }
  func.func @transform_0(%arg0: i32) -> (i32, i32, i32, i32, i32) {
    %c0_i32 = arith.constant 0 : i32
    %c0_i32_0 = arith.constant 0 : i32
    %c0_i32_1 = arith.constant 0 : i32
    %c0_i32_2 = arith.constant 0 : i32
    %c0_i32_3 = arith.constant 0 : i32
    %c0_i32_4 = arith.constant 0 : i32
    return %c0_i32, %c0_i32_0, %c0_i32_1, %c0_i32_2, %c0_i32_3 : i32, i32, i32, i32, i32
  }
  func.func @transform_1(%arg0: i32) -> (i32, i32, i32, i32) {
    %c0_i32 = arith.constant 0 : i32
    %c0_i32_0 = arith.constant 0 : i32
    %c0_i32_1 = arith.constant 0 : i32
    %c0_i32_2 = arith.constant 0 : i32
    %c0_i32_3 = arith.constant 0 : i32
    return %c0_i32, %c0_i32_0, %c0_i32_1, %c0_i32_2 : i32, i32, i32, i32
  }
  func.func @transform_2(%arg0: i32) -> (i32, i32) {
    %c0_i32 = arith.constant 0 : i32
    %c0_i32_0 = arith.constant 0 : i32
    %c0_i32_1 = arith.constant 0 : i32
    return %c0_i32, %c0_i32_0 : i32, i32
  }
  func.func @transform_3(%arg0: i32) -> (i32, i32) {
    %c0_i32 = arith.constant 0 : i32
    %c0_i32_0 = arith.constant 0 : i32
    %c0_i32_1 = arith.constant 0 : i32
    return %c0_i32, %c0_i32_0 : i32, i32
  }
  func.func @transform_4(%arg0: i32) -> (i32, i32) {
    %c0_i32 = arith.constant 0 : i32
    %c0_i32_0 = arith.constant 0 : i32
    %c0_i32_1 = arith.constant 0 : i32
    return %c0_i32, %c0_i32_0 : i32, i32
  }
  func.func @transform_5(%arg0: i32) -> (i32, i32) {
    %c0_i32 = arith.constant 0 : i32
    %c0_i32_0 = arith.constant 0 : i32
    %c0_i32_1 = arith.constant 0 : i32
    return %c0_i32, %c0_i32_0 : i32, i32
  }
  func.func @transform_6(%arg0: i32) -> (i32, i32, i32) {
    %c0_i32 = arith.constant 0 : i32
    %c0_i32_0 = arith.constant 0 : i32
    %c0_i32_1 = arith.constant 0 : i32
    %c0_i32_2 = arith.constant 0 : i32
    return %c0_i32, %c0_i32_0, %c0_i32_1 : i32, i32, i32
  }
  func.func @transform_7(%arg0: i32) -> (i32, i32, i32) {
    %c0_i32 = arith.constant 0 : i32
    %c0_i32_0 = arith.constant 0 : i32
    %c0_i32_1 = arith.constant 0 : i32
    %c0_i32_2 = arith.constant 0 : i32
    return %c0_i32, %c0_i32_0, %c0_i32_1 : i32, i32, i32
  }
  func.func @transform_8(%arg0: i32) -> (i32, i32, i32) {
    %c0_i32 = arith.constant 0 : i32
    %c0_i32_0 = arith.constant 0 : i32
    %c0_i32_1 = arith.constant 0 : i32
    %c0_i32_2 = arith.constant 0 : i32
    return %c0_i32, %c0_i32_0, %c0_i32_1 : i32, i32, i32
  }
  func.func @transform_9(%arg0: i32) -> (i32, i32, i32) {
    %c0_i32 = arith.constant 0 : i32
    %c0_i32_0 = arith.constant 0 : i32
    %c0_i32_1 = arith.constant 0 : i32
    %c0_i32_2 = arith.constant 0 : i32
    return %c0_i32, %c0_i32_0, %c0_i32_1 : i32, i32, i32
  }
  func.func @transform_10(%arg0: i32) -> (i32, i32, i32) {
    %c0_i32 = arith.constant 0 : i32
    %c0_i32_0 = arith.constant 0 : i32
    %c0_i32_1 = arith.constant 0 : i32
    %c0_i32_2 = arith.constant 0 : i32
    return %c0_i32, %c0_i32_0, %c0_i32_1 : i32, i32, i32
  }
  func.func @transform_11(%arg0: i32) -> (i32, i32) {
    %c0_i32 = arith.constant 0 : i32
    %c0_i32_0 = arith.constant 0 : i32
    %c0_i32_1 = arith.constant 0 : i32
    return %c0_i32, %c0_i32_0 : i32, i32
  }
  func.func @transform_12(%arg0: i32) -> (i32, i32) {
    %c0_i32 = arith.constant 0 : i32
    %c0_i32_0 = arith.constant 0 : i32
    %c0_i32_1 = arith.constant 0 : i32
    return %c0_i32, %c0_i32_0 : i32, i32
  }
  func.func @transform_13(%arg0: i32) -> (i32, i32) {
    %c0_i32 = arith.constant 0 : i32
    %c0_i32_0 = arith.constant 0 : i32
    %c0_i32_1 = arith.constant 0 : i32
    return %c0_i32, %c0_i32_0 : i32, i32
  }
  func.func @transform_14(%arg0: i32) -> (i32, i32, i32, i32) {
    %c0_i32 = arith.constant 0 : i32
    %c0_i32_0 = arith.constant 0 : i32
    %c0_i32_1 = arith.constant 0 : i32
    %c0_i32_2 = arith.constant 0 : i32
    %c0_i32_3 = arith.constant 0 : i32
    return %c0_i32, %c0_i32_0, %c0_i32_1, %c0_i32_2 : i32, i32, i32, i32
  }
  func.func @transform_15(%arg0: i32) -> (i32, i32, i32) {
    %c0_i32 = arith.constant 0 : i32
    %c0_i32_0 = arith.constant 0 : i32
    %c0_i32_1 = arith.constant 0 : i32
    %c0_i32_2 = arith.constant 0 : i32
    return %c0_i32, %c0_i32_0, %c0_i32_1 : i32, i32, i32
  }
}

</mosaic_0001>

<llo_original>
// kernel: tpu_custom_call.1
$region0: #{tpu_custom_call.1}
  #allocation0 [shape = 'u32[]', space=smem, size = 0x4, offset = 0x4, fixed_abs, tag = 'smem constant byte address 0x4 - core index']
  #allocation1 [shape = 'u32[144,128]{1,0:T(1,128)}', space=vmem, size = 0x12000, scoped, tag = 'internal scratch']
  %s0 = inlined_call_operand.vmem [shape: bf16[2,8,4,8,32], index: 0, kind: input, shape index: {}]
  %s1 = inlined_call_operand.vmem [shape: f32[4,16,8,1], index: 1, kind: input, shape index: {}]
  %s2 = inlined_call_operand.vmem [shape: bf16[32,32], index: 2, kind: input, shape index: {}]
  %s3 = inlined_call_operand.vmem [shape: f32[1,32], index: 3, kind: input, shape index: {}]
  %s4 = inlined_call_operand.vmem [shape: bf16[32,32], index: 4, kind: input, shape index: {}]
  %s5 = inlined_call_operand.vmem [shape: f32[1,32], index: 5, kind: input, shape index: {}]
  %s6 = inlined_call_operand.vmem [shape: bf16[2,32,96], index: 6, kind: input, shape index: {}]
  %s7 = inlined_call_operand.vmem [shape: bf16[2,32,96], index: 7, kind: input, shape index: {}]
  %s8 = inlined_call_operand.vmem [shape: f32[2,1,96], index: 8, kind: input, shape index: {}]
  %s9 = inlined_call_operand.vmem [shape: f32[2,1,96], index: 9, kind: input, shape index: {}]
  %s10 = inlined_call_operand.vmem [shape: bf16[2,32,96], index: 10, kind: input, shape index: {}]
  %s11 = inlined_call_operand.vmem [shape: bf16[32,96], index: 11, kind: input, shape index: {}]
  %s12 = inlined_call_operand.vmem [shape: f32[1,96], index: 12, kind: input, shape index: {}]
  %s13 = inlined_call_operand.vmem [shape: f32[1,96], index: 13, kind: input, shape index: {}]
  %s14 = inlined_call_operand.hbm [shape: bf16[2,4,8,32], index: 14, kind: output, shape index: {0}]
  %s15 = inlined_call_operand.hbm [shape: bf16[4,8,32], index: 15, kind: output, shape index: {1}]
  %16 = xla_tuple %s14, %s15
  %s17 = sld [smem:[#allocation0]]
  $region74: #{tpu_custom_call.1} parent=0
    _
  %s19 = ssub.s32 1, %s17
  %s20 = scalar_select 0, %s19, %s17
  $region1: #{tpu_custom_call.1} parent=0
    #allocation2 [shape = 'u8[16384]{0}', space=vmem, size = 0x4000, scoped, tag = 'output window, operand 0, single buffered']
    #allocation3 [shape = 's32[1]{0}', space=sflag, size = 0x4, scoped, tag = 'scoped memory for tpu_custom_call.1']
    #allocation4 [shape = 'u8[8192]{0}', space=vmem, size = 0x2000, scoped, tag = 'output window, operand 1, single buffered']
    #allocation5 [shape = 's32[1]{0}', space=sflag, size = 0x4, scoped, tag = 'scoped memory for tpu_custom_call.1']
    %21 = vsyncpa [#allocation3], 0
    %22 = vsyncpa [#allocation5], 0
    // Predicated region
    $region2: #{tpu_custom_call.1} parent=1 // pred_check
      _
    $region3: #{tpu_custom_call.1} parent=1 // pred_check_branch
      %24 = sbr.rel (0) target = $region5
    $region4: #{tpu_custom_call.1} parent=1 // pred_region
      _
    $region5: #{tpu_custom_call.1} parent=1 // pred_fallthru
      _
    // Predicated region
    $region6: #{tpu_custom_call.1} parent=1 // pred_check
      _
    $region7: #{tpu_custom_call.1} parent=1 // pred_check_branch
      %26 = sbr.rel (0) target = $region9
    $region8: #{tpu_custom_call.1} parent=1 // pred_region
      _
    $region9: #{tpu_custom_call.1} parent=1 // pred_fallthru
      _
    // Predicated region
    $region10: #{tpu_custom_call.1} parent=1 // pred_check
      _
    $region11: #{tpu_custom_call.1} parent=1 // pred_check_branch
      %28 = sbr.rel (0) target = $region13
    $region12: #{tpu_custom_call.1} parent=1 // pred_region
      _
    $region13: #{tpu_custom_call.1} parent=1 // pred_fallthru
      _
    // Predicated region
    $region14: #{tpu_custom_call.1} parent=1 // pred_check
      _
    $region15: #{tpu_custom_call.1} parent=1 // pred_check_branch
      %30 = sbr.rel (0) target = $region17
    $region16: #{tpu_custom_call.1} parent=1 // pred_region
      _
    $region17: #{tpu_custom_call.1} parent=1 // pred_fallthru
      _
    // Predicated region
    $region18: #{tpu_custom_call.1} parent=1 // pred_check
      _
    $region19: #{tpu_custom_call.1} parent=1 // pred_check_branch
      %32 = sbr.rel (0) target = $region21
    $region20: #{tpu_custom_call.1} parent=1 // pred_region
      _
    $region21: #{tpu_custom_call.1} parent=1 // pred_fallthru
      _
    // Predicated region
    $region22: #{tpu_custom_call.1} parent=1 // pred_check
      _
    $region23: #{tpu_custom_call.1} parent=1 // pred_check_branch
      %34 = sbr.rel (0) target = $region25
    $region24: #{tpu_custom_call.1} parent=1 // pred_region
      _
    $region25: #{tpu_custom_call.1} parent=1 // pred_fallthru
      _
    // Predicated region
    $region26: #{tpu_custom_call.1} parent=1 // pred_check
      _
    $region27: #{tpu_custom_call.1} parent=1 // pred_check_branch
      %36 = sbr.rel (0) target = $region29
    $region28: #{tpu_custom_call.1} parent=1 // pred_region
      _
    $region29: #{tpu_custom_call.1} parent=1 // pred_fallthru
      _
    // Predicated region
    $region30: #{tpu_custom_call.1} parent=1 // pred_check
      _
    $region31: #{tpu_custom_call.1} parent=1 // pred_check_branch
      %38 = sbr.rel (0) target = $region33
    $region32: #{tpu_custom_call.1} parent=1 // pred_region
      _
    $region33: #{tpu_custom_call.1} parent=1 // pred_fallthru
      _
    // Predicated region
    $region34: #{tpu_custom_call.1} parent=1 // pred_check
      _
    $region35: #{tpu_custom_call.1} parent=1 // pred_check_branch
      %40 = sbr.rel (0) target = $region37
    $region36: #{tpu_custom_call.1} parent=1 // pred_region
      _
    $region37: #{tpu_custom_call.1} parent=1 // pred_fallthru
      _
    // Predicated region
    $region38: #{tpu_custom_call.1} parent=1 // pred_check
      _
    $region39: #{tpu_custom_call.1} parent=1 // pred_check_branch
      %42 = sbr.rel (0) target = $region41
    $region40: #{tpu_custom_call.1} parent=1 // pred_region
      _
    $region41: #{tpu_custom_call.1} parent=1 // pred_fallthru
      _
    // Predicated region
    $region42: #{tpu_custom_call.1} parent=1 // pred_check
      _
    $region43: #{tpu_custom_call.1} parent=1 // pred_check_branch
      %44 = sbr.rel (0) target = $region45
    $region44: #{tpu_custom_call.1} parent=1 // pred_region
      _
    $region45: #{tpu_custom_call.1} parent=1 // pred_fallthru
      _
    // Predicated region
    $region46: #{tpu_custom_call.1} parent=1 // pred_check
      _
    $region47: #{tpu_custom_call.1} parent=1 // pred_check_branch
      %46 = sbr.rel (0) target = $region49
    $region48: #{tpu_custom_call.1} parent=1 // pred_region
      _
    $region49: #{tpu_custom_call.1} parent=1 // pred_fallthru
      _
    // Predicated region
    $region50: #{tpu_custom_call.1} parent=1 // pred_check
      _
    $region51: #{tpu_custom_call.1} parent=1 // pred_check_branch
      %48 = sbr.rel (0) target = $region53
    $region52: #{tpu_custom_call.1} parent=1 // pred_region
      _
    $region53: #{tpu_custom_call.1} parent=1 // pred_fallthru
      _
    // Predicated region
    $region54: #{tpu_custom_call.1} parent=1 // pred_check
      _
    $region55: #{tpu_custom_call.1} parent=1 // pred_check_branch
      %50 = sbr.rel (0) target = $region57
    $region56: #{tpu_custom_call.1} parent=1 // pred_region
      _
    $region57: #{tpu_custom_call.1} parent=1 // pred_fallthru
      _
    %v52 = vld [vmem:[%s2] sm:$0xf]
    %v53 = vld [vmem:[%s2 + $0x4] sm:$0xf]
    %v54 = vld [vmem:[%s2 + $0x8] sm:$0xf]
    %v55 = vld [vmem:[%s2 + $0xc] sm:$0xf]
    %v56 = vld [vmem:[%s3] sm:$0x1]
    %v57 = vld [vmem:[%s4] sm:$0xf]
    %v58 = vld [vmem:[%s4 + $0x4] sm:$0xf]
    %v59 = vld [vmem:[%s4 + $0x8] sm:$0xf]
    %v60 = vld [vmem:[%s4 + $0xc] sm:$0xf]
    %v61 = vld [vmem:[%s5] sm:$0x1]
    %v62 = vld [vmem:[%s6] sm:$0xf]
    %v63 = vld [vmem:[%s6 + $0x4] sm:$0xf]
    %v64 = vld [vmem:[%s6 + $0x8] sm:$0xf]
    %v65 = vld [vmem:[%s6 + $0xc] sm:$0xf]
    %v66 = vld [vmem:[%s6 + $0x10] sm:$0xf]
    %v67 = vld [vmem:[%s6 + $0x14] sm:$0xf]
    %v68 = vld [vmem:[%s6 + $0x18] sm:$0xf]
    %v69 = vld [vmem:[%s6 + $0x1c] sm:$0xf]
    %v70 = vld [vmem:[%s7] sm:$0xf]
    %v71 = vld [vmem:[%s7 + $0x4] sm:$0xf]
    %v72 = vld [vmem:[%s7 + $0x8] sm:$0xf]
    %v73 = vld [vmem:[%s7 + $0xc] sm:$0xf]
    %v74 = vld [vmem:[%s7 + $0x10] sm:$0xf]
    %v75 = vld [vmem:[%s7 + $0x14] sm:$0xf]
    %v76 = vld [vmem:[%s7 + $0x18] sm:$0xf]
    %v77 = vld [vmem:[%s7 + $0x1c] sm:$0xf]
    %v78 = vld [vmem:[%s8] sm:$0x1]
    %v79 = vld [vmem:[%s8 + $0x1] sm:$0x1]
    %v80 = vld [vmem:[%s9] sm:$0x1]
    %v81 = vld [vmem:[%s9 + $0x1] sm:$0x1]
    %v82 = vld [vmem:[%s10] sm:$0xf]
    %v83 = vld [vmem:[%s10 + $0x4] sm:$0xf]
    %v84 = vld [vmem:[%s10 + $0x8] sm:$0xf]
    %v85 = vld [vmem:[%s10 + $0xc] sm:$0xf]
    %v86 = vld [vmem:[%s10 + $0x10] sm:$0xf]
    %v87 = vld [vmem:[%s10 + $0x14] sm:$0xf]
    %v88 = vld [vmem:[%s10 + $0x18] sm:$0xf]
    %v89 = vld [vmem:[%s10 + $0x1c] sm:$0xf]
    %v90 = vld [vmem:[%s11] sm:$0xf]
    %v91 = vld [vmem:[%s11 + $0x4] sm:$0xf]
    %v92 = vld [vmem:[%s11 + $0x8] sm:$0xf]
    %v93 = vld [vmem:[%s11 + $0xc] sm:$0xf]
    %v94 = vld [vmem:[%s12] sm:$0x1]
    %v95 = vld [vmem:[%s13] sm:$0x1]
    %v96 = vld [vmem:[%s0] sm:$0xf]
    %v97 = vld [vmem:[%s0 + $0x10] sm:$0xf]
    %v98 = vld [vmem:[%s0 + $0x20] sm:$0xf]
    %v99 = vld [vmem:[%s0 + $0x30] sm:$0xf]
    %v100 = vld [vmem:[%s0 + $0x40] sm:$0xf]
    %v101 = vld [vmem:[%s0 + $0x50] sm:$0xf]
    %v102 = vld [vmem:[%s0 + $0x60] sm:$0xf]
    %v103 = vld [vmem:[%s0 + $0x70] sm:$0xf]
    %v104 = vld [vmem:[%s0 + $0x80] sm:$0xf]
    %v105 = vld [vmem:[%s0 + $0x90] sm:$0xf]
    %v106 = vld [vmem:[%s0 + $0xa0] sm:$0xf]
    %v107 = vld [vmem:[%s0 + $0xb0] sm:$0xf]
    %v108 = vld [vmem:[%s0 + $0xc0] sm:$0xf]
    %v109 = vld [vmem:[%s0 + $0xd0] sm:$0xf]
    %v110 = vld [vmem:[%s0 + $0xe0] sm:$0xf]
    %v111 = vld [vmem:[%s0 + $0xf0] sm:$0xf]
    %v112 = vld [vmem:[%s1] sm:$0xff]
    %v113 = vld [vmem:[%s1 + $0x8] sm:$0xff]
    %v114 = vld [vmem:[%s1 + $0x10] sm:$0xff]
    %v115 = vld [vmem:[%s1 + $0x18] sm:$0xff]
    %v116 = vld [vmem:[%s1 + $0x20] sm:$0xff]
    %v117 = vld [vmem:[%s1 + $0x28] sm:$0xff]
    %v118 = vld [vmem:[%s1 + $0x30] sm:$0xff]
    %v119 = vld [vmem:[%s1 + $0x38] sm:$0xff]
    %v120 = vld [vmem:[%s1 + $0x40] sm:$0xff]
    %v121 = vld [vmem:[%s1 + $0x48] sm:$0xff]
    %v122 = vld [vmem:[%s1 + $0x50] sm:$0xff]
    %v123 = vld [vmem:[%s1 + $0x58] sm:$0xff]
    %v124 = vld [vmem:[%s1 + $0x60] sm:$0xff]
    %v125 = vld [vmem:[%s1 + $0x68] sm:$0xff]
    %v126 = vld [vmem:[%s1 + $0x70] sm:$0xff]
    %v127 = vld [vmem:[%s1 + $0x78] sm:$0xff]
    %v144 = vunpack.c.l.b16 %v96
    %v145 = vunpack.c.l.b16 %v97
    %v146 = vunpack.c.l.b16 %v98
    %v147 = vunpack.c.l.b16 %v99
    %v148 = vunpack.c.l.b16 %v100
    %v149 = vunpack.c.l.b16 %v101
    %v150 = vunpack.c.l.b16 %v102
    %v151 = vunpack.c.l.b16 %v103
    %v152 = vunpack.c.l.b16 %v104
    %v153 = vunpack.c.l.b16 %v105
    %v154 = vunpack.c.l.b16 %v106
    %v155 = vunpack.c.l.b16 %v107
    %v156 = vunpack.c.l.b16 %v108
    %v157 = vunpack.c.l.b16 %v109
    %v158 = vunpack.c.l.b16 %v110
    %v159 = vunpack.c.l.b16 %v111
    %v160 = vpack.c.b16 %v145, %v144
    %v161 = vpack.c.b16 %v147, %v146
    %v162 = vpack.c.b16 %v149, %v148
    %v163 = vpack.c.b16 %v151, %v150
    %v164 = vpack.c.b16 %v153, %v152
    %v165 = vpack.c.b16 %v155, %v154
    %v166 = vpack.c.b16 %v157, %v156
    %v167 = vpack.c.b16 %v159, %v158
    %v172 = vunpack.c.l.b16 %v52
    %v173 = vunpack.c.l.b16 %v53
    %v174 = vunpack.c.l.b16 %v54
    %v175 = vunpack.c.l.b16 %v55
    %v176 = vpack.c.b16 %v173, %v172
    %v177 = vpack.c.b16 %v175, %v174
    %vm180 = vcmask 261120
    %v182 = vsel %vm180, %v160, 0
    %v185 = vsel %vm180, %v161, 0
    %v188 = vsel %vm180, %v162, 0
    %v191 = vsel %vm180, %v163, 0
    %v194 = vsel %vm180, %v164, 0
    %v197 = vsel %vm180, %v165, 0
    %v200 = vsel %vm180, %v166, 0
    %v203 = vsel %vm180, %v167, 0
    %205 = vmatprep.subr.bf16.mxu0 0
    %206 = vmatpush1.bf16.msra.mxu0 0
    %207 = vmatprep.subr.bf16.mxu0 0
    %208 = vmatpush1.bf16.msra.mxu0 0
    %209 = vmatprep.subr.bf16.mxu0 0
    %210 = vmatpush1.bf16.msra.mxu0 0
    %211 = vmatprep.subr.bf16.mxu0 0
    %212 = vmatpush1.bf16.msra.mxu0 0
    %213 = vmatprep.subr.bf16.mxu0 0
    %214 = vmatpush1.bf16.msra.mxu0 0
    %215 = vmatprep.subr.bf16.mxu0 0
    %216 = vmatpush1.bf16.msra.mxu0 0
    %217 = vmatprep.subr.bf16.mxu0 0
    %218 = vmatpush1.bf16.msra.mxu0 %v177
    %219 = vmatprep.subr.bf16.mxu0 0
    %220 = vmatpush1.bf16.msra.mxu0 %v176
    %221 = vmatprep.subr.bf16.mxu0 0
    %222 = vmatpush2.bf16.msra.mxu0 0
    %223 = vmatprep.subr.bf16.mxu0 0
    %224 = vmatpush2.bf16.msra.mxu0 0
    %225 = vmatprep.subr.bf16.mxu0 0
    %226 = vmatpush2.bf16.msra.mxu0 0
    %227 = vmatprep.subr.bf16.mxu0 0
    %228 = vmatpush2.bf16.msra.mxu0 0
    %229 = vmatprep.subr.bf16.mxu0 0
    %230 = vmatpush2.bf16.msra.mxu0 0
    %231 = vmatprep.subr.bf16.mxu0 0
    %232 = vmatpush2.bf16.msra.mxu0 0
    %233 = vmatprep.subr.bf16.mxu0 0
    %234 = vmatpush2.bf16.msra.mxu0 0
    %235 = vmatprep.subr.bf16.mxu0 0
    %236 = vmatpush2.bf16.msra.mxu0 0
    %237 = vmatprep.mubr.bf16.mxu0 0
    %238 = vmatmul.mubr.bf16.gmra.mxu0 %v182
    %v239 = vpop.f32.mrf.mxu0
    %v240 = vadd.f32 0.0, %v239
    %v241 = vpop.f32.mrf.mxu0
    %v242 = vpop.f32.mrf.mxu0
    %v243 = vadd.f32 0.0, %v242
    %v244 = vpop.f32.mrf.mxu0
    %245 = vmatprep.mubr.bf16.mxu0 0
    %246 = vmatmul.mubr.bf16.gmra.mxu0 %v185
    %v247 = vpop.f32.mrf.mxu0
    %v248 = vadd.f32 0.0, %v247
    %v249 = vpop.f32.mrf.mxu0
    %v250 = vpop.f32.mrf.mxu0
    %v251 = vadd.f32 0.0, %v250
    %v252 = vpop.f32.mrf.mxu0
    %253 = vmatprep.mubr.bf16.mxu0 0
    %254 = vmatmul.mubr.bf16.gmra.mxu0 %v188
    %v255 = vpop.f32.mrf.mxu0
    %v256 = vadd.f32 0.0, %v255
    %v257 = vpop.f32.mrf.mxu0
    %v258 = vpop.f32.mrf.mxu0
    %v259 = vadd.f32 0.0, %v258
    %v260 = vpop.f32.mrf.mxu0
    %261 = vmatprep.mubr.bf16.mxu0 0
    %262 = vmatmul.mubr.bf16.gmra.mxu0 %v191
    %v263 = vpop.f32.mrf.mxu0
    %v264 = vadd.f32 0.0, %v263
    %v265 = vpop.f32.mrf.mxu0
    %v266 = vpop.f32.mrf.mxu0
    %v267 = vadd.f32 0.0, %v266
    %v268 = vpop.f32.mrf.mxu0
    %269 = vmatprep.mubr.bf16.mxu0 0
    %270 = vmatmul.mubr.bf16.gmra.mxu0 %v194
    %v271 = vpop.f32.mrf.mxu0
    %v272 = vadd.f32 0.0, %v271
    %v273 = vpop.f32.mrf.mxu0
    %v274 = vpop.f32.mrf.mxu0
    %v275 = vadd.f32 0.0, %v274
    %v276 = vpop.f32.mrf.mxu0
    %277 = vmatprep.mubr.bf16.mxu0 0
    %278 = vmatmul.mubr.bf16.gmra.mxu0 %v197
    %v279 = vpop.f32.mrf.mxu0
    %v280 = vadd.f32 0.0, %v279
    %v281 = vpop.f32.mrf.mxu0
    %v282 = vpop.f32.mrf.mxu0
    %v283 = vadd.f32 0.0, %v282
    %v284 = vpop.f32.mrf.mxu0
    %285 = vmatprep.mubr.bf16.mxu0 0
    %286 = vmatmul.mubr.bf16.gmra.mxu0 %v200
    %v287 = vpop.f32.mrf.mxu0
    %v288 = vadd.f32 0.0, %v287
    %v289 = vpop.f32.mrf.mxu0
    %v290 = vpop.f32.mrf.mxu0
    %v291 = vadd.f32 0.0, %v290
    %v292 = vpop.f32.mrf.mxu0
    %293 = vmatprep.mubr.bf16.mxu0 0
    %294 = vmatmul.mubr.bf16.gmra.mxu0 %v203
    %v295 = vpop.f32.mrf.mxu0
    %v296 = vadd.f32 0.0, %v295
    %v297 = vpop.f32.mrf.mxu0
    %v298 = vpop.f32.mrf.mxu0
    %v299 = vadd.f32 0.0, %v298
    %v300 = vpop.f32.mrf.mxu0
    %301 = vdwg.mxu0
    %v303 = vlaneseq
    %v304 = vshrl.u32 %v303, 7
    %v305 = vsub.s32 0, %v304
    %v306 = vrot.slane %v56, %v305
    %v308 = vadd.f32 %v240, %v306
    %v309 = vadd.f32 %v243, %v306
    %v310 = vadd.f32 %v248, %v306
    %v311 = vadd.f32 %v251, %v306
    %v312 = vadd.f32 %v256, %v306
    %v313 = vadd.f32 %v259, %v306
    %v314 = vadd.f32 %v264, %v306
    %v315 = vadd.f32 %v267, %v306
    %v316 = vadd.f32 %v272, %v306
    %v317 = vadd.f32 %v275, %v306
    %v318 = vadd.f32 %v280, %v306
    %v319 = vadd.f32 %v283, %v306
    %v320 = vadd.f32 %v288, %v306
    %v321 = vadd.f32 %v291, %v306
    %v322 = vadd.f32 %v296, %v306
    %v323 = vadd.f32 %v299, %v306
    %v328 = vunpack.c.l.b16 %v57
    %v329 = vunpack.c.l.b16 %v58
    %v330 = vunpack.c.l.b16 %v59
    %v331 = vunpack.c.l.b16 %v60
    %v332 = vpack.c.b16 %v329, %v328
    %v333 = vpack.c.b16 %v331, %v330
    %v337 = vsel %vm180, 0, 0
    %339 = vmatprep.subr.bf16.mxu0 0
    %340 = vmatpush1.bf16.msra.mxu0 0
    %341 = vmatprep.subr.bf16.mxu0 0
    %342 = vmatpush1.bf16.msra.mxu0 0
    %343 = vmatprep.subr.bf16.mxu0 0
    %344 = vmatpush1.bf16.msra.mxu0 0
    %345 = vmatprep.subr.bf16.mxu0 0
    %346 = vmatpush1.bf16.msra.mxu0 0
    %347 = vmatprep.subr.bf16.mxu0 0
    %348 = vmatpush1.bf16.msra.mxu0 0
    %349 = vmatprep.subr.bf16.mxu0 0
    %350 = vmatpush1.bf16.msra.mxu0 0
    %351 = vmatprep.subr.bf16.mxu0 0
    %352 = vmatpush1.bf16.msra.mxu0 %v333
    %353 = vmatprep.subr.bf16.mxu0 0
    %354 = vmatpush1.bf16.msra.mxu0 %v332
    %355 = vmatprep.subr.bf16.mxu0 0
    %356 = vmatpush2.bf16.msra.mxu0 0
    %357 = vmatprep.subr.bf16.mxu0 0
    %358 = vmatpush2.bf16.msra.mxu0 0
    %359 = vmatprep.subr.bf16.mxu0 0
    %360 = vmatpush2.bf16.msra.mxu0 0
    %361 = vmatprep.subr.bf16.mxu0 0
    %362 = vmatpush2.bf16.msra.mxu0 0
    %363 = vmatprep.subr.bf16.mxu0 0
    %364 = vmatpush2.bf16.msra.mxu0 0
    %365 = vmatprep.subr.bf16.mxu0 0
    %366 = vmatpush2.bf16.msra.mxu0 0
    %367 = vmatprep.subr.bf16.mxu0 0
    %368 = vmatpush2.bf16.msra.mxu0 0
    %369 = vmatprep.subr.bf16.mxu0 0
    %370 = vmatpush2.bf16.msra.mxu0 0
    %371 = vmatprep.mubr.bf16.mxu0 0
    %372 = vmatmul.mubr.bf16.gmra.mxu0 %v337
    %v373 = vpop.f32.mrf.mxu0
    %v374 = vadd.f32 0.0, %v373
    %v375 = vpop.f32.mrf.mxu0
    %v376 = vpop.f32.mrf.mxu0
    %v377 = vadd.f32 0.0, %v376
    %v378 = vpop.f32.mrf.mxu0
    %379 = vdwg.mxu0
    %v382 = vcombine.high %v374, %v374
    %v384 = vunpack.c.l.s4 1966171168
    %v385 = vunpack.c.0.s8 %v384
    %v386 = vlaneseq
    %v387 = vshrl.u32 %v386, 7
    %v388 = vsub.s32 %v385, %v387
    %v389 = vrot.slane %v374, %v388
    %v391 = vunpack.c.l.s4 1966171168
    %v392 = vunpack.c.0.s8 %v391
    %v393 = vlaneseq
    %v394 = vshrl.u32 %v393, 7
    %v395 = vsub.s32 %v392, %v394
    %v396 = vrot.slane %v382, %v395
    %v397 = vcombine.high %v389, %v389
    %v398 = vcombine.high %v396, %v396
    %v400 = vunpack.c.l.s4 1966171168
    %v401 = vunpack.c.0.s8 %v400
    %v402 = vlaneseq
    %v403 = vshrl.u32 %v402, 7
    %v404 = vsub.s32 %v401, %v403
    %v405 = vrot.slane %v389, %v404
    %v407 = vunpack.c.l.s4 1966171168
    %v408 = vunpack.c.0.s8 %v407
    %v409 = vlaneseq
    %v410 = vshrl.u32 %v409, 7
    %v411 = vsub.s32 %v408, %v410
    %v412 = vrot.slane %v396, %v411
    %v414 = vunpack.c.l.s4 1966171168
    %v415 = vunpack.c.0.s8 %v414
    %v416 = vlaneseq
    %v417 = vshrl.u32 %v416, 7
    %v418 = vsub.s32 %v415, %v417
    %v419 = vrot.slane %v397, %v418
    %v421 = vunpack.c.l.s4 1966171168
    %v422 = vunpack.c.0.s8 %v421
    %v423 = vlaneseq
    %v424 = vshrl.u32 %v423, 7
    %v425 = vsub.s32 %v422, %v424
    %v426 = vrot.slane %v398, %v425
    %v427 = vcombine.high %v405, %v405
    %v428 = vcombine.high %v412, %v412
    %v429 = vcombine.high %v419, %v419
    %v430 = vcombine.high %v426, %v426
    %v431 = vcombine.high %v377, %v377
    %v433 = vunpack.c.l.s4 1966171168
    %v434 = vunpack.c.0.s8 %v433
    %v435 = vlaneseq
    %v436 = vshrl.u32 %v435, 7
    %v437 = vsub.s32 %v434, %v436
    %v438 = vrot.slane %v377, %v437
    %v440 = vunpack.c.l.s4 1966171168
    %v441 = vunpack.c.0.s8 %v440
    %v442 = vlaneseq
    %v443 = vshrl.u32 %v442, 7
    %v444 = vsub.s32 %v441, %v443
    %v445 = vrot.slane %v431, %v444
    %v446 = vcombine.high %v438, %v438
    %v447 = vcombine.high %v445, %v445
    %v449 = vunpack.c.l.s4 1966171168
    %v450 = vunpack.c.0.s8 %v449
    %v451 = vlaneseq
    %v452 = vshrl.u32 %v451, 7
    %v453 = vsub.s32 %v450, %v452
    %v454 = vrot.slane %v438, %v453
    %v456 = vunpack.c.l.s4 1966171168
    %v457 = vunpack.c.0.s8 %v456
    %v458 = vlaneseq
    %v459 = vshrl.u32 %v458, 7
    %v460 = vsub.s32 %v457, %v459
    %v461 = vrot.slane %v445, %v460
    %v463 = vunpack.c.l.s4 1966171168
    %v464 = vunpack.c.0.s8 %v463
    %v465 = vlaneseq
    %v466 = vshrl.u32 %v465, 7
    %v467 = vsub.s32 %v464, %v466
    %v468 = vrot.slane %v446, %v467
    %v470 = vunpack.c.l.s4 1966171168
    %v471 = vunpack.c.0.s8 %v470
    %v472 = vlaneseq
    %v473 = vshrl.u32 %v472, 7
    %v474 = vsub.s32 %v471, %v473
    %v475 = vrot.slane %v447, %v474
    %v476 = vcombine.high %v454, %v454
    %v477 = vcombine.high %v461, %v461
    %v478 = vcombine.high %v468, %v468
    %v479 = vcombine.high %v475, %v475
    %v480 = vlaneseq
    %v481 = vshrl.u32 %v480, 7
    %v482 = vsub.s32 0, %v481
    %v483 = vrot.slane %v405, %v482
    %v484 = vlaneseq
    %v485 = vshrl.u32 %v484, 7
    %v486 = vsub.s32 0, %v485
    %v487 = vrot.slane %v419, %v486
    %v488 = vlaneseq
    %v489 = vshrl.u32 %v488, 7
    %v490 = vsub.s32 0, %v489
    %v491 = vrot.slane %v427, %v490
    %v492 = vlaneseq
    %v493 = vshrl.u32 %v492, 7
    %v494 = vsub.s32 0, %v493
    %v495 = vrot.slane %v429, %v494
    %v496 = vlaneseq
    %v497 = vshrl.u32 %v496, 7
    %v498 = vsub.s32 0, %v497
    %v499 = vrot.slane %v412, %v498
    %v500 = vlaneseq
    %v501 = vshrl.u32 %v500, 7
    %v502 = vsub.s32 0, %v501
    %v503 = vrot.slane %v426, %v502
    %v504 = vlaneseq
    %v505 = vshrl.u32 %v504, 7
    %v506 = vsub.s32 0, %v505
    %v507 = vrot.slane %v428, %v506
    %v508 = vlaneseq
    %v509 = vshrl.u32 %v508, 7
    %v510 = vsub.s32 0, %v509
    %v511 = vrot.slane %v430, %v510
    %v512 = vlaneseq
    %v513 = vshrl.u32 %v512, 7
    %v514 = vsub.s32 0, %v513
    %v515 = vrot.slane %v454, %v514
    %v516 = vlaneseq
    %v517 = vshrl.u32 %v516, 7
    %v518 = vsub.s32 0, %v517
    %v519 = vrot.slane %v468, %v518
    %v520 = vlaneseq
    %v521 = vshrl.u32 %v520, 7
    %v522 = vsub.s32 0, %v521
    %v523 = vrot.slane %v476, %v522
    %v524 = vlaneseq
    %v525 = vshrl.u32 %v524, 7
    %v526 = vsub.s32 0, %v525
    %v527 = vrot.slane %v478, %v526
    %v528 = vlaneseq
    %v529 = vshrl.u32 %v528, 7
    %v530 = vsub.s32 0, %v529
    %v531 = vrot.slane %v461, %v530
    %v532 = vlaneseq
    %v533 = vshrl.u32 %v532, 7
    %v534 = vsub.s32 0, %v533
    %v535 = vrot.slane %v475, %v534
    %v536 = vlaneseq
    %v537 = vshrl.u32 %v536, 7
    %v538 = vsub.s32 0, %v537
    %v539 = vrot.slane %v477, %v538
    %v540 = vlaneseq
    %v541 = vshrl.u32 %v540, 7
    %v542 = vsub.s32 0, %v541
    %v543 = vrot.slane %v479, %v542
    %v560 = vadd.f32 %v308, %v483
    %v561 = vadd.f32 %v309, %v487
    %v562 = vadd.f32 %v310, %v491
    %v563 = vadd.f32 %v311, %v495
    %v564 = vadd.f32 %v312, %v499
    %v565 = vadd.f32 %v313, %v503
    %v566 = vadd.f32 %v314, %v507
    %v567 = vadd.f32 %v315, %v511
    %v568 = vadd.f32 %v316, %v515
    %v569 = vadd.f32 %v317, %v519
    %v570 = vadd.f32 %v318, %v523
    %v571 = vadd.f32 %v319, %v527
    %v572 = vadd.f32 %v320, %v531
    %v573 = vadd.f32 %v321, %v535
    %v574 = vadd.f32 %v322, %v539
    %v575 = vadd.f32 %v323, %v543
    %v576 = vtanh.pop %v560
    %v577 = vtanh.pop %v561
    %v578 = vtanh.pop %v562
    %v579 = vtanh.pop %v563
    %v580 = vtanh.pop %v564
    %v581 = vtanh.pop %v565
    %v582 = vtanh.pop %v566
    %v583 = vtanh.pop %v567
    %v584 = vtanh.pop %v568
    %v585 = vtanh.pop %v569
    %v586 = vtanh.pop %v570
    %v587 = vtanh.pop %v571
    %v588 = vtanh.pop %v572
    %v589 = vtanh.pop %v573
    %v590 = vtanh.pop %v574
    %v591 = vtanh.pop %v575
    %v593 = vlaneseq
    %v594 = vshrl.u32 %v593, 7
    %v595 = vsub.s32 0, %v594
    %v596 = vrot.slane %v61, %v595
    %v598 = vmul.f32 %v576, %v596
    %v599 = vmul.f32 %v577, %v596
    %v600 = vmul.f32 %v578, %v596
    %v601 = vmul.f32 %v579, %v596
    %v602 = vmul.f32 %v580, %v596
    %v603 = vmul.f32 %v581, %v596
    %v604 = vmul.f32 %v582, %v596
    %v605 = vmul.f32 %v583, %v596
    %v606 = vmul.f32 %v584, %v596
    %v607 = vmul.f32 %v585, %v596
    %v608 = vmul.f32 %v586, %v596
    %v609 = vmul.f32 %v587, %v596
    %v610 = vmul.f32 %v588, %v596
    %v611 = vmul.f32 %v589, %v596
    %v612 = vmul.f32 %v590, %v596
    %v613 = vmul.f32 %v591, %v596
    %v614 = vsel %vm180, %v598, 0.0
    %615 = vadd.xlane.f32.xlu0 %v614
    %v616 = vpop.xlane.xlu0 %615
    %v617 = vsel %vm180, %v599, 0.0
    %618 = vadd.xlane.f32.xlu0 %v617
    %v619 = vpop.xlane.xlu0 %618
    %v620 = vsel %vm180, %v600, 0.0
    %621 = vadd.xlane.f32.xlu0 %v620
    %v622 = vpop.xlane.xlu0 %621
    %v623 = vsel %vm180, %v601, 0.0
    %624 = vadd.xlane.f32.xlu0 %v623
    %v625 = vpop.xlane.xlu0 %624
    %v626 = vsel %vm180, %v602, 0.0
    %627 = vadd.xlane.f32.xlu0 %v626
    %v628 = vpop.xlane.xlu0 %627
    %v629 = vsel %vm180, %v603, 0.0
    %630 = vadd.xlane.f32.xlu0 %v629
    %v631 = vpop.xlane.xlu0 %630
    %v632 = vsel %vm180, %v604, 0.0
    %633 = vadd.xlane.f32.xlu0 %v632
    %v634 = vpop.xlane.xlu0 %633
    %v635 = vsel %vm180, %v605, 0.0
    %636 = vadd.xlane.f32.xlu0 %v635
    %v637 = vpop.xlane.xlu0 %636
    %v638 = vsel %vm180, %v606, 0.0
    %639 = vadd.xlane.f32.xlu0 %v638
    %v640 = vpop.xlane.xlu0 %639
    %v641 = vsel %vm180, %v607, 0.0
    %642 = vadd.xlane.f32.xlu0 %v641
    %v643 = vpop.xlane.xlu0 %642
    %v644 = vsel %vm180, %v608, 0.0
    %645 = vadd.xlane.f32.xlu0 %v644
    %v646 = vpop.xlane.xlu0 %645
    %v647 = vsel %vm180, %v609, 0.0
    %648 = vadd.xlane.f32.xlu0 %v647
    %v649 = vpop.xlane.xlu0 %648
    %v650 = vsel %vm180, %v610, 0.0
    %651 = vadd.xlane.f32.xlu0 %v650
    %v652 = vpop.xlane.xlu0 %651
    %v653 = vsel %vm180, %v611, 0.0
    %654 = vadd.xlane.f32.xlu0 %v653
    %v655 = vpop.xlane.xlu0 %654
    %v656 = vsel %vm180, %v612, 0.0
    %657 = vadd.xlane.f32.xlu0 %v656
    %v658 = vpop.xlane.xlu0 %657
    %v659 = vsel %vm180, %v613, 0.0
    %660 = vadd.xlane.f32.xlu0 %v659
    %v661 = vpop.xlane.xlu0 %660
    %v662 = vrot.slane %v616, 4
    %v663 = vmax.f32 %v616, %v662
    %v664 = vrot.slane %v663, 2
    %v665 = vmax.f32 %v663, %v664
    %v666 = vrot.slane %v665, 1
    %v667 = vmax.f32 %v665, %v666
    %v668 = vrot.slane %v619, 4
    %v669 = vmax.f32 %v619, %v668
    %v670 = vrot.slane %v669, 2
    %v671 = vmax.f32 %v669, %v670
    %v672 = vrot.slane %v671, 1
    %v673 = vmax.f32 %v671, %v672
    %v674 = vrot.slane %v622, 4
    %v675 = vmax.f32 %v622, %v674
    %v676 = vrot.slane %v675, 2
    %v677 = vmax.f32 %v675, %v676
    %v678 = vrot.slane %v677, 1
    %v679 = vmax.f32 %v677, %v678
    %v680 = vrot.slane %v625, 4
    %v681 = vmax.f32 %v625, %v680
    %v682 = vrot.slane %v681, 2
    %v683 = vmax.f32 %v681, %v682
    %v684 = vrot.slane %v683, 1
    %v685 = vmax.f32 %v683, %v684
    %v686 = vrot.slane %v628, 4
    %v687 = vmax.f32 %v628, %v686
    %v688 = vrot.slane %v687, 2
    %v689 = vmax.f32 %v687, %v688
    %v690 = vrot.slane %v689, 1
    %v691 = vmax.f32 %v689, %v690
    %v692 = vrot.slane %v631, 4
    %v693 = vmax.f32 %v631, %v692
    %v694 = vrot.slane %v693, 2
    %v695 = vmax.f32 %v693, %v694
    %v696 = vrot.slane %v695, 1
    %v697 = vmax.f32 %v695, %v696
    %v698 = vrot.slane %v634, 4
    %v699 = vmax.f32 %v634, %v698
    %v700 = vrot.slane %v699, 2
    %v701 = vmax.f32 %v699, %v700
    %v702 = vrot.slane %v701, 1
    %v703 = vmax.f32 %v701, %v702
    %v704 = vrot.slane %v637, 4
    %v705 = vmax.f32 %v637, %v704
    %v706 = vrot.slane %v705, 2
    %v707 = vmax.f32 %v705, %v706
    %v708 = vrot.slane %v707, 1
    %v709 = vmax.f32 %v707, %v708
    %v710 = vrot.slane %v640, 4
    %v711 = vmax.f32 %v640, %v710
    %v712 = vrot.slane %v711, 2
    %v713 = vmax.f32 %v711, %v712
    %v714 = vrot.slane %v713, 1
    %v715 = vmax.f32 %v713, %v714
    %v716 = vrot.slane %v643, 4
    %v717 = vmax.f32 %v643, %v716
    %v718 = vrot.slane %v717, 2
    %v719 = vmax.f32 %v717, %v718
    %v720 = vrot.slane %v719, 1
    %v721 = vmax.f32 %v719, %v720
    %v722 = vrot.slane %v646, 4
    %v723 = vmax.f32 %v646, %v722
    %v724 = vrot.slane %v723, 2
    %v725 = vmax.f32 %v723, %v724
    %v726 = vrot.slane %v725, 1
    %v727 = vmax.f32 %v725, %v726
    %v728 = vrot.slane %v649, 4
    %v729 = vmax.f32 %v649, %v728
    %v730 = vrot.slane %v729, 2
    %v731 = vmax.f32 %v729, %v730
    %v732 = vrot.slane %v731, 1
    %v733 = vmax.f32 %v731, %v732
    %v734 = vrot.slane %v652, 4
    %v735 = vmax.f32 %v652, %v734
    %v736 = vrot.slane %v735, 2
    %v737 = vmax.f32 %v735, %v736
    %v738 = vrot.slane %v737, 1
    %v739 = vmax.f32 %v737, %v738
    %v740 = vrot.slane %v655, 4
    %v741 = vmax.f32 %v655, %v740
    %v742 = vrot.slane %v741, 2
    %v743 = vmax.f32 %v741, %v742
    %v744 = vrot.slane %v743, 1
    %v745 = vmax.f32 %v743, %v744
    %v746 = vrot.slane %v658, 4
    %v747 = vmax.f32 %v658, %v746
    %v748 = vrot.slane %v747, 2
    %v749 = vmax.f32 %v747, %v748
    %v750 = vrot.slane %v749, 1
    %v751 = vmax.f32 %v749, %v750
    %v752 = vrot.slane %v661, 4
    %v753 = vmax.f32 %v661, %v752
    %v754 = vrot.slane %v753, 2
    %v755 = vmax.f32 %v753, %v754
    %v756 = vrot.slane %v755, 1
    %v757 = vmax.f32 %v755, %v756
    %v758 = vsub.f32 %v616, %v667
    %v759 = vsub.f32 %v619, %v673
    %v760 = vsub.f32 %v622, %v679
    %v761 = vsub.f32 %v625, %v685
    %v762 = vsub.f32 %v628, %v691
    %v763 = vsub.f32 %v631, %v697
    %v764 = vsub.f32 %v634, %v703
    %v765 = vsub.f32 %v637, %v709
    %v766 = vsub.f32 %v640, %v715
    %v767 = vsub.f32 %v643, %v721
    %v768 = vsub.f32 %v646, %v727
    %v769 = vsub.f32 %v649, %v733
    %v770 = vsub.f32 %v652, %v739
    %v771 = vsub.f32 %v655, %v745
    %v772 = vsub.f32 %v658, %v751
    %v773 = vsub.f32 %v661, %v757
    %v774 = vmul.f32 %v758, 1.442695
    %v775 = vpow.pop %v774
    %v776 = vmul.f32 %v759, 1.442695
    %v777 = vpow.pop %v776
    %v778 = vmul.f32 %v760, 1.442695
    %v779 = vpow.pop %v778
    %v780 = vmul.f32 %v761, 1.442695
    %v781 = vpow.pop %v780
    %v782 = vmul.f32 %v762, 1.442695
    %v783 = vpow.pop %v782
    %v784 = vmul.f32 %v763, 1.442695
    %v785 = vpow.pop %v784
    %v786 = vmul.f32 %v764, 1.442695
    %v787 = vpow.pop %v786
    %v788 = vmul.f32 %v765, 1.442695
    %v789 = vpow.pop %v788
    %v790 = vmul.f32 %v766, 1.442695
    %v791 = vpow.pop %v790
    %v792 = vmul.f32 %v767, 1.442695
    %v793 = vpow.pop %v792
    %v794 = vmul.f32 %v768, 1.442695
    %v795 = vpow.pop %v794
    %v796 = vmul.f32 %v769, 1.442695
    %v797 = vpow.pop %v796
    %v798 = vmul.f32 %v770, 1.442695
    %v799 = vpow.pop %v798
    %v800 = vmul.f32 %v771, 1.442695
    %v801 = vpow.pop %v800
    %v802 = vmul.f32 %v772, 1.442695
    %v803 = vpow.pop %v802
    %v804 = vmul.f32 %v773, 1.442695
    %v805 = vpow.pop %v804
    %v806 = vmul.f32 %v775, %v112
    %v807 = vmul.f32 %v777, %v113
    %v808 = vmul.f32 %v779, %v114
    %v809 = vmul.f32 %v781, %v115
    %v810 = vmul.f32 %v783, %v116
    %v811 = vmul.f32 %v785, %v117
    %v812 = vmul.f32 %v787, %v118
    %v813 = vmul.f32 %v789, %v119
    %v814 = vmul.f32 %v791, %v120
    %v815 = vmul.f32 %v793, %v121
    %v816 = vmul.f32 %v795, %v122
    %v817 = vmul.f32 %v797, %v123
    %v818 = vmul.f32 %v799, %v124
    %v819 = vmul.f32 %v801, %v125
    %v820 = vmul.f32 %v803, %v126
    %v821 = vmul.f32 %v805, %v127
    %vm822 = vcmask 7168
    %v823 = vsel %vm822, %v806, 0.0
    %v824 = vrot.slane %v823, 4
    %v825 = vadd.f32 %v823, %v824
    %v826 = vrot.slane %v825, 2
    %v827 = vadd.f32 %v825, %v826
    %v828 = vrot.slane %v827, 1
    %v829 = vadd.f32 %v827, %v828
    %v830 = vsel %vm822, %v807, 0.0
    %v831 = vrot.slane %v830, 4
    %v832 = vadd.f32 %v830, %v831
    %v833 = vrot.slane %v832, 2
    %v834 = vadd.f32 %v832, %v833
    %v835 = vrot.slane %v834, 1
    %v836 = vadd.f32 %v834, %v835
    %v837 = vsel %vm822, %v808, 0.0
    %v838 = vrot.slane %v837, 4
    %v839 = vadd.f32 %v837, %v838
    %v840 = vrot.slane %v839, 2
    %v841 = vadd.f32 %v839, %v840
    %v842 = vrot.slane %v841, 1
    %v843 = vadd.f32 %v841, %v842
    %v844 = vsel %vm822, %v809, 0.0
    %v845 = vrot.slane %v844, 4
    %v846 = vadd.f32 %v844, %v845
    %v847 = vrot.slane %v846, 2
    %v848 = vadd.f32 %v846, %v847
    %v849 = vrot.slane %v848, 1
    %v850 = vadd.f32 %v848, %v849
    %v851 = vsel %vm822, %v810, 0.0
    %v852 = vrot.slane %v851, 4
    %v853 = vadd.f32 %v851, %v852
    %v854 = vrot.slane %v853, 2
    %v855 = vadd.f32 %v853, %v854
    %v856 = vrot.slane %v855, 1
    %v857 = vadd.f32 %v855, %v856
    %v858 = vsel %vm822, %v811, 0.0
    %v859 = vrot.slane %v858, 4
    %v860 = vadd.f32 %v858, %v859
    %v861 = vrot.slane %v860, 2
    %v862 = vadd.f32 %v860, %v861
    %v863 = vrot.slane %v862, 1
    %v864 = vadd.f32 %v862, %v863
    %v865 = vsel %vm822, %v812, 0.0
    %v866 = vrot.slane %v865, 4
    %v867 = vadd.f32 %v865, %v866
    %v868 = vrot.slane %v867, 2
    %v869 = vadd.f32 %v867, %v868
    %v870 = vrot.slane %v869, 1
    %v871 = vadd.f32 %v869, %v870
    %v872 = vsel %vm822, %v813, 0.0
    %v873 = vrot.slane %v872, 4
    %v874 = vadd.f32 %v872, %v873
    %v875 = vrot.slane %v874, 2
    %v876 = vadd.f32 %v874, %v875
    %v877 = vrot.slane %v876, 1
    %v878 = vadd.f32 %v876, %v877
    %v879 = vsel %vm822, %v814, 0.0
    %v880 = vrot.slane %v879, 4
    %v881 = vadd.f32 %v879, %v880
    %v882 = vrot.slane %v881, 2
    %v883 = vadd.f32 %v881, %v882
    %v884 = vrot.slane %v883, 1
    %v885 = vadd.f32 %v883, %v884
    %v886 = vsel %vm822, %v815, 0.0
    %v887 = vrot.slane %v886, 4
    %v888 = vadd.f32 %v886, %v887
    %v889 = vrot.slane %v888, 2
    %v890 = vadd.f32 %v888, %v889
    %v891 = vrot.slane %v890, 1
    %v892 = vadd.f32 %v890, %v891
    %v893 = vsel %vm822, %v816, 0.0
    %v894 = vrot.slane %v893, 4
    %v895 = vadd.f32 %v893, %v894
    %v896 = vrot.slane %v895, 2
    %v897 = vadd.f32 %v895, %v896
    %v898 = vrot.slane %v897, 1
    %v899 = vadd.f32 %v897, %v898
    %v900 = vsel %vm822, %v817, 0.0
    %v901 = vrot.slane %v900, 4
    %v902 = vadd.f32 %v900, %v901
    %v903 = vrot.slane %v902, 2
    %v904 = vadd.f32 %v902, %v903
    %v905 = vrot.slane %v904, 1
    %v906 = vadd.f32 %v904, %v905
    %v907 = vsel %vm822, %v818, 0.0
    %v908 = vrot.slane %v907, 4
    %v909 = vadd.f32 %v907, %v908
    %v910 = vrot.slane %v909, 2
    %v911 = vadd.f32 %v909, %v910
    %v912 = vrot.slane %v911, 1
    %v913 = vadd.f32 %v911, %v912
    %v914 = vsel %vm822, %v819, 0.0
    %v915 = vrot.slane %v914, 4
    %v916 = vadd.f32 %v914, %v915
    %v917 = vrot.slane %v916, 2
    %v918 = vadd.f32 %v916, %v917
    %v919 = vrot.slane %v918, 1
    %v920 = vadd.f32 %v918, %v919
    %v921 = vsel %vm822, %v820, 0.0
    %v922 = vrot.slane %v921, 4
    %v923 = vadd.f32 %v921, %v922
    %v924 = vrot.slane %v923, 2
    %v925 = vadd.f32 %v923, %v924
    %v926 = vrot.slane %v925, 1
    %v927 = vadd.f32 %v925, %v926
    %v928 = vsel %vm822, %v821, 0.0
    %v929 = vrot.slane %v928, 4
    %v930 = vadd.f32 %v928, %v929
    %v931 = vrot.slane %v930, 2
    %v932 = vadd.f32 %v930, %v931
    %v933 = vrot.slane %v932, 1
    %v934 = vadd.f32 %v932, %v933
    %vm935 = vcmp.eq.f32.partialorder %v829, 0.0
    %vm936 = vcmp.eq.f32.partialorder %v836, 0.0
    %vm937 = vcmp.eq.f32.partialorder %v843, 0.0
    %vm938 = vcmp.eq.f32.partialorder %v850, 0.0
    %vm939 = vcmp.eq.f32.partialorder %v857, 0.0
    %vm940 = vcmp.eq.f32.partialorder %v864, 0.0
    %vm941 = vcmp.eq.f32.partialorder %v871, 0.0
    %vm942 = vcmp.eq.f32.partialorder %v878, 0.0
    %vm943 = vcmp.eq.f32.partialorder %v885, 0.0
    %vm944 = vcmp.eq.f32.partialorder %v892, 0.0
    %vm945 = vcmp.eq.f32.partialorder %v899, 0.0
    %vm946 = vcmp.eq.f32.partialorder %v906, 0.0
    %vm947 = vcmp.eq.f32.partialorder %v913, 0.0
    %vm948 = vcmp.eq.f32.partialorder %v920, 0.0
    %vm949 = vcmp.eq.f32.partialorder %v927, 0.0
    %vm950 = vcmp.eq.f32.partialorder %v934, 0.0
    %v951 = vsel %vm935, 1, 0
    %v952 = vsel %vm936, 1, 0
    %v953 = vsel %vm937, 1, 0
    %v954 = vsel %vm938, 1, 0
    %v955 = vsel %vm939, 1, 0
    %v956 = vsel %vm940, 1, 0
    %v957 = vsel %vm941, 1, 0
    %v958 = vsel %vm942, 1, 0
    %v959 = vsel %vm943, 1, 0
    %v960 = vsel %vm944, 1, 0
    %v961 = vsel %vm945, 1, 0
    %v962 = vsel %vm946, 1, 0
    %v963 = vsel %vm947, 1, 0
    %v964 = vsel %vm948, 1, 0
    %v965 = vsel %vm949, 1, 0
    %v966 = vsel %vm950, 1, 0
    %v967 = vcvt.s32.f32 %v951
    %v968 = vcvt.s32.f32 %v952
    %v969 = vcvt.s32.f32 %v953
    %v970 = vcvt.s32.f32 %v954
    %v971 = vcvt.s32.f32 %v955
    %v972 = vcvt.s32.f32 %v956
    %v973 = vcvt.s32.f32 %v957
    %v974 = vcvt.s32.f32 %v958
    %v975 = vcvt.s32.f32 %v959
    %v976 = vcvt.s32.f32 %v960
    %v977 = vcvt.s32.f32 %v961
    %v978 = vcvt.s32.f32 %v962
    %v979 = vcvt.s32.f32 %v963
    %v980 = vcvt.s32.f32 %v964
    %v981 = vcvt.s32.f32 %v965
    %v982 = vcvt.s32.f32 %v966
    %v983 = vadd.f32 %v829, %v967
    %v984 = vadd.f32 %v836, %v968
    %v985 = vadd.f32 %v843, %v969
    %v986 = vadd.f32 %v850, %v970
    %v987 = vadd.f32 %v857, %v971
    %v988 = vadd.f32 %v864, %v972
    %v989 = vadd.f32 %v871, %v973
    %v990 = vadd.f32 %v878, %v974
    %v991 = vadd.f32 %v885, %v975
    %v992 = vadd.f32 %v892, %v976
    %v993 = vadd.f32 %v899, %v977
    %v994 = vadd.f32 %v906, %v978
    %v995 = vadd.f32 %v913, %v979
    %v996 = vadd.f32 %v920, %v980
    %v997 = vadd.f32 %v927, %v981
    %v998 = vadd.f32 %v934, %v982
    %v999 = vrcp.pop %v983
    %v1000 = vrcp.pop %v984
    %v1001 = vrcp.pop %v985
    %v1002 = vrcp.pop %v986
    %v1003 = vrcp.pop %v987
    %v1004 = vrcp.pop %v988
    %v1005 = vrcp.pop %v989
    %v1006 = vrcp.pop %v990
    %v1007 = vrcp.pop %v991
    %v1008 = vrcp.pop %v992
    %v1009 = vrcp.pop %v993
    %v1010 = vrcp.pop %v994
    %v1011 = vrcp.pop %v995
    %v1012 = vrcp.pop %v996
    %v1013 = vrcp.pop %v997
    %v1014 = vrcp.pop %v998
    %v1015 = vmul.f32 %v806, %v999
    %v1016 = vmul.f32 %v807, %v1000
    %v1017 = vmul.f32 %v808, %v1001
    %v1018 = vmul.f32 %v809, %v1002
    %v1019 = vmul.f32 %v810, %v1003
    %v1020 = vmul.f32 %v811, %v1004
    %v1021 = vmul.f32 %v812, %v1005
    %v1022 = vmul.f32 %v813, %v1006
    %v1023 = vmul.f32 %v814, %v1007
    %v1024 = vmul.f32 %v815, %v1008
    %v1025 = vmul.f32 %v816, %v1009
    %v1026 = vmul.f32 %v817, %v1010
    %v1027 = vmul.f32 %v818, %v1011
    %v1028 = vmul.f32 %v819, %v1012
    %v1029 = vmul.f32 %v820, %v1013
    %v1030 = vmul.f32 %v821, %v1014
    %v1031 = vunpack.c.l.bf16 %v96
    %v1032 = vunpack.c.l.bf16 %v97
    %v1033 = vunpack.c.l.bf16 %v98
    %v1034 = vunpack.c.l.bf16 %v99
    %v1035 = vunpack.c.l.bf16 %v100
    %v1036 = vunpack.c.l.bf16 %v101
    %v1037 = vunpack.c.l.bf16 %v102
    %v1038 = vunpack.c.l.bf16 %v103
    %v1039 = vunpack.c.l.bf16 %v104
    %v1040 = vunpack.c.l.bf16 %v105
    %v1041 = vunpack.c.l.bf16 %v106
    %v1042 = vunpack.c.l.bf16 %v107
    %v1043 = vunpack.c.l.bf16 %v108
    %v1044 = vunpack.c.l.bf16 %v109
    %v1045 = vunpack.c.l.bf16 %v110
    %v1046 = vunpack.c.l.bf16 %v111
    %1048 = vset.pattern.permute.xlu0 0
    %1049 = vperm.xlu0 %1048, %v1015
    %v1050 = vpop.permute.xlu0 %1049
    %1053 = vset.pattern.permute.xlu0 0
    %1054 = vperm.xlu0 %1053, %v1016
    %v1055 = vpop.permute.xlu0 %1054
    %1058 = vset.pattern.permute.xlu0 0
    %1059 = vperm.xlu0 %1058, %v1017
    %v1060 = vpop.permute.xlu0 %1059
    %1063 = vset.pattern.permute.xlu0 0
    %1064 = vperm.xlu0 %1063, %v1018
    %v1065 = vpop.permute.xlu0 %1064
    %1068 = vset.pattern.permute.xlu0 0
    %1069 = vperm.xlu0 %1068, %v1019
    %v1070 = vpop.permute.xlu0 %1069
    %1073 = vset.pattern.permute.xlu0 0
    %1074 = vperm.xlu0 %1073, %v1020
    %v1075 = vpop.permute.xlu0 %1074
    %1078 = vset.pattern.permute.xlu0 0
    %1079 = vperm.xlu0 %1078, %v1021
    %v1080 = vpop.permute.xlu0 %1079
    %1083 = vset.pattern.permute.xlu0 0
    %1084 = vperm.xlu0 %1083, %v1022
    %v1085 = vpop.permute.xlu0 %1084
    %1088 = vset.pattern.permute.xlu0 0
    %1089 = vperm.xlu0 %1088, %v1023
    %v1090 = vpop.permute.xlu0 %1089
    %1093 = vset.pattern.permute.xlu0 0
    %1094 = vperm.xlu0 %1093, %v1024
    %v1095 = vpop.permute.xlu0 %1094
    %1098 = vset.pattern.permute.xlu0 0
    %1099 = vperm.xlu0 %1098, %v1025
    %v1100 = vpop.permute.xlu0 %1099
    %1103 = vset.pattern.permute.xlu0 0
    %1104 = vperm.xlu0 %1103, %v1026
    %v1105 = vpop.permute.xlu0 %1104
    %1108 = vset.pattern.permute.xlu0 0
    %1109 = vperm.xlu0 %1108, %v1027
    %v1110 = vpop.permute.xlu0 %1109
    %1113 = vset.pattern.permute.xlu0 0
    %1114 = vperm.xlu0 %1113, %v1028
    %v1115 = vpop.permute.xlu0 %1114
    %1118 = vset.pattern.permute.xlu0 0
    %1119 = vperm.xlu0 %1118, %v1029
    %v1120 = vpop.permute.xlu0 %1119
    %1123 = vset.pattern.permute.xlu0 0
    %1124 = vperm.xlu0 %1123, %v1030
    %v1125 = vpop.permute.xlu0 %1124
    %v1127 = vmul.f32 %v1031, %v1050
    %v1128 = vmul.f32 %v1032, %v1055
    %v1129 = vmul.f32 %v1033, %v1060
    %v1130 = vmul.f32 %v1034, %v1065
    %v1131 = vmul.f32 %v1035, %v1070
    %v1132 = vmul.f32 %v1036, %v1075
    %v1133 = vmul.f32 %v1037, %v1080
    %v1134 = vmul.f32 %v1038, %v1085
    %v1135 = vmul.f32 %v1039, %v1090
    %v1136 = vmul.f32 %v1040, %v1095
    %v1137 = vmul.f32 %v1041, %v1100
    %v1138 = vmul.f32 %v1042, %v1105
    %v1139 = vmul.f32 %v1043, %v1110
    %v1140 = vmul.f32 %v1044, %v1115
    %v1141 = vmul.f32 %v1045, %v1120
    %v1142 = vmul.f32 %v1046, %v1125
    %v1143 = vsel %vm180, %v1127, 0.0
    %v1144 = vrot.slane %v1143, 4
    %v1145 = vadd.f32 %v1143, %v1144
    %v1146 = vrot.slane %v1145, 2
    %v1147 = vadd.f32 %v1145, %v1146
    %v1148 = vrot.slane %v1147, 1
    %v1149 = vadd.f32 %v1147, %v1148
    %v1150 = vsel %vm180, %v1128, 0.0
    %v1151 = vrot.slane %v1150, 4
    %v1152 = vadd.f32 %v1150, %v1151
    %v1153 = vrot.slane %v1152, 2
    %v1154 = vadd.f32 %v1152, %v1153
    %v1155 = vrot.slane %v1154, 1
    %v1156 = vadd.f32 %v1154, %v1155
    %v1157 = vsel %vm180, %v1129, 0.0
    %v1158 = vrot.slane %v1157, 4
    %v1159 = vadd.f32 %v1157, %v1158
    %v1160 = vrot.slane %v1159, 2
    %v1161 = vadd.f32 %v1159, %v1160
    %v1162 = vrot.slane %v1161, 1
    %v1163 = vadd.f32 %v1161, %v1162
    %v1164 = vsel %vm180, %v1130, 0.0
    %v1165 = vrot.slane %v1164, 4
    %v1166 = vadd.f32 %v1164, %v1165
    %v1167 = vrot.slane %v1166, 2
    %v1168 = vadd.f32 %v1166, %v1167
    %v1169 = vrot.slane %v1168, 1
    %v1170 = vadd.f32 %v1168, %v1169
    %v1171 = vsel %vm180, %v1131, 0.0
    %v1172 = vrot.slane %v1171, 4
    %v1173 = vadd.f32 %v1171, %v1172
    %v1174 = vrot.slane %v1173, 2
    %v1175 = vadd.f32 %v1173, %v1174
    %v1176 = vrot.slane %v1175, 1
    %v1177 = vadd.f32 %v1175, %v1176
    %v1178 = vsel %vm180, %v1132, 0.0
    %v1179 = vrot.slane %v1178, 4
    %v1180 = vadd.f32 %v1178, %v1179
    %v1181 = vrot.slane %v1180, 2
    %v1182 = vadd.f32 %v1180, %v1181
    %v1183 = vrot.slane %v1182, 1
    %v1184 = vadd.f32 %v1182, %v1183
    %v1185 = vsel %vm180, %v1133, 0.0
    %v1186 = vrot.slane %v1185, 4
    %v1187 = vadd.f32 %v1185, %v1186
    %v1188 = vrot.slane %v1187, 2
    %v1189 = vadd.f32 %v1187, %v1188
    %v1190 = vrot.slane %v1189, 1
    %v1191 = vadd.f32 %v1189, %v1190
    %v1192 = vsel %vm180, %v1134, 0.0
    %v1193 = vrot.slane %v1192, 4
    %v1194 = vadd.f32 %v1192, %v1193
    %v1195 = vrot.slane %v1194, 2
    %v1196 = vadd.f32 %v1194, %v1195
    %v1197 = vrot.slane %v1196, 1
    %v1198 = vadd.f32 %v1196, %v1197
    %v1199 = vsel %vm180, %v1135, 0.0
    %v1200 = vrot.slane %v1199, 4
    %v1201 = vadd.f32 %v1199, %v1200
    %v1202 = vrot.slane %v1201, 2
    %v1203 = vadd.f32 %v1201, %v1202
    %v1204 = vrot.slane %v1203, 1
    %v1205 = vadd.f32 %v1203, %v1204
    %v1206 = vsel %vm180, %v1136, 0.0
    %v1207 = vrot.slane %v1206, 4
    %v1208 = vadd.f32 %v1206, %v1207
    %v1209 = vrot.slane %v1208, 2
    %v1210 = vadd.f32 %v1208, %v1209
    %v1211 = vrot.slane %v1210, 1
    %v1212 = vadd.f32 %v1210, %v1211
    %v1213 = vsel %vm180, %v1137, 0.0
    %v1214 = vrot.slane %v1213, 4
    %v1215 = vadd.f32 %v1213, %v1214
    %v1216 = vrot.slane %v1215, 2
    %v1217 = vadd.f32 %v1215, %v1216
    %v1218 = vrot.slane %v1217, 1
    %v1219 = vadd.f32 %v1217, %v1218
    %v1220 = vsel %vm180, %v1138, 0.0
    %v1221 = vrot.slane %v1220, 4
    %v1222 = vadd.f32 %v1220, %v1221
    %v1223 = vrot.slane %v1222, 2
    %v1224 = vadd.f32 %v1222, %v1223
    %v1225 = vrot.slane %v1224, 1
    %v1226 = vadd.f32 %v1224, %v1225
    %v1227 = vsel %vm180, %v1139, 0.0
    %v1228 = vrot.slane %v1227, 4
    %v1229 = vadd.f32 %v1227, %v1228
    %v1230 = vrot.slane %v1229, 2
    %v1231 = vadd.f32 %v1229, %v1230
    %v1232 = vrot.slane %v1231, 1
    %v1233 = vadd.f32 %v1231, %v1232
    %v1234 = vsel %vm180, %v1140, 0.0
    %v1235 = vrot.slane %v1234, 4
    %v1236 = vadd.f32 %v1234, %v1235
    %v1237 = vrot.slane %v1236, 2
    %v1238 = vadd.f32 %v1236, %v1237
    %v1239 = vrot.slane %v1238, 1
    %v1240 = vadd.f32 %v1238, %v1239
    %v1241 = vsel %vm180, %v1141, 0.0
    %v1242 = vrot.slane %v1241, 4
    %v1243 = vadd.f32 %v1241, %v1242
    %v1244 = vrot.slane %v1243, 2
    %v1245 = vadd.f32 %v1243, %v1244
    %v1246 = vrot.slane %v1245, 1
    %v1247 = vadd.f32 %v1245, %v1246
    %v1248 = vsel %vm180, %v1142, 0.0
    %v1249 = vrot.slane %v1248, 4
    %v1250 = vadd.f32 %v1248, %v1249
    %v1251 = vrot.slane %v1250, 2
    %v1252 = vadd.f32 %v1250, %v1251
    %v1253 = vrot.slane %v1252, 1
    %v1254 = vadd.f32 %v1252, %v1253
    %v1255 = vsel %vm822, %v112, 0.0
    %v1256 = vrot.slane %v1255, 4
    %v1257 = vadd.f32 %v1255, %v1256
    %v1258 = vrot.slane %v1257, 2
    %v1259 = vadd.f32 %v1257, %v1258
    %v1260 = vrot.slane %v1259, 1
    %v1261 = vadd.f32 %v1259, %v1260
    %v1262 = vsel %vm822, %v113, 0.0
    %v1263 = vrot.slane %v1262, 4
    %v1264 = vadd.f32 %v1262, %v1263
    %v1265 = vrot.slane %v1264, 2
    %v1266 = vadd.f32 %v1264, %v1265
    %v1267 = vrot.slane %v1266, 1
    %v1268 = vadd.f32 %v1266, %v1267
    %v1269 = vsel %vm822, %v114, 0.0
    %v1270 = vrot.slane %v1269, 4
    %v1271 = vadd.f32 %v1269, %v1270
    %v1272 = vrot.slane %v1271, 2
    %v1273 = vadd.f32 %v1271, %v1272
    %v1274 = vrot.slane %v1273, 1
    %v1275 = vadd.f32 %v1273, %v1274
    %v1276 = vsel %vm822, %v115, 0.0
    %v1277 = vrot.slane %v1276, 4
    %v1278 = vadd.f32 %v1276, %v1277
    %v1279 = vrot.slane %v1278, 2
    %v1280 = vadd.f32 %v1278, %v1279
    %v1281 = vrot.slane %v1280, 1
    %v1282 = vadd.f32 %v1280, %v1281
    %v1283 = vsel %vm822, %v116, 0.0
    %v1284 = vrot.slane %v1283, 4
    %v1285 = vadd.f32 %v1283, %v1284
    %v1286 = vrot.slane %v1285, 2
    %v1287 = vadd.f32 %v1285, %v1286
    %v1288 = vrot.slane %v1287, 1
    %v1289 = vadd.f32 %v1287, %v1288
    %v1290 = vsel %vm822, %v117, 0.0
    %v1291 = vrot.slane %v1290, 4
    %v1292 = vadd.f32 %v1290, %v1291
    %v1293 = vrot.slane %v1292, 2
    %v1294 = vadd.f32 %v1292, %v1293
    %v1295 = vrot.slane %v1294, 1
    %v1296 = vadd.f32 %v1294, %v1295
    %v1297 = vsel %vm822, %v118, 0.0
    %v1298 = vrot.slane %v1297, 4
    %v1299 = vadd.f32 %v1297, %v1298
    %v1300 = vrot.slane %v1299, 2
    %v1301 = vadd.f32 %v1299, %v1300
    %v1302 = vrot.slane %v1301, 1
    %v1303 = vadd.f32 %v1301, %v1302
    %v1304 = vsel %vm822, %v119, 0.0
    %v1305 = vrot.slane %v1304, 4
    %v1306 = vadd.f32 %v1304, %v1305
    %v1307 = vrot.slane %v1306, 2
    %v1308 = vadd.f32 %v1306, %v1307
    %v1309 = vrot.slane %v1308, 1
    %v1310 = vadd.f32 %v1308, %v1309
    %v1311 = vsel %vm822, %v120, 0.0
    %v1312 = vrot.slane %v1311, 4
    %v1313 = vadd.f32 %v1311, %v1312
    %v1314 = vrot.slane %v1313, 2
    %v1315 = vadd.f32 %v1313, %v1314
    %v1316 = vrot.slane %v1315, 1
    %v1317 = vadd.f32 %v1315, %v1316
    %v1318 = vsel %vm822, %v121, 0.0
    %v1319 = vrot.slane %v1318, 4
    %v1320 = vadd.f32 %v1318, %v1319
    %v1321 = vrot.slane %v1320, 2
    %v1322 = vadd.f32 %v1320, %v1321
    %v1323 = vrot.slane %v1322, 1
    %v1324 = vadd.f32 %v1322, %v1323
    %v1325 = vsel %vm822, %v122, 0.0
    %v1326 = vrot.slane %v1325, 4
    %v1327 = vadd.f32 %v1325, %v1326
    %v1328 = vrot.slane %v1327, 2
    %v1329 = vadd.f32 %v1327, %v1328
    %v1330 = vrot.slane %v1329, 1
    %v1331 = vadd.f32 %v1329, %v1330
    %v1332 = vsel %vm822, %v123, 0.0
    %v1333 = vrot.slane %v1332, 4
    %v1334 = vadd.f32 %v1332, %v1333
    %v1335 = vrot.slane %v1334, 2
    %v1336 = vadd.f32 %v1334, %v1335
    %v1337 = vrot.slane %v1336, 1
    %v1338 = vadd.f32 %v1336, %v1337
    %v1339 = vsel %vm822, %v124, 0.0
    %v1340 = vrot.slane %v1339, 4
    %v1341 = vadd.f32 %v1339, %v1340
    %v1342 = vrot.slane %v1341, 2
    %v1343 = vadd.f32 %v1341, %v1342
    %v1344 = vrot.slane %v1343, 1
    %v1345 = vadd.f32 %v1343, %v1344
    %v1346 = vsel %vm822, %v125, 0.0
    %v1347 = vrot.slane %v1346, 4
    %v1348 = vadd.f32 %v1346, %v1347
    %v1349 = vrot.slane %v1348, 2
    %v1350 = vadd.f32 %v1348, %v1349
    %v1351 = vrot.slane %v1350, 1
    %v1352 = vadd.f32 %v1350, %v1351
    %v1353 = vsel %vm822, %v126, 0.0
    %v1354 = vrot.slane %v1353, 4
    %v1355 = vadd.f32 %v1353, %v1354
    %v1356 = vrot.slane %v1355, 2
    %v1357 = vadd.f32 %v1355, %v1356
    %v1358 = vrot.slane %v1357, 1
    %v1359 = vadd.f32 %v1357, %v1358
    %v1360 = vsel %vm822, %v127, 0.0
    %v1361 = vrot.slane %v1360, 4
    %v1362 = vadd.f32 %v1360, %v1361
    %v1363 = vrot.slane %v1362, 2
    %v1364 = vadd.f32 %v1362, %v1363
    %v1365 = vrot.slane %v1364, 1
    %v1366 = vadd.f32 %v1364, %v1365
    %vm1367 = vcmp.gt.f32.partialorder %v1261, 0.0
    %vm1368 = vcmp.gt.f32.partialorder %v1268, 0.0
    %vm1369 = vcmp.gt.f32.partialorder %v1275, 0.0
    %vm1370 = vcmp.gt.f32.partialorder %v1282, 0.0
    %vm1371 = vcmp.gt.f32.partialorder %v1289, 0.0
    %vm1372 = vcmp.gt.f32.partialorder %v1296, 0.0
    %vm1373 = vcmp.gt.f32.partialorder %v1303, 0.0
    %vm1374 = vcmp.gt.f32.partialorder %v1310, 0.0
    %vm1375 = vcmp.gt.f32.partialorder %v1317, 0.0
    %vm1376 = vcmp.gt.f32.partialorder %v1324, 0.0
    %vm1377 = vcmp.gt.f32.partialorder %v1331, 0.0
    %vm1378 = vcmp.gt.f32.partialorder %v1338, 0.0
    %vm1379 = vcmp.gt.f32.partialorder %v1345, 0.0
    %vm1380 = vcmp.gt.f32.partialorder %v1352, 0.0
    %vm1381 = vcmp.gt.f32.partialorder %v1359, 0.0
    %vm1382 = vcmp.gt.f32.partialorder %v1366, 0.0
    %v1383 = vsel %vm1367, 1, 0
    %v1384 = vsel %vm1368, 1, 0
    %v1385 = vsel %vm1369, 1, 0
    %v1386 = vsel %vm1370, 1, 0
    %v1387 = vsel %vm1371, 1, 0
    %v1388 = vsel %vm1372, 1, 0
    %v1389 = vsel %vm1373, 1, 0
    %v1390 = vsel %vm1374, 1, 0
    %v1391 = vsel %vm1375, 1, 0
    %v1392 = vsel %vm1376, 1, 0
    %v1393 = vsel %vm1377, 1, 0
    %v1394 = vsel %vm1378, 1, 0
    %v1395 = vsel %vm1379, 1, 0
    %v1396 = vsel %vm1380, 1, 0
    %v1397 = vsel %vm1381, 1, 0
    %v1398 = vsel %vm1382, 1, 0
    %v1399 = vcvt.s32.f32 %v1383
    %v1400 = vcvt.s32.f32 %v1384
    %v1401 = vcvt.s32.f32 %v1385
    %v1402 = vcvt.s32.f32 %v1386
    %v1403 = vcvt.s32.f32 %v1387
    %v1404 = vcvt.s32.f32 %v1388
    %v1405 = vcvt.s32.f32 %v1389
    %v1406 = vcvt.s32.f32 %v1390
    %v1407 = vcvt.s32.f32 %v1391
    %v1408 = vcvt.s32.f32 %v1392
    %v1409 = vcvt.s32.f32 %v1393
    %v1410 = vcvt.s32.f32 %v1394
    %v1411 = vcvt.s32.f32 %v1395
    %v1412 = vcvt.s32.f32 %v1396
    %v1413 = vcvt.s32.f32 %v1397
    %v1414 = vcvt.s32.f32 %v1398
    %v1415 = vpack.c.bf16 %v1149, %v1149
    %v1416 = vpack.c.bf16 %v1156, %v1156
    %v1417 = vpack.c.bf16 %v1163, %v1163
    %v1418 = vpack.c.bf16 %v1170, %v1170
    %v1419 = vpack.c.bf16 %v1177, %v1177
    %v1420 = vpack.c.bf16 %v1184, %v1184
    %v1421 = vpack.c.bf16 %v1191, %v1191
    %v1422 = vpack.c.bf16 %v1198, %v1198
    %v1423 = vpack.c.bf16 %v1205, %v1205
    %v1424 = vpack.c.bf16 %v1212, %v1212
    %v1425 = vpack.c.bf16 %v1219, %v1219
    %v1426 = vpack.c.bf16 %v1226, %v1226
    %v1427 = vpack.c.bf16 %v1233, %v1233
    %v1428 = vpack.c.bf16 %v1240, %v1240
    %v1429 = vpack.c.bf16 %v1247, %v1247
    %v1430 = vpack.c.bf16 %v1254, %v1254
    %v1433 = vlaneseq
    %v1434 = vshrl.u32 %v1433, 7
    %v1435 = vsub.s32 0, %v1434
    %v1436 = vrot.slane %v78, %v1435
    %v1437 = vlaneseq
    %v1438 = vshrl.u32 %v1437, 7
    %v1439 = vsub.s32 0, %v1438
    %v1440 = vrot.slane %v79, %v1439
    %v1451 = vunpack.c.l.b16 %v1415
    %v1452 = vunpack.c.l.b16 %v1416
    %v1453 = vunpack.c.l.b16 %v1417
    %v1454 = vunpack.c.l.b16 %v1418
    %v1455 = vunpack.c.l.b16 %v1419
    %v1456 = vunpack.c.l.b16 %v1420
    %v1457 = vunpack.c.l.b16 %v1421
    %v1458 = vunpack.c.l.b16 %v1422
    %vm1459 = vcmask 1041409
    %v1460 = vsel %vm1459, %v1452, %v1451
    %vm1461 = vcmask 1042434
    %v1462 = vsel %vm1461, %v1453, %v1460
    %vm1463 = vcmask 1043459
    %v1464 = vsel %vm1463, %v1454, %v1462
    %vm1465 = vcmask 1044484
    %v1466 = vsel %vm1465, %v1455, %v1464
    %vm1467 = vcmask 1045509
    %v1468 = vsel %vm1467, %v1456, %v1466
    %vm1469 = vcmask 1046534
    %v1470 = vsel %vm1469, %v1457, %v1468
    %vm1471 = vcmask 1047559
    %v1472 = vsel %vm1471, %v1458, %v1470
    %v1473 = vpack.c.b16 %v1472, %v1472
    %v1478 = vunpack.c.l.b16 %v62
    %v1479 = vunpack.c.l.b16 %v63
    %v1480 = vunpack.c.l.b16 %v64
    %v1481 = vunpack.c.l.b16 %v65
    %v1482 = vpack.c.b16 %v1479, %v1478
    %v1483 = vpack.c.b16 %v1481, %v1480
    %v1487 = vsel %vm180, %v1473, 0
    %1489 = vmatprep.subr.bf16.mxu0 0
    %1490 = vmatpush1.bf16.msra.mxu0 0
    %1491 = vmatprep.subr.bf16.mxu0 0
    %1492 = vmatpush1.bf16.msra.mxu0 0
    %1493 = vmatprep.subr.bf16.mxu0 0
    %1494 = vmatpush1.bf16.msra.mxu0 0
    %1495 = vmatprep.subr.bf16.mxu0 0
    %1496 = vmatpush1.bf16.msra.mxu0 0
    %1497 = vmatprep.subr.bf16.mxu0 0
    %1498 = vmatpush1.bf16.msra.mxu0 0
    %1499 = vmatprep.subr.bf16.mxu0 0
    %1500 = vmatpush1.bf16.msra.mxu0 0
    %1501 = vmatprep.subr.bf16.mxu0 0
    %1502 = vmatpush1.bf16.msra.mxu0 %v1483
    %1503 = vmatprep.subr.bf16.mxu0 0
    %1504 = vmatpush1.bf16.msra.mxu0 %v1482
    %1505 = vmatprep.subr.bf16.mxu0 0
    %1506 = vmatpush2.bf16.msra.mxu0 0
    %1507 = vmatprep.subr.bf16.mxu0 0
    %1508 = vmatpush2.bf16.msra.mxu0 0
    %1509 = vmatprep.subr.bf16.mxu0 0
    %1510 = vmatpush2.bf16.msra.mxu0 0
    %1511 = vmatprep.subr.bf16.mxu0 0
    %1512 = vmatpush2.bf16.msra.mxu0 0
    %1513 = vmatprep.subr.bf16.mxu0 0
    %1514 = vmatpush2.bf16.msra.mxu0 0
    %1515 = vmatprep.subr.bf16.mxu0 0
    %1516 = vmatpush2.bf16.msra.mxu0 0
    %1517 = vmatprep.subr.bf16.mxu0 0
    %1518 = vmatpush2.bf16.msra.mxu0 0
    %1519 = vmatprep.subr.bf16.mxu0 0
    %1520 = vmatpush2.bf16.msra.mxu0 0
    %1521 = vmatprep.mubr.bf16.mxu0 0
    %1522 = vmatmul.mubr.bf16.gmra.mxu0 %v1487
    %v1523 = vpop.f32.mrf.mxu0
    %v1524 = vadd.f32 %v1436, %v1523
    %v1525 = vpop.f32.mrf.mxu0
    %v1526 = vpop.f32.mrf.mxu0
    %v1527 = vpop.f32.mrf.mxu0
    %1528 = vdwg.mxu0
    %v1537 = vunpack.c.l.b16 %v1423
    %v1538 = vunpack.c.l.b16 %v1424
    %v1539 = vunpack.c.l.b16 %v1425
    %v1540 = vunpack.c.l.b16 %v1426
    %v1541 = vunpack.c.l.b16 %v1427
    %v1542 = vunpack.c.l.b16 %v1428
    %v1543 = vunpack.c.l.b16 %v1429
    %v1544 = vunpack.c.l.b16 %v1430
    %v1545 = vsel %vm1459, %v1538, %v1537
    %v1546 = vsel %vm1461, %v1539, %v1545
    %v1547 = vsel %vm1463, %v1540, %v1546
    %v1548 = vsel %vm1465, %v1541, %v1547
    %v1549 = vsel %vm1467, %v1542, %v1548
    %v1550 = vsel %vm1469, %v1543, %v1549
    %v1551 = vsel %vm1471, %v1544, %v1550
    %v1552 = vpack.c.b16 %v1551, %v1551
    %v1557 = vunpack.c.l.b16 %v66
    %v1558 = vunpack.c.l.b16 %v67
    %v1559 = vunpack.c.l.b16 %v68
    %v1560 = vunpack.c.l.b16 %v69
    %v1561 = vpack.c.b16 %v1558, %v1557
    %v1562 = vpack.c.b16 %v1560, %v1559
    %v1566 = vsel %vm180, %v1552, 0
    %1568 = vmatprep.subr.bf16.mxu0 0
    %1569 = vmatpush1.bf16.msra.mxu0 0
    %1570 = vmatprep.subr.bf16.mxu0 0
    %1571 = vmatpush1.bf16.msra.mxu0 0
    %1572 = vmatprep.subr.bf16.mxu0 0
    %1573 = vmatpush1.bf16.msra.mxu0 0
    %1574 = vmatprep.subr.bf16.mxu0 0
    %1575 = vmatpush1.bf16.msra.mxu0 0
    %1576 = vmatprep.subr.bf16.mxu0 0
    %1577 = vmatpush1.bf16.msra.mxu0 0
    %1578 = vmatprep.subr.bf16.mxu0 0
    %1579 = vmatpush1.bf16.msra.mxu0 0
    %1580 = vmatprep.subr.bf16.mxu0 0
    %1581 = vmatpush1.bf16.msra.mxu0 %v1562
    %1582 = vmatprep.subr.bf16.mxu0 0
    %1583 = vmatpush1.bf16.msra.mxu0 %v1561
    %1584 = vmatprep.subr.bf16.mxu0 0
    %1585 = vmatpush2.bf16.msra.mxu0 0
    %1586 = vmatprep.subr.bf16.mxu0 0
    %1587 = vmatpush2.bf16.msra.mxu0 0
    %1588 = vmatprep.subr.bf16.mxu0 0
    %1589 = vmatpush2.bf16.msra.mxu0 0
    %1590 = vmatprep.subr.bf16.mxu0 0
    %1591 = vmatpush2.bf16.msra.mxu0 0
    %1592 = vmatprep.subr.bf16.mxu0 0
    %1593 = vmatpush2.bf16.msra.mxu0 0
    %1594 = vmatprep.subr.bf16.mxu0 0
    %1595 = vmatpush2.bf16.msra.mxu0 0
    %1596 = vmatprep.subr.bf16.mxu0 0
    %1597 = vmatpush2.bf16.msra.mxu0 0
    %1598 = vmatprep.subr.bf16.mxu0 0
    %1599 = vmatpush2.bf16.msra.mxu0 0
    %1600 = vmatprep.mubr.bf16.mxu0 0
    %1601 = vmatmul.mubr.bf16.gmra.mxu0 %v1566
    %v1602 = vpop.f32.mrf.mxu0
    %v1603 = vadd.f32 %v1440, %v1602
    %v1604 = vpop.f32.mrf.mxu0
    %v1605 = vpop.f32.mrf.mxu0
    %v1606 = vpop.f32.mrf.mxu0
    %1607 = vdwg.mxu0
    %v1610 = vlaneseq
    %v1611 = vshrl.u32 %v1610, 7
    %v1612 = vsub.s32 0, %v1611
    %v1613 = vrot.slane %v80, %v1612
    %v1614 = vlaneseq
    %v1615 = vshrl.u32 %v1614, 7
    %v1616 = vsub.s32 0, %v1615
    %v1617 = vrot.slane %v81, %v1616
    %v1624 = vunpack.c.l.b16 %v70
    %v1625 = vunpack.c.l.b16 %v71
    %v1626 = vunpack.c.l.b16 %v72
    %v1627 = vunpack.c.l.b16 %v73
    %v1628 = vpack.c.b16 %v1625, %v1624
    %v1629 = vpack.c.b16 %v1627, %v1626
    %1632 = vmatprep.subr.bf16.mxu0 0
    %1633 = vmatpush1.bf16.msra.mxu0 0
    %1634 = vmatprep.subr.bf16.mxu0 0
    %1635 = vmatpush1.bf16.msra.mxu0 0
    %1636 = vmatprep.subr.bf16.mxu0 0
    %1637 = vmatpush1.bf16.msra.mxu0 0
    %1638 = vmatprep.subr.bf16.mxu0 0
    %1639 = vmatpush1.bf16.msra.mxu0 0
    %1640 = vmatprep.subr.bf16.mxu0 0
    %1641 = vmatpush1.bf16.msra.mxu0 0
    %1642 = vmatprep.subr.bf16.mxu0 0
    %1643 = vmatpush1.bf16.msra.mxu0 0
    %1644 = vmatprep.subr.bf16.mxu0 0
    %1645 = vmatpush1.bf16.msra.mxu0 %v1629
    %1646 = vmatprep.subr.bf16.mxu0 0
    %1647 = vmatpush1.bf16.msra.mxu0 %v1628
    %1648 = vmatprep.subr.bf16.mxu0 0
    %1649 = vmatpush2.bf16.msra.mxu0 0
    %1650 = vmatprep.subr.bf16.mxu0 0
    %1651 = vmatpush2.bf16.msra.mxu0 0
    %1652 = vmatprep.subr.bf16.mxu0 0
    %1653 = vmatpush2.bf16.msra.mxu0 0
    %1654 = vmatprep.subr.bf16.mxu0 0
    %1655 = vmatpush2.bf16.msra.mxu0 0
    %1656 = vmatprep.subr.bf16.mxu0 0
    %1657 = vmatpush2.bf16.msra.mxu0 0
    %1658 = vmatprep.subr.bf16.mxu0 0
    %1659 = vmatpush2.bf16.msra.mxu0 0
    %1660 = vmatprep.subr.bf16.mxu0 0
    %1661 = vmatpush2.bf16.msra.mxu0 0
    %1662 = vmatprep.subr.bf16.mxu0 0
    %1663 = vmatpush2.bf16.msra.mxu0 0
    %1664 = vmatprep.mubr.bf16.mxu0 0
    %1665 = vmatmul.mubr.bf16.gmra.mxu0 %v337
    %v1666 = vpop.f32.mrf.mxu0
    %v1667 = vadd.f32 %v1613, %v1666
    %v1668 = vpop.f32.mrf.mxu0
    %v1669 = vpop.f32.mrf.mxu0
    %v1670 = vpop.f32.mrf.mxu0
    %1671 = vdwg.mxu0
    %v1676 = vunpack.c.l.b16 %v74
    %v1677 = vunpack.c.l.b16 %v75
    %v1678 = vunpack.c.l.b16 %v76
    %v1679 = vunpack.c.l.b16 %v77
    %v1680 = vpack.c.b16 %v1677, %v1676
    %v1681 = vpack.c.b16 %v1679, %v1678
    %1684 = vmatprep.subr.bf16.mxu0 0
    %1685 = vmatpush1.bf16.msra.mxu0 0
    %1686 = vmatprep.subr.bf16.mxu0 0
    %1687 = vmatpush1.bf16.msra.mxu0 0
    %1688 = vmatprep.subr.bf16.mxu0 0
    %1689 = vmatpush1.bf16.msra.mxu0 0
    %1690 = vmatprep.subr.bf16.mxu0 0
    %1691 = vmatpush1.bf16.msra.mxu0 0
    %1692 = vmatprep.subr.bf16.mxu0 0
    %1693 = vmatpush1.bf16.msra.mxu0 0
    %1694 = vmatprep.subr.bf16.mxu0 0
    %1695 = vmatpush1.bf16.msra.mxu0 0
    %1696 = vmatprep.subr.bf16.mxu0 0
    %1697 = vmatpush1.bf16.msra.mxu0 %v1681
    %1698 = vmatprep.subr.bf16.mxu0 0
    %1699 = vmatpush1.bf16.msra.mxu0 %v1680
    %1700 = vmatprep.subr.bf16.mxu0 0
    %1701 = vmatpush2.bf16.msra.mxu0 0
    %1702 = vmatprep.subr.bf16.mxu0 0
    %1703 = vmatpush2.bf16.msra.mxu0 0
    %1704 = vmatprep.subr.bf16.mxu0 0
    %1705 = vmatpush2.bf16.msra.mxu0 0
    %1706 = vmatprep.subr.bf16.mxu0 0
    %1707 = vmatpush2.bf16.msra.mxu0 0
    %1708 = vmatprep.subr.bf16.mxu0 0
    %1709 = vmatpush2.bf16.msra.mxu0 0
    %1710 = vmatprep.subr.bf16.mxu0 0
    %1711 = vmatpush2.bf16.msra.mxu0 0
    %1712 = vmatprep.subr.bf16.mxu0 0
    %1713 = vmatpush2.bf16.msra.mxu0 0
    %1714 = vmatprep.subr.bf16.mxu0 0
    %1715 = vmatpush2.bf16.msra.mxu0 0
    %1716 = vmatprep.mubr.bf16.mxu0 0
    %1717 = vmatmul.mubr.bf16.gmra.mxu0 %v337
    %v1718 = vpop.f32.mrf.mxu0
    %v1719 = vadd.f32 %v1617, %v1718
    %v1720 = vpop.f32.mrf.mxu0
    %v1721 = vpop.f32.mrf.mxu0
    %v1722 = vpop.f32.mrf.mxu0
    %1723 = vdwg.mxu0
    %v1724 = vadd.f32 %v1524, %v1667
    %v1725 = vadd.f32 %v1603, %v1719
    %v1726 = vxor.u32 %v1724, 2147483648
    %v1727 = vxor.u32 %v1725, 2147483648
    %v1728 = vmul.f32 %v1726, 1.442695
    %v1729 = vpow.pop %v1728
    %v1730 = vmul.f32 %v1727, 1.442695
    %v1731 = vpow.pop %v1730
    %v1732 = vadd.f32 %v1729, 1.0
    %v1733 = vadd.f32 %v1731, 1.0
    %v1734 = vrcp.pop %v1732
    %v1735 = vmul.f32 1.0, %v1734
    %v1736 = vrcp.pop %v1733
    %v1737 = vmul.f32 1.0, %v1736
    %1740 = vrot.lane.b32.xlu0 %v1667, 64
    %v1741 = vpop.permute.xlu0 %1740
    %1742 = vrot.lane.b32.xlu0 %v1719, 64
    %v1743 = vpop.permute.xlu0 %1742
    %v1746 = vmul.f32 %v1735, %v1741
    %v1747 = vmul.f32 %v1737, %v1743
    %1750 = vrot.lane.b32.xlu0 %v1746, 64
    %v1751 = vpop.permute.xlu0 %1750
    %1752 = vrot.lane.b32.xlu0 %v1747, 64
    %v1753 = vpop.permute.xlu0 %1752
    %v1756 = vadd.f32 %v1524, %v1751
    %v1757 = vadd.f32 %v1603, %v1753
    %v1758 = vtanh.pop %v1756
    %v1759 = vtanh.pop %v1757
    %v1760 = vsub.f32 1.0, %v1735
    %v1761 = vsub.f32 1.0, %v1737
    %1764 = vrot.lane.b32.xlu0 %v1758, 96
    %v1765 = vpop.permute.xlu0 %1764
    %1766 = vrot.lane.b32.xlu0 %v1759, 96
    %v1767 = vpop.permute.xlu0 %1766
    %v1770 = vmul.f32 %v1760, %v1765
    %v1771 = vmul.f32 %v1761, %v1767
    %v1772 = vmul.f32 %v1735, 0.0
    %v1773 = vmul.f32 %v1737, 0.0
    %v1774 = vadd.f32 %v1770, %v1772
    %v1775 = vadd.f32 %v1771, %v1773
    %1777 = vset.pattern.permute.xlu0 0
    %1778 = vperm.xlu0 %1777, %v1399
    %v1779 = vpop.permute.xlu0 %1778
    %1781 = vset.pattern.permute.xlu0 0
    %1782 = vperm.xlu0 %1781, %v1400
    %v1783 = vpop.permute.xlu0 %1782
    %1785 = vset.pattern.permute.xlu0 0
    %1786 = vperm.xlu0 %1785, %v1401
    %v1787 = vpop.permute.xlu0 %1786
    %1789 = vset.pattern.permute.xlu0 0
    %1790 = vperm.xlu0 %1789, %v1402
    %v1791 = vpop.permute.xlu0 %1790
    %1793 = vset.pattern.permute.xlu0 0
    %1794 = vperm.xlu0 %1793, %v1403
    %v1795 = vpop.permute.xlu0 %1794
    %1797 = vset.pattern.permute.xlu0 0
    %1798 = vperm.xlu0 %1797, %v1404
    %v1799 = vpop.permute.xlu0 %1798
    %1801 = vset.pattern.permute.xlu0 0
    %1802 = vperm.xlu0 %1801, %v1405
    %v1803 = vpop.permute.xlu0 %1802
    %1805 = vset.pattern.permute.xlu0 0
    %1806 = vperm.xlu0 %1805, %v1406
    %v1807 = vpop.permute.xlu0 %1806
    %1809 = vset.pattern.permute.xlu0 0
    %1810 = vperm.xlu0 %1809, %v1407
    %v1811 = vpop.permute.xlu0 %1810
    %1813 = vset.pattern.permute.xlu0 0
    %1814 = vperm.xlu0 %1813, %v1408
    %v1815 = vpop.permute.xlu0 %1814
    %1817 = vset.pattern.permute.xlu0 0
    %1818 = vperm.xlu0 %1817, %v1409
    %v1819 = vpop.permute.xlu0 %1818
    %1821 = vset.pattern.permute.xlu0 0
    %1822 = vperm.xlu0 %1821, %v1410
    %v1823 = vpop.permute.xlu0 %1822
    %1825 = vset.pattern.permute.xlu0 0
    %1826 = vperm.xlu0 %1825, %v1411
    %v1827 = vpop.permute.xlu0 %1826
    %1829 = vset.pattern.permute.xlu0 0
    %1830 = vperm.xlu0 %1829, %v1412
    %v1831 = vpop.permute.xlu0 %1830
    %1833 = vset.pattern.permute.xlu0 0
    %1834 = vperm.xlu0 %1833, %v1413
    %v1835 = vpop.permute.xlu0 %1834
    %1837 = vset.pattern.permute.xlu0 0
    %1838 = vperm.xlu0 %1837, %v1414
    %v1839 = vpop.permute.xlu0 %1838
    %v1840 = vsel %vm1459, %v1783, %v1779
    %v1841 = vsel %vm1461, %v1787, %v1840
    %v1842 = vsel %vm1463, %v1791, %v1841
    %v1843 = vsel %vm1465, %v1795, %v1842
    %v1844 = vsel %vm1467, %v1799, %v1843
    %v1845 = vsel %vm1469, %v1803, %v1844
    %v1846 = vsel %vm1471, %v1807, %v1845
    %v1847 = vsel %vm1459, %v1815, %v1811
    %v1848 = vsel %vm1461, %v1819, %v1847
    %v1849 = vsel %vm1463, %v1823, %v1848
    %v1850 = vsel %vm1465, %v1827, %v1849
    %v1851 = vsel %vm1467, %v1831, %v1850
    %v1852 = vsel %vm1469, %v1835, %v1851
    %v1853 = vsel %vm1471, %v1839, %v1852
    %v1856 = vmul.f32 %v1774, %v1846
    %v1857 = vmul.f32 %v1775, %v1853
    %v1858 = vsub.f32 1.0, %v1399
    %v1859 = vsub.f32 1.0, %v1400
    %v1860 = vsub.f32 1.0, %v1401
    %v1861 = vsub.f32 1.0, %v1402
    %v1862 = vsub.f32 1.0, %v1403
    %v1863 = vsub.f32 1.0, %v1404
    %v1864 = vsub.f32 1.0, %v1405
    %v1865 = vsub.f32 1.0, %v1406
    %v1866 = vsub.f32 1.0, %v1407
    %v1867 = vsub.f32 1.0, %v1408
    %v1868 = vsub.f32 1.0, %v1409
    %v1869 = vsub.f32 1.0, %v1410
    %v1870 = vsub.f32 1.0, %v1411
    %v1871 = vsub.f32 1.0, %v1412
    %v1872 = vsub.f32 1.0, %v1413
    %v1873 = vsub.f32 1.0, %v1414
    %1875 = vset.pattern.permute.xlu0 0
    %1876 = vperm.xlu0 %1875, %v1858
    %v1877 = vpop.permute.xlu0 %1876
    %1880 = vset.pattern.permute.xlu0 0
    %1881 = vperm.xlu0 %1880, %v1859
    %v1882 = vpop.permute.xlu0 %1881
    %1885 = vset.pattern.permute.xlu0 0
    %1886 = vperm.xlu0 %1885, %v1860
    %v1887 = vpop.permute.xlu0 %1886
    %1890 = vset.pattern.permute.xlu0 0
    %1891 = vperm.xlu0 %1890, %v1861
    %v1892 = vpop.permute.xlu0 %1891
    %1895 = vset.pattern.permute.xlu0 0
    %1896 = vperm.xlu0 %1895, %v1862
    %v1897 = vpop.permute.xlu0 %1896
    %1900 = vset.pattern.permute.xlu0 0
    %1901 = vperm.xlu0 %1900, %v1863
    %v1902 = vpop.permute.xlu0 %1901
    %1905 = vset.pattern.permute.xlu0 0
    %1906 = vperm.xlu0 %1905, %v1864
    %v1907 = vpop.permute.xlu0 %1906
    %1910 = vset.pattern.permute.xlu0 0
    %1911 = vperm.xlu0 %1910, %v1865
    %v1912 = vpop.permute.xlu0 %1911
    %1915 = vset.pattern.permute.xlu0 0
    %1916 = vperm.xlu0 %1915, %v1866
    %v1917 = vpop.permute.xlu0 %1916
    %1920 = vset.pattern.permute.xlu0 0
    %1921 = vperm.xlu0 %1920, %v1867
    %v1922 = vpop.permute.xlu0 %1921
    %1925 = vset.pattern.permute.xlu0 0
    %1926 = vperm.xlu0 %1925, %v1868
    %v1927 = vpop.permute.xlu0 %1926
    %1930 = vset.pattern.permute.xlu0 0
    %1931 = vperm.xlu0 %1930, %v1869
    %v1932 = vpop.permute.xlu0 %1931
    %1935 = vset.pattern.permute.xlu0 0
    %1936 = vperm.xlu0 %1935, %v1870
    %v1937 = vpop.permute.xlu0 %1936
    %1940 = vset.pattern.permute.xlu0 0
    %1941 = vperm.xlu0 %1940, %v1871
    %v1942 = vpop.permute.xlu0 %1941
    %1945 = vset.pattern.permute.xlu0 0
    %1946 = vperm.xlu0 %1945, %v1872
    %v1947 = vpop.permute.xlu0 %1946
    %1950 = vset.pattern.permute.xlu0 0
    %1951 = vperm.xlu0 %1950, %v1873
    %v1952 = vpop.permute.xlu0 %1951
    %v1954 = vmul.f32 %v1877, 0.0
    %v1955 = vmul.f32 %v1882, 0.0
    %v1956 = vmul.f32 %v1887, 0.0
    %v1957 = vmul.f32 %v1892, 0.0
    %v1958 = vmul.f32 %v1897, 0.0
    %v1959 = vmul.f32 %v1902, 0.0
    %v1960 = vmul.f32 %v1907, 0.0
    %v1961 = vmul.f32 %v1912, 0.0
    %v1962 = vmul.f32 %v1917, 0.0
    %v1963 = vmul.f32 %v1922, 0.0
    %v1964 = vmul.f32 %v1927, 0.0
    %v1965 = vmul.f32 %v1932, 0.0
    %v1966 = vmul.f32 %v1937, 0.0
    %v1967 = vmul.f32 %v1942, 0.0
    %v1968 = vmul.f32 %v1947, 0.0
    %v1969 = vmul.f32 %v1952, 0.0
    %v1986 = vsel %vm1459, %v1955, %v1954
    %v1987 = vsel %vm1461, %v1956, %v1986
    %v1988 = vsel %vm1463, %v1957, %v1987
    %v1989 = vsel %vm1465, %v1958, %v1988
    %v1990 = vsel %vm1467, %v1959, %v1989
    %v1991 = vsel %vm1469, %v1960, %v1990
    %v1992 = vsel %vm1471, %v1961, %v1991
    %v1993 = vsel %vm1459, %v1963, %v1962
    %v1994 = vsel %vm1461, %v1964, %v1993
    %v1995 = vsel %vm1463, %v1965, %v1994
    %v1996 = vsel %vm1465, %v1966, %v1995
    %v1997 = vsel %vm1467, %v1967, %v1996
    %v1998 = vsel %vm1469, %v1968, %v1997
    %v1999 = vsel %vm1471, %v1969, %v1998
    %v2002 = vadd.f32 %v1856, %v1992
    %v2003 = vadd.f32 %v1857, %v1999
    %v2004 = vpack.c.bf16 %v2002, %v2002
    %v2005 = vpack.c.bf16 %v2003, %v2003
    %2007 = vrot.lane.b32.xlu0 %v2004, 96
    %v2008 = vpop.permute.xlu0 %2007
    %v2013 = vunpack.c.l.b16 %v82
    %v2014 = vunpack.c.l.b16 %v83
    %v2015 = vunpack.c.l.b16 %v84
    %v2016 = vunpack.c.l.b16 %v85
    %v2017 = vpack.c.b16 %v2014, %v2013
    %v2018 = vpack.c.b16 %v2016, %v2015
    %v2022 = vsel %vm180, %v2008, 0
    %2024 = vmatprep.subr.bf16.mxu0 0
    %2025 = vmatpush1.bf16.msra.mxu0 0
    %2026 = vmatprep.subr.bf16.mxu0 0
    %2027 = vmatpush1.bf16.msra.mxu0 0
    %2028 = vmatprep.subr.bf16.mxu0 0
    %2029 = vmatpush1.bf16.msra.mxu0 0
    %2030 = vmatprep.subr.bf16.mxu0 0
    %2031 = vmatpush1.bf16.msra.mxu0 0
    %2032 = vmatprep.subr.bf16.mxu0 0
    %2033 = vmatpush1.bf16.msra.mxu0 0
    %2034 = vmatprep.subr.bf16.mxu0 0
    %2035 = vmatpush1.bf16.msra.mxu0 0
    %2036 = vmatprep.subr.bf16.mxu0 0
    %2037 = vmatpush1.bf16.msra.mxu0 %v2018
    %2038 = vmatprep.subr.bf16.mxu0 0
    %2039 = vmatpush1.bf16.msra.mxu0 %v2017
    %2040 = vmatprep.subr.bf16.mxu0 0
    %2041 = vmatpush2.bf16.msra.mxu0 0
    %2042 = vmatprep.subr.bf16.mxu0 0
    %2043 = vmatpush2.bf16.msra.mxu0 0
    %2044 = vmatprep.subr.bf16.mxu0 0
    %2045 = vmatpush2.bf16.msra.mxu0 0
    %2046 = vmatprep.subr.bf16.mxu0 0
    %2047 = vmatpush2.bf16.msra.mxu0 0
    %2048 = vmatprep.subr.bf16.mxu0 0
    %2049 = vmatpush2.bf16.msra.mxu0 0
    %2050 = vmatprep.subr.bf16.mxu0 0
    %2051 = vmatpush2.bf16.msra.mxu0 0
    %2052 = vmatprep.subr.bf16.mxu0 0
    %2053 = vmatpush2.bf16.msra.mxu0 0
    %2054 = vmatprep.subr.bf16.mxu0 0
    %2055 = vmatpush2.bf16.msra.mxu0 0
    %2056 = vmatprep.mubr.bf16.mxu0 0
    %2057 = vmatmul.mubr.bf16.gmra.mxu0 %v2022
    %v2058 = vpop.f32.mrf.mxu0
    %v2059 = vadd.f32 0.0, %v2058
    %v2060 = vpop.f32.mrf.mxu0
    %v2061 = vpop.f32.mrf.mxu0
    %v2062 = vpop.f32.mrf.mxu0
    %2063 = vdwg.mxu0
    %2065 = vrot.lane.b32.xlu0 %v2005, 96
    %v2066 = vpop.permute.xlu0 %2065
    %v2071 = vunpack.c.l.b16 %v86
    %v2072 = vunpack.c.l.b16 %v87
    %v2073 = vunpack.c.l.b16 %v88
    %v2074 = vunpack.c.l.b16 %v89
    %v2075 = vpack.c.b16 %v2072, %v2071
    %v2076 = vpack.c.b16 %v2074, %v2073
    %v2080 = vsel %vm180, %v2066, 0
    %2082 = vmatprep.subr.bf16.mxu0 0
    %2083 = vmatpush1.bf16.msra.mxu0 0
    %2084 = vmatprep.subr.bf16.mxu0 0
    %2085 = vmatpush1.bf16.msra.mxu0 0
    %2086 = vmatprep.subr.bf16.mxu0 0
    %2087 = vmatpush1.bf16.msra.mxu0 0
    %2088 = vmatprep.subr.bf16.mxu0 0
    %2089 = vmatpush1.bf16.msra.mxu0 0
    %2090 = vmatprep.subr.bf16.mxu0 0
    %2091 = vmatpush1.bf16.msra.mxu0 0
    %2092 = vmatprep.subr.bf16.mxu0 0
    %2093 = vmatpush1.bf16.msra.mxu0 0
    %2094 = vmatprep.subr.bf16.mxu0 0
    %2095 = vmatpush1.bf16.msra.mxu0 %v2076
    %2096 = vmatprep.subr.bf16.mxu0 0
    %2097 = vmatpush1.bf16.msra.mxu0 %v2075
    %2098 = vmatprep.subr.bf16.mxu0 0
    %2099 = vmatpush2.bf16.msra.mxu0 0
    %2100 = vmatprep.subr.bf16.mxu0 0
    %2101 = vmatpush2.bf16.msra.mxu0 0
    %2102 = vmatprep.subr.bf16.mxu0 0
    %2103 = vmatpush2.bf16.msra.mxu0 0
    %2104 = vmatprep.subr.bf16.mxu0 0
    %2105 = vmatpush2.bf16.msra.mxu0 0
    %2106 = vmatprep.subr.bf16.mxu0 0
    %2107 = vmatpush2.bf16.msra.mxu0 0
    %2108 = vmatprep.subr.bf16.mxu0 0
    %2109 = vmatpush2.bf16.msra.mxu0 0
    %2110 = vmatprep.subr.bf16.mxu0 0
    %2111 = vmatpush2.bf16.msra.mxu0 0
    %2112 = vmatprep.subr.bf16.mxu0 0
    %2113 = vmatpush2.bf16.msra.mxu0 0
    %2114 = vmatprep.mubr.bf16.mxu0 0
    %2115 = vmatmul.mubr.bf16.gmra.mxu0 %v2080
    %v2116 = vpop.f32.mrf.mxu0
    %v2117 = vadd.f32 0.0, %v2116
    %v2118 = vpop.f32.mrf.mxu0
    %v2119 = vpop.f32.mrf.mxu0
    %v2120 = vpop.f32.mrf.mxu0
    %2121 = vdwg.mxu0
    %vm2122 = vcmask 785408
    %v2123 = vsel %vm2122, %v2059, 0.0
    %v2124 = vsel %vm2122, %v2117, 0.0
    %v2125 = vadd.f32 %v2123, %v2124
    %v2127 = vlaneseq
    %v2128 = vshrl.u32 %v2127, 7
    %v2129 = vsub.s32 0, %v2128
    %v2130 = vrot.slane %v94, %v2129
    %v2132 = vadd.f32 %v2125, %v2130
    %v2134 = vlaneseq
    %v2135 = vshrl.u32 %v2134, 7
    %v2136 = vsub.s32 0, %v2135
    %v2137 = vrot.slane %v95, %v2136
    %v2143 = vunpack.c.l.b16 %v90
    %v2144 = vunpack.c.l.b16 %v91
    %v2145 = vunpack.c.l.b16 %v92
    %v2146 = vunpack.c.l.b16 %v93
    %v2147 = vpack.c.b16 %v2144, %v2143
    %v2148 = vpack.c.b16 %v2146, %v2145
    %2151 = vmatprep.subr.bf16.mxu0 0
    %2152 = vmatpush1.bf16.msra.mxu0 0
    %2153 = vmatprep.subr.bf16.mxu0 0
    %2154 = vmatpush1.bf16.msra.mxu0 0
    %2155 = vmatprep.subr.bf16.mxu0 0
    %2156 = vmatpush1.bf16.msra.mxu0 0
    %2157 = vmatprep.subr.bf16.mxu0 0
    %2158 = vmatpush1.bf16.msra.mxu0 0
    %2159 = vmatprep.subr.bf16.mxu0 0
    %2160 = vmatpush1.bf16.msra.mxu0 0
    %2161 = vmatprep.subr.bf16.mxu0 0
    %2162 = vmatpush1.bf16.msra.mxu0 0
    %2163 = vmatprep.subr.bf16.mxu0 0
    %2164 = vmatpush1.bf16.msra.mxu0 %v2148
    %2165 = vmatprep.subr.bf16.mxu0 0
    %2166 = vmatpush1.bf16.msra.mxu0 %v2147
    %2167 = vmatprep.subr.bf16.mxu0 0
    %2168 = vmatpush2.bf16.msra.mxu0 0
    %2169 = vmatprep.subr.bf16.mxu0 0
    %2170 = vmatpush2.bf16.msra.mxu0 0
    %2171 = vmatprep.subr.bf16.mxu0 0
    %2172 = vmatpush2.bf16.msra.mxu0 0
    %2173 = vmatprep.subr.bf16.mxu0 0
    %2174 = vmatpush2.bf16.msra.mxu0 0
    %2175 = vmatprep.subr.bf16.mxu0 0
    %2176 = vmatpush2.bf16.msra.mxu0 0
    %2177 = vmatprep.subr.bf16.mxu0 0
    %2178 = vmatpush2.bf16.msra.mxu0 0
    %2179 = vmatprep.subr.bf16.mxu0 0
    %2180 = vmatpush2.bf16.msra.mxu0 0
    %2181 = vmatprep.subr.bf16.mxu0 0
    %2182 = vmatpush2.bf16.msra.mxu0 0
    %2183 = vmatprep.mubr.bf16.mxu0 0
    %2184 = vmatmul.mubr.bf16.gmra.mxu0 %v337
    %v2185 = vpop.f32.mrf.mxu0
    %v2186 = vadd.f32 %v2137, %v2185
    %v2187 = vpop.f32.mrf.mxu0
    %v2188 = vpop.f32.mrf.mxu0
    %v2189 = vpop.f32.mrf.mxu0
    %2190 = vdwg.mxu0
    %v2191 = vadd.f32 %v2132, %v2186
    %v2192 = vxor.u32 %v2191, 2147483648
    %v2193 = vmul.f32 %v2192, 1.442695
    %v2194 = vpow.pop %v2193
    %v2195 = vadd.f32 %v2194, 1.0
    %v2196 = vrcp.pop %v2195
    %v2197 = vmul.f32 1.0, %v2196
    %2199 = vrot.lane.b32.xlu0 %v2186, 64
    %v2200 = vpop.permute.xlu0 %2199
    %v2202 = vmul.f32 %v2197, %v2200
    %2204 = vrot.lane.b32.xlu0 %v2202, 64
    %v2205 = vpop.permute.xlu0 %2204
    %v2207 = vadd.f32 %v2132, %v2205
    %v2208 = vtanh.pop %v2207
    %v2209 = vsub.f32 1.0, %v2197
    %2211 = vrot.lane.b32.xlu0 %v2208, 96
    %v2212 = vpop.permute.xlu0 %2211
    %v2214 = vmul.f32 %v2209, %v2212
    %v2215 = vmul.f32 %v2197, 0.0
    %v2216 = vadd.f32 %v2214, %v2215
    %v2217 = vunpack.c.l.b16 %v2004
    %v2218 = vunpack.c.l.b16 %v2005
    %v2219 = vpack.c.b16 %v2217, %v2217
    %v2220 = vpack.c.b16 %v2218, %v2218
    %2221 = vrot.lane.b32.xlu0 %v2219, 96
    %v2222 = vpop.permute.xlu0 %2221
    %2223 = vrot.lane.b32.xlu0 %v2220, 96
    %v2224 = vpop.permute.xlu0 %2223
    %vm2227 = vcmask 257024
    %2228 = vst.msk [vmem:[#allocation2] sm:$0xf] %vm2227, %v2222
    %2229 = vst.msk [vmem:[#allocation2 + $0x10] sm:$0xf] %vm2227, %v2224
    %v2230 = vpack.c.bf16 %v2216, %v2216
    %v2232 = vunpack.c.l.b16 %v2230
    %v2233 = vpack.c.b16 %v2232, %v2232
    %2234 = vrot.lane.b32.xlu0 %v2233, 96
    %v2235 = vpop.permute.xlu0 %2234
    %2237 = vst.msk [vmem:[#allocation4] sm:$0xf] %vm2227, %v2235
    %s2238 = scalar_lea.vmem %s0, 4
    %v2239 = vld [vmem:[%s2238] sm:$0xf]
    %v2240 = vld [vmem:[%s2238 + $0x10] sm:$0xf]
    %v2241 = vld [vmem:[%s2238 + $0x20] sm:$0xf]
    %v2242 = vld [vmem:[%s2238 + $0x30] sm:$0xf]
    %v2243 = vld [vmem:[%s2238 + $0x40] sm:$0xf]
    %v2244 = vld [vmem:[%s2238 + $0x50] sm:$0xf]
    %v2245 = vld [vmem:[%s2238 + $0x60] sm:$0xf]
    %v2246 = vld [vmem:[%s2238 + $0x70] sm:$0xf]
    %v2247 = vld [vmem:[%s2238 + $0x80] sm:$0xf]
    %v2248 = vld [vmem:[%s2238 + $0x90] sm:$0xf]
    %v2249 = vld [vmem:[%s2238 + $0xa0] sm:$0xf]
    %v2250 = vld [vmem:[%s2238 + $0xb0] sm:$0xf]
    %v2251 = vld [vmem:[%s2238 + $0xc0] sm:$0xf]
    %v2252 = vld [vmem:[%s2238 + $0xd0] sm:$0xf]
    %v2253 = vld [vmem:[%s2238 + $0xe0] sm:$0xf]
    %v2254 = vld [vmem:[%s2238 + $0xf0] sm:$0xf]
    %s2255 = scalar_lea.vmem %s1, 128
    %v2256 = vld [vmem:[%s2255] sm:$0xff]
    %v2257 = vld [vmem:[%s2255 + $0x8] sm:$0xff]
    %v2258 = vld [vmem:[%s2255 + $0x10] sm:$0xff]
    %v2259 = vld [vmem:[%s2255 + $0x18] sm:$0xff]
    %v2260 = vld [vmem:[%s2255 + $0x20] sm:$0xff]
    %v2261 = vld [vmem:[%s2255 + $0x28] sm:$0xff]
    %v2262 = vld [vmem:[%s2255 + $0x30] sm:$0xff]
    %v2263 = vld [vmem:[%s2255 + $0x38] sm:$0xff]
    %v2264 = vld [vmem:[%s2255 + $0x40] sm:$0xff]
    %v2265 = vld [vmem:[%s2255 + $0x48] sm:$0xff]
    %v2266 = vld [vmem:[%s2255 + $0x50] sm:$0xff]
    %v2267 = vld [vmem:[%s2255 + $0x58] sm:$0xff]
    %v2268 = vld [vmem:[%s2255 + $0x60] sm:$0xff]
    %v2269 = vld [vmem:[%s2255 + $0x68] sm:$0xff]
    %v2270 = vld [vmem:[%s2255 + $0x70] sm:$0xff]
    %v2271 = vld [vmem:[%s2255 + $0x78] sm:$0xff]
    %v2272 = vpack.c.bf16 %v2003, %v2002
    %v2289 = vunpack.c.l.b16 %v2239
    %v2290 = vunpack.c.l.b16 %v2240
    %v2291 = vunpack.c.l.b16 %v2241
    %v2292 = vunpack.c.l.b16 %v2242
    %v2293 = vunpack.c.l.b16 %v2243
    %v2294 = vunpack.c.l.b16 %v2244
    %v2295 = vunpack.c.l.b16 %v2245
    %v2296 = vunpack.c.l.b16 %v2246
    %v2297 = vunpack.c.l.b16 %v2247
    %v2298 = vunpack.c.l.b16 %v2248
    %v2299 = vunpack.c.l.b16 %v2249
    %v2300 = vunpack.c.l.b16 %v2250
    %v2301 = vunpack.c.l.b16 %v2251
    %v2302 = vunpack.c.l.b16 %v2252
    %v2303 = vunpack.c.l.b16 %v2253
    %v2304 = vunpack.c.l.b16 %v2254
    %v2305 = vpack.c.b16 %v2290, %v2289
    %v2306 = vpack.c.b16 %v2292, %v2291
    %v2307 = vpack.c.b16 %v2294, %v2293
    %v2308 = vpack.c.b16 %v2296, %v2295
    %v2309 = vpack.c.b16 %v2298, %v2297
    %v2310 = vpack.c.b16 %v2300, %v2299
    %v2311 = vpack.c.b16 %v2302, %v2301
    %v2312 = vpack.c.b16 %v2304, %v2303
    %v2314 = vsel %vm180, %v2305, 0
    %v2317 = vsel %vm180, %v2306, 0
    %v2320 = vsel %vm180, %v2307, 0
    %v2323 = vsel %vm180, %v2308, 0
    %v2326 = vsel %vm180, %v2309, 0
    %v2329 = vsel %vm180, %v2310, 0
    %v2332 = vsel %vm180, %v2311, 0
    %v2335 = vsel %vm180, %v2312, 0
    %2337 = vmatprep.subr.bf16.mxu0 0
    %2338 = vmatpush1.bf16.msra.mxu0 0
    %2339 = vmatprep.subr.bf16.mxu0 0
    %2340 = vmatpush1.bf16.msra.mxu0 0
    %2341 = vmatprep.subr.bf16.mxu0 0
    %2342 = vmatpush1.bf16.msra.mxu0 0
    %2343 = vmatprep.subr.bf16.mxu0 0
    %2344 = vmatpush1.bf16.msra.mxu0 0
    %2345 = vmatprep.subr.bf16.mxu0 0
    %2346 = vmatpush1.bf16.msra.mxu0 0
    %2347 = vmatprep.subr.bf16.mxu0 0
    %2348 = vmatpush1.bf16.msra.mxu0 0
    %2349 = vmatprep.subr.bf16.mxu0 0
    %2350 = vmatpush1.bf16.msra.mxu0 %v177
    %2351 = vmatprep.subr.bf16.mxu0 0
    %2352 = vmatpush1.bf16.msra.mxu0 %v176
    %2353 = vmatprep.subr.bf16.mxu0 0
    %2354 = vmatpush2.bf16.msra.mxu0 0
    %2355 = vmatprep.subr.bf16.mxu0 0
    %2356 = vmatpush2.bf16.msra.mxu0 0
    %2357 = vmatprep.subr.bf16.mxu0 0
    %2358 = vmatpush2.bf16.msra.mxu0 0
    %2359 = vmatprep.subr.bf16.mxu0 0
    %2360 = vmatpush2.bf16.msra.mxu0 0
    %2361 = vmatprep.subr.bf16.mxu0 0
    %2362 = vmatpush2.bf16.msra.mxu0 0
    %2363 = vmatprep.subr.bf16.mxu0 0
    %2364 = vmatpush2.bf16.msra.mxu0 0
    %2365 = vmatprep.subr.bf16.mxu0 0
    %2366 = vmatpush2.bf16.msra.mxu0 0
    %2367 = vmatprep.subr.bf16.mxu0 0
    %2368 = vmatpush2.bf16.msra.mxu0 0
    %2369 = vmatprep.mubr.bf16.mxu0 0
    %2370 = vmatmul.mubr.bf16.gmra.mxu0 %v2314
    %v2371 = vpop.f32.mrf.mxu0
    %v2372 = vadd.f32 0.0, %v2371
    %v2373 = vpop.f32.mrf.mxu0
    %v2374 = vpop.f32.mrf.mxu0
    %v2375 = vadd.f32 0.0, %v2374
    %v2376 = vpop.f32.mrf.mxu0
    %2377 = vmatprep.mubr.bf16.mxu0 0
    %2378 = vmatmul.mubr.bf16.gmra.mxu0 %v2317
    %v2379 = vpop.f32.mrf.mxu0
    %v2380 = vadd.f32 0.0, %v2379
    %v2381 = vpop.f32.mrf.mxu0
    %v2382 = vpop.f32.mrf.mxu0
    %v2383 = vadd.f32 0.0, %v2382
    %v2384 = vpop.f32.mrf.mxu0
    %2385 = vmatprep.mubr.bf16.mxu0 0
    %2386 = vmatmul.mubr.bf16.gmra.mxu0 %v2320
    %v2387 = vpop.f32.mrf.mxu0
    %v2388 = vadd.f32 0.0, %v2387
    %v2389 = vpop.f32.mrf.mxu0
    %v2390 = vpop.f32.mrf.mxu0
    %v2391 = vadd.f32 0.0, %v2390
    %v2392 = vpop.f32.mrf.mxu0
    %2393 = vmatprep.mubr.bf16.mxu0 0
    %2394 = vmatmul.mubr.bf16.gmra.mxu0 %v2323
    %v2395 = vpop.f32.mrf.mxu0
    %v2396 = vadd.f32 0.0, %v2395
    %v2397 = vpop.f32.mrf.mxu0
    %v2398 = vpop.f32.mrf.mxu0
    %v2399 = vadd.f32 0.0, %v2398
    %v2400 = vpop.f32.mrf.mxu0
    %2401 = vmatprep.mubr.bf16.mxu0 0
    %2402 = vmatmul.mubr.bf16.gmra.mxu0 %v2326
    %v2403 = vpop.f32.mrf.mxu0
    %v2404 = vadd.f32 0.0, %v2403
    %v2405 = vpop.f32.mrf.mxu0
    %v2406 = vpop.f32.mrf.mxu0
    %v2407 = vadd.f32 0.0, %v2406
    %v2408 = vpop.f32.mrf.mxu0
    %2409 = vmatprep.mubr.bf16.mxu0 0
    %2410 = vmatmul.mubr.bf16.gmra.mxu0 %v2329
    %v2411 = vpop.f32.mrf.mxu0
    %v2412 = vadd.f32 0.0, %v2411
    %v2413 = vpop.f32.mrf.mxu0
    %v2414 = vpop.f32.mrf.mxu0
    %v2415 = vadd.f32 0.0, %v2414
    %v2416 = vpop.f32.mrf.mxu0
    %2417 = vmatprep.mubr.bf16.mxu0 0
    %2418 = vmatmul.mubr.bf16.gmra.mxu0 %v2332
    %v2419 = vpop.f32.mrf.mxu0
    %v2420 = vadd.f32 0.0, %v2419
    %v2421 = vpop.f32.mrf.mxu0
    %v2422 = vpop.f32.mrf.mxu0
    %v2423 = vadd.f32 0.0, %v2422
    %v2424 = vpop.f32.mrf.mxu0
    %2425 = vmatprep.mubr.bf16.mxu0 0
    %2426 = vmatmul.mubr.bf16.gmra.mxu0 %v2335
    %v2427 = vpop.f32.mrf.mxu0
    %v2428 = vadd.f32 0.0, %v2427
    %v2429 = vpop.f32.mrf.mxu0
    %v2430 = vpop.f32.mrf.mxu0
    %v2431 = vadd.f32 0.0, %v2430
    %v2432 = vpop.f32.mrf.mxu0
    %2433 = vdwg.mxu0
    %v2434 = vadd.f32 %v2372, %v306
    %v2435 = vadd.f32 %v2375, %v306
    %v2436 = vadd.f32 %v2380, %v306
    %v2437 = vadd.f32 %v2383, %v306
    %v2438 = vadd.f32 %v2388, %v306
    %v2439 = vadd.f32 %v2391, %v306
    %v2440 = vadd.f32 %v2396, %v306
    %v2441 = vadd.f32 %v2399, %v306
    %v2442 = vadd.f32 %v2404, %v306
    %v2443 = vadd.f32 %v2407, %v306
    %v2444 = vadd.f32 %v2412, %v306
    %v2445 = vadd.f32 %v2415, %v306
    %v2446 = vadd.f32 %v2420, %v306
    %v2447 = vadd.f32 %v2423, %v306
    %v2448 = vadd.f32 %v2428, %v306
    %v2449 = vadd.f32 %v2431, %v306
    %2451 = vrot.lane.b32.xlu0 %v2272, 96
    %v2452 = vpop.permute.xlu0 %2451
    %v2454 = vsel %vm180, %v2452, 0
    %2456 = vmatprep.subr.bf16.mxu0 0
    %2457 = vmatpush1.bf16.msra.mxu0 0
    %2458 = vmatprep.subr.bf16.mxu0 0
    %2459 = vmatpush1.bf16.msra.mxu0 0
    %2460 = vmatprep.subr.bf16.mxu0 0
    %2461 = vmatpush1.bf16.msra.mxu0 0
    %2462 = vmatprep.subr.bf16.mxu0 0
    %2463 = vmatpush1.bf16.msra.mxu0 0
    %2464 = vmatprep.subr.bf16.mxu0 0
    %2465 = vmatpush1.bf16.msra.mxu0 0
    %2466 = vmatprep.subr.bf16.mxu0 0
    %2467 = vmatpush1.bf16.msra.mxu0 0
    %2468 = vmatprep.subr.bf16.mxu0 0
    %2469 = vmatpush1.bf16.msra.mxu0 %v333
    %2470 = vmatprep.subr.bf16.mxu0 0
    %2471 = vmatpush1.bf16.msra.mxu0 %v332
    %2472 = vmatprep.subr.bf16.mxu0 0
    %2473 = vmatpush2.bf16.msra.mxu0 0
    %2474 = vmatprep.subr.bf16.mxu0 0
    %2475 = vmatpush2.bf16.msra.mxu0 0
    %2476 = vmatprep.subr.bf16.mxu0 0
    %2477 = vmatpush2.bf16.msra.mxu0 0
    %2478 = vmatprep.subr.bf16.mxu0 0
    %2479 = vmatpush2.bf16.msra.mxu0 0
    %2480 = vmatprep.subr.bf16.mxu0 0
    %2481 = vmatpush2.bf16.msra.mxu0 0
    %2482 = vmatprep.subr.bf16.mxu0 0
    %2483 = vmatpush2.bf16.msra.mxu0 0
    %2484 = vmatprep.subr.bf16.mxu0 0
    %2485 = vmatpush2.bf16.msra.mxu0 0
    %2486 = vmatprep.subr.bf16.mxu0 0
    %2487 = vmatpush2.bf16.msra.mxu0 0
    %2488 = vmatprep.mubr.bf16.mxu0 0
    %2489 = vmatmul.mubr.bf16.gmra.mxu0 %v2454
    %v2490 = vpop.f32.mrf.mxu0
    %v2491 = vadd.f32 0.0, %v2490
    %v2492 = vpop.f32.mrf.mxu0
    %v2493 = vpop.f32.mrf.mxu0
    %v2494 = vadd.f32 0.0, %v2493
    %v2495 = vpop.f32.mrf.mxu0
    %2496 = vdwg.mxu0
    %v2499 = vcombine.high %v2491, %v2491
    %v2501 = vunpack.c.l.s4 1966171168
    %v2502 = vunpack.c.0.s8 %v2501
    %v2503 = vlaneseq
    %v2504 = vshrl.u32 %v2503, 7
    %v2505 = vsub.s32 %v2502, %v2504
    %v2506 = vrot.slane %v2491, %v2505
    %v2508 = vunpack.c.l.s4 1966171168
    %v2509 = vunpack.c.0.s8 %v2508
    %v2510 = vlaneseq
    %v2511 = vshrl.u32 %v2510, 7
    %v2512 = vsub.s32 %v2509, %v2511
    %v2513 = vrot.slane %v2499, %v2512
    %v2514 = vcombine.high %v2506, %v2506
    %v2515 = vcombine.high %v2513, %v2513
    %v2517 = vunpack.c.l.s4 1966171168
    %v2518 = vunpack.c.0.s8 %v2517
    %v2519 = vlaneseq
    %v2520 = vshrl.u32 %v2519, 7
    %v2521 = vsub.s32 %v2518, %v2520
    %v2522 = vrot.slane %v2506, %v2521
    %v2524 = vunpack.c.l.s4 1966171168
    %v2525 = vunpack.c.0.s8 %v2524
    %v2526 = vlaneseq
    %v2527 = vshrl.u32 %v2526, 7
    %v2528 = vsub.s32 %v2525, %v2527
    %v2529 = vrot.slane %v2513, %v2528
    %v2531 = vunpack.c.l.s4 1966171168
    %v2532 = vunpack.c.0.s8 %v2531
    %v2533 = vlaneseq
    %v2534 = vshrl.u32 %v2533, 7
    %v2535 = vsub.s32 %v2532, %v2534
    %v2536 = vrot.slane %v2514, %v2535
    %v2538 = vunpack.c.l.s4 1966171168
    %v2539 = vunpack.c.0.s8 %v2538
    %v2540 = vlaneseq
    %v2541 = vshrl.u32 %v2540, 7
    %v2542 = vsub.s32 %v2539, %v2541
    %v2543 = vrot.slane %v2515, %v2542
    %v2544 = vcombine.high %v2522, %v2522
    %v2545 = vcombine.high %v2529, %v2529
    %v2546 = vcombine.high %v2536, %v2536
    %v2547 = vcombine.high %v2543, %v2543
    %v2548 = vcombine.high %v2494, %v2494
    %v2550 = vunpack.c.l.s4 1966171168
    %v2551 = vunpack.c.0.s8 %v2550
    %v2552 = vlaneseq
    %v2553 = vshrl.u32 %v2552, 7
    %v2554 = vsub.s32 %v2551, %v2553
    %v2555 = vrot.slane %v2494, %v2554
    %v2557 = vunpack.c.l.s4 1966171168
    %v2558 = vunpack.c.0.s8 %v2557
    %v2559 = vlaneseq
    %v2560 = vshrl.u32 %v2559, 7
    %v2561 = vsub.s32 %v2558, %v2560
    %v2562 = vrot.slane %v2548, %v2561
    %v2563 = vcombine.high %v2555, %v2555
    %v2564 = vcombine.high %v2562, %v2562
    %v2566 = vunpack.c.l.s4 1966171168
    %v2567 = vunpack.c.0.s8 %v2566
    %v2568 = vlaneseq
    %v2569 = vshrl.u32 %v2568, 7
    %v2570 = vsub.s32 %v2567, %v2569
    %v2571 = vrot.slane %v2555, %v2570
    %v2573 = vunpack.c.l.s4 1966171168
    %v2574 = vunpack.c.0.s8 %v2573
    %v2575 = vlaneseq
    %v2576 = vshrl.u32 %v2575, 7
    %v2577 = vsub.s32 %v2574, %v2576
    %v2578 = vrot.slane %v2562, %v2577
    %v2580 = vunpack.c.l.s4 1966171168
    %v2581 = vunpack.c.0.s8 %v2580
    %v2582 = vlaneseq
    %v2583 = vshrl.u32 %v2582, 7
    %v2584 = vsub.s32 %v2581, %v2583
    %v2585 = vrot.slane %v2563, %v2584
    %v2587 = vunpack.c.l.s4 1966171168
    %v2588 = vunpack.c.0.s8 %v2587
    %v2589 = vlaneseq
    %v2590 = vshrl.u32 %v2589, 7
    %v2591 = vsub.s32 %v2588, %v2590
    %v2592 = vrot.slane %v2564, %v2591
    %v2593 = vcombine.high %v2571, %v2571
    %v2594 = vcombine.high %v2578, %v2578
    %v2595 = vcombine.high %v2585, %v2585
    %v2596 = vcombine.high %v2592, %v2592
    %v2597 = vlaneseq
    %v2598 = vshrl.u32 %v2597, 7
    %v2599 = vsub.s32 0, %v2598
    %v2600 = vrot.slane %v2522, %v2599
    %v2601 = vlaneseq
    %v2602 = vshrl.u32 %v2601, 7
    %v2603 = vsub.s32 0, %v2602
    %v2604 = vrot.slane %v2536, %v2603
    %v2605 = vlaneseq
    %v2606 = vshrl.u32 %v2605, 7
    %v2607 = vsub.s32 0, %v2606
    %v2608 = vrot.slane %v2544, %v2607
    %v2609 = vlaneseq
    %v2610 = vshrl.u32 %v2609, 7
    %v2611 = vsub.s32 0, %v2610
    %v2612 = vrot.slane %v2546, %v2611
    %v2613 = vlaneseq
    %v2614 = vshrl.u32 %v2613, 7
    %v2615 = vsub.s32 0, %v2614
    %v2616 = vrot.slane %v2529, %v2615
    %v2617 = vlaneseq
    %v2618 = vshrl.u32 %v2617, 7
    %v2619 = vsub.s32 0, %v2618
    %v2620 = vrot.slane %v2543, %v2619
    %v2621 = vlaneseq
    %v2622 = vshrl.u32 %v2621, 7
    %v2623 = vsub.s32 0, %v2622
    %v2624 = vrot.slane %v2545, %v2623
    %v2625 = vlaneseq
    %v2626 = vshrl.u32 %v2625, 7
    %v2627 = vsub.s32 0, %v2626
    %v2628 = vrot.slane %v2547, %v2627
    %v2629 = vlaneseq
    %v2630 = vshrl.u32 %v2629, 7
    %v2631 = vsub.s32 0, %v2630
    %v2632 = vrot.slane %v2571, %v2631
    %v2633 = vlaneseq
    %v2634 = vshrl.u32 %v2633, 7
    %v2635 = vsub.s32 0, %v2634
    %v2636 = vrot.slane %v2585, %v2635
    %v2637 = vlaneseq
    %v2638 = vshrl.u32 %v2637, 7
    %v2639 = vsub.s32 0, %v2638
    %v2640 = vrot.slane %v2593, %v2639
    %v2641 = vlaneseq
    %v2642 = vshrl.u32 %v2641, 7
    %v2643 = vsub.s32 0, %v2642
    %v2644 = vrot.slane %v2595, %v2643
    %v2645 = vlaneseq
    %v2646 = vshrl.u32 %v2645, 7
    %v2647 = vsub.s32 0, %v2646
    %v2648 = vrot.slane %v2578, %v2647
    %v2649 = vlaneseq
    %v2650 = vshrl.u32 %v2649, 7
    %v2651 = vsub.s32 0, %v2650
    %v2652 = vrot.slane %v2592, %v2651
    %v2653 = vlaneseq
    %v2654 = vshrl.u32 %v2653, 7
    %v2655 = vsub.s32 0, %v2654
    %v2656 = vrot.slane %v2594, %v2655
    %v2657 = vlaneseq
    %v2658 = vshrl.u32 %v2657, 7
    %v2659 = vsub.s32 0, %v2658
    %v2660 = vrot.slane %v2596, %v2659
    %v2677 = vadd.f32 %v2434, %v2600
    %v2678 = vadd.f32 %v2435, %v2604
    %v2679 = vadd.f32 %v2436, %v2608
    %v2680 = vadd.f32 %v2437, %v2612
    %v2681 = vadd.f32 %v2438, %v2616
    %v2682 = vadd.f32 %v2439, %v2620
    %v2683 = vadd.f32 %v2440, %v2624
    %v2684 = vadd.f32 %v2441, %v2628
    %v2685 = vadd.f32 %v2442, %v2632
    %v2686 = vadd.f32 %v2443, %v2636
    %v2687 = vadd.f32 %v2444, %v2640
    %v2688 = vadd.f32 %v2445, %v2644
    %v2689 = vadd.f32 %v2446, %v2648
    %v2690 = vadd.f32 %v2447, %v2652
    %v2691 = vadd.f32 %v2448, %v2656
    %v2692 = vadd.f32 %v2449, %v2660
    %v2693 = vtanh.pop %v2677
    %v2694 = vtanh.pop %v2678
    %v2695 = vtanh.pop %v2679
    %v2696 = vtanh.pop %v2680
    %v2697 = vtanh.pop %v2681
    %v2698 = vtanh.pop %v2682
    %v2699 = vtanh.pop %v2683
    %v2700 = vtanh.pop %v2684
    %v2701 = vtanh.pop %v2685
    %v2702 = vtanh.pop %v2686
    %v2703 = vtanh.pop %v2687
    %v2704 = vtanh.pop %v2688
    %v2705 = vtanh.pop %v2689
    %v2706 = vtanh.pop %v2690
    %v2707 = vtanh.pop %v2691
    %v2708 = vtanh.pop %v2692
    %v2709 = vmul.f32 %v2693, %v596
    %v2710 = vmul.f32 %v2694, %v596
    %v2711 = vmul.f32 %v2695, %v596
    %v2712 = vmul.f32 %v2696, %v596
    %v2713 = vmul.f32 %v2697, %v596
    %v2714 = vmul.f32 %v2698, %v596
    %v2715 = vmul.f32 %v2699, %v596
    %v2716 = vmul.f32 %v2700, %v596
    %v2717 = vmul.f32 %v2701, %v596
    %v2718 = vmul.f32 %v2702, %v596
    %v2719 = vmul.f32 %v2703, %v596
    %v2720 = vmul.f32 %v2704, %v596
    %v2721 = vmul.f32 %v2705, %v596
    %v2722 = vmul.f32 %v2706, %v596
    %v2723 = vmul.f32 %v2707, %v596
    %v2724 = vmul.f32 %v2708, %v596
    %v2725 = vsel %vm180, %v2709, 0.0
    %2726 = vadd.xlane.f32.xlu0 %v2725
    %v2727 = vpop.xlane.xlu0 %2726
    %v2728 = vsel %vm180, %v2710, 0.0
    %2729 = vadd.xlane.f32.xlu0 %v2728
    %v2730 = vpop.xlane.xlu0 %2729
    %v2731 = vsel %vm180, %v2711, 0.0
    %2732 = vadd.xlane.f32.xlu0 %v2731
    %v2733 = vpop.xlane.xlu0 %2732
    %v2734 = vsel %vm180, %v2712, 0.0
    %2735 = vadd.xlane.f32.xlu0 %v2734
    %v2736 = vpop.xlane.xlu0 %2735
    %v2737 = vsel %vm180, %v2713, 0.0
    %2738 = vadd.xlane.f32.xlu0 %v2737
    %v2739 = vpop.xlane.xlu0 %2738
    %v2740 = vsel %vm180, %v2714, 0.0
    %2741 = vadd.xlane.f32.xlu0 %v2740
    %v2742 = vpop.xlane.xlu0 %2741
    %v2743 = vsel %vm180, %v2715, 0.0
    %2744 = vadd.xlane.f32.xlu0 %v2743
    %v2745 = vpop.xlane.xlu0 %2744
    %v2746 = vsel %vm180, %v2716, 0.0
    %2747 = vadd.xlane.f32.xlu0 %v2746
    %v2748 = vpop.xlane.xlu0 %2747
    %v2749 = vsel %vm180, %v2717, 0.0
    %2750 = vadd.xlane.f32.xlu0 %v2749
    %v2751 = vpop.xlane.xlu0 %2750
    %v2752 = vsel %vm180, %v2718, 0.0
    %2753 = vadd.xlane.f32.xlu0 %v2752
    %v2754 = vpop.xlane.xlu0 %2753
    %v2755 = vsel %vm180, %v2719, 0.0
    %2756 = vadd.xlane.f32.xlu0 %v2755
    %v2757 = vpop.xlane.xlu0 %2756
    %v2758 = vsel %vm180, %v2720, 0.0
    %2759 = vadd.xlane.f32.xlu0 %v2758
    %v2760 = vpop.xlane.xlu0 %2759
    %v2761 = vsel %vm180, %v2721, 0.0
    %2762 = vadd.xlane.f32.xlu0 %v2761
    %v2763 = vpop.xlane.xlu0 %2762
    %v2764 = vsel %vm180, %v2722, 0.0
    %2765 = vadd.xlane.f32.xlu0 %v2764
    %v2766 = vpop.xlane.xlu0 %2765
    %v2767 = vsel %vm180, %v2723, 0.0
    %2768 = vadd.xlane.f32.xlu0 %v2767
    %v2769 = vpop.xlane.xlu0 %2768
    %v2770 = vsel %vm180, %v2724, 0.0
    %2771 = vadd.xlane.f32.xlu0 %v2770
    %v2772 = vpop.xlane.xlu0 %2771
    %v2773 = vrot.slane %v2727, 4
    %v2774 = vmax.f32 %v2727, %v2773
    %v2775 = vrot.slane %v2774, 2
    %v2776 = vmax.f32 %v2774, %v2775
    %v2777 = vrot.slane %v2776, 1
    %v2778 = vmax.f32 %v2776, %v2777
    %v2779 = vrot.slane %v2730, 4
    %v2780 = vmax.f32 %v2730, %v2779
    %v2781 = vrot.slane %v2780, 2
    %v2782 = vmax.f32 %v2780, %v2781
    %v2783 = vrot.slane %v2782, 1
    %v2784 = vmax.f32 %v2782, %v2783
    %v2785 = vrot.slane %v2733, 4
    %v2786 = vmax.f32 %v2733, %v2785
    %v2787 = vrot.slane %v2786, 2
    %v2788 = vmax.f32 %v2786, %v2787
    %v2789 = vrot.slane %v2788, 1
    %v2790 = vmax.f32 %v2788, %v2789
    %v2791 = vrot.slane %v2736, 4
    %v2792 = vmax.f32 %v2736, %v2791
    %v2793 = vrot.slane %v2792, 2
    %v2794 = vmax.f32 %v2792, %v2793
    %v2795 = vrot.slane %v2794, 1
    %v2796 = vmax.f32 %v2794, %v2795
    %v2797 = vrot.slane %v2739, 4
    %v2798 = vmax.f32 %v2739, %v2797
    %v2799 = vrot.slane %v2798, 2
    %v2800 = vmax.f32 %v2798, %v2799
    %v2801 = vrot.slane %v2800, 1
    %v2802 = vmax.f32 %v2800, %v2801
    %v2803 = vrot.slane %v2742, 4
    %v2804 = vmax.f32 %v2742, %v2803
    %v2805 = vrot.slane %v2804, 2
    %v2806 = vmax.f32 %v2804, %v2805
    %v2807 = vrot.slane %v2806, 1
    %v2808 = vmax.f32 %v2806, %v2807
    %v2809 = vrot.slane %v2745, 4
    %v2810 = vmax.f32 %v2745, %v2809
    %v2811 = vrot.slane %v2810, 2
    %v2812 = vmax.f32 %v2810, %v2811
    %v2813 = vrot.slane %v2812, 1
    %v2814 = vmax.f32 %v2812, %v2813
    %v2815 = vrot.slane %v2748, 4
    %v2816 = vmax.f32 %v2748, %v2815
    %v2817 = vrot.slane %v2816, 2
    %v2818 = vmax.f32 %v2816, %v2817
    %v2819 = vrot.slane %v2818, 1
    %v2820 = vmax.f32 %v2818, %v2819
    %v2821 = vrot.slane %v2751, 4
    %v2822 = vmax.f32 %v2751, %v2821
    %v2823 = vrot.slane %v2822, 2
    %v2824 = vmax.f32 %v2822, %v2823
    %v2825 = vrot.slane %v2824, 1
    %v2826 = vmax.f32 %v2824, %v2825
    %v2827 = vrot.slane %v2754, 4
    %v2828 = vmax.f32 %v2754, %v2827
    %v2829 = vrot.slane %v2828, 2
    %v2830 = vmax.f32 %v2828, %v2829
    %v2831 = vrot.slane %v2830, 1
    %v2832 = vmax.f32 %v2830, %v2831
    %v2833 = vrot.slane %v2757, 4
    %v2834 = vmax.f32 %v2757, %v2833
    %v2835 = vrot.slane %v2834, 2
    %v2836 = vmax.f32 %v2834, %v2835
    %v2837 = vrot.slane %v2836, 1
    %v2838 = vmax.f32 %v2836, %v2837
    %v2839 = vrot.slane %v2760, 4
    %v2840 = vmax.f32 %v2760, %v2839
    %v2841 = vrot.slane %v2840, 2
    %v2842 = vmax.f32 %v2840, %v2841
    %v2843 = vrot.slane %v2842, 1
    %v2844 = vmax.f32 %v2842, %v2843
    %v2845 = vrot.slane %v2763, 4
    %v2846 = vmax.f32 %v2763, %v2845
    %v2847 = vrot.slane %v2846, 2
    %v2848 = vmax.f32 %v2846, %v2847
    %v2849 = vrot.slane %v2848, 1
    %v2850 = vmax.f32 %v2848, %v2849
    %v2851 = vrot.slane %v2766, 4
    %v2852 = vmax.f32 %v2766, %v2851
    %v2853 = vrot.slane %v2852, 2
    %v2854 = vmax.f32 %v2852, %v2853
    %v2855 = vrot.slane %v2854, 1
    %v2856 = vmax.f32 %v2854, %v2855
    %v2857 = vrot.slane %v2769, 4
    %v2858 = vmax.f32 %v2769, %v2857
    %v2859 = vrot.slane %v2858, 2
    %v2860 = vmax.f32 %v2858, %v2859
    %v2861 = vrot.slane %v2860, 1
    %v2862 = vmax.f32 %v2860, %v2861
    %v2863 = vrot.slane %v2772, 4
    %v2864 = vmax.f32 %v2772, %v2863
    %v2865 = vrot.slane %v2864, 2
    %v2866 = vmax.f32 %v2864, %v2865
    %v2867 = vrot.slane %v2866, 1
    %v2868 = vmax.f32 %v2866, %v2867
    %v2869 = vsub.f32 %v2727, %v2778
    %v2870 = vsub.f32 %v2730, %v2784
    %v2871 = vsub.f32 %v2733, %v2790
    %v2872 = vsub.f32 %v2736, %v2796
    %v2873 = vsub.f32 %v2739, %v2802
    %v2874 = vsub.f32 %v2742, %v2808
    %v2875 = vsub.f32 %v2745, %v2814
    %v2876 = vsub.f32 %v2748, %v2820
    %v2877 = vsub.f32 %v2751, %v2826
    %v2878 = vsub.f32 %v2754, %v2832
    %v2879 = vsub.f32 %v2757, %v2838
    %v2880 = vsub.f32 %v2760, %v2844
    %v2881 = vsub.f32 %v2763, %v2850
    %v2882 = vsub.f32 %v2766, %v2856
    %v2883 = vsub.f32 %v2769, %v2862
    %v2884 = vsub.f32 %v2772, %v2868
    %v2885 = vmul.f32 %v2869, 1.442695
    %v2886 = vpow.pop %v2885
    %v2887 = vmul.f32 %v2870, 1.442695
    %v2888 = vpow.pop %v2887
    %v2889 = vmul.f32 %v2871, 1.442695
    %v2890 = vpow.pop %v2889
    %v2891 = vmul.f32 %v2872, 1.442695
    %v2892 = vpow.pop %v2891
    %v2893 = vmul.f32 %v2873, 1.442695
    %v2894 = vpow.pop %v2893
    %v2895 = vmul.f32 %v2874, 1.442695
    %v2896 = vpow.pop %v2895
    %v2897 = vmul.f32 %v2875, 1.442695
    %v2898 = vpow.pop %v2897
    %v2899 = vmul.f32 %v2876, 1.442695
    %v2900 = vpow.pop %v2899
    %v2901 = vmul.f32 %v2877, 1.442695
    %v2902 = vpow.pop %v2901
    %v2903 = vmul.f32 %v2878, 1.442695
    %v2904 = vpow.pop %v2903
    %v2905 = vmul.f32 %v2879, 1.442695
    %v2906 = vpow.pop %v2905
    %v2907 = vmul.f32 %v2880, 1.442695
    %v2908 = vpow.pop %v2907
    %v2909 = vmul.f32 %v2881, 1.442695
    %v2910 = vpow.pop %v2909
    %v2911 = vmul.f32 %v2882, 1.442695
    %v2912 = vpow.pop %v2911
    %v2913 = vmul.f32 %v2883, 1.442695
    %v2914 = vpow.pop %v2913
    %v2915 = vmul.f32 %v2884, 1.442695
    %v2916 = vpow.pop %v2915
    %v2917 = vmul.f32 %v2886, %v2256
    %v2918 = vmul.f32 %v2888, %v2257
    %v2919 = vmul.f32 %v2890, %v2258
    %v2920 = vmul.f32 %v2892, %v2259
    %v2921 = vmul.f32 %v2894, %v2260
    %v2922 = vmul.f32 %v2896, %v2261
    %v2923 = vmul.f32 %v2898, %v2262
    %v2924 = vmul.f32 %v2900, %v2263
    %v2925 = vmul.f32 %v2902, %v2264
    %v2926 = vmul.f32 %v2904, %v2265
    %v2927 = vmul.f32 %v2906, %v2266
    %v2928 = vmul.f32 %v2908, %v2267
    %v2929 = vmul.f32 %v2910, %v2268
    %v2930 = vmul.f32 %v2912, %v2269
    %v2931 = vmul.f32 %v2914, %v2270
    %v2932 = vmul.f32 %v2916, %v2271
    %v2933 = vsel %vm822, %v2917, 0.0
    %v2934 = vrot.slane %v2933, 4
    %v2935 = vadd.f32 %v2933, %v2934
    %v2936 = vrot.slane %v2935, 2
    %v2937 = vadd.f32 %v2935, %v2936
    %v2938 = vrot.slane %v2937, 1
    %v2939 = vadd.f32 %v2937, %v2938
    %v2940 = vsel %vm822, %v2918, 0.0
    %v2941 = vrot.slane %v2940, 4
    %v2942 = vadd.f32 %v2940, %v2941
    %v2943 = vrot.slane %v2942, 2
    %v2944 = vadd.f32 %v2942, %v2943
    %v2945 = vrot.slane %v2944, 1
    %v2946 = vadd.f32 %v2944, %v2945
    %v2947 = vsel %vm822, %v2919, 0.0
    %v2948 = vrot.slane %v2947, 4
    %v2949 = vadd.f32 %v2947, %v2948
    %v2950 = vrot.slane %v2949, 2
    %v2951 = vadd.f32 %v2949, %v2950
    %v2952 = vrot.slane %v2951, 1
    %v2953 = vadd.f32 %v2951, %v2952
    %v2954 = vsel %vm822, %v2920, 0.0
    %v2955 = vrot.slane %v2954, 4
    %v2956 = vadd.f32 %v2954, %v2955
    %v2957 = vrot.slane %v2956, 2
    %v2958 = vadd.f32 %v2956, %v2957
    %v2959 = vrot.slane %v2958, 1
    %v2960 = vadd.f32 %v2958, %v2959
    %v2961 = vsel %vm822, %v2921, 0.0
    %v2962 = vrot.slane %v2961, 4
    %v2963 = vadd.f32 %v2961, %v2962
    %v2964 = vrot.slane %v2963, 2
    %v2965 = vadd.f32 %v2963, %v2964
    %v2966 = vrot.slane %v2965, 1
    %v2967 = vadd.f32 %v2965, %v2966
    %v2968 = vsel %vm822, %v2922, 0.0
    %v2969 = vrot.slane %v2968, 4
    %v2970 = vadd.f32 %v2968, %v2969
    %v2971 = vrot.slane %v2970, 2
    %v2972 = vadd.f32 %v2970, %v2971
    %v2973 = vrot.slane %v2972, 1
    %v2974 = vadd.f32 %v2972, %v2973
    %v2975 = vsel %vm822, %v2923, 0.0
    %v2976 = vrot.slane %v2975, 4
    %v2977 = vadd.f32 %v2975, %v2976
    %v2978 = vrot.slane %v2977, 2
    %v2979 = vadd.f32 %v2977, %v2978
    %v2980 = vrot.slane %v2979, 1
    %v2981 = vadd.f32 %v2979, %v2980
    %v2982 = vsel %vm822, %v2924, 0.0
    %v2983 = vrot.slane %v2982, 4
    %v2984 = vadd.f32 %v2982, %v2983
    %v2985 = vrot.slane %v2984, 2
    %v2986 = vadd.f32 %v2984, %v2985
    %v2987 = vrot.slane %v2986, 1
    %v2988 = vadd.f32 %v2986, %v2987
    %v2989 = vsel %vm822, %v2925, 0.0
    %v2990 = vrot.slane %v2989, 4
    %v2991 = vadd.f32 %v2989, %v2990
    %v2992 = vrot.slane %v2991, 2
    %v2993 = vadd.f32 %v2991, %v2992
    %v2994 = vrot.slane %v2993, 1
    %v2995 = vadd.f32 %v2993, %v2994
    %v2996 = vsel %vm822, %v2926, 0.0
    %v2997 = vrot.slane %v2996, 4
    %v2998 = vadd.f32 %v2996, %v2997
    %v2999 = vrot.slane %v2998, 2
    %v3000 = vadd.f32 %v2998, %v2999
    %v3001 = vrot.slane %v3000, 1
    %v3002 = vadd.f32 %v3000, %v3001
    %v3003 = vsel %vm822, %v2927, 0.0
    %v3004 = vrot.slane %v3003, 4
    %v3005 = vadd.f32 %v3003, %v3004
    %v3006 = vrot.slane %v3005, 2
    %v3007 = vadd.f32 %v3005, %v3006
    %v3008 = vrot.slane %v3007, 1
    %v3009 = vadd.f32 %v3007, %v3008
    %v3010 = vsel %vm822, %v2928, 0.0
    %v3011 = vrot.slane %v3010, 4
    %v3012 = vadd.f32 %v3010, %v3011
    %v3013 = vrot.slane %v3012, 2
    %v3014 = vadd.f32 %v3012, %v3013
    %v3015 = vrot.slane %v3014, 1
    %v3016 = vadd.f32 %v3014, %v3015
    %v3017 = vsel %vm822, %v2929, 0.0
    %v3018 = vrot.slane %v3017, 4
    %v3019 = vadd.f32 %v3017, %v3018
    %v3020 = vrot.slane %v3019, 2
    %v3021 = vadd.f32 %v3019, %v3020
    %v3022 = vrot.slane %v3021, 1
    %v3023 = vadd.f32 %v3021, %v3022
    %v3024 = vsel %vm822, %v2930, 0.0
    %v3025 = vrot.slane %v3024, 4
    %v3026 = vadd.f32 %v3024, %v3025
    %v3027 = vrot.slane %v3026, 2
    %v3028 = vadd.f32 %v3026, %v3027
    %v3029 = vrot.slane %v3028, 1
    %v3030 = vadd.f32 %v3028, %v3029
    %v3031 = vsel %vm822, %v2931, 0.0
    %v3032 = vrot.slane %v3031, 4
    %v3033 = vadd.f32 %v3031, %v3032
    %v3034 = vrot.slane %v3033, 2
    %v3035 = vadd.f32 %v3033, %v3034
    %v3036 = vrot.slane %v3035, 1
    %v3037 = vadd.f32 %v3035, %v3036
    %v3038 = vsel %vm822, %v2932, 0.0
    %v3039 = vrot.slane %v3038, 4
    %v3040 = vadd.f32 %v3038, %v3039
    %v3041 = vrot.slane %v3040, 2
    %v3042 = vadd.f32 %v3040, %v3041
    %v3043 = vrot.slane %v3042, 1
    %v3044 = vadd.f32 %v3042, %v3043
    %vm3045 = vcmp.eq.f32.partialorder %v2939, 0.0
    %vm3046 = vcmp.eq.f32.partialorder %v2946, 0.0
    %vm3047 = vcmp.eq.f32.partialorder %v2953, 0.0
    %vm3048 = vcmp.eq.f32.partialorder %v2960, 0.0
    %vm3049 = vcmp.eq.f32.partialorder %v2967, 0.0
    %vm3050 = vcmp.eq.f32.partialorder %v2974, 0.0
    %vm3051 = vcmp.eq.f32.partialorder %v2981, 0.0
    %vm3052 = vcmp.eq.f32.partialorder %v2988, 0.0
    %vm3053 = vcmp.eq.f32.partialorder %v2995, 0.0
    %vm3054 = vcmp.eq.f32.partialorder %v3002, 0.0
    %vm3055 = vcmp.eq.f32.partialorder %v3009, 0.0
    %vm3056 = vcmp.eq.f32.partialorder %v3016, 0.0
    %vm3057 = vcmp.eq.f32.partialorder %v3023, 0.0
    %vm3058 = vcmp.eq.f32.partialorder %v3030, 0.0
    %vm3059 = vcmp.eq.f32.partialorder %v3037, 0.0
    %vm3060 = vcmp.eq.f32.partialorder %v3044, 0.0
    %v3061 = vsel %vm3045, 1, 0
    %v3062 = vsel %vm3046, 1, 0
    %v3063 = vsel %vm3047, 1, 0
    %v3064 = vsel %vm3048, 1, 0
    %v3065 = vsel %vm3049, 1, 0
    %v3066 = vsel %vm3050, 1, 0
    %v3067 = vsel %vm3051, 1, 0
    %v3068 = vsel %vm3052, 1, 0
    %v3069 = vsel %vm3053, 1, 0
    %v3070 = vsel %vm3054, 1, 0
    %v3071 = vsel %vm3055, 1, 0
    %v3072 = vsel %vm3056, 1, 0
    %v3073 = vsel %vm3057, 1, 0
    %v3074 = vsel %vm3058, 1, 0
    %v3075 = vsel %vm3059, 1, 0
    %v3076 = vsel %vm3060, 1, 0
    %v3077 = vcvt.s32.f32 %v3061
    %v3078 = vcvt.s32.f32 %v3062
    %v3079 = vcvt.s32.f32 %v3063
    %v3080 = vcvt.s32.f32 %v3064
    %v3081 = vcvt.s32.f32 %v3065
    %v3082 = vcvt.s32.f32 %v3066
    %v3083 = vcvt.s32.f32 %v3067
    %v3084 = vcvt.s32.f32 %v3068
    %v3085 = vcvt.s32.f32 %v3069
    %v3086 = vcvt.s32.f32 %v3070
    %v3087 = vcvt.s32.f32 %v3071
    %v3088 = vcvt.s32.f32 %v3072
    %v3089 = vcvt.s32.f32 %v3073
    %v3090 = vcvt.s32.f32 %v3074
    %v3091 = vcvt.s32.f32 %v3075
    %v3092 = vcvt.s32.f32 %v3076
    %v3093 = vadd.f32 %v2939, %v3077
    %v3094 = vadd.f32 %v2946, %v3078
    %v3095 = vadd.f32 %v2953, %v3079
    %v3096 = vadd.f32 %v2960, %v3080
    %v3097 = vadd.f32 %v2967, %v3081
    %v3098 = vadd.f32 %v2974, %v3082
    %v3099 = vadd.f32 %v2981, %v3083
    %v3100 = vadd.f32 %v2988, %v3084
    %v3101 = vadd.f32 %v2995, %v3085
    %v3102 = vadd.f32 %v3002, %v3086
    %v3103 = vadd.f32 %v3009, %v3087
    %v3104 = vadd.f32 %v3016, %v3088
    %v3105 = vadd.f32 %v3023, %v3089
    %v3106 = vadd.f32 %v3030, %v3090
    %v3107 = vadd.f32 %v3037, %v3091
    %v3108 = vadd.f32 %v3044, %v3092
    %v3109 = vrcp.pop %v3093
    %v3110 = vrcp.pop %v3094
    %v3111 = vrcp.pop %v3095
    %v3112 = vrcp.pop %v3096
    %v3113 = vrcp.pop %v3097
    %v3114 = vrcp.pop %v3098
    %v3115 = vrcp.pop %v3099
    %v3116 = vrcp.pop %v3100
    %v3117 = vrcp.pop %v3101
    %v3118 = vrcp.pop %v3102
    %v3119 = vrcp.pop %v3103
    %v3120 = vrcp.pop %v3104
    %v3121 = vrcp.pop %v3105
    %v3122 = vrcp.pop %v3106
    %v3123 = vrcp.pop %v3107
    %v3124 = vrcp.pop %v3108
    %v3125 = vmul.f32 %v2917, %v3109
    %v3126 = vmul.f32 %v2918, %v3110
    %v3127 = vmul.f32 %v2919, %v3111
    %v3128 = vmul.f32 %v2920, %v3112
    %v3129 = vmul.f32 %v2921, %v3113
    %v3130 = vmul.f32 %v2922, %v3114
    %v3131 = vmul.f32 %v2923, %v3115
    %v3132 = vmul.f32 %v2924, %v3116
    %v3133 = vmul.f32 %v2925, %v3117
    %v3134 = vmul.f32 %v2926, %v3118
    %v3135 = vmul.f32 %v2927, %v3119
    %v3136 = vmul.f32 %v2928, %v3120
    %v3137 = vmul.f32 %v2929, %v3121
    %v3138 = vmul.f32 %v2930, %v3122
    %v3139 = vmul.f32 %v2931, %v3123
    %v3140 = vmul.f32 %v2932, %v3124
    %v3141 = vunpack.c.l.bf16 %v2239
    %v3142 = vunpack.c.l.bf16 %v2240
    %v3143 = vunpack.c.l.bf16 %v2241
    %v3144 = vunpack.c.l.bf16 %v2242
    %v3145 = vunpack.c.l.bf16 %v2243
    %v3146 = vunpack.c.l.bf16 %v2244
    %v3147 = vunpack.c.l.bf16 %v2245
    %v3148 = vunpack.c.l.bf16 %v2246
    %v3149 = vunpack.c.l.bf16 %v2247
    %v3150 = vunpack.c.l.bf16 %v2248
    %v3151 = vunpack.c.l.bf16 %v2249
    %v3152 = vunpack.c.l.bf16 %v2250
    %v3153 = vunpack.c.l.bf16 %v2251
    %v3154 = vunpack.c.l.bf16 %v2252
    %v3155 = vunpack.c.l.bf16 %v2253
    %v3156 = vunpack.c.l.bf16 %v2254
    %3158 = vset.pattern.permute.xlu0 0
    %3159 = vperm.xlu0 %3158, %v3125
    %v3160 = vpop.permute.xlu0 %3159
    %3163 = vset.pattern.permute.xlu0 0
    %3164 = vperm.xlu0 %3163, %v3126
    %v3165 = vpop.permute.xlu0 %3164
    %3168 = vset.pattern.permute.xlu0 0
    %3169 = vperm.xlu0 %3168, %v3127
    %v3170 = vpop.permute.xlu0 %3169
    %3173 = vset.pattern.permute.xlu0 0
    %3174 = vperm.xlu0 %3173, %v3128
    %v3175 = vpop.permute.xlu0 %3174
    %3178 = vset.pattern.permute.xlu0 0
    %3179 = vperm.xlu0 %3178, %v3129
    %v3180 = vpop.permute.xlu0 %3179
    %3183 = vset.pattern.permute.xlu0 0
    %3184 = vperm.xlu0 %3183, %v3130
    %v3185 = vpop.permute.xlu0 %3184
    %3188 = vset.pattern.permute.xlu0 0
    %3189 = vperm.xlu0 %3188, %v3131
    %v3190 = vpop.permute.xlu0 %3189
    %3193 = vset.pattern.permute.xlu0 0
    %3194 = vperm.xlu0 %3193, %v3132
    %v3195 = vpop.permute.xlu0 %3194
    %3198 = vset.pattern.permute.xlu0 0
    %3199 = vperm.xlu0 %3198, %v3133
    %v3200 = vpop.permute.xlu0 %3199
    %3203 = vset.pattern.permute.xlu0 0
    %3204 = vperm.xlu0 %3203, %v3134
    %v3205 = vpop.permute.xlu0 %3204
    %3208 = vset.pattern.permute.xlu0 0
    %3209 = vperm.xlu0 %3208, %v3135
    %v3210 = vpop.permute.xlu0 %3209
    %3213 = vset.pattern.permute.xlu0 0
    %3214 = vperm.xlu0 %3213, %v3136
    %v3215 = vpop.permute.xlu0 %3214
    %3218 = vset.pattern.permute.xlu0 0
    %3219 = vperm.xlu0 %3218, %v3137
    %v3220 = vpop.permute.xlu0 %3219
    %3223 = vset.pattern.permute.xlu0 0
    %3224 = vperm.xlu0 %3223, %v3138
    %v3225 = vpop.permute.xlu0 %3224
    %3228 = vset.pattern.permute.xlu0 0
    %3229 = vperm.xlu0 %3228, %v3139
    %v3230 = vpop.permute.xlu0 %3229
    %3233 = vset.pattern.permute.xlu0 0
    %3234 = vperm.xlu0 %3233, %v3140
    %v3235 = vpop.permute.xlu0 %3234
    %v3237 = vmul.f32 %v3141, %v3160
    %v3238 = vmul.f32 %v3142, %v3165
    %v3239 = vmul.f32 %v3143, %v3170
    %v3240 = vmul.f32 %v3144, %v3175
    %v3241 = vmul.f32 %v3145, %v3180
    %v3242 = vmul.f32 %v3146, %v3185
    %v3243 = vmul.f32 %v3147, %v3190
    %v3244 = vmul.f32 %v3148, %v3195
    %v3245 = vmul.f32 %v3149, %v3200
    %v3246 = vmul.f32 %v3150, %v3205
    %v3247 = vmul.f32 %v3151, %v3210
    %v3248 = vmul.f32 %v3152, %v3215
    %v3249 = vmul.f32 %v3153, %v3220
    %v3250 = vmul.f32 %v3154, %v3225
    %v3251 = vmul.f32 %v3155, %v3230
    %v3252 = vmul.f32 %v3156, %v3235
    %v3253 = vsel %vm180, %v3237, 0.0
    %v3254 = vrot.slane %v3253, 4
    %v3255 = vadd.f32 %v3253, %v3254
    %v3256 = vrot.slane %v3255, 2
    %v3257 = vadd.f32 %v3255, %v3256
    %v3258 = vrot.slane %v3257, 1
    %v3259 = vadd.f32 %v3257, %v3258
    %v3260 = vsel %vm180, %v3238, 0.0
    %v3261 = vrot.slane %v3260, 4
    %v3262 = vadd.f32 %v3260, %v3261
    %v3263 = vrot.slane %v3262, 2
    %v3264 = vadd.f32 %v3262, %v3263
    %v3265 = vrot.slane %v3264, 1
    %v3266 = vadd.f32 %v3264, %v3265
    %v3267 = vsel %vm180, %v3239, 0.0
    %v3268 = vrot.slane %v3267, 4
    %v3269 = vadd.f32 %v3267, %v3268
    %v3270 = vrot.slane %v3269, 2
    %v3271 = vadd.f32 %v3269, %v3270
    %v3272 = vrot.slane %v3271, 1
    %v3273 = vadd.f32 %v3271, %v3272
    %v3274 = vsel %vm180, %v3240, 0.0
    %v3275 = vrot.slane %v3274, 4
    %v3276 = vadd.f32 %v3274, %v3275
    %v3277 = vrot.slane %v3276, 2
    %v3278 = vadd.f32 %v3276, %v3277
    %v3279 = vrot.slane %v3278, 1
    %v3280 = vadd.f32 %v3278, %v3279
    %v3281 = vsel %vm180, %v3241, 0.0
    %v3282 = vrot.slane %v3281, 4
    %v3283 = vadd.f32 %v3281, %v3282
    %v3284 = vrot.slane %v3283, 2
    %v3285 = vadd.f32 %v3283, %v3284
    %v3286 = vrot.slane %v3285, 1
    %v3287 = vadd.f32 %v3285, %v3286
    %v3288 = vsel %vm180, %v3242, 0.0
    %v3289 = vrot.slane %v3288, 4
    %v3290 = vadd.f32 %v3288, %v3289
    %v3291 = vrot.slane %v3290, 2
    %v3292 = vadd.f32 %v3290, %v3291
    %v3293 = vrot.slane %v3292, 1
    %v3294 = vadd.f32 %v3292, %v3293
    %v3295 = vsel %vm180, %v3243, 0.0
    %v3296 = vrot.slane %v3295, 4
    %v3297 = vadd.f32 %v3295, %v3296
    %v3298 = vrot.slane %v3297, 2
    %v3299 = vadd.f32 %v3297, %v3298
    %v3300 = vrot.slane %v3299, 1
    %v3301 = vadd.f32 %v3299, %v3300
    %v3302 = vsel %vm180, %v3244, 0.0
    %v3303 = vrot.slane %v3302, 4
    %v3304 = vadd.f32 %v3302, %v3303
    %v3305 = vrot.slane %v3304, 2
    %v3306 = vadd.f32 %v3304, %v3305
    %v3307 = vrot.slane %v3306, 1
    %v3308 = vadd.f32 %v3306, %v3307
    %v3309 = vsel %vm180, %v3245, 0.0
    %v3310 = vrot.slane %v3309, 4
    %v3311 = vadd.f32 %v3309, %v3310
    %v3312 = vrot.slane %v3311, 2
    %v3313 = vadd.f32 %v3311, %v3312
    %v3314 = vrot.slane %v3313, 1
    %v3315 = vadd.f32 %v3313, %v3314
    %v3316 = vsel %vm180, %v3246, 0.0
    %v3317 = vrot.slane %v3316, 4
    %v3318 = vadd.f32 %v3316, %v3317
    %v3319 = vrot.slane %v3318, 2
    %v3320 = vadd.f32 %v3318, %v3319
    %v3321 = vrot.slane %v3320, 1
    %v3322 = vadd.f32 %v3320, %v3321
    %v3323 = vsel %vm180, %v3247, 0.0
    %v3324 = vrot.slane %v3323, 4
    %v3325 = vadd.f32 %v3323, %v3324
    %v3326 = vrot.slane %v3325, 2
    %v3327 = vadd.f32 %v3325, %v3326
    %v3328 = vrot.slane %v3327, 1
    %v3329 = vadd.f32 %v3327, %v3328
    %v3330 = vsel %vm180, %v3248, 0.0
    %v3331 = vrot.slane %v3330, 4
    %v3332 = vadd.f32 %v3330, %v3331
    %v3333 = vrot.slane %v3332, 2
    %v3334 = vadd.f32 %v3332, %v3333
    %v3335 = vrot.slane %v3334, 1
    %v3336 = vadd.f32 %v3334, %v3335
    %v3337 = vsel %vm180, %v3249, 0.0
    %v3338 = vrot.slane %v3337, 4
    %v3339 = vadd.f32 %v3337, %v3338
    %v3340 = vrot.slane %v3339, 2
    %v3341 = vadd.f32 %v3339, %v3340
    %v3342 = vrot.slane %v3341, 1
    %v3343 = vadd.f32 %v3341, %v3342
    %v3344 = vsel %vm180, %v3250, 0.0
    %v3345 = vrot.slane %v3344, 4
    %v3346 = vadd.f32 %v3344, %v3345
    %v3347 = vrot.slane %v3346, 2
    %v3348 = vadd.f32 %v3346, %v3347
    %v3349 = vrot.slane %v3348, 1
    %v3350 = vadd.f32 %v3348, %v3349
    %v3351 = vsel %vm180, %v3251, 0.0
    %v3352 = vrot.slane %v3351, 4
    %v3353 = vadd.f32 %v3351, %v3352
    %v3354 = vrot.slane %v3353, 2
    %v3355 = vadd.f32 %v3353, %v3354
    %v3356 = vrot.slane %v3355, 1
    %v3357 = vadd.f32 %v3355, %v3356
    %v3358 = vsel %vm180, %v3252, 0.0
    %v3359 = vrot.slane %v3358, 4
    %v3360 = vadd.f32 %v3358, %v3359
    %v3361 = vrot.slane %v3360, 2
    %v3362 = vadd.f32 %v3360, %v3361
    %v3363 = vrot.slane %v3362, 1
    %v3364 = vadd.f32 %v3362, %v3363
    %v3365 = vsel %vm822, %v2256, 0.0
    %v3366 = vrot.slane %v3365, 4
    %v3367 = vadd.f32 %v3365, %v3366
    %v3368 = vrot.slane %v3367, 2
    %v3369 = vadd.f32 %v3367, %v3368
    %v3370 = vrot.slane %v3369, 1
    %v3371 = vadd.f32 %v3369, %v3370
    %v3372 = vsel %vm822, %v2257, 0.0
    %v3373 = vrot.slane %v3372, 4
    %v3374 = vadd.f32 %v3372, %v3373
    %v3375 = vrot.slane %v3374, 2
    %v3376 = vadd.f32 %v3374, %v3375
    %v3377 = vrot.slane %v3376, 1
    %v3378 = vadd.f32 %v3376, %v3377
    %v3379 = vsel %vm822, %v2258, 0.0
    %v3380 = vrot.slane %v3379, 4
    %v3381 = vadd.f32 %v3379, %v3380
    %v3382 = vrot.slane %v3381, 2
    %v3383 = vadd.f32 %v3381, %v3382
    %v3384 = vrot.slane %v3383, 1
    %v3385 = vadd.f32 %v3383, %v3384
    %v3386 = vsel %vm822, %v2259, 0.0
    %v3387 = vrot.slane %v3386, 4
    %v3388 = vadd.f32 %v3386, %v3387
    %v3389 = vrot.slane %v3388, 2
    %v3390 = vadd.f32 %v3388, %v3389
    %v3391 = vrot.slane %v3390, 1
    %v3392 = vadd.f32 %v3390, %v3391
    %v3393 = vsel %vm822, %v2260, 0.0
    %v3394 = vrot.slane %v3393, 4
    %v3395 = vadd.f32 %v3393, %v3394
    %v3396 = vrot.slane %v3395, 2
    %v3397 = vadd.f32 %v3395, %v3396
    %v3398 = vrot.slane %v3397, 1
    %v3399 = vadd.f32 %v3397, %v3398
    %v3400 = vsel %vm822, %v2261, 0.0
    %v3401 = vrot.slane %v3400, 4
    %v3402 = vadd.f32 %v3400, %v3401
    %v3403 = vrot.slane %v3402, 2
    %v3404 = vadd.f32 %v3402, %v3403
    %v3405 = vrot.slane %v3404, 1
    %v3406 = vadd.f32 %v3404, %v3405
    %v3407 = vsel %vm822, %v2262, 0.0
    %v3408 = vrot.slane %v3407, 4
    %v3409 = vadd.f32 %v3407, %v3408
    %v3410 = vrot.slane %v3409, 2
    %v3411 = vadd.f32 %v3409, %v3410
    %v3412 = vrot.slane %v3411, 1
    %v3413 = vadd.f32 %v3411, %v3412
    %v3414 = vsel %vm822, %v2263, 0.0
    %v3415 = vrot.slane %v3414, 4
    %v3416 = vadd.f32 %v3414, %v3415
    %v3417 = vrot.slane %v3416, 2
    %v3418 = vadd.f32 %v3416, %v3417
    %v3419 = vrot.slane %v3418, 1
    %v3420 = vadd.f32 %v3418, %v3419
    %v3421 = vsel %vm822, %v2264, 0.0
    %v3422 = vrot.slane %v3421, 4
    %v3423 = vadd.f32 %v3421, %v3422
    %v3424 = vrot.slane %v3423, 2
    %v3425 = vadd.f32 %v3423, %v3424
    %v3426 = vrot.slane %v3425, 1
    %v3427 = vadd.f32 %v3425, %v3426
    %v3428 = vsel %vm822, %v2265, 0.0
    %v3429 = vrot.slane %v3428, 4
    %v3430 = vadd.f32 %v3428, %v3429
    %v3431 = vrot.slane %v3430, 2
    %v3432 = vadd.f32 %v3430, %v3431
    %v3433 = vrot.slane %v3432, 1
    %v3434 = vadd.f32 %v3432, %v3433
    %v3435 = vsel %vm822, %v2266, 0.0
    %v3436 = vrot.slane %v3435, 4
    %v3437 = vadd.f32 %v3435, %v3436
    %v3438 = vrot.slane %v3437, 2
    %v3439 = vadd.f32 %v3437, %v3438
    %v3440 = vrot.slane %v3439, 1
    %v3441 = vadd.f32 %v3439, %v3440
    %v3442 = vsel %vm822, %v2267, 0.0
    %v3443 = vrot.slane %v3442, 4
    %v3444 = vadd.f32 %v3442, %v3443
    %v3445 = vrot.slane %v3444, 2
    %v3446 = vadd.f32 %v3444, %v3445
    %v3447 = vrot.slane %v3446, 1
    %v3448 = vadd.f32 %v3446, %v3447
    %v3449 = vsel %vm822, %v2268, 0.0
    %v3450 = vrot.slane %v3449, 4
    %v3451 = vadd.f32 %v3449, %v3450
    %v3452 = vrot.slane %v3451, 2
    %v3453 = vadd.f32 %v3451, %v3452
    %v3454 = vrot.slane %v3453, 1
    %v3455 = vadd.f32 %v3453, %v3454
    %v3456 = vsel %vm822, %v2269, 0.0
    %v3457 = vrot.slane %v3456, 4
    %v3458 = vadd.f32 %v3456, %v3457
    %v3459 = vrot.slane %v3458, 2
    %v3460 = vadd.f32 %v3458, %v3459
    %v3461 = vrot.slane %v3460, 1
    %v3462 = vadd.f32 %v3460, %v3461
    %v3463 = vsel %vm822, %v2270, 0.0
    %v3464 = vrot.slane %v3463, 4
    %v3465 = vadd.f32 %v3463, %v3464
    %v3466 = vrot.slane %v3465, 2
    %v3467 = vadd.f32 %v3465, %v3466
    %v3468 = vrot.slane %v3467, 1
    %v3469 = vadd.f32 %v3467, %v3468
    %v3470 = vsel %vm822, %v2271, 0.0
    %v3471 = vrot.slane %v3470, 4
    %v3472 = vadd.f32 %v3470, %v3471
    %v3473 = vrot.slane %v3472, 2
    %v3474 = vadd.f32 %v3472, %v3473
    %v3475 = vrot.slane %v3474, 1
    %v3476 = vadd.f32 %v3474, %v3475
    %vm3477 = vcmp.gt.f32.partialorder %v3371, 0.0
    %vm3478 = vcmp.gt.f32.partialorder %v3378, 0.0
    %vm3479 = vcmp.gt.f32.partialorder %v3385, 0.0
    %vm3480 = vcmp.gt.f32.partialorder %v3392, 0.0
    %vm3481 = vcmp.gt.f32.partialorder %v3399, 0.0
    %vm3482 = vcmp.gt.f32.partialorder %v3406, 0.0
    %vm3483 = vcmp.gt.f32.partialorder %v3413, 0.0
    %vm3484 = vcmp.gt.f32.partialorder %v3420, 0.0
    %vm3485 = vcmp.gt.f32.partialorder %v3427, 0.0
    %vm3486 = vcmp.gt.f32.partialorder %v3434, 0.0
    %vm3487 = vcmp.gt.f32.partialorder %v3441, 0.0
    %vm3488 = vcmp.gt.f32.partialorder %v3448, 0.0
    %vm3489 = vcmp.gt.f32.partialorder %v3455, 0.0
    %vm3490 = vcmp.gt.f32.partialorder %v3462, 0.0
    %vm3491 = vcmp.gt.f32.partialorder %v3469, 0.0
    %vm3492 = vcmp.gt.f32.partialorder %v3476, 0.0
    %v3493 = vsel %vm3477, 1, 0
    %v3494 = vsel %vm3478, 1, 0
    %v3495 = vsel %vm3479, 1, 0
    %v3496 = vsel %vm3480, 1, 0
    %v3497 = vsel %vm3481, 1, 0
    %v3498 = vsel %vm3482, 1, 0
    %v3499 = vsel %vm3483, 1, 0
    %v3500 = vsel %vm3484, 1, 0
    %v3501 = vsel %vm3485, 1, 0
    %v3502 = vsel %vm3486, 1, 0
    %v3503 = vsel %vm3487, 1, 0
    %v3504 = vsel %vm3488, 1, 0
    %v3505 = vsel %vm3489, 1, 0
    %v3506 = vsel %vm3490, 1, 0
    %v3507 = vsel %vm3491, 1, 0
    %v3508 = vsel %vm3492, 1, 0
    %v3509 = vcvt.s32.f32 %v3493
    %v3510 = vcvt.s32.f32 %v3494
    %v3511 = vcvt.s32.f32 %v3495
    %v3512 = vcvt.s32.f32 %v3496
    %v3513 = vcvt.s32.f32 %v3497
    %v3514 = vcvt.s32.f32 %v3498
    %v3515 = vcvt.s32.f32 %v3499
    %v3516 = vcvt.s32.f32 %v3500
    %v3517 = vcvt.s32.f32 %v3501
    %v3518 = vcvt.s32.f32 %v3502
    %v3519 = vcvt.s32.f32 %v3503
    %v3520 = vcvt.s32.f32 %v3504
    %v3521 = vcvt.s32.f32 %v3505
    %v3522 = vcvt.s32.f32 %v3506
    %v3523 = vcvt.s32.f32 %v3507
    %v3524 = vcvt.s32.f32 %v3508
    %v3525 = vpack.c.bf16 %v3259, %v3259
    %v3526 = vpack.c.bf16 %v3266, %v3266
    %v3527 = vpack.c.bf16 %v3273, %v3273
    %v3528 = vpack.c.bf16 %v3280, %v3280
    %v3529 = vpack.c.bf16 %v3287, %v3287
    %v3530 = vpack.c.bf16 %v3294, %v3294
    %v3531 = vpack.c.bf16 %v3301, %v3301
    %v3532 = vpack.c.bf16 %v3308, %v3308
    %v3533 = vpack.c.bf16 %v3315, %v3315
    %v3534 = vpack.c.bf16 %v3322, %v3322
    %v3535 = vpack.c.bf16 %v3329, %v3329
    %v3536 = vpack.c.bf16 %v3336, %v3336
    %v3537 = vpack.c.bf16 %v3343, %v3343
    %v3538 = vpack.c.bf16 %v3350, %v3350
    %v3539 = vpack.c.bf16 %v3357, %v3357
    %v3540 = vpack.c.bf16 %v3364, %v3364
    %v3549 = vunpack.c.l.b16 %v3525
    %v3550 = vunpack.c.l.b16 %v3526
    %v3551 = vunpack.c.l.b16 %v3527
    %v3552 = vunpack.c.l.b16 %v3528
    %v3553 = vunpack.c.l.b16 %v3529
    %v3554 = vunpack.c.l.b16 %v3530
    %v3555 = vunpack.c.l.b16 %v3531
    %v3556 = vunpack.c.l.b16 %v3532
    %v3557 = vsel %vm1459, %v3550, %v3549
    %v3558 = vsel %vm1461, %v3551, %v3557
    %v3559 = vsel %vm1463, %v3552, %v3558
    %v3560 = vsel %vm1465, %v3553, %v3559
    %v3561 = vsel %vm1467, %v3554, %v3560
    %v3562 = vsel %vm1469, %v3555, %v3561
    %v3563 = vsel %vm1471, %v3556, %v3562
    %v3564 = vpack.c.b16 %v3563, %v3563
    %v3566 = vsel %vm180, %v3564, 0
    %3568 = vmatprep.subr.bf16.mxu0 0
    %3569 = vmatpush1.bf16.msra.mxu0 0
    %3570 = vmatprep.subr.bf16.mxu0 0
    %3571 = vmatpush1.bf16.msra.mxu0 0
    %3572 = vmatprep.subr.bf16.mxu0 0
    %3573 = vmatpush1.bf16.msra.mxu0 0
    %3574 = vmatprep.subr.bf16.mxu0 0
    %3575 = vmatpush1.bf16.msra.mxu0 0
    %3576 = vmatprep.subr.bf16.mxu0 0
    %3577 = vmatpush1.bf16.msra.mxu0 0
    %3578 = vmatprep.subr.bf16.mxu0 0
    %3579 = vmatpush1.bf16.msra.mxu0 0
    %3580 = vmatprep.subr.bf16.mxu0 0
    %3581 = vmatpush1.bf16.msra.mxu0 %v1483
    %3582 = vmatprep.subr.bf16.mxu0 0
    %3583 = vmatpush1.bf16.msra.mxu0 %v1482
    %3584 = vmatprep.subr.bf16.mxu0 0
    %3585 = vmatpush2.bf16.msra.mxu0 0
    %3586 = vmatprep.subr.bf16.mxu0 0
    %3587 = vmatpush2.bf16.msra.mxu0 0
    %3588 = vmatprep.subr.bf16.mxu0 0
    %3589 = vmatpush2.bf16.msra.mxu0 0
    %3590 = vmatprep.subr.bf16.mxu0 0
    %3591 = vmatpush2.bf16.msra.mxu0 0
    %3592 = vmatprep.subr.bf16.mxu0 0
    %3593 = vmatpush2.bf16.msra.mxu0 0
    %3594 = vmatprep.subr.bf16.mxu0 0
    %3595 = vmatpush2.bf16.msra.mxu0 0
    %3596 = vmatprep.subr.bf16.mxu0 0
    %3597 = vmatpush2.bf16.msra.mxu0 0
    %3598 = vmatprep.subr.bf16.mxu0 0
    %3599 = vmatpush2.bf16.msra.mxu0 0
    %3600 = vmatprep.mubr.bf16.mxu0 0
    %3601 = vmatmul.mubr.bf16.gmra.mxu0 %v3566
    %v3602 = vpop.f32.mrf.mxu0
    %v3603 = vadd.f32 %v1436, %v3602
    %v3604 = vpop.f32.mrf.mxu0
    %v3605 = vpop.f32.mrf.mxu0
    %v3606 = vpop.f32.mrf.mxu0
    %3607 = vdwg.mxu0
    %v3616 = vunpack.c.l.b16 %v3533
    %v3617 = vunpack.c.l.b16 %v3534
    %v3618 = vunpack.c.l.b16 %v3535
    %v3619 = vunpack.c.l.b16 %v3536
    %v3620 = vunpack.c.l.b16 %v3537
    %v3621 = vunpack.c.l.b16 %v3538
    %v3622 = vunpack.c.l.b16 %v3539
    %v3623 = vunpack.c.l.b16 %v3540
    %v3624 = vsel %vm1459, %v3617, %v3616
    %v3625 = vsel %vm1461, %v3618, %v3624
    %v3626 = vsel %vm1463, %v3619, %v3625
    %v3627 = vsel %vm1465, %v3620, %v3626
    %v3628 = vsel %vm1467, %v3621, %v3627
    %v3629 = vsel %vm1469, %v3622, %v3628
    %v3630 = vsel %vm1471, %v3623, %v3629
    %v3631 = vpack.c.b16 %v3630, %v3630
    %v3633 = vsel %vm180, %v3631, 0
    %3635 = vmatprep.subr.bf16.mxu0 0
    %3636 = vmatpush1.bf16.msra.mxu0 0
    %3637 = vmatprep.subr.bf16.mxu0 0
    %3638 = vmatpush1.bf16.msra.mxu0 0
    %3639 = vmatprep.subr.bf16.mxu0 0
    %3640 = vmatpush1.bf16.msra.mxu0 0
    %3641 = vmatprep.subr.bf16.mxu0 0
    %3642 = vmatpush1.bf16.msra.mxu0 0
    %3643 = vmatprep.subr.bf16.mxu0 0
    %3644 = vmatpush1.bf16.msra.mxu0 0
    %3645 = vmatprep.subr.bf16.mxu0 0
    %3646 = vmatpush1.bf16.msra.mxu0 0
    %3647 = vmatprep.subr.bf16.mxu0 0
    %3648 = vmatpush1.bf16.msra.mxu0 %v1562
    %3649 = vmatprep.subr.bf16.mxu0 0
    %3650 = vmatpush1.bf16.msra.mxu0 %v1561
    %3651 = vmatprep.subr.bf16.mxu0 0
    %3652 = vmatpush2.bf16.msra.mxu0 0
    %3653 = vmatprep.subr.bf16.mxu0 0
    %3654 = vmatpush2.bf16.msra.mxu0 0
    %3655 = vmatprep.subr.bf16.mxu0 0
    %3656 = vmatpush2.bf16.msra.mxu0 0
    %3657 = vmatprep.subr.bf16.mxu0 0
    %3658 = vmatpush2.bf16.msra.mxu0 0
    %3659 = vmatprep.subr.bf16.mxu0 0
    %3660 = vmatpush2.bf16.msra.mxu0 0
    %3661 = vmatprep.subr.bf16.mxu0 0
    %3662 = vmatpush2.bf16.msra.mxu0 0
    %3663 = vmatprep.subr.bf16.mxu0 0
    %3664 = vmatpush2.bf16.msra.mxu0 0
    %3665 = vmatprep.subr.bf16.mxu0 0
    %3666 = vmatpush2.bf16.msra.mxu0 0
    %3667 = vmatprep.mubr.bf16.mxu0 0
    %3668 = vmatmul.mubr.bf16.gmra.mxu0 %v3633
    %v3669 = vpop.f32.mrf.mxu0
    %v3670 = vadd.f32 %v1440, %v3669
    %v3671 = vpop.f32.mrf.mxu0
    %v3672 = vpop.f32.mrf.mxu0
    %v3673 = vpop.f32.mrf.mxu0
    %3674 = vdwg.mxu0
    %3675 = vmatprep.subr.bf16.mxu0 0
    %3676 = vmatpush1.bf16.msra.mxu0 0
    %3677 = vmatprep.subr.bf16.mxu0 0
    %3678 = vmatpush1.bf16.msra.mxu0 0
    %3679 = vmatprep.subr.bf16.mxu0 0
    %3680 = vmatpush1.bf16.msra.mxu0 0
    %3681 = vmatprep.subr.bf16.mxu0 0
    %3682 = vmatpush1.bf16.msra.mxu0 0
    %3683 = vmatprep.subr.bf16.mxu0 0
    %3684 = vmatpush1.bf16.msra.mxu0 0
    %3685 = vmatprep.subr.bf16.mxu0 0
    %3686 = vmatpush1.bf16.msra.mxu0 0
    %3687 = vmatprep.subr.bf16.mxu0 0
    %3688 = vmatpush1.bf16.msra.mxu0 %v1629
    %3689 = vmatprep.subr.bf16.mxu0 0
    %3690 = vmatpush1.bf16.msra.mxu0 %v1628
    %3691 = vmatprep.subr.bf16.mxu0 0
    %3692 = vmatpush2.bf16.msra.mxu0 0
    %3693 = vmatprep.subr.bf16.mxu0 0
    %3694 = vmatpush2.bf16.msra.mxu0 0
    %3695 = vmatprep.subr.bf16.mxu0 0
    %3696 = vmatpush2.bf16.msra.mxu0 0
    %3697 = vmatprep.subr.bf16.mxu0 0
    %3698 = vmatpush2.bf16.msra.mxu0 0
    %3699 = vmatprep.subr.bf16.mxu0 0
    %3700 = vmatpush2.bf16.msra.mxu0 0
    %3701 = vmatprep.subr.bf16.mxu0 0
    %3702 = vmatpush2.bf16.msra.mxu0 0
    %3703 = vmatprep.subr.bf16.mxu0 0
    %3704 = vmatpush2.bf16.msra.mxu0 0
    %3705 = vmatprep.subr.bf16.mxu0 0
    %3706 = vmatpush2.bf16.msra.mxu0 0
    %3707 = vmatprep.mubr.bf16.mxu0 0
    %3708 = vmatmul.mubr.bf16.gmra.mxu0 %v2022
    %v3709 = vpop.f32.mrf.mxu0
    %v3710 = vadd.f32 %v1613, %v3709
    %v3711 = vpop.f32.mrf.mxu0
    %v3712 = vpop.f32.mrf.mxu0
    %v3713 = vpop.f32.mrf.mxu0
    %3714 = vdwg.mxu0
    %3715 = vmatprep.subr.bf16.mxu0 0
    %3716 = vmatpush1.bf16.msra.mxu0 0
    %3717 = vmatprep.subr.bf16.mxu0 0
    %3718 = vmatpush1.bf16.msra.mxu0 0
    %3719 = vmatprep.subr.bf16.mxu0 0
    %3720 = vmatpush1.bf16.msra.mxu0 0
    %3721 = vmatprep.subr.bf16.mxu0 0
    %3722 = vmatpush1.bf16.msra.mxu0 0
    %3723 = vmatprep.subr.bf16.mxu0 0
    %3724 = vmatpush1.bf16.msra.mxu0 0
    %3725 = vmatprep.subr.bf16.mxu0 0
    %3726 = vmatpush1.bf16.msra.mxu0 0
    %3727 = vmatprep.subr.bf16.mxu0 0
    %3728 = vmatpush1.bf16.msra.mxu0 %v1681
    %3729 = vmatprep.subr.bf16.mxu0 0
    %3730 = vmatpush1.bf16.msra.mxu0 %v1680
    %3731 = vmatprep.subr.bf16.mxu0 0
    %3732 = vmatpush2.bf16.msra.mxu0 0
    %3733 = vmatprep.subr.bf16.mxu0 0
    %3734 = vmatpush2.bf16.msra.mxu0 0
    %3735 = vmatprep.subr.bf16.mxu0 0
    %3736 = vmatpush2.bf16.msra.mxu0 0
    %3737 = vmatprep.subr.bf16.mxu0 0
    %3738 = vmatpush2.bf16.msra.mxu0 0
    %3739 = vmatprep.subr.bf16.mxu0 0
    %3740 = vmatpush2.bf16.msra.mxu0 0
    %3741 = vmatprep.subr.bf16.mxu0 0
    %3742 = vmatpush2.bf16.msra.mxu0 0
    %3743 = vmatprep.subr.bf16.mxu0 0
    %3744 = vmatpush2.bf16.msra.mxu0 0
    %3745 = vmatprep.subr.bf16.mxu0 0
    %3746 = vmatpush2.bf16.msra.mxu0 0
    %3747 = vmatprep.mubr.bf16.mxu0 0
    %3748 = vmatmul.mubr.bf16.gmra.mxu0 %v2080
    %v3749 = vpop.f32.mrf.mxu0
    %v3750 = vadd.f32 %v1617, %v3749
    %v3751 = vpop.f32.mrf.mxu0
    %v3752 = vpop.f32.mrf.mxu0
    %v3753 = vpop.f32.mrf.mxu0
    %3754 = vdwg.mxu0
    %v3755 = vadd.f32 %v3603, %v3710
    %v3756 = vadd.f32 %v3670, %v3750
    %v3757 = vxor.u32 %v3755, 2147483648
    %v3758 = vxor.u32 %v3756, 2147483648
    %v3759 = vmul.f32 %v3757, 1.442695
    %v3760 = vpow.pop %v3759
    %v3761 = vmul.f32 %v3758, 1.442695
    %v3762 = vpow.pop %v3761
    %v3763 = vadd.f32 %v3760, 1.0
    %v3764 = vadd.f32 %v3762, 1.0
    %v3765 = vrcp.pop %v3763
    %v3766 = vmul.f32 1.0, %v3765
    %v3767 = vrcp.pop %v3764
    %v3768 = vmul.f32 1.0, %v3767
    %3771 = vrot.lane.b32.xlu0 %v3710, 64
    %v3772 = vpop.permute.xlu0 %3771
    %3773 = vrot.lane.b32.xlu0 %v3750, 64
    %v3774 = vpop.permute.xlu0 %3773
    %v3777 = vmul.f32 %v3766, %v3772
    %v3778 = vmul.f32 %v3768, %v3774
    %3781 = vrot.lane.b32.xlu0 %v3777, 64
    %v3782 = vpop.permute.xlu0 %3781
    %3783 = vrot.lane.b32.xlu0 %v3778, 64
    %v3784 = vpop.permute.xlu0 %3783
    %v3787 = vadd.f32 %v3603, %v3782
    %v3788 = vadd.f32 %v3670, %v3784
    %v3789 = vtanh.pop %v3787
    %v3790 = vtanh.pop %v3788
    %v3791 = vsub.f32 1.0, %v3766
    %v3792 = vsub.f32 1.0, %v3768
    %3795 = vrot.lane.b32.xlu0 %v3789, 96
    %v3796 = vpop.permute.xlu0 %3795
    %3797 = vrot.lane.b32.xlu0 %v3790, 96
    %v3798 = vpop.permute.xlu0 %3797
    %v3801 = vmul.f32 %v3791, %v3796
    %v3802 = vmul.f32 %v3792, %v3798
    %v3803 = vmul.f32 %v3766, %v2002
    %v3804 = vmul.f32 %v3768, %v2003
    %v3805 = vadd.f32 %v3801, %v3803
    %v3806 = vadd.f32 %v3802, %v3804
    %3808 = vset.pattern.permute.xlu0 0
    %3809 = vperm.xlu0 %3808, %v3509
    %v3810 = vpop.permute.xlu0 %3809
    %3812 = vset.pattern.permute.xlu0 0
    %3813 = vperm.xlu0 %3812, %v3510
    %v3814 = vpop.permute.xlu0 %3813
    %3816 = vset.pattern.permute.xlu0 0
    %3817 = vperm.xlu0 %3816, %v3511
    %v3818 = vpop.permute.xlu0 %3817
    %3820 = vset.pattern.permute.xlu0 0
    %3821 = vperm.xlu0 %3820, %v3512
    %v3822 = vpop.permute.xlu0 %3821
    %3824 = vset.pattern.permute.xlu0 0
    %3825 = vperm.xlu0 %3824, %v3513
    %v3826 = vpop.permute.xlu0 %3825
    %3828 = vset.pattern.permute.xlu0 0
    %3829 = vperm.xlu0 %3828, %v3514
    %v3830 = vpop.permute.xlu0 %3829
    %3832 = vset.pattern.permute.xlu0 0
    %3833 = vperm.xlu0 %3832, %v3515
    %v3834 = vpop.permute.xlu0 %3833
    %3836 = vset.pattern.permute.xlu0 0
    %3837 = vperm.xlu0 %3836, %v3516
    %v3838 = vpop.permute.xlu0 %3837
    %3840 = vset.pattern.permute.xlu0 0
    %3841 = vperm.xlu0 %3840, %v3517
    %v3842 = vpop.permute.xlu0 %3841
    %3844 = vset.pattern.permute.xlu0 0
    %3845 = vperm.xlu0 %3844, %v3518
    %v3846 = vpop.permute.xlu0 %3845
    %3848 = vset.pattern.permute.xlu0 0
    %3849 = vperm.xlu0 %3848, %v3519
    %v3850 = vpop.permute.xlu0 %3849
    %3852 = vset.pattern.permute.xlu0 0
    %3853 = vperm.xlu0 %3852, %v3520
    %v3854 = vpop.permute.xlu0 %3853
    %3856 = vset.pattern.permute.xlu0 0
    %3857 = vperm.xlu0 %3856, %v3521
    %v3858 = vpop.permute.xlu0 %3857
    %3860 = vset.pattern.permute.xlu0 0
    %3861 = vperm.xlu0 %3860, %v3522
    %v3862 = vpop.permute.xlu0 %3861
    %3864 = vset.pattern.permute.xlu0 0
    %3865 = vperm.xlu0 %3864, %v3523
    %v3866 = vpop.permute.xlu0 %3865
    %3868 = vset.pattern.permute.xlu0 0
    %3869 = vperm.xlu0 %3868, %v3524
    %v3870 = vpop.permute.xlu0 %3869
    %v3871 = vsel %vm1459, %v3814, %v3810
    %v3872 = vsel %vm1461, %v3818, %v3871
    %v3873 = vsel %vm1463, %v3822, %v3872
    %v3874 = vsel %vm1465, %v3826, %v3873
    %v3875 = vsel %vm1467, %v3830, %v3874
    %v3876 = vsel %vm1469, %v3834, %v3875
    %v3877 = vsel %vm1471, %v3838, %v3876
    %v3878 = vsel %vm1459, %v3846, %v3842
    %v3879 = vsel %vm1461, %v3850, %v3878
    %v3880 = vsel %vm1463, %v3854, %v3879
    %v3881 = vsel %vm1465, %v3858, %v3880
    %v3882 = vsel %vm1467, %v3862, %v3881
    %v3883 = vsel %vm1469, %v3866, %v3882
    %v3884 = vsel %vm1471, %v3870, %v3883
    %v3887 = vmul.f32 %v3805, %v3877
    %v3888 = vmul.f32 %v3806, %v3884
    %v3889 = vsub.f32 1.0, %v3509
    %v3890 = vsub.f32 1.0, %v3510
    %v3891 = vsub.f32 1.0, %v3511
    %v3892 = vsub.f32 1.0, %v3512
    %v3893 = vsub.f32 1.0, %v3513
    %v3894 = vsub.f32 1.0, %v3514
    %v3895 = vsub.f32 1.0, %v3515
    %v3896 = vsub.f32 1.0, %v3516
    %v3897 = vsub.f32 1.0, %v3517
    %v3898 = vsub.f32 1.0, %v3518
    %v3899 = vsub.f32 1.0, %v3519
    %v3900 = vsub.f32 1.0, %v3520
    %v3901 = vsub.f32 1.0, %v3521
    %v3902 = vsub.f32 1.0, %v3522
    %v3903 = vsub.f32 1.0, %v3523
    %v3904 = vsub.f32 1.0, %v3524
    %3906 = vset.pattern.permute.xlu0 0
    %3907 = vperm.xlu0 %3906, %v3889
    %v3908 = vpop.permute.xlu0 %3907
    %3910 = vset.pattern.permute.xlu0 0
    %3911 = vperm.xlu0 %3910, %v3890
    %v3912 = vpop.permute.xlu0 %3911
    %3914 = vset.pattern.permute.xlu0 0
    %3915 = vperm.xlu0 %3914, %v3891
    %v3916 = vpop.permute.xlu0 %3915
    %3918 = vset.pattern.permute.xlu0 0
    %3919 = vperm.xlu0 %3918, %v3892
    %v3920 = vpop.permute.xlu0 %3919
    %3922 = vset.pattern.permute.xlu0 0
    %3923 = vperm.xlu0 %3922, %v3893
    %v3924 = vpop.permute.xlu0 %3923
    %3926 = vset.pattern.permute.xlu0 0
    %3927 = vperm.xlu0 %3926, %v3894
    %v3928 = vpop.permute.xlu0 %3927
    %3930 = vset.pattern.permute.xlu0 0
    %3931 = vperm.xlu0 %3930, %v3895
    %v3932 = vpop.permute.xlu0 %3931
    %3934 = vset.pattern.permute.xlu0 0
    %3935 = vperm.xlu0 %3934, %v3896
    %v3936 = vpop.permute.xlu0 %3935
    %3938 = vset.pattern.permute.xlu0 0
    %3939 = vperm.xlu0 %3938, %v3897
    %v3940 = vpop.permute.xlu0 %3939
    %3942 = vset.pattern.permute.xlu0 0
    %3943 = vperm.xlu0 %3942, %v3898
    %v3944 = vpop.permute.xlu0 %3943
    %3946 = vset.pattern.permute.xlu0 0
    %3947 = vperm.xlu0 %3946, %v3899
    %v3948 = vpop.permute.xlu0 %3947
    %3950 = vset.pattern.permute.xlu0 0
    %3951 = vperm.xlu0 %3950, %v3900
    %v3952 = vpop.permute.xlu0 %3951
    %3954 = vset.pattern.permute.xlu0 0
    %3955 = vperm.xlu0 %3954, %v3901
    %v3956 = vpop.permute.xlu0 %3955
    %3958 = vset.pattern.permute.xlu0 0
    %3959 = vperm.xlu0 %3958, %v3902
    %v3960 = vpop.permute.xlu0 %3959
    %3962 = vset.pattern.permute.xlu0 0
    %3963 = vperm.xlu0 %3962, %v3903
    %v3964 = vpop.permute.xlu0 %3963
    %3966 = vset.pattern.permute.xlu0 0
    %3967 = vperm.xlu0 %3966, %v3904
    %v3968 = vpop.permute.xlu0 %3967
    %v3969 = vsel %vm1459, %v3912, %v3908
    %v3970 = vsel %vm1461, %v3916, %v3969
    %v3971 = vsel %vm1463, %v3920, %v3970
    %v3972 = vsel %vm1465, %v3924, %v3971
    %v3973 = vsel %vm1467, %v3928, %v3972
    %v3974 = vsel %vm1469, %v3932, %v3973
    %v3975 = vsel %vm1471, %v3936, %v3974
    %v3976 = vsel %vm1459, %v3944, %v3940
    %v3977 = vsel %vm1461, %v3948, %v3976
    %v3978 = vsel %vm1463, %v3952, %v3977
    %v3979 = vsel %vm1465, %v3956, %v3978
    %v3980 = vsel %vm1467, %v3960, %v3979
    %v3981 = vsel %vm1469, %v3964, %v3980
    %v3982 = vsel %vm1471, %v3968, %v3981
    %v3985 = vmul.f32 %v2002, %v3975
    %v3986 = vmul.f32 %v2003, %v3982
    %v3987 = vadd.f32 %v3887, %v3985
    %v3988 = vadd.f32 %v3888, %v3986
    %v3989 = vpack.c.bf16 %v3987, %v3987
    %v3990 = vpack.c.bf16 %v3988, %v3988
    %3992 = vrot.lane.b32.xlu0 %v3989, 96
    %v3993 = vpop.permute.xlu0 %3992
    %v3995 = vsel %vm180, %v3993, 0
    %3997 = vmatprep.subr.bf16.mxu0 0
    %3998 = vmatpush1.bf16.msra.mxu0 0
    %3999 = vmatprep.subr.bf16.mxu0 0
    %4000 = vmatpush1.bf16.msra.mxu0 0
    %4001 = vmatprep.subr.bf16.mxu0 0
    %4002 = vmatpush1.bf16.msra.mxu0 0
    %4003 = vmatprep.subr.bf16.mxu0 0
    %4004 = vmatpush1.bf16.msra.mxu0 0
    %4005 = vmatprep.subr.bf16.mxu0 0
    %4006 = vmatpush1.bf16.msra.mxu0 0
    %4007 = vmatprep.subr.bf16.mxu0 0
    %4008 = vmatpush1.bf16.msra.mxu0 0
    %4009 = vmatprep.subr.bf16.mxu0 0
    %4010 = vmatpush1.bf16.msra.mxu0 %v2018
    %4011 = vmatprep.subr.bf16.mxu0 0
    %4012 = vmatpush1.bf16.msra.mxu0 %v2017
    %4013 = vmatprep.subr.bf16.mxu0 0
    %4014 = vmatpush2.bf16.msra.mxu0 0
    %4015 = vmatprep.subr.bf16.mxu0 0
    %4016 = vmatpush2.bf16.msra.mxu0 0
    %4017 = vmatprep.subr.bf16.mxu0 0
    %4018 = vmatpush2.bf16.msra.mxu0 0
    %4019 = vmatprep.subr.bf16.mxu0 0
    %4020 = vmatpush2.bf16.msra.mxu0 0
    %4021 = vmatprep.subr.bf16.mxu0 0
    %4022 = vmatpush2.bf16.msra.mxu0 0
    %4023 = vmatprep.subr.bf16.mxu0 0
    %4024 = vmatpush2.bf16.msra.mxu0 0
    %4025 = vmatprep.subr.bf16.mxu0 0
    %4026 = vmatpush2.bf16.msra.mxu0 0
    %4027 = vmatprep.subr.bf16.mxu0 0
    %4028 = vmatpush2.bf16.msra.mxu0 0
    %4029 = vmatprep.mubr.bf16.mxu0 0
    %4030 = vmatmul.mubr.bf16.gmra.mxu0 %v3995
    %v4031 = vpop.f32.mrf.mxu0
    %v4032 = vadd.f32 0.0, %v4031
    %v4033 = vpop.f32.mrf.mxu0
    %v4034 = vpop.f32.mrf.mxu0
    %v4035 = vpop.f32.mrf.mxu0
    %4036 = vdwg.mxu0
    %4038 = vrot.lane.b32.xlu0 %v3990, 96
    %v4039 = vpop.permute.xlu0 %4038
    %v4041 = vsel %vm180, %v4039, 0
    %4043 = vmatprep.subr.bf16.mxu0 0
    %4044 = vmatpush1.bf16.msra.mxu0 0
    %4045 = vmatprep.subr.bf16.mxu0 0
    %4046 = vmatpush1.bf16.msra.mxu0 0
    %4047 = vmatprep.subr.bf16.mxu0 0
    %4048 = vmatpush1.bf16.msra.mxu0 0
    %4049 = vmatprep.subr.bf16.mxu0 0
    %4050 = vmatpush1.bf16.msra.mxu0 0
    %4051 = vmatprep.subr.bf16.mxu0 0
    %4052 = vmatpush1.bf16.msra.mxu0 0
    %4053 = vmatprep.subr.bf16.mxu0 0
    %4054 = vmatpush1.bf16.msra.mxu0 0
    %4055 = vmatprep.subr.bf16.mxu0 0
    %4056 = vmatpush1.bf16.msra.mxu0 %v2076
    %4057 = vmatprep.subr.bf16.mxu0 0
    %4058 = vmatpush1.bf16.msra.mxu0 %v2075
    %4059 = vmatprep.subr.bf16.mxu0 0
    %4060 = vmatpush2.bf16.msra.mxu0 0
    %4061 = vmatprep.subr.bf16.mxu0 0
    %4062 = vmatpush2.bf16.msra.mxu0 0
    %4063 = vmatprep.subr.bf16.mxu0 0
    %4064 = vmatpush2.bf16.msra.mxu0 0
    %4065 = vmatprep.subr.bf16.mxu0 0
    %4066 = vmatpush2.bf16.msra.mxu0 0
    %4067 = vmatprep.subr.bf16.mxu0 0
    %4068 = vmatpush2.bf16.msra.mxu0 0
    %4069 = vmatprep.subr.bf16.mxu0 0
    %4070 = vmatpush2.bf16.msra.mxu0 0
    %4071 = vmatprep.subr.bf16.mxu0 0
    %4072 = vmatpush2.bf16.msra.mxu0 0
    %4073 = vmatprep.subr.bf16.mxu0 0
    %4074 = vmatpush2.bf16.msra.mxu0 0
    %4075 = vmatprep.mubr.bf16.mxu0 0
    %4076 = vmatmul.mubr.bf16.gmra.mxu0 %v4041
    %v4077 = vpop.f32.mrf.mxu0
    %v4078 = vadd.f32 0.0, %v4077
    %v4079 = vpop.f32.mrf.mxu0
    %v4080 = vpop.f32.mrf.mxu0
    %v4081 = vpop.f32.mrf.mxu0
    %4082 = vdwg.mxu0
    %v4083 = vsel %vm2122, %v4032, 0.0
    %v4084 = vsel %vm2122, %v4078, 0.0
    %v4085 = vadd.f32 %v4083, %v4084
    %v4086 = vadd.f32 %v4085, %v2130
    %4087 = vrot.lane.b32.xlu0 %v2230, 96
    %v4088 = vpop.permute.xlu0 %4087
    %v4090 = vsel %vm180, %v4088, 0
    %4092 = vmatprep.subr.bf16.mxu0 0
    %4093 = vmatpush1.bf16.msra.mxu0 0
    %4094 = vmatprep.subr.bf16.mxu0 0
    %4095 = vmatpush1.bf16.msra.mxu0 0
    %4096 = vmatprep.subr.bf16.mxu0 0
    %4097 = vmatpush1.bf16.msra.mxu0 0
    %4098 = vmatprep.subr.bf16.mxu0 0
    %4099 = vmatpush1.bf16.msra.mxu0 0
    %4100 = vmatprep.subr.bf16.mxu0 0
    %4101 = vmatpush1.bf16.msra.mxu0 0
    %4102 = vmatprep.subr.bf16.mxu0 0
    %4103 = vmatpush1.bf16.msra.mxu0 0
    %4104 = vmatprep.subr.bf16.mxu0 0
    %4105 = vmatpush1.bf16.msra.mxu0 %v2148
    %4106 = vmatprep.subr.bf16.mxu0 0
    %4107 = vmatpush1.bf16.msra.mxu0 %v2147
    %4108 = vmatprep.subr.bf16.mxu0 0
    %4109 = vmatpush2.bf16.msra.mxu0 0
    %4110 = vmatprep.subr.bf16.mxu0 0
    %4111 = vmatpush2.bf16.msra.mxu0 0
    %4112 = vmatprep.subr.bf16.mxu0 0
    %4113 = vmatpush2.bf16.msra.mxu0 0
    %4114 = vmatprep.subr.bf16.mxu0 0
    %4115 = vmatpush2.bf16.msra.mxu0 0
    %4116 = vmatprep.subr.bf16.mxu0 0
    %4117 = vmatpush2.bf16.msra.mxu0 0
    %4118 = vmatprep.subr.bf16.mxu0 0
    %4119 = vmatpush2.bf16.msra.mxu0 0
    %4120 = vmatprep.subr.bf16.mxu0 0
    %4121 = vmatpush2.bf16.msra.mxu0 0
    %4122 = vmatprep.subr.bf16.mxu0 0
    %4123 = vmatpush2.bf16.msra.mxu0 0
    %4124 = vmatprep.mubr.bf16.mxu0 0
    %4125 = vmatmul.mubr.bf16.gmra.mxu0 %v4090
    %v4126 = vpop.f32.mrf.mxu0
    %v4127 = vadd.f32 %v2137, %v4126
    %v4128 = vpop.f32.mrf.mxu0
    %v4129 = vpop.f32.mrf.mxu0
    %v4130 = vpop.f32.mrf.mxu0
    %4131 = vdwg.mxu0
    %v4132 = vadd.f32 %v4086, %v4127
    %v4133 = vxor.u32 %v4132, 2147483648
    %v4134 = vmul.f32 %v4133, 1.442695
    %v4135 = vpow.pop %v4134
    %v4136 = vadd.f32 %v4135, 1.0
    %v4137 = vrcp.pop %v4136
    %v4138 = vmul.f32 1.0, %v4137
    %4140 = vrot.lane.b32.xlu0 %v4127, 64
    %v4141 = vpop.permute.xlu0 %4140
    %v4143 = vmul.f32 %v4138, %v4141
    %4145 = vrot.lane.b32.xlu0 %v4143, 64
    %v4146 = vpop.permute.xlu0 %4145
    %v4148 = vadd.f32 %v4086, %v4146
    %v4149 = vtanh.pop %v4148
    %v4150 = vsub.f32 1.0, %v4138
    %4152 = vrot.lane.b32.xlu0 %v4149, 96
    %v4153 = vpop.permute.xlu0 %4152
    %v4155 = vmul.f32 %v4150, %v4153
    %v4156 = vmul.f32 %v4138, %v2216
    %v4157 = vadd.f32 %v4155, %v4156
    %v4158 = vunpack.c.l.b16 %v3989
    %v4159 = vunpack.c.l.b16 %v3990
    %v4160 = vpack.c.b16 %v4158, %v4158
    %v4161 = vpack.c.b16 %v4159, %v4159
    %4162 = vrot.lane.b32.xlu0 %v4160, 96
    %v4163 = vpop.permute.xlu0 %4162
    %4164 = vrot.lane.b32.xlu0 %v4161, 96
    %v4165 = vpop.permute.xlu0 %4164
    %s4168 = scalar_lea.vmem [#allocation2], 4
    %4169 = vst.msk [vmem:[%s4168] sm:$0xf] %vm2227, %v4163
    %4170 = vst.msk [vmem:[%s4168 + $0x10] sm:$0xf] %vm2227, %v4165
    %v4171 = vpack.c.bf16 %v4157, %v4157
    %v4173 = vunpack.c.l.b16 %v4171
    %v4174 = vpack.c.b16 %v4173, %v4173
    %4175 = vrot.lane.b32.xlu0 %v4174, 96
    %v4176 = vpop.permute.xlu0 %4175
    %s4178 = scalar_lea.vmem [#allocation4], 4
    %4179 = vst.msk [vmem:[%s4178] sm:$0xf] %vm2227, %v4176
    %s4180 = scalar_lea.vmem %s0, 8
    %v4181 = vld [vmem:[%s4180] sm:$0xf]
    %v4182 = vld [vmem:[%s4180 + $0x10] sm:$0xf]
    %v4183 = vld [vmem:[%s4180 + $0x20] sm:$0xf]
    %v4184 = vld [vmem:[%s4180 + $0x30] sm:$0xf]
    %v4185 = vld [vmem:[%s4180 + $0x40] sm:$0xf]
    %v4186 = vld [vmem:[%s4180 + $0x50] sm:$0xf]
    %v4187 = vld [vmem:[%s4180 + $0x60] sm:$0xf]
    %v4188 = vld [vmem:[%s4180 + $0x70] sm:$0xf]
    %v4189 = vld [vmem:[%s4180 + $0x80] sm:$0xf]
    %v4190 = vld [vmem:[%s4180 + $0x90] sm:$0xf]
    %v4191 = vld [vmem:[%s4180 + $0xa0] sm:$0xf]
    %v4192 = vld [vmem:[%s4180 + $0xb0] sm:$0xf]
    %v4193 = vld [vmem:[%s4180 + $0xc0] sm:$0xf]
    %v4194 = vld [vmem:[%s4180 + $0xd0] sm:$0xf]
    %v4195 = vld [vmem:[%s4180 + $0xe0] sm:$0xf]
    %v4196 = vld [vmem:[%s4180 + $0xf0] sm:$0xf]
    %s4197 = scalar_lea.vmem %s1, 256
    %v4198 = vld [vmem:[%s4197] sm:$0xff]
    %v4199 = vld [vmem:[%s4197 + $0x8] sm:$0xff]
    %v4200 = vld [vmem:[%s4197 + $0x10] sm:$0xff]
    %v4201 = vld [vmem:[%s4197 + $0x18] sm:$0xff]
    %v4202 = vld [vmem:[%s4197 + $0x20] sm:$0xff]
    %v4203 = vld [vmem:[%s4197 + $0x28] sm:$0xff]
    %v4204 = vld [vmem:[%s4197 + $0x30] sm:$0xff]
    %v4205 = vld [vmem:[%s4197 + $0x38] sm:$0xff]
    %v4206 = vld [vmem:[%s4197 + $0x40] sm:$0xff]
    %v4207 = vld [vmem:[%s4197 + $0x48] sm:$0xff]
    %v4208 = vld [vmem:[%s4197 + $0x50] sm:$0xff]
    %v4209 = vld [vmem:[%s4197 + $0x58] sm:$0xff]
    %v4210 = vld [vmem:[%s4197 + $0x60] sm:$0xff]
    %v4211 = vld [vmem:[%s4197 + $0x68] sm:$0xff]
    %v4212 = vld [vmem:[%s4197 + $0x70] sm:$0xff]
    %v4213 = vld [vmem:[%s4197 + $0x78] sm:$0xff]
    %v4214 = vpack.c.bf16 %v3988, %v3987
    %v4231 = vunpack.c.l.b16 %v4181
    %v4232 = vunpack.c.l.b16 %v4182
    %v4233 = vunpack.c.l.b16 %v4183
    %v4234 = vunpack.c.l.b16 %v4184
    %v4235 = vunpack.c.l.b16 %v4185
    %v4236 = vunpack.c.l.b16 %v4186
    %v4237 = vunpack.c.l.b16 %v4187
    %v4238 = vunpack.c.l.b16 %v4188
    %v4239 = vunpack.c.l.b16 %v4189
    %v4240 = vunpack.c.l.b16 %v4190
    %v4241 = vunpack.c.l.b16 %v4191
    %v4242 = vunpack.c.l.b16 %v4192
    %v4243 = vunpack.c.l.b16 %v4193
    %v4244 = vunpack.c.l.b16 %v4194
    %v4245 = vunpack.c.l.b16 %v4195
    %v4246 = vunpack.c.l.b16 %v4196
    %v4247 = vpack.c.b16 %v4232, %v4231
    %v4248 = vpack.c.b16 %v4234, %v4233
    %v4249 = vpack.c.b16 %v4236, %v4235
    %v4250 = vpack.c.b16 %v4238, %v4237
    %v4251 = vpack.c.b16 %v4240, %v4239
    %v4252 = vpack.c.b16 %v4242, %v4241
    %v4253 = vpack.c.b16 %v4244, %v4243
    %v4254 = vpack.c.b16 %v4246, %v4245
    %v4256 = vsel %vm180, %v4247, 0
    %v4259 = vsel %vm180, %v4248, 0
    %v4262 = vsel %vm180, %v4249, 0
    %v4265 = vsel %vm180, %v4250, 0
    %v4268 = vsel %vm180, %v4251, 0
    %v4271 = vsel %vm180, %v4252, 0
    %v4274 = vsel %vm180, %v4253, 0
    %v4277 = vsel %vm180, %v4254, 0
    %4279 = vmatprep.subr.bf16.mxu0 0
    %4280 = vmatpush1.bf16.msra.mxu0 0
    %4281 = vmatprep.subr.bf16.mxu0 0
    %4282 = vmatpush1.bf16.msra.mxu0 0
    %4283 = vmatprep.subr.bf16.mxu0 0
    %4284 = vmatpush1.bf16.msra.mxu0 0
    %4285 = vmatprep.subr.bf16.mxu0 0
    %4286 = vmatpush1.bf16.msra.mxu0 0
    %4287 = vmatprep.subr.bf16.mxu0 0
    %4288 = vmatpush1.bf16.msra.mxu0 0
    %4289 = vmatprep.subr.bf16.mxu0 0
    %4290 = vmatpush1.bf16.msra.mxu0 0
    %4291 = vmatprep.subr.bf16.mxu0 0
    %4292 = vmatpush1.bf16.msra.mxu0 %v177
    %4293 = vmatprep.subr.bf16.mxu0 0
    %4294 = vmatpush1.bf16.msra.mxu0 %v176
    %4295 = vmatprep.subr.bf16.mxu0 0
    %4296 = vmatpush2.bf16.msra.mxu0 0
    %4297 = vmatprep.subr.bf16.mxu0 0
    %4298 = vmatpush2.bf16.msra.mxu0 0
    %4299 = vmatprep.subr.bf16.mxu0 0
    %4300 = vmatpush2.bf16.msra.mxu0 0
    %4301 = vmatprep.subr.bf16.mxu0 0
    %4302 = vmatpush2.bf16.msra.mxu0 0
    %4303 = vmatprep.subr.bf16.mxu0 0
    %4304 = vmatpush2.bf16.msra.mxu0 0
    %4305 = vmatprep.subr.bf16.mxu0 0
    %4306 = vmatpush2.bf16.msra.mxu0 0
    %4307 = vmatprep.subr.bf16.mxu0 0
    %4308 = vmatpush2.bf16.msra.mxu0 0
    %4309 = vmatprep.subr.bf16.mxu0 0
    %4310 = vmatpush2.bf16.msra.mxu0 0
    %4311 = vmatprep.mubr.bf16.mxu0 0
    %4312 = vmatmul.mubr.bf16.gmra.mxu0 %v4256
    %v4313 = vpop.f32.mrf.mxu0
    %v4314 = vadd.f32 0.0, %v4313
    %v4315 = vpop.f32.mrf.mxu0
    %v4316 = vpop.f32.mrf.mxu0
    %v4317 = vadd.f32 0.0, %v4316
    %v4318 = vpop.f32.mrf.mxu0
    %4319 = vmatprep.mubr.bf16.mxu0 0
    %4320 = vmatmul.mubr.bf16.gmra.mxu0 %v4259
    %v4321 = vpop.f32.mrf.mxu0
    %v4322 = vadd.f32 0.0, %v4321
    %v4323 = vpop.f32.mrf.mxu0
    %v4324 = vpop.f32.mrf.mxu0
    %v4325 = vadd.f32 0.0, %v4324
    %v4326 = vpop.f32.mrf.mxu0
    %4327 = vmatprep.mubr.bf16.mxu0 0
    %4328 = vmatmul.mubr.bf16.gmra.mxu0 %v4262
    %v4329 = vpop.f32.mrf.mxu0
    %v4330 = vadd.f32 0.0, %v4329
    %v4331 = vpop.f32.mrf.mxu0
    %v4332 = vpop.f32.mrf.mxu0
    %v4333 = vadd.f32 0.0, %v4332
    %v4334 = vpop.f32.mrf.mxu0
    %4335 = vmatprep.mubr.bf16.mxu0 0
    %4336 = vmatmul.mubr.bf16.gmra.mxu0 %v4265
    %v4337 = vpop.f32.mrf.mxu0
    %v4338 = vadd.f32 0.0, %v4337
    %v4339 = vpop.f32.mrf.mxu0
    %v4340 = vpop.f32.mrf.mxu0
    %v4341 = vadd.f32 0.0, %v4340
    %v4342 = vpop.f32.mrf.mxu0
    %4343 = vmatprep.mubr.bf16.mxu0 0
    %4344 = vmatmul.mubr.bf16.gmra.mxu0 %v4268
    %v4345 = vpop.f32.mrf.mxu0
    %v4346 = vadd.f32 0.0, %v4345
    %v4347 = vpop.f32.mrf.mxu0
    %v4348 = vpop.f32.mrf.mxu0
    %v4349 = vadd.f32 0.0, %v4348
    %v4350 = vpop.f32.mrf.mxu0
    %4351 = vmatprep.mubr.bf16.mxu0 0
    %4352 = vmatmul.mubr.bf16.gmra.mxu0 %v4271
    %v4353 = vpop.f32.mrf.mxu0
    %v4354 = vadd.f32 0.0, %v4353
    %v4355 = vpop.f32.mrf.mxu0
    %v4356 = vpop.f32.mrf.mxu0
    %v4357 = vadd.f32 0.0, %v4356
    %v4358 = vpop.f32.mrf.mxu0
    %4359 = vmatprep.mubr.bf16.mxu0 0
    %4360 = vmatmul.mubr.bf16.gmra.mxu0 %v4274
    %v4361 = vpop.f32.mrf.mxu0
    %v4362 = vadd.f32 0.0, %v4361
    %v4363 = vpop.f32.mrf.mxu0
    %v4364 = vpop.f32.mrf.mxu0
    %v4365 = vadd.f32 0.0, %v4364
    %v4366 = vpop.f32.mrf.mxu0
    %4367 = vmatprep.mubr.bf16.mxu0 0
    %4368 = vmatmul.mubr.bf16.gmra.mxu0 %v4277
    %v4369 = vpop.f32.mrf.mxu0
    %v4370 = vadd.f32 0.0, %v4369
    %v4371 = vpop.f32.mrf.mxu0
    %v4372 = vpop.f32.mrf.mxu0
    %v4373 = vadd.f32 0.0, %v4372
    %v4374 = vpop.f32.mrf.mxu0
    %4375 = vdwg.mxu0
    %v4376 = vadd.f32 %v4314, %v306
    %v4377 = vadd.f32 %v4317, %v306
    %v4378 = vadd.f32 %v4322, %v306
    %v4379 = vadd.f32 %v4325, %v306
    %v4380 = vadd.f32 %v4330, %v306
    %v4381 = vadd.f32 %v4333, %v306
    %v4382 = vadd.f32 %v4338, %v306
    %v4383 = vadd.f32 %v4341, %v306
    %v4384 = vadd.f32 %v4346, %v306
    %v4385 = vadd.f32 %v4349, %v306
    %v4386 = vadd.f32 %v4354, %v306
    %v4387 = vadd.f32 %v4357, %v306
    %v4388 = vadd.f32 %v4362, %v306
    %v4389 = vadd.f32 %v4365, %v306
    %v4390 = vadd.f32 %v4370, %v306
    %v4391 = vadd.f32 %v4373, %v306
    %4393 = vrot.lane.b32.xlu0 %v4214, 96
    %v4394 = vpop.permute.xlu0 %4393
    %v4396 = vsel %vm180, %v4394, 0
    %4398 = vmatprep.subr.bf16.mxu0 0
    %4399 = vmatpush1.bf16.msra.mxu0 0
    %4400 = vmatprep.subr.bf16.mxu0 0
    %4401 = vmatpush1.bf16.msra.mxu0 0
    %4402 = vmatprep.subr.bf16.mxu0 0
    %4403 = vmatpush1.bf16.msra.mxu0 0
    %4404 = vmatprep.subr.bf16.mxu0 0
    %4405 = vmatpush1.bf16.msra.mxu0 0
    %4406 = vmatprep.subr.bf16.mxu0 0
    %4407 = vmatpush1.bf16.msra.mxu0 0
    %4408 = vmatprep.subr.bf16.mxu0 0
    %4409 = vmatpush1.bf16.msra.mxu0 0
    %4410 = vmatprep.subr.bf16.mxu0 0
    %4411 = vmatpush1.bf16.msra.mxu0 %v333
    %4412 = vmatprep.subr.bf16.mxu0 0
    %4413 = vmatpush1.bf16.msra.mxu0 %v332
    %4414 = vmatprep.subr.bf16.mxu0 0
    %4415 = vmatpush2.bf16.msra.mxu0 0
    %4416 = vmatprep.subr.bf16.mxu0 0
    %4417 = vmatpush2.bf16.msra.mxu0 0
    %4418 = vmatprep.subr.bf16.mxu0 0
    %4419 = vmatpush2.bf16.msra.mxu0 0
    %4420 = vmatprep.subr.bf16.mxu0 0
    %4421 = vmatpush2.bf16.msra.mxu0 0
    %4422 = vmatprep.subr.bf16.mxu0 0
    %4423 = vmatpush2.bf16.msra.mxu0 0
    %4424 = vmatprep.subr.bf16.mxu0 0
    %4425 = vmatpush2.bf16.msra.mxu0 0
    %4426 = vmatprep.subr.bf16.mxu0 0
    %4427 = vmatpush2.bf16.msra.mxu0 0
    %4428 = vmatprep.subr.bf16.mxu0 0
    %4429 = vmatpush2.bf16.msra.mxu0 0
    %4430 = vmatprep.mubr.bf16.mxu0 0
    %4431 = vmatmul.mubr.bf16.gmra.mxu0 %v4396
    %v4432 = vpop.f32.mrf.mxu0
    %v4433 = vadd.f32 0.0, %v4432
    %v4434 = vpop.f32.mrf.mxu0
    %v4435 = vpop.f32.mrf.mxu0
    %v4436 = vadd.f32 0.0, %v4435
    %v4437 = vpop.f32.mrf.mxu0
    %4438 = vdwg.mxu0
    %v4441 = vcombine.high %v4433, %v4433
    %v4443 = vunpack.c.l.s4 1966171168
    %v4444 = vunpack.c.0.s8 %v4443
    %v4445 = vlaneseq
    %v4446 = vshrl.u32 %v4445, 7
    %v4447 = vsub.s32 %v4444, %v4446
    %v4448 = vrot.slane %v4433, %v4447
    %v4450 = vunpack.c.l.s4 1966171168
    %v4451 = vunpack.c.0.s8 %v4450
    %v4452 = vlaneseq
    %v4453 = vshrl.u32 %v4452, 7
    %v4454 = vsub.s32 %v4451, %v4453
    %v4455 = vrot.slane %v4441, %v4454
    %v4456 = vcombine.high %v4448, %v4448
    %v4457 = vcombine.high %v4455, %v4455
    %v4459 = vunpack.c.l.s4 1966171168
    %v4460 = vunpack.c.0.s8 %v4459
    %v4461 = vlaneseq
    %v4462 = vshrl.u32 %v4461, 7
    %v4463 = vsub.s32 %v4460, %v4462
    %v4464 = vrot.slane %v4448, %v4463
    %v4466 = vunpack.c.l.s4 1966171168
    %v4467 = vunpack.c.0.s8 %v4466
    %v4468 = vlaneseq
    %v4469 = vshrl.u32 %v4468, 7
    %v4470 = vsub.s32 %v4467, %v4469
    %v4471 = vrot.slane %v4455, %v4470
    %v4473 = vunpack.c.l.s4 1966171168
    %v4474 = vunpack.c.0.s8 %v4473
    %v4475 = vlaneseq
    %v4476 = vshrl.u32 %v4475, 7
    %v4477 = vsub.s32 %v4474, %v4476
    %v4478 = vrot.slane %v4456, %v4477
    %v4480 = vunpack.c.l.s4 1966171168
    %v4481 = vunpack.c.0.s8 %v4480
    %v4482 = vlaneseq
    %v4483 = vshrl.u32 %v4482, 7
    %v4484 = vsub.s32 %v4481, %v4483
    %v4485 = vrot.slane %v4457, %v4484
    %v4486 = vcombine.high %v4464, %v4464
    %v4487 = vcombine.high %v4471, %v4471
    %v4488 = vcombine.high %v4478, %v4478
    %v4489 = vcombine.high %v4485, %v4485
    %v4490 = vcombine.high %v4436, %v4436
    %v4492 = vunpack.c.l.s4 1966171168
    %v4493 = vunpack.c.0.s8 %v4492
    %v4494 = vlaneseq
    %v4495 = vshrl.u32 %v4494, 7
    %v4496 = vsub.s32 %v4493, %v4495
    %v4497 = vrot.slane %v4436, %v4496
    %v4499 = vunpack.c.l.s4 1966171168
    %v4500 = vunpack.c.0.s8 %v4499
    %v4501 = vlaneseq
    %v4502 = vshrl.u32 %v4501, 7
    %v4503 = vsub.s32 %v4500, %v4502
    %v4504 = vrot.slane %v4490, %v4503
    %v4505 = vcombine.high %v4497, %v4497
    %v4506 = vcombine.high %v4504, %v4504
    %v4508 = vunpack.c.l.s4 1966171168
    %v4509 = vunpack.c.0.s8 %v4508
    %v4510 = vlaneseq
    %v4511 = vshrl.u32 %v4510, 7
    %v4512 = vsub.s32 %v4509, %v4511
    %v4513 = vrot.slane %v4497, %v4512
    %v4515 = vunpack.c.l.s4 1966171168
    %v4516 = vunpack.c.0.s8 %v4515
    %v4517 = vlaneseq
    %v4518 = vshrl.u32 %v4517, 7
    %v4519 = vsub.s32 %v4516, %v4518
    %v4520 = vrot.slane %v4504, %v4519
    %v4522 = vunpack.c.l.s4 1966171168
    %v4523 = vunpack.c.0.s8 %v4522
    %v4524 = vlaneseq
    %v4525 = vshrl.u32 %v4524, 7
    %v4526 = vsub.s32 %v4523, %v4525
    %v4527 = vrot.slane %v4505, %v4526
    %v4529 = vunpack.c.l.s4 1966171168
    %v4530 = vunpack.c.0.s8 %v4529
    %v4531 = vlaneseq
    %v4532 = vshrl.u32 %v4531, 7
    %v4533 = vsub.s32 %v4530, %v4532
    %v4534 = vrot.slane %v4506, %v4533
    %v4535 = vcombine.high %v4513, %v4513
    %v4536 = vcombine.high %v4520, %v4520
    %v4537 = vcombine.high %v4527, %v4527
    %v4538 = vcombine.high %v4534, %v4534
    %v4539 = vlaneseq
    %v4540 = vshrl.u32 %v4539, 7
    %v4541 = vsub.s32 0, %v4540
    %v4542 = vrot.slane %v4464, %v4541
    %v4543 = vlaneseq
    %v4544 = vshrl.u32 %v4543, 7
    %v4545 = vsub.s32 0, %v4544
    %v4546 = vrot.slane %v4478, %v4545
    %v4547 = vlaneseq
    %v4548 = vshrl.u32 %v4547, 7
    %v4549 = vsub.s32 0, %v4548
    %v4550 = vrot.slane %v4486, %v4549
    %v4551 = vlaneseq
    %v4552 = vshrl.u32 %v4551, 7
    %v4553 = vsub.s32 0, %v4552
    %v4554 = vrot.slane %v4488, %v4553
    %v4555 = vlaneseq
    %v4556 = vshrl.u32 %v4555, 7
    %v4557 = vsub.s32 0, %v4556
    %v4558 = vrot.slane %v4471, %v4557
    %v4559 = vlaneseq
    %v4560 = vshrl.u32 %v4559, 7
    %v4561 = vsub.s32 0, %v4560
    %v4562 = vrot.slane %v4485, %v4561
    %v4563 = vlaneseq
    %v4564 = vshrl.u32 %v4563, 7
    %v4565 = vsub.s32 0, %v4564
    %v4566 = vrot.slane %v4487, %v4565
    %v4567 = vlaneseq
    %v4568 = vshrl.u32 %v4567, 7
    %v4569 = vsub.s32 0, %v4568
    %v4570 = vrot.slane %v4489, %v4569
    %v4571 = vlaneseq
    %v4572 = vshrl.u32 %v4571, 7
    %v4573 = vsub.s32 0, %v4572
    %v4574 = vrot.slane %v4513, %v4573
    %v4575 = vlaneseq
    %v4576 = vshrl.u32 %v4575, 7
    %v4577 = vsub.s32 0, %v4576
    %v4578 = vrot.slane %v4527, %v4577
    %v4579 = vlaneseq
    %v4580 = vshrl.u32 %v4579, 7
    %v4581 = vsub.s32 0, %v4580
    %v4582 = vrot.slane %v4535, %v4581
    %v4583 = vlaneseq
    %v4584 = vshrl.u32 %v4583, 7
    %v4585 = vsub.s32 0, %v4584
    %v4586 = vrot.slane %v4537, %v4585
    %v4587 = vlaneseq
    %v4588 = vshrl.u32 %v4587, 7
    %v4589 = vsub.s32 0, %v4588
    %v4590 = vrot.slane %v4520, %v4589
    %v4591 = vlaneseq
    %v4592 = vshrl.u32 %v4591, 7
    %v4593 = vsub.s32 0, %v4592
    %v4594 = vrot.slane %v4534, %v4593
    %v4595 = vlaneseq
    %v4596 = vshrl.u32 %v4595, 7
    %v4597 = vsub.s32 0, %v4596
    %v4598 = vrot.slane %v4536, %v4597
    %v4599 = vlaneseq
    %v4600 = vshrl.u32 %v4599, 7
    %v4601 = vsub.s32 0, %v4600
    %v4602 = vrot.slane %v4538, %v4601
    %v4619 = vadd.f32 %v4376, %v4542
    %v4620 = vadd.f32 %v4377, %v4546
    %v4621 = vadd.f32 %v4378, %v4550
    %v4622 = vadd.f32 %v4379, %v4554
    %v4623 = vadd.f32 %v4380, %v4558
    %v4624 = vadd.f32 %v4381, %v4562
    %v4625 = vadd.f32 %v4382, %v4566
    %v4626 = vadd.f32 %v4383, %v4570
    %v4627 = vadd.f32 %v4384, %v4574
    %v4628 = vadd.f32 %v4385, %v4578
    %v4629 = vadd.f32 %v4386, %v4582
    %v4630 = vadd.f32 %v4387, %v4586
    %v4631 = vadd.f32 %v4388, %v4590
    %v4632 = vadd.f32 %v4389, %v4594
    %v4633 = vadd.f32 %v4390, %v4598
    %v4634 = vadd.f32 %v4391, %v4602
    %v4635 = vtanh.pop %v4619
    %v4636 = vtanh.pop %v4620
    %v4637 = vtanh.pop %v4621
    %v4638 = vtanh.pop %v4622
    %v4639 = vtanh.pop %v4623
    %v4640 = vtanh.pop %v4624
    %v4641 = vtanh.pop %v4625
    %v4642 = vtanh.pop %v4626
    %v4643 = vtanh.pop %v4627
    %v4644 = vtanh.pop %v4628
    %v4645 = vtanh.pop %v4629
    %v4646 = vtanh.pop %v4630
    %v4647 = vtanh.pop %v4631
    %v4648 = vtanh.pop %v4632
    %v4649 = vtanh.pop %v4633
    %v4650 = vtanh.pop %v4634
    %v4651 = vmul.f32 %v4635, %v596
    %v4652 = vmul.f32 %v4636, %v596
    %v4653 = vmul.f32 %v4637, %v596
    %v4654 = vmul.f32 %v4638, %v596
    %v4655 = vmul.f32 %v4639, %v596
    %v4656 = vmul.f32 %v4640, %v596
    %v4657 = vmul.f32 %v4641, %v596
    %v4658 = vmul.f32 %v4642, %v596
    %v4659 = vmul.f32 %v4643, %v596
    %v4660 = vmul.f32 %v4644, %v596
    %v4661 = vmul.f32 %v4645, %v596
    %v4662 = vmul.f32 %v4646, %v596
    %v4663 = vmul.f32 %v4647, %v596
    %v4664 = vmul.f32 %v4648, %v596
    %v4665 = vmul.f32 %v4649, %v596
    %v4666 = vmul.f32 %v4650, %v596
    %v4667 = vsel %vm180, %v4651, 0.0
    %4668 = vadd.xlane.f32.xlu0 %v4667
    %v4669 = vpop.xlane.xlu0 %4668
    %v4670 = vsel %vm180, %v4652, 0.0
    %4671 = vadd.xlane.f32.xlu0 %v4670
    %v4672 = vpop.xlane.xlu0 %4671
    %v4673 = vsel %vm180, %v4653, 0.0
    %4674 = vadd.xlane.f32.xlu0 %v4673
    %v4675 = vpop.xlane.xlu0 %4674
    %v4676 = vsel %vm180, %v4654, 0.0
    %4677 = vadd.xlane.f32.xlu0 %v4676
    %v4678 = vpop.xlane.xlu0 %4677
    %v4679 = vsel %vm180, %v4655, 0.0
    %4680 = vadd.xlane.f32.xlu0 %v4679
    %v4681 = vpop.xlane.xlu0 %4680
    %v4682 = vsel %vm180, %v4656, 0.0
    %4683 = vadd.xlane.f32.xlu0 %v4682
    %v4684 = vpop.xlane.xlu0 %4683
    %v4685 = vsel %vm180, %v4657, 0.0
    %4686 = vadd.xlane.f32.xlu0 %v4685
    %v4687 = vpop.xlane.xlu0 %4686
    %v4688 = vsel %vm180, %v4658, 0.0
    %4689 = vadd.xlane.f32.xlu0 %v4688
    %v4690 = vpop.xlane.xlu0 %4689
    %v4691 = vsel %vm180, %v4659, 0.0
    %4692 = vadd.xlane.f32.xlu0 %v4691
    %v4693 = vpop.xlane.xlu0 %4692
    %v4694 = vsel %vm180, %v4660, 0.0
    %4695 = vadd.xlane.f32.xlu0 %v4694
    %v4696 = vpop.xlane.xlu0 %4695
    %v4697 = vsel %vm180, %v4661, 0.0
    %4698 = vadd.xlane.f32.xlu0 %v4697
    %v4699 = vpop.xlane.xlu0 %4698
    %v4700 = vsel %vm180, %v4662, 0.0
    %4701 = vadd.xlane.f32.xlu0 %v4700
    %v4702 = vpop.xlane.xlu0 %4701
    %v4703 = vsel %vm180, %v4663, 0.0
    %4704 = vadd.xlane.f32.xlu0 %v4703
    %v4705 = vpop.xlane.xlu0 %4704
    %v4706 = vsel %vm180, %v4664, 0.0
    %4707 = vadd.xlane.f32.xlu0 %v4706
    %v4708 = vpop.xlane.xlu0 %4707
    %v4709 = vsel %vm180, %v4665, 0.0
    %4710 = vadd.xlane.f32.xlu0 %v4709
    %v4711 = vpop.xlane.xlu0 %4710
    %v4712 = vsel %vm180, %v4666, 0.0
    %4713 = vadd.xlane.f32.xlu0 %v4712
    %v4714 = vpop.xlane.xlu0 %4713
    %v4715 = vrot.slane %v4669, 4
    %v4716 = vmax.f32 %v4669, %v4715
    %v4717 = vrot.slane %v4716, 2
    %v4718 = vmax.f32 %v4716, %v4717
    %v4719 = vrot.slane %v4718, 1
    %v4720 = vmax.f32 %v4718, %v4719
    %v4721 = vrot.slane %v4672, 4
    %v4722 = vmax.f32 %v4672, %v4721
    %v4723 = vrot.slane %v4722, 2
    %v4724 = vmax.f32 %v4722, %v4723
    %v4725 = vrot.slane %v4724, 1
    %v4726 = vmax.f32 %v4724, %v4725
    %v4727 = vrot.slane %v4675, 4
    %v4728 = vmax.f32 %v4675, %v4727
    %v4729 = vrot.slane %v4728, 2
    %v4730 = vmax.f32 %v4728, %v4729
    %v4731 = vrot.slane %v4730, 1
    %v4732 = vmax.f32 %v4730, %v4731
    %v4733 = vrot.slane %v4678, 4
    %v4734 = vmax.f32 %v4678, %v4733
    %v4735 = vrot.slane %v4734, 2
    %v4736 = vmax.f32 %v4734, %v4735
    %v4737 = vrot.slane %v4736, 1
    %v4738 = vmax.f32 %v4736, %v4737
    %v4739 = vrot.slane %v4681, 4
    %v4740 = vmax.f32 %v4681, %v4739
    %v4741 = vrot.slane %v4740, 2
    %v4742 = vmax.f32 %v4740, %v4741
    %v4743 = vrot.slane %v4742, 1
    %v4744 = vmax.f32 %v4742, %v4743
    %v4745 = vrot.slane %v4684, 4
    %v4746 = vmax.f32 %v4684, %v4745
    %v4747 = vrot.slane %v4746, 2
    %v4748 = vmax.f32 %v4746, %v4747
    %v4749 = vrot.slane %v4748, 1
    %v4750 = vmax.f32 %v4748, %v4749
    %v4751 = vrot.slane %v4687, 4
    %v4752 = vmax.f32 %v4687, %v4751
    %v4753 = vrot.slane %v4752, 2
    %v4754 = vmax.f32 %v4752, %v4753
    %v4755 = vrot.slane %v4754, 1
    %v4756 = vmax.f32 %v4754, %v4755
    %v4757 = vrot.slane %v4690, 4
    %v4758 = vmax.f32 %v4690, %v4757
    %v4759 = vrot.slane %v4758, 2
    %v4760 = vmax.f32 %v4758, %v4759
    %v4761 = vrot.slane %v4760, 1
    %v4762 = vmax.f32 %v4760, %v4761
    %v4763 = vrot.slane %v4693, 4
    %v4764 = vmax.f32 %v4693, %v4763
    %v4765 = vrot.slane %v4764, 2
    %v4766 = vmax.f32 %v4764, %v4765
    %v4767 = vrot.slane %v4766, 1
    %v4768 = vmax.f32 %v4766, %v4767
    %v4769 = vrot.slane %v4696, 4
    %v4770 = vmax.f32 %v4696, %v4769
    %v4771 = vrot.slane %v4770, 2
    %v4772 = vmax.f32 %v4770, %v4771
    %v4773 = vrot.slane %v4772, 1
    %v4774 = vmax.f32 %v4772, %v4773
    %v4775 = vrot.slane %v4699, 4
    %v4776 = vmax.f32 %v4699, %v4775
    %v4777 = vrot.slane %v4776, 2
    %v4778 = vmax.f32 %v4776, %v4777
    %v4779 = vrot.slane %v4778, 1
    %v4780 = vmax.f32 %v4778, %v4779
    %v4781 = vrot.slane %v4702, 4
    %v4782 = vmax.f32 %v4702, %v4781
    %v4783 = vrot.slane %v4782, 2
    %v4784 = vmax.f32 %v4782, %v4783
    %v4785 = vrot.slane %v4784, 1
    %v4786 = vmax.f32 %v4784, %v4785
    %v4787 = vrot.slane %v4705, 4
    %v4788 = vmax.f32 %v4705, %v4787
    %v4789 = vrot.slane %v4788, 2
    %v4790 = vmax.f32 %v4788, %v4789
    %v4791 = vrot.slane %v4790, 1
    %v4792 = vmax.f32 %v4790, %v4791
    %v4793 = vrot.slane %v4708, 4
    %v4794 = vmax.f32 %v4708, %v4793
    %v4795 = vrot.slane %v4794, 2
    %v4796 = vmax.f32 %v4794, %v4795
    %v4797 = vrot.slane %v4796, 1
    %v4798 = vmax.f32 %v4796, %v4797
    %v4799 = vrot.slane %v4711, 4
    %v4800 = vmax.f32 %v4711, %v4799
    %v4801 = vrot.slane %v4800, 2
    %v4802 = vmax.f32 %v4800, %v4801
    %v4803 = vrot.slane %v4802, 1
    %v4804 = vmax.f32 %v4802, %v4803
    %v4805 = vrot.slane %v4714, 4
    %v4806 = vmax.f32 %v4714, %v4805
    %v4807 = vrot.slane %v4806, 2
    %v4808 = vmax.f32 %v4806, %v4807
    %v4809 = vrot.slane %v4808, 1
    %v4810 = vmax.f32 %v4808, %v4809
    %v4811 = vsub.f32 %v4669, %v4720
    %v4812 = vsub.f32 %v4672, %v4726
    %v4813 = vsub.f32 %v4675, %v4732
    %v4814 = vsub.f32 %v4678, %v4738
    %v4815 = vsub.f32 %v4681, %v4744
    %v4816 = vsub.f32 %v4684, %v4750
    %v4817 = vsub.f32 %v4687, %v4756
    %v4818 = vsub.f32 %v4690, %v4762
    %v4819 = vsub.f32 %v4693, %v4768
    %v4820 = vsub.f32 %v4696, %v4774
    %v4821 = vsub.f32 %v4699, %v4780
    %v4822 = vsub.f32 %v4702, %v4786
    %v4823 = vsub.f32 %v4705, %v4792
    %v4824 = vsub.f32 %v4708, %v4798
    %v4825 = vsub.f32 %v4711, %v4804
    %v4826 = vsub.f32 %v4714, %v4810
    %v4827 = vmul.f32 %v4811, 1.442695
    %v4828 = vpow.pop %v4827
    %v4829 = vmul.f32 %v4812, 1.442695
    %v4830 = vpow.pop %v4829
    %v4831 = vmul.f32 %v4813, 1.442695
    %v4832 = vpow.pop %v4831
    %v4833 = vmul.f32 %v4814, 1.442695
    %v4834 = vpow.pop %v4833
    %v4835 = vmul.f32 %v4815, 1.442695
    %v4836 = vpow.pop %v4835
    %v4837 = vmul.f32 %v4816, 1.442695
    %v4838 = vpow.pop %v4837
    %v4839 = vmul.f32 %v4817, 1.442695
    %v4840 = vpow.pop %v4839
    %v4841 = vmul.f32 %v4818, 1.442695
    %v4842 = vpow.pop %v4841
    %v4843 = vmul.f32 %v4819, 1.442695
    %v4844 = vpow.pop %v4843
    %v4845 = vmul.f32 %v4820, 1.442695
    %v4846 = vpow.pop %v4845
    %v4847 = vmul.f32 %v4821, 1.442695
    %v4848 = vpow.pop %v4847
    %v4849 = vmul.f32 %v4822, 1.442695
    %v4850 = vpow.pop %v4849
    %v4851 = vmul.f32 %v4823, 1.442695
    %v4852 = vpow.pop %v4851
    %v4853 = vmul.f32 %v4824, 1.442695
    %v4854 = vpow.pop %v4853
    %v4855 = vmul.f32 %v4825, 1.442695
    %v4856 = vpow.pop %v4855
    %v4857 = vmul.f32 %v4826, 1.442695
    %v4858 = vpow.pop %v4857
    %v4859 = vmul.f32 %v4828, %v4198
    %v4860 = vmul.f32 %v4830, %v4199
    %v4861 = vmul.f32 %v4832, %v4200
    %v4862 = vmul.f32 %v4834, %v4201
    %v4863 = vmul.f32 %v4836, %v4202
    %v4864 = vmul.f32 %v4838, %v4203
    %v4865 = vmul.f32 %v4840, %v4204
    %v4866 = vmul.f32 %v4842, %v4205
    %v4867 = vmul.f32 %v4844, %v4206
    %v4868 = vmul.f32 %v4846, %v4207
    %v4869 = vmul.f32 %v4848, %v4208
    %v4870 = vmul.f32 %v4850, %v4209
    %v4871 = vmul.f32 %v4852, %v4210
    %v4872 = vmul.f32 %v4854, %v4211
    %v4873 = vmul.f32 %v4856, %v4212
    %v4874 = vmul.f32 %v4858, %v4213
    %v4875 = vsel %vm822, %v4859, 0.0
    %v4876 = vrot.slane %v4875, 4
    %v4877 = vadd.f32 %v4875, %v4876
    %v4878 = vrot.slane %v4877, 2
    %v4879 = vadd.f32 %v4877, %v4878
    %v4880 = vrot.slane %v4879, 1
    %v4881 = vadd.f32 %v4879, %v4880
    %v4882 = vsel %vm822, %v4860, 0.0
    %v4883 = vrot.slane %v4882, 4
    %v4884 = vadd.f32 %v4882, %v4883
    %v4885 = vrot.slane %v4884, 2
    %v4886 = vadd.f32 %v4884, %v4885
    %v4887 = vrot.slane %v4886, 1
    %v4888 = vadd.f32 %v4886, %v4887
    %v4889 = vsel %vm822, %v4861, 0.0
    %v4890 = vrot.slane %v4889, 4
    %v4891 = vadd.f32 %v4889, %v4890
    %v4892 = vrot.slane %v4891, 2
    %v4893 = vadd.f32 %v4891, %v4892
    %v4894 = vrot.slane %v4893, 1
    %v4895 = vadd.f32 %v4893, %v4894
    %v4896 = vsel %vm822, %v4862, 0.0
    %v4897 = vrot.slane %v4896, 4
    %v4898 = vadd.f32 %v4896, %v4897
    %v4899 = vrot.slane %v4898, 2
    %v4900 = vadd.f32 %v4898, %v4899
    %v4901 = vrot.slane %v4900, 1
    %v4902 = vadd.f32 %v4900, %v4901
    %v4903 = vsel %vm822, %v4863, 0.0
    %v4904 = vrot.slane %v4903, 4
    %v4905 = vadd.f32 %v4903, %v4904
    %v4906 = vrot.slane %v4905, 2
    %v4907 = vadd.f32 %v4905, %v4906
    %v4908 = vrot.slane %v4907, 1
    %v4909 = vadd.f32 %v4907, %v4908
    %v4910 = vsel %vm822, %v4864, 0.0
    %v4911 = vrot.slane %v4910, 4
    %v4912 = vadd.f32 %v4910, %v4911
    %v4913 = vrot.slane %v4912, 2
    %v4914 = vadd.f32 %v4912, %v4913
    %v4915 = vrot.slane %v4914, 1
    %v4916 = vadd.f32 %v4914, %v4915
    %v4917 = vsel %vm822, %v4865, 0.0
    %v4918 = vrot.slane %v4917, 4
    %v4919 = vadd.f32 %v4917, %v4918
    %v4920 = vrot.slane %v4919, 2
    %v4921 = vadd.f32 %v4919, %v4920
    %v4922 = vrot.slane %v4921, 1
    %v4923 = vadd.f32 %v4921, %v4922
    %v4924 = vsel %vm822, %v4866, 0.0
    %v4925 = vrot.slane %v4924, 4
    %v4926 = vadd.f32 %v4924, %v4925
    %v4927 = vrot.slane %v4926, 2
    %v4928 = vadd.f32 %v4926, %v4927
    %v4929 = vrot.slane %v4928, 1
    %v4930 = vadd.f32 %v4928, %v4929
    %v4931 = vsel %vm822, %v4867, 0.0
    %v4932 = vrot.slane %v4931, 4
    %v4933 = vadd.f32 %v4931, %v4932
    %v4934 = vrot.slane %v4933, 2
    %v4935 = vadd.f32 %v4933, %v4934
    %v4936 = vrot.slane %v4935, 1
    %v4937 = vadd.f32 %v4935, %v4936
    %v4938 = vsel %vm822, %v4868, 0.0
    %v4939 = vrot.slane %v4938, 4
    %v4940 = vadd.f32 %v4938, %v4939
    %v4941 = vrot.slane %v4940, 2
    %v4942 = vadd.f32 %v4940, %v4941
    %v4943 = vrot.slane %v4942, 1
    %v4944 = vadd.f32 %v4942, %v4943
    %v4945 = vsel %vm822, %v4869, 0.0
    %v4946 = vrot.slane %v4945, 4
    %v4947 = vadd.f32 %v4945, %v4946
    %v4948 = vrot.slane %v4947, 2
    %v4949 = vadd.f32 %v4947, %v4948
    %v4950 = vrot.slane %v4949, 1
    %v4951 = vadd.f32 %v4949, %v4950
    %v4952 = vsel %vm822, %v4870, 0.0
    %v4953 = vrot.slane %v4952, 4
    %v4954 = vadd.f32 %v4952, %v4953
    %v4955 = vrot.slane %v4954, 2
    %v4956 = vadd.f32 %v4954, %v4955
    %v4957 = vrot.slane %v4956, 1
    %v4958 = vadd.f32 %v4956, %v4957
    %v4959 = vsel %vm822, %v4871, 0.0
    %v4960 = vrot.slane %v4959, 4
    %v4961 = vadd.f32 %v4959, %v4960
    %v4962 = vrot.slane %v4961, 2
    %v4963 = vadd.f32 %v4961, %v4962
    %v4964 = vrot.slane %v4963, 1
    %v4965 = vadd.f32 %v4963, %v4964
    %v4966 = vsel %vm822, %v4872, 0.0
    %v4967 = vrot.slane %v4966, 4
    %v4968 = vadd.f32 %v4966, %v4967
    %v4969 = vrot.slane %v4968, 2
    %v4970 = vadd.f32 %v4968, %v4969
    %v4971 = vrot.slane %v4970, 1
    %v4972 = vadd.f32 %v4970, %v4971
    %v4973 = vsel %vm822, %v4873, 0.0
    %v4974 = vrot.slane %v4973, 4
    %v4975 = vadd.f32 %v4973, %v4974
    %v4976 = vrot.slane %v4975, 2
    %v4977 = vadd.f32 %v4975, %v4976
    %v4978 = vrot.slane %v4977, 1
    %v4979 = vadd.f32 %v4977, %v4978
    %v4980 = vsel %vm822, %v4874, 0.0
    %v4981 = vrot.slane %v4980, 4
    %v4982 = vadd.f32 %v4980, %v4981
    %v4983 = vrot.slane %v4982, 2
    %v4984 = vadd.f32 %v4982, %v4983
    %v4985 = vrot.slane %v4984, 1
    %v4986 = vadd.f32 %v4984, %v4985
    %vm4987 = vcmp.eq.f32.partialorder %v4881, 0.0
    %vm4988 = vcmp.eq.f32.partialorder %v4888, 0.0
    %vm4989 = vcmp.eq.f32.partialorder %v4895, 0.0
    %vm4990 = vcmp.eq.f32.partialorder %v4902, 0.0
    %vm4991 = vcmp.eq.f32.partialorder %v4909, 0.0
    %vm4992 = vcmp.eq.f32.partialorder %v4916, 0.0
    %vm4993 = vcmp.eq.f32.partialorder %v4923, 0.0
    %vm4994 = vcmp.eq.f32.partialorder %v4930, 0.0
    %vm4995 = vcmp.eq.f32.partialorder %v4937, 0.0
    %vm4996 = vcmp.eq.f32.partialorder %v4944, 0.0
    %vm4997 = vcmp.eq.f32.partialorder %v4951, 0.0
    %vm4998 = vcmp.eq.f32.partialorder %v4958, 0.0
    %vm4999 = vcmp.eq.f32.partialorder %v4965, 0.0
    %vm5000 = vcmp.eq.f32.partialorder %v4972, 0.0
    %vm5001 = vcmp.eq.f32.partialorder %v4979, 0.0
    %vm5002 = vcmp.eq.f32.partialorder %v4986, 0.0
    %v5003 = vsel %vm4987, 1, 0
    %v5004 = vsel %vm4988, 1, 0
    %v5005 = vsel %vm4989, 1, 0
    %v5006 = vsel %vm4990, 1, 0
    %v5007 = vsel %vm4991, 1, 0
    %v5008 = vsel %vm4992, 1, 0
    %v5009 = vsel %vm4993, 1, 0
    %v5010 = vsel %vm4994, 1, 0
    %v5011 = vsel %vm4995, 1, 0
    %v5012 = vsel %vm4996, 1, 0
    %v5013 = vsel %vm4997, 1, 0
    %v5014 = vsel %vm4998, 1, 0
    %v5015 = vsel %vm4999, 1, 0
    %v5016 = vsel %vm5000, 1, 0
    %v5017 = vsel %vm5001, 1, 0
    %v5018 = vsel %vm5002, 1, 0
    %v5019 = vcvt.s32.f32 %v5003
    %v5020 = vcvt.s32.f32 %v5004
    %v5021 = vcvt.s32.f32 %v5005
    %v5022 = vcvt.s32.f32 %v5006
    %v5023 = vcvt.s32.f32 %v5007
    %v5024 = vcvt.s32.f32 %v5008
    %v5025 = vcvt.s32.f32 %v5009
    %v5026 = vcvt.s32.f32 %v5010
    %v5027 = vcvt.s32.f32 %v5011
    %v5028 = vcvt.s32.f32 %v5012
    %v5029 = vcvt.s32.f32 %v5013
    %v5030 = vcvt.s32.f32 %v5014
    %v5031 = vcvt.s32.f32 %v5015
    %v5032 = vcvt.s32.f32 %v5016
    %v5033 = vcvt.s32.f32 %v5017
    %v5034 = vcvt.s32.f32 %v5018
    %v5035 = vadd.f32 %v4881, %v5019
    %v5036 = vadd.f32 %v4888, %v5020
    %v5037 = vadd.f32 %v4895, %v5021
    %v5038 = vadd.f32 %v4902, %v5022
    %v5039 = vadd.f32 %v4909, %v5023
    %v5040 = vadd.f32 %v4916, %v5024
    %v5041 = vadd.f32 %v4923, %v5025
    %v5042 = vadd.f32 %v4930, %v5026
    %v5043 = vadd.f32 %v4937, %v5027
    %v5044 = vadd.f32 %v4944, %v5028
    %v5045 = vadd.f32 %v4951, %v5029
    %v5046 = vadd.f32 %v4958, %v5030
    %v5047 = vadd.f32 %v4965, %v5031
    %v5048 = vadd.f32 %v4972, %v5032
    %v5049 = vadd.f32 %v4979, %v5033
    %v5050 = vadd.f32 %v4986, %v5034
    %v5051 = vrcp.pop %v5035
    %v5052 = vrcp.pop %v5036
    %v5053 = vrcp.pop %v5037
    %v5054 = vrcp.pop %v5038
    %v5055 = vrcp.pop %v5039
    %v5056 = vrcp.pop %v5040
    %v5057 = vrcp.pop %v5041
    %v5058 = vrcp.pop %v5042
    %v5059 = vrcp.pop %v5043
    %v5060 = vrcp.pop %v5044
    %v5061 = vrcp.pop %v5045
    %v5062 = vrcp.pop %v5046
    %v5063 = vrcp.pop %v5047
    %v5064 = vrcp.pop %v5048
    %v5065 = vrcp.pop %v5049
    %v5066 = vrcp.pop %v5050
    %v5067 = vmul.f32 %v4859, %v5051
    %v5068 = vmul.f32 %v4860, %v5052
    %v5069 = vmul.f32 %v4861, %v5053
    %v5070 = vmul.f32 %v4862, %v5054
    %v5071 = vmul.f32 %v4863, %v5055
    %v5072 = vmul.f32 %v4864, %v5056
    %v5073 = vmul.f32 %v4865, %v5057
    %v5074 = vmul.f32 %v4866, %v5058
    %v5075 = vmul.f32 %v4867, %v5059
    %v5076 = vmul.f32 %v4868, %v5060
    %v5077 = vmul.f32 %v4869, %v5061
    %v5078 = vmul.f32 %v4870, %v5062
    %v5079 = vmul.f32 %v4871, %v5063
    %v5080 = vmul.f32 %v4872, %v5064
    %v5081 = vmul.f32 %v4873, %v5065
    %v5082 = vmul.f32 %v4874, %v5066
    %v5083 = vunpack.c.l.bf16 %v4181
    %v5084 = vunpack.c.l.bf16 %v4182
    %v5085 = vunpack.c.l.bf16 %v4183
    %v5086 = vunpack.c.l.bf16 %v4184
    %v5087 = vunpack.c.l.bf16 %v4185
    %v5088 = vunpack.c.l.bf16 %v4186
    %v5089 = vunpack.c.l.bf16 %v4187
    %v5090 = vunpack.c.l.bf16 %v4188
    %v5091 = vunpack.c.l.bf16 %v4189
    %v5092 = vunpack.c.l.bf16 %v4190
    %v5093 = vunpack.c.l.bf16 %v4191
    %v5094 = vunpack.c.l.bf16 %v4192
    %v5095 = vunpack.c.l.bf16 %v4193
    %v5096 = vunpack.c.l.bf16 %v4194
    %v5097 = vunpack.c.l.bf16 %v4195
    %v5098 = vunpack.c.l.bf16 %v4196
    %5100 = vset.pattern.permute.xlu0 0
    %5101 = vperm.xlu0 %5100, %v5067
    %v5102 = vpop.permute.xlu0 %5101
    %5105 = vset.pattern.permute.xlu0 0
    %5106 = vperm.xlu0 %5105, %v5068
    %v5107 = vpop.permute.xlu0 %5106
    %5110 = vset.pattern.permute.xlu0 0
    %5111 = vperm.xlu0 %5110, %v5069
    %v5112 = vpop.permute.xlu0 %5111
    %5115 = vset.pattern.permute.xlu0 0
    %5116 = vperm.xlu0 %5115, %v5070
    %v5117 = vpop.permute.xlu0 %5116
    %5120 = vset.pattern.permute.xlu0 0
    %5121 = vperm.xlu0 %5120, %v5071
    %v5122 = vpop.permute.xlu0 %5121
    %5125 = vset.pattern.permute.xlu0 0
    %5126 = vperm.xlu0 %5125, %v5072
    %v5127 = vpop.permute.xlu0 %5126
    %5130 = vset.pattern.permute.xlu0 0
    %5131 = vperm.xlu0 %5130, %v5073
    %v5132 = vpop.permute.xlu0 %5131
    %5135 = vset.pattern.permute.xlu0 0
    %5136 = vperm.xlu0 %5135, %v5074
    %v5137 = vpop.permute.xlu0 %5136
    %5140 = vset.pattern.permute.xlu0 0
    %5141 = vperm.xlu0 %5140, %v5075
    %v5142 = vpop.permute.xlu0 %5141
    %5145 = vset.pattern.permute.xlu0 0
    %5146 = vperm.xlu0 %5145, %v5076
    %v5147 = vpop.permute.xlu0 %5146
    %5150 = vset.pattern.permute.xlu0 0
    %5151 = vperm.xlu0 %5150, %v5077
    %v5152 = vpop.permute.xlu0 %5151
    %5155 = vset.pattern.permute.xlu0 0
    %5156 = vperm.xlu0 %5155, %v5078
    %v5157 = vpop.permute.xlu0 %5156
    %5160 = vset.pattern.permute.xlu0 0
    %5161 = vperm.xlu0 %5160, %v5079
    %v5162 = vpop.permute.xlu0 %5161
    %5165 = vset.pattern.permute.xlu0 0
    %5166 = vperm.xlu0 %5165, %v5080
    %v5167 = vpop.permute.xlu0 %5166
    %5170 = vset.pattern.permute.xlu0 0
    %5171 = vperm.xlu0 %5170, %v5081
    %v5172 = vpop.permute.xlu0 %5171
    %5175 = vset.pattern.permute.xlu0 0
    %5176 = vperm.xlu0 %5175, %v5082
    %v5177 = vpop.permute.xlu0 %5176
    %v5179 = vmul.f32 %v5083, %v5102
    %v5180 = vmul.f32 %v5084, %v5107
    %v5181 = vmul.f32 %v5085, %v5112
    %v5182 = vmul.f32 %v5086, %v5117
    %v5183 = vmul.f32 %v5087, %v5122
    %v5184 = vmul.f32 %v5088, %v5127
    %v5185 = vmul.f32 %v5089, %v5132
    %v5186 = vmul.f32 %v5090, %v5137
    %v5187 = vmul.f32 %v5091, %v5142
    %v5188 = vmul.f32 %v5092, %v5147
    %v5189 = vmul.f32 %v5093, %v5152
    %v5190 = vmul.f32 %v5094, %v5157
    %v5191 = vmul.f32 %v5095, %v5162
    %v5192 = vmul.f32 %v5096, %v5167
    %v5193 = vmul.f32 %v5097, %v5172
    %v5194 = vmul.f32 %v5098, %v5177
    %v5195 = vsel %vm180, %v5179, 0.0
    %v5196 = vrot.slane %v5195, 4
    %v5197 = vadd.f32 %v5195, %v5196
    %v5198 = vrot.slane %v5197, 2
    %v5199 = vadd.f32 %v5197, %v5198
    %v5200 = vrot.slane %v5199, 1
    %v5201 = vadd.f32 %v5199, %v5200
    %v5202 = vsel %vm180, %v5180, 0.0
    %v5203 = vrot.slane %v5202, 4
    %v5204 = vadd.f32 %v5202, %v5203
    %v5205 = vrot.slane %v5204, 2
    %v5206 = vadd.f32 %v5204, %v5205
    %v5207 = vrot.slane %v5206, 1
    %v5208 = vadd.f32 %v5206, %v5207
    %v5209 = vsel %vm180, %v5181, 0.0
    %v5210 = vrot.slane %v5209, 4
    %v5211 = vadd.f32 %v5209, %v5210
    %v5212 = vrot.slane %v5211, 2
    %v5213 = vadd.f32 %v5211, %v5212
    %v5214 = vrot.slane %v5213, 1
    %v5215 = vadd.f32 %v5213, %v5214
    %v5216 = vsel %vm180, %v5182, 0.0
    %v5217 = vrot.slane %v5216, 4
    %v5218 = vadd.f32 %v5216, %v5217
    %v5219 = vrot.slane %v5218, 2
    %v5220 = vadd.f32 %v5218, %v5219
    %v5221 = vrot.slane %v5220, 1
    %v5222 = vadd.f32 %v5220, %v5221
    %v5223 = vsel %vm180, %v5183, 0.0
    %v5224 = vrot.slane %v5223, 4
    %v5225 = vadd.f32 %v5223, %v5224
    %v5226 = vrot.slane %v5225, 2
    %v5227 = vadd.f32 %v5225, %v5226
    %v5228 = vrot.slane %v5227, 1
    %v5229 = vadd.f32 %v5227, %v5228
    %v5230 = vsel %vm180, %v5184, 0.0
    %v5231 = vrot.slane %v5230, 4
    %v5232 = vadd.f32 %v5230, %v5231
    %v5233 = vrot.slane %v5232, 2
    %v5234 = vadd.f32 %v5232, %v5233
    %v5235 = vrot.slane %v5234, 1
    %v5236 = vadd.f32 %v5234, %v5235
    %v5237 = vsel %vm180, %v5185, 0.0
    %v5238 = vrot.slane %v5237, 4
    %v5239 = vadd.f32 %v5237, %v5238
    %v5240 = vrot.slane %v5239, 2
    %v5241 = vadd.f32 %v5239, %v5240
    %v5242 = vrot.slane %v5241, 1
    %v5243 = vadd.f32 %v5241, %v5242
    %v5244 = vsel %vm180, %v5186, 0.0
    %v5245 = vrot.slane %v5244, 4
    %v5246 = vadd.f32 %v5244, %v5245
    %v5247 = vrot.slane %v5246, 2
    %v5248 = vadd.f32 %v5246, %v5247
    %v5249 = vrot.slane %v5248, 1
    %v5250 = vadd.f32 %v5248, %v5249
    %v5251 = vsel %vm180, %v5187, 0.0
    %v5252 = vrot.slane %v5251, 4
    %v5253 = vadd.f32 %v5251, %v5252
    %v5254 = vrot.slane %v5253, 2
    %v5255 = vadd.f32 %v5253, %v5254
    %v5256 = vrot.slane %v5255, 1
    %v5257 = vadd.f32 %v5255, %v5256
    %v5258 = vsel %vm180, %v5188, 0.0
    %v5259 = vrot.slane %v5258, 4
    %v5260 = vadd.f32 %v5258, %v5259
    %v5261 = vrot.slane %v5260, 2
    %v5262 = vadd.f32 %v5260, %v5261
    %v5263 = vrot.slane %v5262, 1
    %v5264 = vadd.f32 %v5262, %v5263
    %v5265 = vsel %vm180, %v5189, 0.0
    %v5266 = vrot.slane %v5265, 4
    %v5267 = vadd.f32 %v5265, %v5266
    %v5268 = vrot.slane %v5267, 2
    %v5269 = vadd.f32 %v5267, %v5268
    %v5270 = vrot.slane %v5269, 1
    %v5271 = vadd.f32 %v5269, %v5270
    %v5272 = vsel %vm180, %v5190, 0.0
    %v5273 = vrot.slane %v5272, 4
    %v5274 = vadd.f32 %v5272, %v5273
    %v5275 = vrot.slane %v5274, 2
    %v5276 = vadd.f32 %v5274, %v5275
    %v5277 = vrot.slane %v5276, 1
    %v5278 = vadd.f32 %v5276, %v5277
    %v5279 = vsel %vm180, %v5191, 0.0
    %v5280 = vrot.slane %v5279, 4
    %v5281 = vadd.f32 %v5279, %v5280
    %v5282 = vrot.slane %v5281, 2
    %v5283 = vadd.f32 %v5281, %v5282
    %v5284 = vrot.slane %v5283, 1
    %v5285 = vadd.f32 %v5283, %v5284
    %v5286 = vsel %vm180, %v5192, 0.0
    %v5287 = vrot.slane %v5286, 4
    %v5288 = vadd.f32 %v5286, %v5287
    %v5289 = vrot.slane %v5288, 2
    %v5290 = vadd.f32 %v5288, %v5289
    %v5291 = vrot.slane %v5290, 1
    %v5292 = vadd.f32 %v5290, %v5291
    %v5293 = vsel %vm180, %v5193, 0.0
    %v5294 = vrot.slane %v5293, 4
    %v5295 = vadd.f32 %v5293, %v5294
    %v5296 = vrot.slane %v5295, 2
    %v5297 = vadd.f32 %v5295, %v5296
    %v5298 = vrot.slane %v5297, 1
    %v5299 = vadd.f32 %v5297, %v5298
    %v5300 = vsel %vm180, %v5194, 0.0
    %v5301 = vrot.slane %v5300, 4
    %v5302 = vadd.f32 %v5300, %v5301
    %v5303 = vrot.slane %v5302, 2
    %v5304 = vadd.f32 %v5302, %v5303
    %v5305 = vrot.slane %v5304, 1
    %v5306 = vadd.f32 %v5304, %v5305
    %v5307 = vsel %vm822, %v4198, 0.0
    %v5308 = vrot.slane %v5307, 4
    %v5309 = vadd.f32 %v5307, %v5308
    %v5310 = vrot.slane %v5309, 2
    %v5311 = vadd.f32 %v5309, %v5310
    %v5312 = vrot.slane %v5311, 1
    %v5313 = vadd.f32 %v5311, %v5312
    %v5314 = vsel %vm822, %v4199, 0.0
    %v5315 = vrot.slane %v5314, 4
    %v5316 = vadd.f32 %v5314, %v5315
    %v5317 = vrot.slane %v5316, 2
    %v5318 = vadd.f32 %v5316, %v5317
    %v5319 = vrot.slane %v5318, 1
    %v5320 = vadd.f32 %v5318, %v5319
    %v5321 = vsel %vm822, %v4200, 0.0
    %v5322 = vrot.slane %v5321, 4
    %v5323 = vadd.f32 %v5321, %v5322
    %v5324 = vrot.slane %v5323, 2
    %v5325 = vadd.f32 %v5323, %v5324
    %v5326 = vrot.slane %v5325, 1
    %v5327 = vadd.f32 %v5325, %v5326
    %v5328 = vsel %vm822, %v4201, 0.0
    %v5329 = vrot.slane %v5328, 4
    %v5330 = vadd.f32 %v5328, %v5329
    %v5331 = vrot.slane %v5330, 2
    %v5332 = vadd.f32 %v5330, %v5331
    %v5333 = vrot.slane %v5332, 1
    %v5334 = vadd.f32 %v5332, %v5333
    %v5335 = vsel %vm822, %v4202, 0.0
    %v5336 = vrot.slane %v5335, 4
    %v5337 = vadd.f32 %v5335, %v5336
    %v5338 = vrot.slane %v5337, 2
    %v5339 = vadd.f32 %v5337, %v5338
    %v5340 = vrot.slane %v5339, 1
    %v5341 = vadd.f32 %v5339, %v5340
    %v5342 = vsel %vm822, %v4203, 0.0
    %v5343 = vrot.slane %v5342, 4
    %v5344 = vadd.f32 %v5342, %v5343
    %v5345 = vrot.slane %v5344, 2
    %v5346 = vadd.f32 %v5344, %v5345
    %v5347 = vrot.slane %v5346, 1
    %v5348 = vadd.f32 %v5346, %v5347
    %v5349 = vsel %vm822, %v4204, 0.0
    %v5350 = vrot.slane %v5349, 4
    %v5351 = vadd.f32 %v5349, %v5350
    %v5352 = vrot.slane %v5351, 2
    %v5353 = vadd.f32 %v5351, %v5352
    %v5354 = vrot.slane %v5353, 1
    %v5355 = vadd.f32 %v5353, %v5354
    %v5356 = vsel %vm822, %v4205, 0.0
    %v5357 = vrot.slane %v5356, 4
    %v5358 = vadd.f32 %v5356, %v5357
    %v5359 = vrot.slane %v5358, 2
    %v5360 = vadd.f32 %v5358, %v5359
    %v5361 = vrot.slane %v5360, 1
    %v5362 = vadd.f32 %v5360, %v5361
    %v5363 = vsel %vm822, %v4206, 0.0
    %v5364 = vrot.slane %v5363, 4
    %v5365 = vadd.f32 %v5363, %v5364
    %v5366 = vrot.slane %v5365, 2
    %v5367 = vadd.f32 %v5365, %v5366
    %v5368 = vrot.slane %v5367, 1
    %v5369 = vadd.f32 %v5367, %v5368
    %v5370 = vsel %vm822, %v4207, 0.0
    %v5371 = vrot.slane %v5370, 4
    %v5372 = vadd.f32 %v5370, %v5371
    %v5373 = vrot.slane %v5372, 2
    %v5374 = vadd.f32 %v5372, %v5373
    %v5375 = vrot.slane %v5374, 1
    %v5376 = vadd.f32 %v5374, %v5375
    %v5377 = vsel %vm822, %v4208, 0.0
    %v5378 = vrot.slane %v5377, 4
    %v5379 = vadd.f32 %v5377, %v5378
    %v5380 = vrot.slane %v5379, 2
    %v5381 = vadd.f32 %v5379, %v5380
    %v5382 = vrot.slane %v5381, 1
    %v5383 = vadd.f32 %v5381, %v5382
    %v5384 = vsel %vm822, %v4209, 0.0
    %v5385 = vrot.slane %v5384, 4
    %v5386 = vadd.f32 %v5384, %v5385
    %v5387 = vrot.slane %v5386, 2
    %v5388 = vadd.f32 %v5386, %v5387
    %v5389 = vrot.slane %v5388, 1
    %v5390 = vadd.f32 %v5388, %v5389
    %v5391 = vsel %vm822, %v4210, 0.0
    %v5392 = vrot.slane %v5391, 4
    %v5393 = vadd.f32 %v5391, %v5392
    %v5394 = vrot.slane %v5393, 2
    %v5395 = vadd.f32 %v5393, %v5394
    %v5396 = vrot.slane %v5395, 1
    %v5397 = vadd.f32 %v5395, %v5396
    %v5398 = vsel %vm822, %v4211, 0.0
    %v5399 = vrot.slane %v5398, 4
    %v5400 = vadd.f32 %v5398, %v5399
    %v5401 = vrot.slane %v5400, 2
    %v5402 = vadd.f32 %v5400, %v5401
    %v5403 = vrot.slane %v5402, 1
    %v5404 = vadd.f32 %v5402, %v5403
    %v5405 = vsel %vm822, %v4212, 0.0
    %v5406 = vrot.slane %v5405, 4
    %v5407 = vadd.f32 %v5405, %v5406
    %v5408 = vrot.slane %v5407, 2
    %v5409 = vadd.f32 %v5407, %v5408
    %v5410 = vrot.slane %v5409, 1
    %v5411 = vadd.f32 %v5409, %v5410
    %v5412 = vsel %vm822, %v4213, 0.0
    %v5413 = vrot.slane %v5412, 4
    %v5414 = vadd.f32 %v5412, %v5413
    %v5415 = vrot.slane %v5414, 2
    %v5416 = vadd.f32 %v5414, %v5415
    %v5417 = vrot.slane %v5416, 1
    %v5418 = vadd.f32 %v5416, %v5417
    %vm5419 = vcmp.gt.f32.partialorder %v5313, 0.0
    %vm5420 = vcmp.gt.f32.partialorder %v5320, 0.0
    %vm5421 = vcmp.gt.f32.partialorder %v5327, 0.0
    %vm5422 = vcmp.gt.f32.partialorder %v5334, 0.0
    %vm5423 = vcmp.gt.f32.partialorder %v5341, 0.0
    %vm5424 = vcmp.gt.f32.partialorder %v5348, 0.0
    %vm5425 = vcmp.gt.f32.partialorder %v5355, 0.0
    %vm5426 = vcmp.gt.f32.partialorder %v5362, 0.0
    %vm5427 = vcmp.gt.f32.partialorder %v5369, 0.0
    %vm5428 = vcmp.gt.f32.partialorder %v5376, 0.0
    %vm5429 = vcmp.gt.f32.partialorder %v5383, 0.0
    %vm5430 = vcmp.gt.f32.partialorder %v5390, 0.0
    %vm5431 = vcmp.gt.f32.partialorder %v5397, 0.0
    %vm5432 = vcmp.gt.f32.partialorder %v5404, 0.0
    %vm5433 = vcmp.gt.f32.partialorder %v5411, 0.0
    %vm5434 = vcmp.gt.f32.partialorder %v5418, 0.0
    %v5435 = vsel %vm5419, 1, 0
    %v5436 = vsel %vm5420, 1, 0
    %v5437 = vsel %vm5421, 1, 0
    %v5438 = vsel %vm5422, 1, 0
    %v5439 = vsel %vm5423, 1, 0
    %v5440 = vsel %vm5424, 1, 0
    %v5441 = vsel %vm5425, 1, 0
    %v5442 = vsel %vm5426, 1, 0
    %v5443 = vsel %vm5427, 1, 0
    %v5444 = vsel %vm5428, 1, 0
    %v5445 = vsel %vm5429, 1, 0
    %v5446 = vsel %vm5430, 1, 0
    %v5447 = vsel %vm5431, 1, 0
    %v5448 = vsel %vm5432, 1, 0
    %v5449 = vsel %vm5433, 1, 0
    %v5450 = vsel %vm5434, 1, 0
    %v5451 = vcvt.s32.f32 %v5435
    %v5452 = vcvt.s32.f32 %v5436
    %v5453 = vcvt.s32.f32 %v5437
    %v5454 = vcvt.s32.f32 %v5438
    %v5455 = vcvt.s32.f32 %v5439
    %v5456 = vcvt.s32.f32 %v5440
    %v5457 = vcvt.s32.f32 %v5441
    %v5458 = vcvt.s32.f32 %v5442
    %v5459 = vcvt.s32.f32 %v5443
    %v5460 = vcvt.s32.f32 %v5444
    %v5461 = vcvt.s32.f32 %v5445
    %v5462 = vcvt.s32.f32 %v5446
    %v5463 = vcvt.s32.f32 %v5447
    %v5464 = vcvt.s32.f32 %v5448
    %v5465 = vcvt.s32.f32 %v5449
    %v5466 = vcvt.s32.f32 %v5450
    %v5467 = vpack.c.bf16 %v5201, %v5201
    %v5468 = vpack.c.bf16 %v5208, %v5208
    %v5469 = vpack.c.bf16 %v5215, %v5215
    %v5470 = vpack.c.bf16 %v5222, %v5222
    %v5471 = vpack.c.bf16 %v5229, %v5229
    %v5472 = vpack.c.bf16 %v5236, %v5236
    %v5473 = vpack.c.bf16 %v5243, %v5243
    %v5474 = vpack.c.bf16 %v5250, %v5250
    %v5475 = vpack.c.bf16 %v5257, %v5257
    %v5476 = vpack.c.bf16 %v5264, %v5264
    %v5477 = vpack.c.bf16 %v5271, %v5271
    %v5478 = vpack.c.bf16 %v5278, %v5278
    %v5479 = vpack.c.bf16 %v5285, %v5285
    %v5480 = vpack.c.bf16 %v5292, %v5292
    %v5481 = vpack.c.bf16 %v5299, %v5299
    %v5482 = vpack.c.bf16 %v5306, %v5306
    %v5491 = vunpack.c.l.b16 %v5467
    %v5492 = vunpack.c.l.b16 %v5468
    %v5493 = vunpack.c.l.b16 %v5469
    %v5494 = vunpack.c.l.b16 %v5470
    %v5495 = vunpack.c.l.b16 %v5471
    %v5496 = vunpack.c.l.b16 %v5472
    %v5497 = vunpack.c.l.b16 %v5473
    %v5498 = vunpack.c.l.b16 %v5474
    %v5499 = vsel %vm1459, %v5492, %v5491
    %v5500 = vsel %vm1461, %v5493, %v5499
    %v5501 = vsel %vm1463, %v5494, %v5500
    %v5502 = vsel %vm1465, %v5495, %v5501
    %v5503 = vsel %vm1467, %v5496, %v5502
    %v5504 = vsel %vm1469, %v5497, %v5503
    %v5505 = vsel %vm1471, %v5498, %v5504
    %v5506 = vpack.c.b16 %v5505, %v5505
    %v5508 = vsel %vm180, %v5506, 0
    %5510 = vmatprep.subr.bf16.mxu0 0
    %5511 = vmatpush1.bf16.msra.mxu0 0
    %5512 = vmatprep.subr.bf16.mxu0 0
    %5513 = vmatpush1.bf16.msra.mxu0 0
    %5514 = vmatprep.subr.bf16.mxu0 0
    %5515 = vmatpush1.bf16.msra.mxu0 0
    %5516 = vmatprep.subr.bf16.mxu0 0
    %5517 = vmatpush1.bf16.msra.mxu0 0
    %5518 = vmatprep.subr.bf16.mxu0 0
    %5519 = vmatpush1.bf16.msra.mxu0 0
    %5520 = vmatprep.subr.bf16.mxu0 0
    %5521 = vmatpush1.bf16.msra.mxu0 0
    %5522 = vmatprep.subr.bf16.mxu0 0
    %5523 = vmatpush1.bf16.msra.mxu0 %v1483
    %5524 = vmatprep.subr.bf16.mxu0 0
    %5525 = vmatpush1.bf16.msra.mxu0 %v1482
    %5526 = vmatprep.subr.bf16.mxu0 0
    %5527 = vmatpush2.bf16.msra.mxu0 0
    %5528 = vmatprep.subr.bf16.mxu0 0
    %5529 = vmatpush2.bf16.msra.mxu0 0
    %5530 = vmatprep.subr.bf16.mxu0 0
    %5531 = vmatpush2.bf16.msra.mxu0 0
    %5532 = vmatprep.subr.bf16.mxu0 0
    %5533 = vmatpush2.bf16.msra.mxu0 0
    %5534 = vmatprep.subr.bf16.mxu0 0
    %5535 = vmatpush2.bf16.msra.mxu0 0
    %5536 = vmatprep.subr.bf16.mxu0 0
    %5537 = vmatpush2.bf16.msra.mxu0 0
    %5538 = vmatprep.subr.bf16.mxu0 0
    %5539 = vmatpush2.bf16.msra.mxu0 0
    %5540 = vmatprep.subr.bf16.mxu0 0
    %5541 = vmatpush2.bf16.msra.mxu0 0
    %5542 = vmatprep.mubr.bf16.mxu0 0
    %5543 = vmatmul.mubr.bf16.gmra.mxu0 %v5508
    %v5544 = vpop.f32.mrf.mxu0
    %v5545 = vadd.f32 %v1436, %v5544
    %v5546 = vpop.f32.mrf.mxu0
    %v5547 = vpop.f32.mrf.mxu0
    %v5548 = vpop.f32.mrf.mxu0
    %5549 = vdwg.mxu0
    %v5558 = vunpack.c.l.b16 %v5475
    %v5559 = vunpack.c.l.b16 %v5476
    %v5560 = vunpack.c.l.b16 %v5477
    %v5561 = vunpack.c.l.b16 %v5478
    %v5562 = vunpack.c.l.b16 %v5479
    %v5563 = vunpack.c.l.b16 %v5480
    %v5564 = vunpack.c.l.b16 %v5481
    %v5565 = vunpack.c.l.b16 %v5482
    %v5566 = vsel %vm1459, %v5559, %v5558
    %v5567 = vsel %vm1461, %v5560, %v5566
    %v5568 = vsel %vm1463, %v5561, %v5567
    %v5569 = vsel %vm1465, %v5562, %v5568
    %v5570 = vsel %vm1467, %v5563, %v5569
    %v5571 = vsel %vm1469, %v5564, %v5570
    %v5572 = vsel %vm1471, %v5565, %v5571
    %v5573 = vpack.c.b16 %v5572, %v5572
    %v5575 = vsel %vm180, %v5573, 0
    %5577 = vmatprep.subr.bf16.mxu0 0
    %5578 = vmatpush1.bf16.msra.mxu0 0
    %5579 = vmatprep.subr.bf16.mxu0 0
    %5580 = vmatpush1.bf16.msra.mxu0 0
    %5581 = vmatprep.subr.bf16.mxu0 0
    %5582 = vmatpush1.bf16.msra.mxu0 0
    %5583 = vmatprep.subr.bf16.mxu0 0
    %5584 = vmatpush1.bf16.msra.mxu0 0
    %5585 = vmatprep.subr.bf16.mxu0 0
    %5586 = vmatpush1.bf16.msra.mxu0 0
    %5587 = vmatprep.subr.bf16.mxu0 0
    %5588 = vmatpush1.bf16.msra.mxu0 0
    %5589 = vmatprep.subr.bf16.mxu0 0
    %5590 = vmatpush1.bf16.msra.mxu0 %v1562
    %5591 = vmatprep.subr.bf16.mxu0 0
    %5592 = vmatpush1.bf16.msra.mxu0 %v1561
    %5593 = vmatprep.subr.bf16.mxu0 0
    %5594 = vmatpush2.bf16.msra.mxu0 0
    %5595 = vmatprep.subr.bf16.mxu0 0
    %5596 = vmatpush2.bf16.msra.mxu0 0
    %5597 = vmatprep.subr.bf16.mxu0 0
    %5598 = vmatpush2.bf16.msra.mxu0 0
    %5599 = vmatprep.subr.bf16.mxu0 0
    %5600 = vmatpush2.bf16.msra.mxu0 0
    %5601 = vmatprep.subr.bf16.mxu0 0
    %5602 = vmatpush2.bf16.msra.mxu0 0
    %5603 = vmatprep.subr.bf16.mxu0 0
    %5604 = vmatpush2.bf16.msra.mxu0 0
    %5605 = vmatprep.subr.bf16.mxu0 0
    %5606 = vmatpush2.bf16.msra.mxu0 0
    %5607 = vmatprep.subr.bf16.mxu0 0
    %5608 = vmatpush2.bf16.msra.mxu0 0
    %5609 = vmatprep.mubr.bf16.mxu0 0
    %5610 = vmatmul.mubr.bf16.gmra.mxu0 %v5575
    %v5611 = vpop.f32.mrf.mxu0
    %v5612 = vadd.f32 %v1440, %v5611
    %v5613 = vpop.f32.mrf.mxu0
    %v5614 = vpop.f32.mrf.mxu0
    %v5615 = vpop.f32.mrf.mxu0
    %5616 = vdwg.mxu0
    %5617 = vmatprep.subr.bf16.mxu0 0
    %5618 = vmatpush1.bf16.msra.mxu0 0
    %5619 = vmatprep.subr.bf16.mxu0 0
    %5620 = vmatpush1.bf16.msra.mxu0 0
    %5621 = vmatprep.subr.bf16.mxu0 0
    %5622 = vmatpush1.bf16.msra.mxu0 0
    %5623 = vmatprep.subr.bf16.mxu0 0
    %5624 = vmatpush1.bf16.msra.mxu0 0
    %5625 = vmatprep.subr.bf16.mxu0 0
    %5626 = vmatpush1.bf16.msra.mxu0 0
    %5627 = vmatprep.subr.bf16.mxu0 0
    %5628 = vmatpush1.bf16.msra.mxu0 0
    %5629 = vmatprep.subr.bf16.mxu0 0
    %5630 = vmatpush1.bf16.msra.mxu0 %v1629
    %5631 = vmatprep.subr.bf16.mxu0 0
    %5632 = vmatpush1.bf16.msra.mxu0 %v1628
    %5633 = vmatprep.subr.bf16.mxu0 0
    %5634 = vmatpush2.bf16.msra.mxu0 0
    %5635 = vmatprep.subr.bf16.mxu0 0
    %5636 = vmatpush2.bf16.msra.mxu0 0
    %5637 = vmatprep.subr.bf16.mxu0 0
    %5638 = vmatpush2.bf16.msra.mxu0 0
    %5639 = vmatprep.subr.bf16.mxu0 0
    %5640 = vmatpush2.bf16.msra.mxu0 0
    %5641 = vmatprep.subr.bf16.mxu0 0
    %5642 = vmatpush2.bf16.msra.mxu0 0
    %5643 = vmatprep.subr.bf16.mxu0 0
    %5644 = vmatpush2.bf16.msra.mxu0 0
    %5645 = vmatprep.subr.bf16.mxu0 0
    %5646 = vmatpush2.bf16.msra.mxu0 0
    %5647 = vmatprep.subr.bf16.mxu0 0
    %5648 = vmatpush2.bf16.msra.mxu0 0
    %5649 = vmatprep.mubr.bf16.mxu0 0
    %5650 = vmatmul.mubr.bf16.gmra.mxu0 %v3995
    %v5651 = vpop.f32.mrf.mxu0
    %v5652 = vadd.f32 %v1613, %v5651
    %v5653 = vpop.f32.mrf.mxu0
    %v5654 = vpop.f32.mrf.mxu0
    %v5655 = vpop.f32.mrf.mxu0
    %5656 = vdwg.mxu0
    %5657 = vmatprep.subr.bf16.mxu0 0
    %5658 = vmatpush1.bf16.msra.mxu0 0
    %5659 = vmatprep.subr.bf16.mxu0 0
    %5660 = vmatpush1.bf16.msra.mxu0 0
    %5661 = vmatprep.subr.bf16.mxu0 0
    %5662 = vmatpush1.bf16.msra.mxu0 0
    %5663 = vmatprep.subr.bf16.mxu0 0
    %5664 = vmatpush1.bf16.msra.mxu0 0
    %5665 = vmatprep.subr.bf16.mxu0 0
    %5666 = vmatpush1.bf16.msra.mxu0 0
    %5667 = vmatprep.subr.bf16.mxu0 0
    %5668 = vmatpush1.bf16.msra.mxu0 0
    %5669 = vmatprep.subr.bf16.mxu0 0
    %5670 = vmatpush1.bf16.msra.mxu0 %v1681
    %5671 = vmatprep.subr.bf16.mxu0 0
    %5672 = vmatpush1.bf16.msra.mxu0 %v1680
    %5673 = vmatprep.subr.bf16.mxu0 0
    %5674 = vmatpush2.bf16.msra.mxu0 0
    %5675 = vmatprep.subr.bf16.mxu0 0
    %5676 = vmatpush2.bf16.msra.mxu0 0
    %5677 = vmatprep.subr.bf16.mxu0 0
    %5678 = vmatpush2.bf16.msra.mxu0 0
    %5679 = vmatprep.subr.bf16.mxu0 0
    %5680 = vmatpush2.bf16.msra.mxu0 0
    %5681 = vmatprep.subr.bf16.mxu0 0
    %5682 = vmatpush2.bf16.msra.mxu0 0
    %5683 = vmatprep.subr.bf16.mxu0 0
    %5684 = vmatpush2.bf16.msra.mxu0 0
    %5685 = vmatprep.subr.bf16.mxu0 0
    %5686 = vmatpush2.bf16.msra.mxu0 0
    %5687 = vmatprep.subr.bf16.mxu0 0
    %5688 = vmatpush2.bf16.msra.mxu0 0
    %5689 = vmatprep.mubr.bf16.mxu0 0
    %5690 = vmatmul.mubr.bf16.gmra.mxu0 %v4041
    %v5691 = vpop.f32.mrf.mxu0
    %v5692 = vadd.f32 %v1617, %v5691
    %v5693 = vpop.f32.mrf.mxu0
    %v5694 = vpop.f32.mrf.mxu0
    %v5695 = vpop.f32.mrf.mxu0
    %5696 = vdwg.mxu0
    %v5697 = vadd.f32 %v5545, %v5652
    %v5698 = vadd.f32 %v5612, %v5692
    %v5699 = vxor.u32 %v5697, 2147483648
    %v5700 = vxor.u32 %v5698, 2147483648
    %v5701 = vmul.f32 %v5699, 1.442695
    %v5702 = vpow.pop %v5701
    %v5703 = vmul.f32 %v5700, 1.442695
    %v5704 = vpow.pop %v5703
    %v5705 = vadd.f32 %v5702, 1.0
    %v5706 = vadd.f32 %v5704, 1.0
    %v5707 = vrcp.pop %v5705
    %v5708 = vmul.f32 1.0, %v5707
    %v5709 = vrcp.pop %v5706
    %v5710 = vmul.f32 1.0, %v5709
    %5713 = vrot.lane.b32.xlu0 %v5652, 64
    %v5714 = vpop.permute.xlu0 %5713
    %5715 = vrot.lane.b32.xlu0 %v5692, 64
    %v5716 = vpop.permute.xlu0 %5715
    %v5719 = vmul.f32 %v5708, %v5714
    %v5720 = vmul.f32 %v5710, %v5716
    %5723 = vrot.lane.b32.xlu0 %v5719, 64
    %v5724 = vpop.permute.xlu0 %5723
    %5725 = vrot.lane.b32.xlu0 %v5720, 64
    %v5726 = vpop.permute.xlu0 %5725
    %v5729 = vadd.f32 %v5545, %v5724
    %v5730 = vadd.f32 %v5612, %v5726
    %v5731 = vtanh.pop %v5729
    %v5732 = vtanh.pop %v5730
    %v5733 = vsub.f32 1.0, %v5708
    %v5734 = vsub.f32 1.0, %v5710
    %5737 = vrot.lane.b32.xlu0 %v5731, 96
    %v5738 = vpop.permute.xlu0 %5737
    %5739 = vrot.lane.b32.xlu0 %v5732, 96
    %v5740 = vpop.permute.xlu0 %5739
    %v5743 = vmul.f32 %v5733, %v5738
    %v5744 = vmul.f32 %v5734, %v5740
    %v5745 = vmul.f32 %v5708, %v3987
    %v5746 = vmul.f32 %v5710, %v3988
    %v5747 = vadd.f32 %v5743, %v5745
    %v5748 = vadd.f32 %v5744, %v5746
    %5750 = vset.pattern.permute.xlu0 0
    %5751 = vperm.xlu0 %5750, %v5451
    %v5752 = vpop.permute.xlu0 %5751
    %5754 = vset.pattern.permute.xlu0 0
    %5755 = vperm.xlu0 %5754, %v5452
    %v5756 = vpop.permute.xlu0 %5755
    %5758 = vset.pattern.permute.xlu0 0
    %5759 = vperm.xlu0 %5758, %v5453
    %v5760 = vpop.permute.xlu0 %5759
    %5762 = vset.pattern.permute.xlu0 0
    %5763 = vperm.xlu0 %5762, %v5454
    %v5764 = vpop.permute.xlu0 %5763
    %5766 = vset.pattern.permute.xlu0 0
    %5767 = vperm.xlu0 %5766, %v5455
    %v5768 = vpop.permute.xlu0 %5767
    %5770 = vset.pattern.permute.xlu0 0
    %5771 = vperm.xlu0 %5770, %v5456
    %v5772 = vpop.permute.xlu0 %5771
    %5774 = vset.pattern.permute.xlu0 0
    %5775 = vperm.xlu0 %5774, %v5457
    %v5776 = vpop.permute.xlu0 %5775
    %5778 = vset.pattern.permute.xlu0 0
    %5779 = vperm.xlu0 %5778, %v5458
    %v5780 = vpop.permute.xlu0 %5779
    %5782 = vset.pattern.permute.xlu0 0
    %5783 = vperm.xlu0 %5782, %v5459
    %v5784 = vpop.permute.xlu0 %5783
    %5786 = vset.pattern.permute.xlu0 0
    %5787 = vperm.xlu0 %5786, %v5460
    %v5788 = vpop.permute.xlu0 %5787
    %5790 = vset.pattern.permute.xlu0 0
    %5791 = vperm.xlu0 %5790, %v5461
    %v5792 = vpop.permute.xlu0 %5791
    %5794 = vset.pattern.permute.xlu0 0
    %5795 = vperm.xlu0 %5794, %v5462
    %v5796 = vpop.permute.xlu0 %5795
    %5798 = vset.pattern.permute.xlu0 0
    %5799 = vperm.xlu0 %5798, %v5463
    %v5800 = vpop.permute.xlu0 %5799
    %5802 = vset.pattern.permute.xlu0 0
    %5803 = vperm.xlu0 %5802, %v5464
    %v5804 = vpop.permute.xlu0 %5803
    %5806 = vset.pattern.permute.xlu0 0
    %5807 = vperm.xlu0 %5806, %v5465
    %v5808 = vpop.permute.xlu0 %5807
    %5810 = vset.pattern.permute.xlu0 0
    %5811 = vperm.xlu0 %5810, %v5466
    %v5812 = vpop.permute.xlu0 %5811
    %v5813 = vsel %vm1459, %v5756, %v5752
    %v5814 = vsel %vm1461, %v5760, %v5813
    %v5815 = vsel %vm1463, %v5764, %v5814
    %v5816 = vsel %vm1465, %v5768, %v5815
    %v5817 = vsel %vm1467, %v5772, %v5816
    %v5818 = vsel %vm1469, %v5776, %v5817
    %v5819 = vsel %vm1471, %v5780, %v5818
    %v5820 = vsel %vm1459, %v5788, %v5784
    %v5821 = vsel %vm1461, %v5792, %v5820
    %v5822 = vsel %vm1463, %v5796, %v5821
    %v5823 = vsel %vm1465, %v5800, %v5822
    %v5824 = vsel %vm1467, %v5804, %v5823
    %v5825 = vsel %vm1469, %v5808, %v5824
    %v5826 = vsel %vm1471, %v5812, %v5825
    %v5829 = vmul.f32 %v5747, %v5819
    %v5830 = vmul.f32 %v5748, %v5826
    %v5831 = vsub.f32 1.0, %v5451
    %v5832 = vsub.f32 1.0, %v5452
    %v5833 = vsub.f32 1.0, %v5453
    %v5834 = vsub.f32 1.0, %v5454
    %v5835 = vsub.f32 1.0, %v5455
    %v5836 = vsub.f32 1.0, %v5456
    %v5837 = vsub.f32 1.0, %v5457
    %v5838 = vsub.f32 1.0, %v5458
    %v5839 = vsub.f32 1.0, %v5459
    %v5840 = vsub.f32 1.0, %v5460
    %v5841 = vsub.f32 1.0, %v5461
    %v5842 = vsub.f32 1.0, %v5462
    %v5843 = vsub.f32 1.0, %v5463
    %v5844 = vsub.f32 1.0, %v5464
    %v5845 = vsub.f32 1.0, %v5465
    %v5846 = vsub.f32 1.0, %v5466
    %5848 = vset.pattern.permute.xlu0 0
    %5849 = vperm.xlu0 %5848, %v5831
    %v5850 = vpop.permute.xlu0 %5849
    %5852 = vset.pattern.permute.xlu0 0
    %5853 = vperm.xlu0 %5852, %v5832
    %v5854 = vpop.permute.xlu0 %5853
    %5856 = vset.pattern.permute.xlu0 0
    %5857 = vperm.xlu0 %5856, %v5833
    %v5858 = vpop.permute.xlu0 %5857
    %5860 = vset.pattern.permute.xlu0 0
    %5861 = vperm.xlu0 %5860, %v5834
    %v5862 = vpop.permute.xlu0 %5861
    %5864 = vset.pattern.permute.xlu0 0
    %5865 = vperm.xlu0 %5864, %v5835
    %v5866 = vpop.permute.xlu0 %5865
    %5868 = vset.pattern.permute.xlu0 0
    %5869 = vperm.xlu0 %5868, %v5836
    %v5870 = vpop.permute.xlu0 %5869
    %5872 = vset.pattern.permute.xlu0 0
    %5873 = vperm.xlu0 %5872, %v5837
    %v5874 = vpop.permute.xlu0 %5873
    %5876 = vset.pattern.permute.xlu0 0
    %5877 = vperm.xlu0 %5876, %v5838
    %v5878 = vpop.permute.xlu0 %5877
    %5880 = vset.pattern.permute.xlu0 0
    %5881 = vperm.xlu0 %5880, %v5839
    %v5882 = vpop.permute.xlu0 %5881
    %5884 = vset.pattern.permute.xlu0 0
    %5885 = vperm.xlu0 %5884, %v5840
    %v5886 = vpop.permute.xlu0 %5885
    %5888 = vset.pattern.permute.xlu0 0
    %5889 = vperm.xlu0 %5888, %v5841
    %v5890 = vpop.permute.xlu0 %5889
    %5892 = vset.pattern.permute.xlu0 0
    %5893 = vperm.xlu0 %5892, %v5842
    %v5894 = vpop.permute.xlu0 %5893
    %5896 = vset.pattern.permute.xlu0 0
    %5897 = vperm.xlu0 %5896, %v5843
    %v5898 = vpop.permute.xlu0 %5897
    %5900 = vset.pattern.permute.xlu0 0
    %5901 = vperm.xlu0 %5900, %v5844
    %v5902 = vpop.permute.xlu0 %5901
    %5904 = vset.pattern.permute.xlu0 0
    %5905 = vperm.xlu0 %5904, %v5845
    %v5906 = vpop.permute.xlu0 %5905
    %5908 = vset.pattern.permute.xlu0 0
    %5909 = vperm.xlu0 %5908, %v5846
    %v5910 = vpop.permute.xlu0 %5909
    %v5911 = vsel %vm1459, %v5854, %v5850
    %v5912 = vsel %vm1461, %v5858, %v5911
    %v5913 = vsel %vm1463, %v5862, %v5912
    %v5914 = vsel %vm1465, %v5866, %v5913
    %v5915 = vsel %vm1467, %v5870, %v5914
    %v5916 = vsel %vm1469, %v5874, %v5915
    %v5917 = vsel %vm1471, %v5878, %v5916
    %v5918 = vsel %vm1459, %v5886, %v5882
    %v5919 = vsel %vm1461, %v5890, %v5918
    %v5920 = vsel %vm1463, %v5894, %v5919
    %v5921 = vsel %vm1465, %v5898, %v5920
    %v5922 = vsel %vm1467, %v5902, %v5921
    %v5923 = vsel %vm1469, %v5906, %v5922
    %v5924 = vsel %vm1471, %v5910, %v5923
    %v5927 = vmul.f32 %v3987, %v5917
    %v5928 = vmul.f32 %v3988, %v5924
    %v5929 = vadd.f32 %v5829, %v5927
    %v5930 = vadd.f32 %v5830, %v5928
    %v5931 = vpack.c.bf16 %v5929, %v5929
    %v5932 = vpack.c.bf16 %v5930, %v5930
    %5934 = vrot.lane.b32.xlu0 %v5931, 96
    %v5935 = vpop.permute.xlu0 %5934
    %v5937 = vsel %vm180, %v5935, 0
    %5939 = vmatprep.subr.bf16.mxu0 0
    %5940 = vmatpush1.bf16.msra.mxu0 0
    %5941 = vmatprep.subr.bf16.mxu0 0
    %5942 = vmatpush1.bf16.msra.mxu0 0
    %5943 = vmatprep.subr.bf16.mxu0 0
    %5944 = vmatpush1.bf16.msra.mxu0 0
    %5945 = vmatprep.subr.bf16.mxu0 0
    %5946 = vmatpush1.bf16.msra.mxu0 0
    %5947 = vmatprep.subr.bf16.mxu0 0
    %5948 = vmatpush1.bf16.msra.mxu0 0
    %5949 = vmatprep.subr.bf16.mxu0 0
    %5950 = vmatpush1.bf16.msra.mxu0 0
    %5951 = vmatprep.subr.bf16.mxu0 0
    %5952 = vmatpush1.bf16.msra.mxu0 %v2018
    %5953 = vmatprep.subr.bf16.mxu0 0
    %5954 = vmatpush1.bf16.msra.mxu0 %v2017
    %5955 = vmatprep.subr.bf16.mxu0 0
    %5956 = vmatpush2.bf16.msra.mxu0 0
    %5957 = vmatprep.subr.bf16.mxu0 0
    %5958 = vmatpush2.bf16.msra.mxu0 0
    %5959 = vmatprep.subr.bf16.mxu0 0
    %5960 = vmatpush2.bf16.msra.mxu0 0
    %5961 = vmatprep.subr.bf16.mxu0 0
    %5962 = vmatpush2.bf16.msra.mxu0 0
    %5963 = vmatprep.subr.bf16.mxu0 0
    %5964 = vmatpush2.bf16.msra.mxu0 0
    %5965 = vmatprep.subr.bf16.mxu0 0
    %5966 = vmatpush2.bf16.msra.mxu0 0
    %5967 = vmatprep.subr.bf16.mxu0 0
    %5968 = vmatpush2.bf16.msra.mxu0 0
    %5969 = vmatprep.subr.bf16.mxu0 0
    %5970 = vmatpush2.bf16.msra.mxu0 0
    %5971 = vmatprep.mubr.bf16.mxu0 0
    %5972 = vmatmul.mubr.bf16.gmra.mxu0 %v5937
    %v5973 = vpop.f32.mrf.mxu0
    %v5974 = vadd.f32 0.0, %v5973
    %v5975 = vpop.f32.mrf.mxu0
    %v5976 = vpop.f32.mrf.mxu0
    %v5977 = vpop.f32.mrf.mxu0
    %5978 = vdwg.mxu0
    %5980 = vrot.lane.b32.xlu0 %v5932, 96
    %v5981 = vpop.permute.xlu0 %5980
    %v5983 = vsel %vm180, %v5981, 0
    %5985 = vmatprep.subr.bf16.mxu0 0
    %5986 = vmatpush1.bf16.msra.mxu0 0
    %5987 = vmatprep.subr.bf16.mxu0 0
    %5988 = vmatpush1.bf16.msra.mxu0 0
    %5989 = vmatprep.subr.bf16.mxu0 0
    %5990 = vmatpush1.bf16.msra.mxu0 0
    %5991 = vmatprep.subr.bf16.mxu0 0
    %5992 = vmatpush1.bf16.msra.mxu0 0
    %5993 = vmatprep.subr.bf16.mxu0 0
    %5994 = vmatpush1.bf16.msra.mxu0 0
    %5995 = vmatprep.subr.bf16.mxu0 0
    %5996 = vmatpush1.bf16.msra.mxu0 0
    %5997 = vmatprep.subr.bf16.mxu0 0
    %5998 = vmatpush1.bf16.msra.mxu0 %v2076
    %5999 = vmatprep.subr.bf16.mxu0 0
    %6000 = vmatpush1.bf16.msra.mxu0 %v2075
    %6001 = vmatprep.subr.bf16.mxu0 0
    %6002 = vmatpush2.bf16.msra.mxu0 0
    %6003 = vmatprep.subr.bf16.mxu0 0
    %6004 = vmatpush2.bf16.msra.mxu0 0
    %6005 = vmatprep.subr.bf16.mxu0 0
    %6006 = vmatpush2.bf16.msra.mxu0 0
    %6007 = vmatprep.subr.bf16.mxu0 0
    %6008 = vmatpush2.bf16.msra.mxu0 0
    %6009 = vmatprep.subr.bf16.mxu0 0
    %6010 = vmatpush2.bf16.msra.mxu0 0
    %6011 = vmatprep.subr.bf16.mxu0 0
    %6012 = vmatpush2.bf16.msra.mxu0 0
    %6013 = vmatprep.subr.bf16.mxu0 0
    %6014 = vmatpush2.bf16.msra.mxu0 0
    %6015 = vmatprep.subr.bf16.mxu0 0
    %6016 = vmatpush2.bf16.msra.mxu0 0
    %6017 = vmatprep.mubr.bf16.mxu0 0
    %6018 = vmatmul.mubr.bf16.gmra.mxu0 %v5983
    %v6019 = vpop.f32.mrf.mxu0
    %v6020 = vadd.f32 0.0, %v6019
    %v6021 = vpop.f32.mrf.mxu0
    %v6022 = vpop.f32.mrf.mxu0
    %v6023 = vpop.f32.mrf.mxu0
    %6024 = vdwg.mxu0
    %v6025 = vsel %vm2122, %v5974, 0.0
    %v6026 = vsel %vm2122, %v6020, 0.0
    %v6027 = vadd.f32 %v6025, %v6026
    %v6028 = vadd.f32 %v6027, %v2130
    %6029 = vrot.lane.b32.xlu0 %v4171, 96
    %v6030 = vpop.permute.xlu0 %6029
    %v6032 = vsel %vm180, %v6030, 0
    %6034 = vmatprep.subr.bf16.mxu0 0
    %6035 = vmatpush1.bf16.msra.mxu0 0
    %6036 = vmatprep.subr.bf16.mxu0 0
    %6037 = vmatpush1.bf16.msra.mxu0 0
    %6038 = vmatprep.subr.bf16.mxu0 0
    %6039 = vmatpush1.bf16.msra.mxu0 0
    %6040 = vmatprep.subr.bf16.mxu0 0
    %6041 = vmatpush1.bf16.msra.mxu0 0
    %6042 = vmatprep.subr.bf16.mxu0 0
    %6043 = vmatpush1.bf16.msra.mxu0 0
    %6044 = vmatprep.subr.bf16.mxu0 0
    %6045 = vmatpush1.bf16.msra.mxu0 0
    %6046 = vmatprep.subr.bf16.mxu0 0
    %6047 = vmatpush1.bf16.msra.mxu0 %v2148
    %6048 = vmatprep.subr.bf16.mxu0 0
    %6049 = vmatpush1.bf16.msra.mxu0 %v2147
    %6050 = vmatprep.subr.bf16.mxu0 0
    %6051 = vmatpush2.bf16.msra.mxu0 0
    %6052 = vmatprep.subr.bf16.mxu0 0
    %6053 = vmatpush2.bf16.msra.mxu0 0
    %6054 = vmatprep.subr.bf16.mxu0 0
    %6055 = vmatpush2.bf16.msra.mxu0 0
    %6056 = vmatprep.subr.bf16.mxu0 0
    %6057 = vmatpush2.bf16.msra.mxu0 0
    %6058 = vmatprep.subr.bf16.mxu0 0
    %6059 = vmatpush2.bf16.msra.mxu0 0
    %6060 = vmatprep.subr.bf16.mxu0 0
    %6061 = vmatpush2.bf16.msra.mxu0 0
    %6062 = vmatprep.subr.bf16.mxu0 0
    %6063 = vmatpush2.bf16.msra.mxu0 0
    %6064 = vmatprep.subr.bf16.mxu0 0
    %6065 = vmatpush2.bf16.msra.mxu0 0
    %6066 = vmatprep.mubr.bf16.mxu0 0
    %6067 = vmatmul.mubr.bf16.gmra.mxu0 %v6032
    %v6068 = vpop.f32.mrf.mxu0
    %v6069 = vadd.f32 %v2137, %v6068
    %v6070 = vpop.f32.mrf.mxu0
    %v6071 = vpop.f32.mrf.mxu0
    %v6072 = vpop.f32.mrf.mxu0
    %6073 = vdwg.mxu0
    %v6074 = vadd.f32 %v6028, %v6069
    %v6075 = vxor.u32 %v6074, 2147483648
    %v6076 = vmul.f32 %v6075, 1.442695
    %v6077 = vpow.pop %v6076
    %v6078 = vadd.f32 %v6077, 1.0
    %v6079 = vrcp.pop %v6078
    %v6080 = vmul.f32 1.0, %v6079
    %6082 = vrot.lane.b32.xlu0 %v6069, 64
    %v6083 = vpop.permute.xlu0 %6082
    %v6085 = vmul.f32 %v6080, %v6083
    %6087 = vrot.lane.b32.xlu0 %v6085, 64
    %v6088 = vpop.permute.xlu0 %6087
    %v6090 = vadd.f32 %v6028, %v6088
    %v6091 = vtanh.pop %v6090
    %v6092 = vsub.f32 1.0, %v6080
    %6094 = vrot.lane.b32.xlu0 %v6091, 96
    %v6095 = vpop.permute.xlu0 %6094
    %v6097 = vmul.f32 %v6092, %v6095
    %v6098 = vmul.f32 %v6080, %v4157
    %v6099 = vadd.f32 %v6097, %v6098
    %v6100 = vunpack.c.l.b16 %v5931
    %v6101 = vunpack.c.l.b16 %v5932
    %v6102 = vpack.c.b16 %v6100, %v6100
    %v6103 = vpack.c.b16 %v6101, %v6101
    %6104 = vrot.lane.b32.xlu0 %v6102, 96
    %v6105 = vpop.permute.xlu0 %6104
    %6106 = vrot.lane.b32.xlu0 %v6103, 96
    %v6107 = vpop.permute.xlu0 %6106
    %s6110 = scalar_lea.vmem [#allocation2], 8
    %6111 = vst.msk [vmem:[%s6110] sm:$0xf] %vm2227, %v6105
    %6112 = vst.msk [vmem:[%s6110 + $0x10] sm:$0xf] %vm2227, %v6107
    %v6113 = vpack.c.bf16 %v6099, %v6099
    %v6115 = vunpack.c.l.b16 %v6113
    %v6116 = vpack.c.b16 %v6115, %v6115
    %6117 = vrot.lane.b32.xlu0 %v6116, 96
    %v6118 = vpop.permute.xlu0 %6117
    %s6120 = scalar_lea.vmem [#allocation4], 8
    %6121 = vst.msk [vmem:[%s6120] sm:$0xf] %vm2227, %v6118
    %s6122 = scalar_lea.vmem %s0, 12
    %v6123 = vld [vmem:[%s6122] sm:$0xf]
    %v6124 = vld [vmem:[%s6122 + $0x10] sm:$0xf]
    %v6125 = vld [vmem:[%s6122 + $0x20] sm:$0xf]
    %v6126 = vld [vmem:[%s6122 + $0x30] sm:$0xf]
    %v6127 = vld [vmem:[%s6122 + $0x40] sm:$0xf]
    %v6128 = vld [vmem:[%s6122 + $0x50] sm:$0xf]
    %v6129 = vld [vmem:[%s6122 + $0x60] sm:$0xf]
    %v6130 = vld [vmem:[%s6122 + $0x70] sm:$0xf]
    %v6131 = vld [vmem:[%s6122 + $0x80] sm:$0xf]
    %v6132 = vld [vmem:[%s6122 + $0x90] sm:$0xf]
    %v6133 = vld [vmem:[%s6122 + $0xa0] sm:$0xf]
    %v6134 = vld [vmem:[%s6122 + $0xb0] sm:$0xf]
    %v6135 = vld [vmem:[%s6122 + $0xc0] sm:$0xf]
    %v6136 = vld [vmem:[%s6122 + $0xd0] sm:$0xf]
    %v6137 = vld [vmem:[%s6122 + $0xe0] sm:$0xf]
    %v6138 = vld [vmem:[%s6122 + $0xf0] sm:$0xf]
    %s6139 = scalar_lea.vmem %s1, 384
    %v6140 = vld [vmem:[%s6139] sm:$0xff]
    %v6141 = vld [vmem:[%s6139 + $0x8] sm:$0xff]
    %v6142 = vld [vmem:[%s6139 + $0x10] sm:$0xff]
    %v6143 = vld [vmem:[%s6139 + $0x18] sm:$0xff]
    %v6144 = vld [vmem:[%s6139 + $0x20] sm:$0xff]
    %v6145 = vld [vmem:[%s6139 + $0x28] sm:$0xff]
    %v6146 = vld [vmem:[%s6139 + $0x30] sm:$0xff]
    %v6147 = vld [vmem:[%s6139 + $0x38] sm:$0xff]
    %v6148 = vld [vmem:[%s6139 + $0x40] sm:$0xff]
    %v6149 = vld [vmem:[%s6139 + $0x48] sm:$0xff]
    %v6150 = vld [vmem:[%s6139 + $0x50] sm:$0xff]
    %v6151 = vld [vmem:[%s6139 + $0x58] sm:$0xff]
    %v6152 = vld [vmem:[%s6139 + $0x60] sm:$0xff]
    %v6153 = vld [vmem:[%s6139 + $0x68] sm:$0xff]
    %v6154 = vld [vmem:[%s6139 + $0x70] sm:$0xff]
    %v6155 = vld [vmem:[%s6139 + $0x78] sm:$0xff]
    %v6156 = vpack.c.bf16 %v5930, %v5929
    %v6173 = vunpack.c.l.b16 %v6123
    %v6174 = vunpack.c.l.b16 %v6124
    %v6175 = vunpack.c.l.b16 %v6125
    %v6176 = vunpack.c.l.b16 %v6126
    %v6177 = vunpack.c.l.b16 %v6127
    %v6178 = vunpack.c.l.b16 %v6128
    %v6179 = vunpack.c.l.b16 %v6129
    %v6180 = vunpack.c.l.b16 %v6130
    %v6181 = vunpack.c.l.b16 %v6131
    %v6182 = vunpack.c.l.b16 %v6132
    %v6183 = vunpack.c.l.b16 %v6133
    %v6184 = vunpack.c.l.b16 %v6134
    %v6185 = vunpack.c.l.b16 %v6135
    %v6186 = vunpack.c.l.b16 %v6136
    %v6187 = vunpack.c.l.b16 %v6137
    %v6188 = vunpack.c.l.b16 %v6138
    %v6189 = vpack.c.b16 %v6174, %v6173
    %v6190 = vpack.c.b16 %v6176, %v6175
    %v6191 = vpack.c.b16 %v6178, %v6177
    %v6192 = vpack.c.b16 %v6180, %v6179
    %v6193 = vpack.c.b16 %v6182, %v6181
    %v6194 = vpack.c.b16 %v6184, %v6183
    %v6195 = vpack.c.b16 %v6186, %v6185
    %v6196 = vpack.c.b16 %v6188, %v6187
    %v6198 = vsel %vm180, %v6189, 0
    %v6201 = vsel %vm180, %v6190, 0
    %v6204 = vsel %vm180, %v6191, 0
    %v6207 = vsel %vm180, %v6192, 0
    %v6210 = vsel %vm180, %v6193, 0
    %v6213 = vsel %vm180, %v6194, 0
    %v6216 = vsel %vm180, %v6195, 0
    %v6219 = vsel %vm180, %v6196, 0
    %6221 = vmatprep.subr.bf16.mxu0 0
    %6222 = vmatpush1.bf16.msra.mxu0 0
    %6223 = vmatprep.subr.bf16.mxu0 0
    %6224 = vmatpush1.bf16.msra.mxu0 0
    %6225 = vmatprep.subr.bf16.mxu0 0
    %6226 = vmatpush1.bf16.msra.mxu0 0
    %6227 = vmatprep.subr.bf16.mxu0 0
    %6228 = vmatpush1.bf16.msra.mxu0 0
    %6229 = vmatprep.subr.bf16.mxu0 0
    %6230 = vmatpush1.bf16.msra.mxu0 0
    %6231 = vmatprep.subr.bf16.mxu0 0
    %6232 = vmatpush1.bf16.msra.mxu0 0
    %6233 = vmatprep.subr.bf16.mxu0 0
    %6234 = vmatpush1.bf16.msra.mxu0 %v177
    %6235 = vmatprep.subr.bf16.mxu0 0
    %6236 = vmatpush1.bf16.msra.mxu0 %v176
    %6237 = vmatprep.subr.bf16.mxu0 0
    %6238 = vmatpush2.bf16.msra.mxu0 0
    %6239 = vmatprep.subr.bf16.mxu0 0
    %6240 = vmatpush2.bf16.msra.mxu0 0
    %6241 = vmatprep.subr.bf16.mxu0 0
    %6242 = vmatpush2.bf16.msra.mxu0 0
    %6243 = vmatprep.subr.bf16.mxu0 0
    %6244 = vmatpush2.bf16.msra.mxu0 0
    %6245 = vmatprep.subr.bf16.mxu0 0
    %6246 = vmatpush2.bf16.msra.mxu0 0
    %6247 = vmatprep.subr.bf16.mxu0 0
    %6248 = vmatpush2.bf16.msra.mxu0 0
    %6249 = vmatprep.subr.bf16.mxu0 0
    %6250 = vmatpush2.bf16.msra.mxu0 0
    %6251 = vmatprep.subr.bf16.mxu0 0
    %6252 = vmatpush2.bf16.msra.mxu0 0
    %6253 = vmatprep.mubr.bf16.mxu0 0
    %6254 = vmatmul.mubr.bf16.gmra.mxu0 %v6198
    %v6255 = vpop.f32.mrf.mxu0
    %v6256 = vadd.f32 0.0, %v6255
    %v6257 = vpop.f32.mrf.mxu0
    %v6258 = vpop.f32.mrf.mxu0
    %v6259 = vadd.f32 0.0, %v6258
    %v6260 = vpop.f32.mrf.mxu0
    %6261 = vmatprep.mubr.bf16.mxu0 0
    %6262 = vmatmul.mubr.bf16.gmra.mxu0 %v6201
    %v6263 = vpop.f32.mrf.mxu0
    %v6264 = vadd.f32 0.0, %v6263
    %v6265 = vpop.f32.mrf.mxu0
    %v6266 = vpop.f32.mrf.mxu0
    %v6267 = vadd.f32 0.0, %v6266
    %v6268 = vpop.f32.mrf.mxu0
    %6269 = vmatprep.mubr.bf16.mxu0 0
    %6270 = vmatmul.mubr.bf16.gmra.mxu0 %v6204
    %v6271 = vpop.f32.mrf.mxu0
    %v6272 = vadd.f32 0.0, %v6271
    %v6273 = vpop.f32.mrf.mxu0
    %v6274 = vpop.f32.mrf.mxu0
    %v6275 = vadd.f32 0.0, %v6274
    %v6276 = vpop.f32.mrf.mxu0
    %6277 = vmatprep.mubr.bf16.mxu0 0
    %6278 = vmatmul.mubr.bf16.gmra.mxu0 %v6207
    %v6279 = vpop.f32.mrf.mxu0
    %v6280 = vadd.f32 0.0, %v6279
    %v6281 = vpop.f32.mrf.mxu0
    %v6282 = vpop.f32.mrf.mxu0
    %v6283 = vadd.f32 0.0, %v6282
    %v6284 = vpop.f32.mrf.mxu0
    %6285 = vmatprep.mubr.bf16.mxu0 0
    %6286 = vmatmul.mubr.bf16.gmra.mxu0 %v6210
    %v6287 = vpop.f32.mrf.mxu0
    %v6288 = vadd.f32 0.0, %v6287
    %v6289 = vpop.f32.mrf.mxu0
    %v6290 = vpop.f32.mrf.mxu0
    %v6291 = vadd.f32 0.0, %v6290
    %v6292 = vpop.f32.mrf.mxu0
    %6293 = vmatprep.mubr.bf16.mxu0 0
    %6294 = vmatmul.mubr.bf16.gmra.mxu0 %v6213
    %v6295 = vpop.f32.mrf.mxu0
    %v6296 = vadd.f32 0.0, %v6295
    %v6297 = vpop.f32.mrf.mxu0
    %v6298 = vpop.f32.mrf.mxu0
    %v6299 = vadd.f32 0.0, %v6298
    %v6300 = vpop.f32.mrf.mxu0
    %6301 = vmatprep.mubr.bf16.mxu0 0
    %6302 = vmatmul.mubr.bf16.gmra.mxu0 %v6216
    %v6303 = vpop.f32.mrf.mxu0
    %v6304 = vadd.f32 0.0, %v6303
    %v6305 = vpop.f32.mrf.mxu0
    %v6306 = vpop.f32.mrf.mxu0
    %v6307 = vadd.f32 0.0, %v6306
    %v6308 = vpop.f32.mrf.mxu0
    %6309 = vmatprep.mubr.bf16.mxu0 0
    %6310 = vmatmul.mubr.bf16.gmra.mxu0 %v6219
    %v6311 = vpop.f32.mrf.mxu0
    %v6312 = vadd.f32 0.0, %v6311
    %v6313 = vpop.f32.mrf.mxu0
    %v6314 = vpop.f32.mrf.mxu0
    %v6315 = vadd.f32 0.0, %v6314
    %v6316 = vpop.f32.mrf.mxu0
    %6317 = vdwg.mxu0
    %v6318 = vadd.f32 %v6256, %v306
    %v6319 = vadd.f32 %v6259, %v306
    %v6320 = vadd.f32 %v6264, %v306
    %v6321 = vadd.f32 %v6267, %v306
    %v6322 = vadd.f32 %v6272, %v306
    %v6323 = vadd.f32 %v6275, %v306
    %v6324 = vadd.f32 %v6280, %v306
    %v6325 = vadd.f32 %v6283, %v306
    %v6326 = vadd.f32 %v6288, %v306
    %v6327 = vadd.f32 %v6291, %v306
    %v6328 = vadd.f32 %v6296, %v306
    %v6329 = vadd.f32 %v6299, %v306
    %v6330 = vadd.f32 %v6304, %v306
    %v6331 = vadd.f32 %v6307, %v306
    %v6332 = vadd.f32 %v6312, %v306
    %v6333 = vadd.f32 %v6315, %v306
    %6335 = vrot.lane.b32.xlu0 %v6156, 96
    %v6336 = vpop.permute.xlu0 %6335
    %v6338 = vsel %vm180, %v6336, 0
    %6340 = vmatprep.subr.bf16.mxu0 0
    %6341 = vmatpush1.bf16.msra.mxu0 0
    %6342 = vmatprep.subr.bf16.mxu0 0
    %6343 = vmatpush1.bf16.msra.mxu0 0
    %6344 = vmatprep.subr.bf16.mxu0 0
    %6345 = vmatpush1.bf16.msra.mxu0 0
    %6346 = vmatprep.subr.bf16.mxu0 0
    %6347 = vmatpush1.bf16.msra.mxu0 0
    %6348 = vmatprep.subr.bf16.mxu0 0
    %6349 = vmatpush1.bf16.msra.mxu0 0
    %6350 = vmatprep.subr.bf16.mxu0 0
    %6351 = vmatpush1.bf16.msra.mxu0 0
    %6352 = vmatprep.subr.bf16.mxu0 0
    %6353 = vmatpush1.bf16.msra.mxu0 %v333
    %6354 = vmatprep.subr.bf16.mxu0 0
    %6355 = vmatpush1.bf16.msra.mxu0 %v332
    %6356 = vmatprep.subr.bf16.mxu0 0
    %6357 = vmatpush2.bf16.msra.mxu0 0
    %6358 = vmatprep.subr.bf16.mxu0 0
    %6359 = vmatpush2.bf16.msra.mxu0 0
    %6360 = vmatprep.subr.bf16.mxu0 0
    %6361 = vmatpush2.bf16.msra.mxu0 0
    %6362 = vmatprep.subr.bf16.mxu0 0
    %6363 = vmatpush2.bf16.msra.mxu0 0
    %6364 = vmatprep.subr.bf16.mxu0 0
    %6365 = vmatpush2.bf16.msra.mxu0 0
    %6366 = vmatprep.subr.bf16.mxu0 0
    %6367 = vmatpush2.bf16.msra.mxu0 0
    %6368 = vmatprep.subr.bf16.mxu0 0
    %6369 = vmatpush2.bf16.msra.mxu0 0
    %6370 = vmatprep.subr.bf16.mxu0 0
    %6371 = vmatpush2.bf16.msra.mxu0 0
    %6372 = vmatprep.mubr.bf16.mxu0 0
    %6373 = vmatmul.mubr.bf16.gmra.mxu0 %v6338
    %v6374 = vpop.f32.mrf.mxu0
    %v6375 = vadd.f32 0.0, %v6374
    %v6376 = vpop.f32.mrf.mxu0
    %v6377 = vpop.f32.mrf.mxu0
    %v6378 = vadd.f32 0.0, %v6377
    %v6379 = vpop.f32.mrf.mxu0
    %6380 = vdwg.mxu0
    %v6383 = vcombine.high %v6375, %v6375
    %v6385 = vunpack.c.l.s4 1966171168
    %v6386 = vunpack.c.0.s8 %v6385
    %v6387 = vlaneseq
    %v6388 = vshrl.u32 %v6387, 7
    %v6389 = vsub.s32 %v6386, %v6388
    %v6390 = vrot.slane %v6375, %v6389
    %v6392 = vunpack.c.l.s4 1966171168
    %v6393 = vunpack.c.0.s8 %v6392
    %v6394 = vlaneseq
    %v6395 = vshrl.u32 %v6394, 7
    %v6396 = vsub.s32 %v6393, %v6395
    %v6397 = vrot.slane %v6383, %v6396
    %v6398 = vcombine.high %v6390, %v6390
    %v6399 = vcombine.high %v6397, %v6397
    %v6401 = vunpack.c.l.s4 1966171168
    %v6402 = vunpack.c.0.s8 %v6401
    %v6403 = vlaneseq
    %v6404 = vshrl.u32 %v6403, 7
    %v6405 = vsub.s32 %v6402, %v6404
    %v6406 = vrot.slane %v6390, %v6405
    %v6408 = vunpack.c.l.s4 1966171168
    %v6409 = vunpack.c.0.s8 %v6408
    %v6410 = vlaneseq
    %v6411 = vshrl.u32 %v6410, 7
    %v6412 = vsub.s32 %v6409, %v6411
    %v6413 = vrot.slane %v6397, %v6412
    %v6415 = vunpack.c.l.s4 1966171168
    %v6416 = vunpack.c.0.s8 %v6415
    %v6417 = vlaneseq
    %v6418 = vshrl.u32 %v6417, 7
    %v6419 = vsub.s32 %v6416, %v6418
    %v6420 = vrot.slane %v6398, %v6419
    %v6422 = vunpack.c.l.s4 1966171168
    %v6423 = vunpack.c.0.s8 %v6422
    %v6424 = vlaneseq
    %v6425 = vshrl.u32 %v6424, 7
    %v6426 = vsub.s32 %v6423, %v6425
    %v6427 = vrot.slane %v6399, %v6426
    %v6428 = vcombine.high %v6406, %v6406
    %v6429 = vcombine.high %v6413, %v6413
    %v6430 = vcombine.high %v6420, %v6420
    %v6431 = vcombine.high %v6427, %v6427
    %v6432 = vcombine.high %v6378, %v6378
    %v6434 = vunpack.c.l.s4 1966171168
    %v6435 = vunpack.c.0.s8 %v6434
    %v6436 = vlaneseq
    %v6437 = vshrl.u32 %v6436, 7
    %v6438 = vsub.s32 %v6435, %v6437
    %v6439 = vrot.slane %v6378, %v6438
    %v6441 = vunpack.c.l.s4 1966171168
    %v6442 = vunpack.c.0.s8 %v6441
    %v6443 = vlaneseq
    %v6444 = vshrl.u32 %v6443, 7
    %v6445 = vsub.s32 %v6442, %v6444
    %v6446 = vrot.slane %v6432, %v6445
    %v6447 = vcombine.high %v6439, %v6439
    %v6448 = vcombine.high %v6446, %v6446
    %v6450 = vunpack.c.l.s4 1966171168
    %v6451 = vunpack.c.0.s8 %v6450
    %v6452 = vlaneseq
    %v6453 = vshrl.u32 %v6452, 7
    %v6454 = vsub.s32 %v6451, %v6453
    %v6455 = vrot.slane %v6439, %v6454
    %v6457 = vunpack.c.l.s4 1966171168
    %v6458 = vunpack.c.0.s8 %v6457
    %v6459 = vlaneseq
    %v6460 = vshrl.u32 %v6459, 7
    %v6461 = vsub.s32 %v6458, %v6460
    %v6462 = vrot.slane %v6446, %v6461
    %v6464 = vunpack.c.l.s4 1966171168
    %v6465 = vunpack.c.0.s8 %v6464
    %v6466 = vlaneseq
    %v6467 = vshrl.u32 %v6466, 7
    %v6468 = vsub.s32 %v6465, %v6467
    %v6469 = vrot.slane %v6447, %v6468
    %v6471 = vunpack.c.l.s4 1966171168
    %v6472 = vunpack.c.0.s8 %v6471
    %v6473 = vlaneseq
    %v6474 = vshrl.u32 %v6473, 7
    %v6475 = vsub.s32 %v6472, %v6474
    %v6476 = vrot.slane %v6448, %v6475
    %v6477 = vcombine.high %v6455, %v6455
    %v6478 = vcombine.high %v6462, %v6462
    %v6479 = vcombine.high %v6469, %v6469
    %v6480 = vcombine.high %v6476, %v6476
    %v6481 = vlaneseq
    %v6482 = vshrl.u32 %v6481, 7
    %v6483 = vsub.s32 0, %v6482
    %v6484 = vrot.slane %v6406, %v6483
    %v6485 = vlaneseq
    %v6486 = vshrl.u32 %v6485, 7
    %v6487 = vsub.s32 0, %v6486
    %v6488 = vrot.slane %v6420, %v6487
    %v6489 = vlaneseq
    %v6490 = vshrl.u32 %v6489, 7
    %v6491 = vsub.s32 0, %v6490
    %v6492 = vrot.slane %v6428, %v6491
    %v6493 = vlaneseq
    %v6494 = vshrl.u32 %v6493, 7
    %v6495 = vsub.s32 0, %v6494
    %v6496 = vrot.slane %v6430, %v6495
    %v6497 = vlaneseq
    %v6498 = vshrl.u32 %v6497, 7
    %v6499 = vsub.s32 0, %v6498
    %v6500 = vrot.slane %v6413, %v6499
    %v6501 = vlaneseq
    %v6502 = vshrl.u32 %v6501, 7
    %v6503 = vsub.s32 0, %v6502
    %v6504 = vrot.slane %v6427, %v6503
    %v6505 = vlaneseq
    %v6506 = vshrl.u32 %v6505, 7
    %v6507 = vsub.s32 0, %v6506
    %v6508 = vrot.slane %v6429, %v6507
    %v6509 = vlaneseq
    %v6510 = vshrl.u32 %v6509, 7
    %v6511 = vsub.s32 0, %v6510
    %v6512 = vrot.slane %v6431, %v6511
    %v6513 = vlaneseq
    %v6514 = vshrl.u32 %v6513, 7
    %v6515 = vsub.s32 0, %v6514
    %v6516 = vrot.slane %v6455, %v6515
    %v6517 = vlaneseq
    %v6518 = vshrl.u32 %v6517, 7
    %v6519 = vsub.s32 0, %v6518
    %v6520 = vrot.slane %v6469, %v6519
    %v6521 = vlaneseq
    %v6522 = vshrl.u32 %v6521, 7
    %v6523 = vsub.s32 0, %v6522
    %v6524 = vrot.slane %v6477, %v6523
    %v6525 = vlaneseq
    %v6526 = vshrl.u32 %v6525, 7
    %v6527 = vsub.s32 0, %v6526
    %v6528 = vrot.slane %v6479, %v6527
    %v6529 = vlaneseq
    %v6530 = vshrl.u32 %v6529, 7
    %v6531 = vsub.s32 0, %v6530
    %v6532 = vrot.slane %v6462, %v6531
    %v6533 = vlaneseq
    %v6534 = vshrl.u32 %v6533, 7
    %v6535 = vsub.s32 0, %v6534
    %v6536 = vrot.slane %v6476, %v6535
    %v6537 = vlaneseq
    %v6538 = vshrl.u32 %v6537, 7
    %v6539 = vsub.s32 0, %v6538
    %v6540 = vrot.slane %v6478, %v6539
    %v6541 = vlaneseq
    %v6542 = vshrl.u32 %v6541, 7
    %v6543 = vsub.s32 0, %v6542
    %v6544 = vrot.slane %v6480, %v6543
    %v6561 = vadd.f32 %v6318, %v6484
    %v6562 = vadd.f32 %v6319, %v6488
    %v6563 = vadd.f32 %v6320, %v6492
    %v6564 = vadd.f32 %v6321, %v6496
    %v6565 = vadd.f32 %v6322, %v6500
    %v6566 = vadd.f32 %v6323, %v6504
    %v6567 = vadd.f32 %v6324, %v6508
    %v6568 = vadd.f32 %v6325, %v6512
    %v6569 = vadd.f32 %v6326, %v6516
    %v6570 = vadd.f32 %v6327, %v6520
    %v6571 = vadd.f32 %v6328, %v6524
    %v6572 = vadd.f32 %v6329, %v6528
    %v6573 = vadd.f32 %v6330, %v6532
    %v6574 = vadd.f32 %v6331, %v6536
    %v6575 = vadd.f32 %v6332, %v6540
    %v6576 = vadd.f32 %v6333, %v6544
    %v6577 = vtanh.pop %v6561
    %v6578 = vtanh.pop %v6562
    %v6579 = vtanh.pop %v6563
    %v6580 = vtanh.pop %v6564
    %v6581 = vtanh.pop %v6565
    %v6582 = vtanh.pop %v6566
    %v6583 = vtanh.pop %v6567
    %v6584 = vtanh.pop %v6568
    %v6585 = vtanh.pop %v6569
    %v6586 = vtanh.pop %v6570
    %v6587 = vtanh.pop %v6571
    %v6588 = vtanh.pop %v6572
    %v6589 = vtanh.pop %v6573
    %v6590 = vtanh.pop %v6574
    %v6591 = vtanh.pop %v6575
    %v6592 = vtanh.pop %v6576
    %v6593 = vmul.f32 %v6577, %v596
    %v6594 = vmul.f32 %v6578, %v596
    %v6595 = vmul.f32 %v6579, %v596
    %v6596 = vmul.f32 %v6580, %v596
    %v6597 = vmul.f32 %v6581, %v596
    %v6598 = vmul.f32 %v6582, %v596
    %v6599 = vmul.f32 %v6583, %v596
    %v6600 = vmul.f32 %v6584, %v596
    %v6601 = vmul.f32 %v6585, %v596
    %v6602 = vmul.f32 %v6586, %v596
    %v6603 = vmul.f32 %v6587, %v596
    %v6604 = vmul.f32 %v6588, %v596
    %v6605 = vmul.f32 %v6589, %v596
    %v6606 = vmul.f32 %v6590, %v596
    %v6607 = vmul.f32 %v6591, %v596
    %v6608 = vmul.f32 %v6592, %v596
    %v6609 = vsel %vm180, %v6593, 0.0
    %6610 = vadd.xlane.f32.xlu0 %v6609
    %v6611 = vpop.xlane.xlu0 %6610
    %v6612 = vsel %vm180, %v6594, 0.0
    %6613 = vadd.xlane.f32.xlu0 %v6612
    %v6614 = vpop.xlane.xlu0 %6613
    %v6615 = vsel %vm180, %v6595, 0.0
    %6616 = vadd.xlane.f32.xlu0 %v6615
    %v6617 = vpop.xlane.xlu0 %6616
    %v6618 = vsel %vm180, %v6596, 0.0
    %6619 = vadd.xlane.f32.xlu0 %v6618
    %v6620 = vpop.xlane.xlu0 %6619
    %v6621 = vsel %vm180, %v6597, 0.0
    %6622 = vadd.xlane.f32.xlu0 %v6621
    %v6623 = vpop.xlane.xlu0 %6622
    %v6624 = vsel %vm180, %v6598, 0.0
    %6625 = vadd.xlane.f32.xlu0 %v6624
    %v6626 = vpop.xlane.xlu0 %6625
    %v6627 = vsel %vm180, %v6599, 0.0
    %6628 = vadd.xlane.f32.xlu0 %v6627
    %v6629 = vpop.xlane.xlu0 %6628
    %v6630 = vsel %vm180, %v6600, 0.0
    %6631 = vadd.xlane.f32.xlu0 %v6630
    %v6632 = vpop.xlane.xlu0 %6631
    %v6633 = vsel %vm180, %v6601, 0.0
    %6634 = vadd.xlane.f32.xlu0 %v6633
    %v6635 = vpop.xlane.xlu0 %6634
    %v6636 = vsel %vm180, %v6602, 0.0
    %6637 = vadd.xlane.f32.xlu0 %v6636
    %v6638 = vpop.xlane.xlu0 %6637
    %v6639 = vsel %vm180, %v6603, 0.0
    %6640 = vadd.xlane.f32.xlu0 %v6639
    %v6641 = vpop.xlane.xlu0 %6640
    %v6642 = vsel %vm180, %v6604, 0.0
    %6643 = vadd.xlane.f32.xlu0 %v6642
    %v6644 = vpop.xlane.xlu0 %6643
    %v6645 = vsel %vm180, %v6605, 0.0
    %6646 = vadd.xlane.f32.xlu0 %v6645
    %v6647 = vpop.xlane.xlu0 %6646
    %v6648 = vsel %vm180, %v6606, 0.0
    %6649 = vadd.xlane.f32.xlu0 %v6648
    %v6650 = vpop.xlane.xlu0 %6649
    %v6651 = vsel %vm180, %v6607, 0.0
    %6652 = vadd.xlane.f32.xlu0 %v6651
    %v6653 = vpop.xlane.xlu0 %6652
    %v6654 = vsel %vm180, %v6608, 0.0
    %6655 = vadd.xlane.f32.xlu0 %v6654
    %v6656 = vpop.xlane.xlu0 %6655
    %v6657 = vrot.slane %v6611, 4
    %v6658 = vmax.f32 %v6611, %v6657
    %v6659 = vrot.slane %v6658, 2
    %v6660 = vmax.f32 %v6658, %v6659
    %v6661 = vrot.slane %v6660, 1
    %v6662 = vmax.f32 %v6660, %v6661
    %v6663 = vrot.slane %v6614, 4
    %v6664 = vmax.f32 %v6614, %v6663
    %v6665 = vrot.slane %v6664, 2
    %v6666 = vmax.f32 %v6664, %v6665
    %v6667 = vrot.slane %v6666, 1
    %v6668 = vmax.f32 %v6666, %v6667
    %v6669 = vrot.slane %v6617, 4
    %v6670 = vmax.f32 %v6617, %v6669
    %v6671 = vrot.slane %v6670, 2
    %v6672 = vmax.f32 %v6670, %v6671
    %v6673 = vrot.slane %v6672, 1
    %v6674 = vmax.f32 %v6672, %v6673
    %v6675 = vrot.slane %v6620, 4
    %v6676 = vmax.f32 %v6620, %v6675
    %v6677 = vrot.slane %v6676, 2
    %v6678 = vmax.f32 %v6676, %v6677
    %v6679 = vrot.slane %v6678, 1
    %v6680 = vmax.f32 %v6678, %v6679
    %v6681 = vrot.slane %v6623, 4
    %v6682 = vmax.f32 %v6623, %v6681
    %v6683 = vrot.slane %v6682, 2
    %v6684 = vmax.f32 %v6682, %v6683
    %v6685 = vrot.slane %v6684, 1
    %v6686 = vmax.f32 %v6684, %v6685
    %v6687 = vrot.slane %v6626, 4
    %v6688 = vmax.f32 %v6626, %v6687
    %v6689 = vrot.slane %v6688, 2
    %v6690 = vmax.f32 %v6688, %v6689
    %v6691 = vrot.slane %v6690, 1
    %v6692 = vmax.f32 %v6690, %v6691
    %v6693 = vrot.slane %v6629, 4
    %v6694 = vmax.f32 %v6629, %v6693
    %v6695 = vrot.slane %v6694, 2
    %v6696 = vmax.f32 %v6694, %v6695
    %v6697 = vrot.slane %v6696, 1
    %v6698 = vmax.f32 %v6696, %v6697
    %v6699 = vrot.slane %v6632, 4
    %v6700 = vmax.f32 %v6632, %v6699
    %v6701 = vrot.slane %v6700, 2
    %v6702 = vmax.f32 %v6700, %v6701
    %v6703 = vrot.slane %v6702, 1
    %v6704 = vmax.f32 %v6702, %v6703
    %v6705 = vrot.slane %v6635, 4
    %v6706 = vmax.f32 %v6635, %v6705
    %v6707 = vrot.slane %v6706, 2
    %v6708 = vmax.f32 %v6706, %v6707
    %v6709 = vrot.slane %v6708, 1
    %v6710 = vmax.f32 %v6708, %v6709
    %v6711 = vrot.slane %v6638, 4
    %v6712 = vmax.f32 %v6638, %v6711
    %v6713 = vrot.slane %v6712, 2
    %v6714 = vmax.f32 %v6712, %v6713
    %v6715 = vrot.slane %v6714, 1
    %v6716 = vmax.f32 %v6714, %v6715
    %v6717 = vrot.slane %v6641, 4
    %v6718 = vmax.f32 %v6641, %v6717
    %v6719 = vrot.slane %v6718, 2
    %v6720 = vmax.f32 %v6718, %v6719
    %v6721 = vrot.slane %v6720, 1
    %v6722 = vmax.f32 %v6720, %v6721
    %v6723 = vrot.slane %v6644, 4
    %v6724 = vmax.f32 %v6644, %v6723
    %v6725 = vrot.slane %v6724, 2
    %v6726 = vmax.f32 %v6724, %v6725
    %v6727 = vrot.slane %v6726, 1
    %v6728 = vmax.f32 %v6726, %v6727
    %v6729 = vrot.slane %v6647, 4
    %v6730 = vmax.f32 %v6647, %v6729
    %v6731 = vrot.slane %v6730, 2
    %v6732 = vmax.f32 %v6730, %v6731
    %v6733 = vrot.slane %v6732, 1
    %v6734 = vmax.f32 %v6732, %v6733
    %v6735 = vrot.slane %v6650, 4
    %v6736 = vmax.f32 %v6650, %v6735
    %v6737 = vrot.slane %v6736, 2
    %v6738 = vmax.f32 %v6736, %v6737
    %v6739 = vrot.slane %v6738, 1
    %v6740 = vmax.f32 %v6738, %v6739
    %v6741 = vrot.slane %v6653, 4
    %v6742 = vmax.f32 %v6653, %v6741
    %v6743 = vrot.slane %v6742, 2
    %v6744 = vmax.f32 %v6742, %v6743
    %v6745 = vrot.slane %v6744, 1
    %v6746 = vmax.f32 %v6744, %v6745
    %v6747 = vrot.slane %v6656, 4
    %v6748 = vmax.f32 %v6656, %v6747
    %v6749 = vrot.slane %v6748, 2
    %v6750 = vmax.f32 %v6748, %v6749
    %v6751 = vrot.slane %v6750, 1
    %v6752 = vmax.f32 %v6750, %v6751
    %v6753 = vsub.f32 %v6611, %v6662
    %v6754 = vsub.f32 %v6614, %v6668
    %v6755 = vsub.f32 %v6617, %v6674
    %v6756 = vsub.f32 %v6620, %v6680
    %v6757 = vsub.f32 %v6623, %v6686
    %v6758 = vsub.f32 %v6626, %v6692
    %v6759 = vsub.f32 %v6629, %v6698
    %v6760 = vsub.f32 %v6632, %v6704
    %v6761 = vsub.f32 %v6635, %v6710
    %v6762 = vsub.f32 %v6638, %v6716
    %v6763 = vsub.f32 %v6641, %v6722
    %v6764 = vsub.f32 %v6644, %v6728
    %v6765 = vsub.f32 %v6647, %v6734
    %v6766 = vsub.f32 %v6650, %v6740
    %v6767 = vsub.f32 %v6653, %v6746
    %v6768 = vsub.f32 %v6656, %v6752
    %v6769 = vmul.f32 %v6753, 1.442695
    %v6770 = vpow.pop %v6769
    %v6771 = vmul.f32 %v6754, 1.442695
    %v6772 = vpow.pop %v6771
    %v6773 = vmul.f32 %v6755, 1.442695
    %v6774 = vpow.pop %v6773
    %v6775 = vmul.f32 %v6756, 1.442695
    %v6776 = vpow.pop %v6775
    %v6777 = vmul.f32 %v6757, 1.442695
    %v6778 = vpow.pop %v6777
    %v6779 = vmul.f32 %v6758, 1.442695
    %v6780 = vpow.pop %v6779
    %v6781 = vmul.f32 %v6759, 1.442695
    %v6782 = vpow.pop %v6781
    %v6783 = vmul.f32 %v6760, 1.442695
    %v6784 = vpow.pop %v6783
    %v6785 = vmul.f32 %v6761, 1.442695
    %v6786 = vpow.pop %v6785
    %v6787 = vmul.f32 %v6762, 1.442695
    %v6788 = vpow.pop %v6787
    %v6789 = vmul.f32 %v6763, 1.442695
    %v6790 = vpow.pop %v6789
    %v6791 = vmul.f32 %v6764, 1.442695
    %v6792 = vpow.pop %v6791
    %v6793 = vmul.f32 %v6765, 1.442695
    %v6794 = vpow.pop %v6793
    %v6795 = vmul.f32 %v6766, 1.442695
    %v6796 = vpow.pop %v6795
    %v6797 = vmul.f32 %v6767, 1.442695
    %v6798 = vpow.pop %v6797
    %v6799 = vmul.f32 %v6768, 1.442695
    %v6800 = vpow.pop %v6799
    %v6801 = vmul.f32 %v6770, %v6140
    %v6802 = vmul.f32 %v6772, %v6141
    %v6803 = vmul.f32 %v6774, %v6142
    %v6804 = vmul.f32 %v6776, %v6143
    %v6805 = vmul.f32 %v6778, %v6144
    %v6806 = vmul.f32 %v6780, %v6145
    %v6807 = vmul.f32 %v6782, %v6146
    %v6808 = vmul.f32 %v6784, %v6147
    %v6809 = vmul.f32 %v6786, %v6148
    %v6810 = vmul.f32 %v6788, %v6149
    %v6811 = vmul.f32 %v6790, %v6150
    %v6812 = vmul.f32 %v6792, %v6151
    %v6813 = vmul.f32 %v6794, %v6152
    %v6814 = vmul.f32 %v6796, %v6153
    %v6815 = vmul.f32 %v6798, %v6154
    %v6816 = vmul.f32 %v6800, %v6155
    %v6817 = vsel %vm822, %v6801, 0.0
    %v6818 = vrot.slane %v6817, 4
    %v6819 = vadd.f32 %v6817, %v6818
    %v6820 = vrot.slane %v6819, 2
    %v6821 = vadd.f32 %v6819, %v6820
    %v6822 = vrot.slane %v6821, 1
    %v6823 = vadd.f32 %v6821, %v6822
    %v6824 = vsel %vm822, %v6802, 0.0
    %v6825 = vrot.slane %v6824, 4
    %v6826 = vadd.f32 %v6824, %v6825
    %v6827 = vrot.slane %v6826, 2
    %v6828 = vadd.f32 %v6826, %v6827
    %v6829 = vrot.slane %v6828, 1
    %v6830 = vadd.f32 %v6828, %v6829
    %v6831 = vsel %vm822, %v6803, 0.0
    %v6832 = vrot.slane %v6831, 4
    %v6833 = vadd.f32 %v6831, %v6832
    %v6834 = vrot.slane %v6833, 2
    %v6835 = vadd.f32 %v6833, %v6834
    %v6836 = vrot.slane %v6835, 1
    %v6837 = vadd.f32 %v6835, %v6836
    %v6838 = vsel %vm822, %v6804, 0.0
    %v6839 = vrot.slane %v6838, 4
    %v6840 = vadd.f32 %v6838, %v6839
    %v6841 = vrot.slane %v6840, 2
    %v6842 = vadd.f32 %v6840, %v6841
    %v6843 = vrot.slane %v6842, 1
    %v6844 = vadd.f32 %v6842, %v6843
    %v6845 = vsel %vm822, %v6805, 0.0
    %v6846 = vrot.slane %v6845, 4
    %v6847 = vadd.f32 %v6845, %v6846
    %v6848 = vrot.slane %v6847, 2
    %v6849 = vadd.f32 %v6847, %v6848
    %v6850 = vrot.slane %v6849, 1
    %v6851 = vadd.f32 %v6849, %v6850
    %v6852 = vsel %vm822, %v6806, 0.0
    %v6853 = vrot.slane %v6852, 4
    %v6854 = vadd.f32 %v6852, %v6853
    %v6855 = vrot.slane %v6854, 2
    %v6856 = vadd.f32 %v6854, %v6855
    %v6857 = vrot.slane %v6856, 1
    %v6858 = vadd.f32 %v6856, %v6857
    %v6859 = vsel %vm822, %v6807, 0.0
    %v6860 = vrot.slane %v6859, 4
    %v6861 = vadd.f32 %v6859, %v6860
    %v6862 = vrot.slane %v6861, 2
    %v6863 = vadd.f32 %v6861, %v6862
    %v6864 = vrot.slane %v6863, 1
    %v6865 = vadd.f32 %v6863, %v6864
    %v6866 = vsel %vm822, %v6808, 0.0
    %v6867 = vrot.slane %v6866, 4
    %v6868 = vadd.f32 %v6866, %v6867
    %v6869 = vrot.slane %v6868, 2
    %v6870 = vadd.f32 %v6868, %v6869
    %v6871 = vrot.slane %v6870, 1
    %v6872 = vadd.f32 %v6870, %v6871
    %v6873 = vsel %vm822, %v6809, 0.0
    %v6874 = vrot.slane %v6873, 4
    %v6875 = vadd.f32 %v6873, %v6874
    %v6876 = vrot.slane %v6875, 2
    %v6877 = vadd.f32 %v6875, %v6876
    %v6878 = vrot.slane %v6877, 1
    %v6879 = vadd.f32 %v6877, %v6878
    %v6880 = vsel %vm822, %v6810, 0.0
    %v6881 = vrot.slane %v6880, 4
    %v6882 = vadd.f32 %v6880, %v6881
    %v6883 = vrot.slane %v6882, 2
    %v6884 = vadd.f32 %v6882, %v6883
    %v6885 = vrot.slane %v6884, 1
    %v6886 = vadd.f32 %v6884, %v6885
    %v6887 = vsel %vm822, %v6811, 0.0
    %v6888 = vrot.slane %v6887, 4
    %v6889 = vadd.f32 %v6887, %v6888
    %v6890 = vrot.slane %v6889, 2
    %v6891 = vadd.f32 %v6889, %v6890
    %v6892 = vrot.slane %v6891, 1
    %v6893 = vadd.f32 %v6891, %v6892
    %v6894 = vsel %vm822, %v6812, 0.0
    %v6895 = vrot.slane %v6894, 4
    %v6896 = vadd.f32 %v6894, %v6895
    %v6897 = vrot.slane %v6896, 2
    %v6898 = vadd.f32 %v6896, %v6897
    %v6899 = vrot.slane %v6898, 1
    %v6900 = vadd.f32 %v6898, %v6899
    %v6901 = vsel %vm822, %v6813, 0.0
    %v6902 = vrot.slane %v6901, 4
    %v6903 = vadd.f32 %v6901, %v6902
    %v6904 = vrot.slane %v6903, 2
    %v6905 = vadd.f32 %v6903, %v6904
    %v6906 = vrot.slane %v6905, 1
    %v6907 = vadd.f32 %v6905, %v6906
    %v6908 = vsel %vm822, %v6814, 0.0
    %v6909 = vrot.slane %v6908, 4
    %v6910 = vadd.f32 %v6908, %v6909
    %v6911 = vrot.slane %v6910, 2
    %v6912 = vadd.f32 %v6910, %v6911
    %v6913 = vrot.slane %v6912, 1
    %v6914 = vadd.f32 %v6912, %v6913
    %v6915 = vsel %vm822, %v6815, 0.0
    %v6916 = vrot.slane %v6915, 4
    %v6917 = vadd.f32 %v6915, %v6916
    %v6918 = vrot.slane %v6917, 2
    %v6919 = vadd.f32 %v6917, %v6918
    %v6920 = vrot.slane %v6919, 1
    %v6921 = vadd.f32 %v6919, %v6920
    %v6922 = vsel %vm822, %v6816, 0.0
    %v6923 = vrot.slane %v6922, 4
    %v6924 = vadd.f32 %v6922, %v6923
    %v6925 = vrot.slane %v6924, 2
    %v6926 = vadd.f32 %v6924, %v6925
    %v6927 = vrot.slane %v6926, 1
    %v6928 = vadd.f32 %v6926, %v6927
    %vm6929 = vcmp.eq.f32.partialorder %v6823, 0.0
    %vm6930 = vcmp.eq.f32.partialorder %v6830, 0.0
    %vm6931 = vcmp.eq.f32.partialorder %v6837, 0.0
    %vm6932 = vcmp.eq.f32.partialorder %v6844, 0.0
    %vm6933 = vcmp.eq.f32.partialorder %v6851, 0.0
    %vm6934 = vcmp.eq.f32.partialorder %v6858, 0.0
    %vm6935 = vcmp.eq.f32.partialorder %v6865, 0.0
    %vm6936 = vcmp.eq.f32.partialorder %v6872, 0.0
    %vm6937 = vcmp.eq.f32.partialorder %v6879, 0.0
    %vm6938 = vcmp.eq.f32.partialorder %v6886, 0.0
    %vm6939 = vcmp.eq.f32.partialorder %v6893, 0.0
    %vm6940 = vcmp.eq.f32.partialorder %v6900, 0.0
    %vm6941 = vcmp.eq.f32.partialorder %v6907, 0.0
    %vm6942 = vcmp.eq.f32.partialorder %v6914, 0.0
    %vm6943 = vcmp.eq.f32.partialorder %v6921, 0.0
    %vm6944 = vcmp.eq.f32.partialorder %v6928, 0.0
    %v6945 = vsel %vm6929, 1, 0
    %v6946 = vsel %vm6930, 1, 0
    %v6947 = vsel %vm6931, 1, 0
    %v6948 = vsel %vm6932, 1, 0
    %v6949 = vsel %vm6933, 1, 0
    %v6950 = vsel %vm6934, 1, 0
    %v6951 = vsel %vm6935, 1, 0
    %v6952 = vsel %vm6936, 1, 0
    %v6953 = vsel %vm6937, 1, 0
    %v6954 = vsel %vm6938, 1, 0
    %v6955 = vsel %vm6939, 1, 0
    %v6956 = vsel %vm6940, 1, 0
    %v6957 = vsel %vm6941, 1, 0
    %v6958 = vsel %vm6942, 1, 0
    %v6959 = vsel %vm6943, 1, 0
    %v6960 = vsel %vm6944, 1, 0
    %v6961 = vcvt.s32.f32 %v6945
    %v6962 = vcvt.s32.f32 %v6946
    %v6963 = vcvt.s32.f32 %v6947
    %v6964 = vcvt.s32.f32 %v6948
    %v6965 = vcvt.s32.f32 %v6949
    %v6966 = vcvt.s32.f32 %v6950
    %v6967 = vcvt.s32.f32 %v6951
    %v6968 = vcvt.s32.f32 %v6952
    %v6969 = vcvt.s32.f32 %v6953
    %v6970 = vcvt.s32.f32 %v6954
    %v6971 = vcvt.s32.f32 %v6955
    %v6972 = vcvt.s32.f32 %v6956
    %v6973 = vcvt.s32.f32 %v6957
    %v6974 = vcvt.s32.f32 %v6958
    %v6975 = vcvt.s32.f32 %v6959
    %v6976 = vcvt.s32.f32 %v6960
    %v6977 = vadd.f32 %v6823, %v6961
    %v6978 = vadd.f32 %v6830, %v6962
    %v6979 = vadd.f32 %v6837, %v6963
    %v6980 = vadd.f32 %v6844, %v6964
    %v6981 = vadd.f32 %v6851, %v6965
    %v6982 = vadd.f32 %v6858, %v6966
    %v6983 = vadd.f32 %v6865, %v6967
    %v6984 = vadd.f32 %v6872, %v6968
    %v6985 = vadd.f32 %v6879, %v6969
    %v6986 = vadd.f32 %v6886, %v6970
    %v6987 = vadd.f32 %v6893, %v6971
    %v6988 = vadd.f32 %v6900, %v6972
    %v6989 = vadd.f32 %v6907, %v6973
    %v6990 = vadd.f32 %v6914, %v6974
    %v6991 = vadd.f32 %v6921, %v6975
    %v6992 = vadd.f32 %v6928, %v6976
    %v6993 = vrcp.pop %v6977
    %v6994 = vrcp.pop %v6978
    %v6995 = vrcp.pop %v6979
    %v6996 = vrcp.pop %v6980
    %v6997 = vrcp.pop %v6981
    %v6998 = vrcp.pop %v6982
    %v6999 = vrcp.pop %v6983
    %v7000 = vrcp.pop %v6984
    %v7001 = vrcp.pop %v6985
    %v7002 = vrcp.pop %v6986
    %v7003 = vrcp.pop %v6987
    %v7004 = vrcp.pop %v6988
    %v7005 = vrcp.pop %v6989
    %v7006 = vrcp.pop %v6990
    %v7007 = vrcp.pop %v6991
    %v7008 = vrcp.pop %v6992
    %v7009 = vmul.f32 %v6801, %v6993
    %v7010 = vmul.f32 %v6802, %v6994
    %v7011 = vmul.f32 %v6803, %v6995
    %v7012 = vmul.f32 %v6804, %v6996
    %v7013 = vmul.f32 %v6805, %v6997
    %v7014 = vmul.f32 %v6806, %v6998
    %v7015 = vmul.f32 %v6807, %v6999
    %v7016 = vmul.f32 %v6808, %v7000
    %v7017 = vmul.f32 %v6809, %v7001
    %v7018 = vmul.f32 %v6810, %v7002
    %v7019 = vmul.f32 %v6811, %v7003
    %v7020 = vmul.f32 %v6812, %v7004
    %v7021 = vmul.f32 %v6813, %v7005
    %v7022 = vmul.f32 %v6814, %v7006
    %v7023 = vmul.f32 %v6815, %v7007
    %v7024 = vmul.f32 %v6816, %v7008
    %v7025 = vunpack.c.l.bf16 %v6123
    %v7026 = vunpack.c.l.bf16 %v6124
    %v7027 = vunpack.c.l.bf16 %v6125
    %v7028 = vunpack.c.l.bf16 %v6126
    %v7029 = vunpack.c.l.bf16 %v6127
    %v7030 = vunpack.c.l.bf16 %v6128
    %v7031 = vunpack.c.l.bf16 %v6129
    %v7032 = vunpack.c.l.bf16 %v6130
    %v7033 = vunpack.c.l.bf16 %v6131
    %v7034 = vunpack.c.l.bf16 %v6132
    %v7035 = vunpack.c.l.bf16 %v6133
    %v7036 = vunpack.c.l.bf16 %v6134
    %v7037 = vunpack.c.l.bf16 %v6135
    %v7038 = vunpack.c.l.bf16 %v6136
    %v7039 = vunpack.c.l.bf16 %v6137
    %v7040 = vunpack.c.l.bf16 %v6138
    %7042 = vset.pattern.permute.xlu0 0
    %7043 = vperm.xlu0 %7042, %v7009
    %v7044 = vpop.permute.xlu0 %7043
    %7047 = vset.pattern.permute.xlu0 0
    %7048 = vperm.xlu0 %7047, %v7010
    %v7049 = vpop.permute.xlu0 %7048
    %7052 = vset.pattern.permute.xlu0 0
    %7053 = vperm.xlu0 %7052, %v7011
    %v7054 = vpop.permute.xlu0 %7053
    %7057 = vset.pattern.permute.xlu0 0
    %7058 = vperm.xlu0 %7057, %v7012
    %v7059 = vpop.permute.xlu0 %7058
    %7062 = vset.pattern.permute.xlu0 0
    %7063 = vperm.xlu0 %7062, %v7013
    %v7064 = vpop.permute.xlu0 %7063
    %7067 = vset.pattern.permute.xlu0 0
    %7068 = vperm.xlu0 %7067, %v7014
    %v7069 = vpop.permute.xlu0 %7068
    %7072 = vset.pattern.permute.xlu0 0
    %7073 = vperm.xlu0 %7072, %v7015
    %v7074 = vpop.permute.xlu0 %7073
    %7077 = vset.pattern.permute.xlu0 0
    %7078 = vperm.xlu0 %7077, %v7016
    %v7079 = vpop.permute.xlu0 %7078
    %7082 = vset.pattern.permute.xlu0 0
    %7083 = vperm.xlu0 %7082, %v7017
    %v7084 = vpop.permute.xlu0 %7083
    %7087 = vset.pattern.permute.xlu0 0
    %7088 = vperm.xlu0 %7087, %v7018
    %v7089 = vpop.permute.xlu0 %7088
    %7092 = vset.pattern.permute.xlu0 0
    %7093 = vperm.xlu0 %7092, %v7019
    %v7094 = vpop.permute.xlu0 %7093
    %7097 = vset.pattern.permute.xlu0 0
    %7098 = vperm.xlu0 %7097, %v7020
    %v7099 = vpop.permute.xlu0 %7098
    %7102 = vset.pattern.permute.xlu0 0
    %7103 = vperm.xlu0 %7102, %v7021
    %v7104 = vpop.permute.xlu0 %7103
    %7107 = vset.pattern.permute.xlu0 0
    %7108 = vperm.xlu0 %7107, %v7022
    %v7109 = vpop.permute.xlu0 %7108
    %7112 = vset.pattern.permute.xlu0 0
    %7113 = vperm.xlu0 %7112, %v7023
    %v7114 = vpop.permute.xlu0 %7113
    %7117 = vset.pattern.permute.xlu0 0
    %7118 = vperm.xlu0 %7117, %v7024
    %v7119 = vpop.permute.xlu0 %7118
    %v7121 = vmul.f32 %v7025, %v7044
    %v7122 = vmul.f32 %v7026, %v7049
    %v7123 = vmul.f32 %v7027, %v7054
    %v7124 = vmul.f32 %v7028, %v7059
    %v7125 = vmul.f32 %v7029, %v7064
    %v7126 = vmul.f32 %v7030, %v7069
    %v7127 = vmul.f32 %v7031, %v7074
    %v7128 = vmul.f32 %v7032, %v7079
    %v7129 = vmul.f32 %v7033, %v7084
    %v7130 = vmul.f32 %v7034, %v7089
    %v7131 = vmul.f32 %v7035, %v7094
    %v7132 = vmul.f32 %v7036, %v7099
    %v7133 = vmul.f32 %v7037, %v7104
    %v7134 = vmul.f32 %v7038, %v7109
    %v7135 = vmul.f32 %v7039, %v7114
    %v7136 = vmul.f32 %v7040, %v7119
    %v7137 = vsel %vm180, %v7121, 0.0
    %v7138 = vrot.slane %v7137, 4
    %v7139 = vadd.f32 %v7137, %v7138
    %v7140 = vrot.slane %v7139, 2
    %v7141 = vadd.f32 %v7139, %v7140
    %v7142 = vrot.slane %v7141, 1
    %v7143 = vadd.f32 %v7141, %v7142
    %v7144 = vsel %vm180, %v7122, 0.0
    %v7145 = vrot.slane %v7144, 4
    %v7146 = vadd.f32 %v7144, %v7145
    %v7147 = vrot.slane %v7146, 2
    %v7148 = vadd.f32 %v7146, %v7147
    %v7149 = vrot.slane %v7148, 1
    %v7150 = vadd.f32 %v7148, %v7149
    %v7151 = vsel %vm180, %v7123, 0.0
    %v7152 = vrot.slane %v7151, 4
    %v7153 = vadd.f32 %v7151, %v7152
    %v7154 = vrot.slane %v7153, 2
    %v7155 = vadd.f32 %v7153, %v7154
    %v7156 = vrot.slane %v7155, 1
    %v7157 = vadd.f32 %v7155, %v7156
    %v7158 = vsel %vm180, %v7124, 0.0
    %v7159 = vrot.slane %v7158, 4
    %v7160 = vadd.f32 %v7158, %v7159
    %v7161 = vrot.slane %v7160, 2
    %v7162 = vadd.f32 %v7160, %v7161
    %v7163 = vrot.slane %v7162, 1
    %v7164 = vadd.f32 %v7162, %v7163
    %v7165 = vsel %vm180, %v7125, 0.0
    %v7166 = vrot.slane %v7165, 4
    %v7167 = vadd.f32 %v7165, %v7166
    %v7168 = vrot.slane %v7167, 2
    %v7169 = vadd.f32 %v7167, %v7168
    %v7170 = vrot.slane %v7169, 1
    %v7171 = vadd.f32 %v7169, %v7170
    %v7172 = vsel %vm180, %v7126, 0.0
    %v7173 = vrot.slane %v7172, 4
    %v7174 = vadd.f32 %v7172, %v7173
    %v7175 = vrot.slane %v7174, 2
    %v7176 = vadd.f32 %v7174, %v7175
    %v7177 = vrot.slane %v7176, 1
    %v7178 = vadd.f32 %v7176, %v7177
    %v7179 = vsel %vm180, %v7127, 0.0
    %v7180 = vrot.slane %v7179, 4
    %v7181 = vadd.f32 %v7179, %v7180
    %v7182 = vrot.slane %v7181, 2
    %v7183 = vadd.f32 %v7181, %v7182
    %v7184 = vrot.slane %v7183, 1
    %v7185 = vadd.f32 %v7183, %v7184
    %v7186 = vsel %vm180, %v7128, 0.0
    %v7187 = vrot.slane %v7186, 4
    %v7188 = vadd.f32 %v7186, %v7187
    %v7189 = vrot.slane %v7188, 2
    %v7190 = vadd.f32 %v7188, %v7189
    %v7191 = vrot.slane %v7190, 1
    %v7192 = vadd.f32 %v7190, %v7191
    %v7193 = vsel %vm180, %v7129, 0.0
    %v7194 = vrot.slane %v7193, 4
    %v7195 = vadd.f32 %v7193, %v7194
    %v7196 = vrot.slane %v7195, 2
    %v7197 = vadd.f32 %v7195, %v7196
    %v7198 = vrot.slane %v7197, 1
    %v7199 = vadd.f32 %v7197, %v7198
    %v7200 = vsel %vm180, %v7130, 0.0
    %v7201 = vrot.slane %v7200, 4
    %v7202 = vadd.f32 %v7200, %v7201
    %v7203 = vrot.slane %v7202, 2
    %v7204 = vadd.f32 %v7202, %v7203
    %v7205 = vrot.slane %v7204, 1
    %v7206 = vadd.f32 %v7204, %v7205
    %v7207 = vsel %vm180, %v7131, 0.0
    %v7208 = vrot.slane %v7207, 4
    %v7209 = vadd.f32 %v7207, %v7208
    %v7210 = vrot.slane %v7209, 2
    %v7211 = vadd.f32 %v7209, %v7210
    %v7212 = vrot.slane %v7211, 1
    %v7213 = vadd.f32 %v7211, %v7212
    %v7214 = vsel %vm180, %v7132, 0.0
    %v7215 = vrot.slane %v7214, 4
    %v7216 = vadd.f32 %v7214, %v7215
    %v7217 = vrot.slane %v7216, 2
    %v7218 = vadd.f32 %v7216, %v7217
    %v7219 = vrot.slane %v7218, 1
    %v7220 = vadd.f32 %v7218, %v7219
    %v7221 = vsel %vm180, %v7133, 0.0
    %v7222 = vrot.slane %v7221, 4
    %v7223 = vadd.f32 %v7221, %v7222
    %v7224 = vrot.slane %v7223, 2
    %v7225 = vadd.f32 %v7223, %v7224
    %v7226 = vrot.slane %v7225, 1
    %v7227 = vadd.f32 %v7225, %v7226
    %v7228 = vsel %vm180, %v7134, 0.0
    %v7229 = vrot.slane %v7228, 4
    %v7230 = vadd.f32 %v7228, %v7229
    %v7231 = vrot.slane %v7230, 2
    %v7232 = vadd.f32 %v7230, %v7231
    %v7233 = vrot.slane %v7232, 1
    %v7234 = vadd.f32 %v7232, %v7233
    %v7235 = vsel %vm180, %v7135, 0.0
    %v7236 = vrot.slane %v7235, 4
    %v7237 = vadd.f32 %v7235, %v7236
    %v7238 = vrot.slane %v7237, 2
    %v7239 = vadd.f32 %v7237, %v7238
    %v7240 = vrot.slane %v7239, 1
    %v7241 = vadd.f32 %v7239, %v7240
    %v7242 = vsel %vm180, %v7136, 0.0
    %v7243 = vrot.slane %v7242, 4
    %v7244 = vadd.f32 %v7242, %v7243
    %v7245 = vrot.slane %v7244, 2
    %v7246 = vadd.f32 %v7244, %v7245
    %v7247 = vrot.slane %v7246, 1
    %v7248 = vadd.f32 %v7246, %v7247
    %v7249 = vsel %vm822, %v6140, 0.0
    %v7250 = vrot.slane %v7249, 4
    %v7251 = vadd.f32 %v7249, %v7250
    %v7252 = vrot.slane %v7251, 2
    %v7253 = vadd.f32 %v7251, %v7252
    %v7254 = vrot.slane %v7253, 1
    %v7255 = vadd.f32 %v7253, %v7254
    %v7256 = vsel %vm822, %v6141, 0.0
    %v7257 = vrot.slane %v7256, 4
    %v7258 = vadd.f32 %v7256, %v7257
    %v7259 = vrot.slane %v7258, 2
    %v7260 = vadd.f32 %v7258, %v7259
    %v7261 = vrot.slane %v7260, 1
    %v7262 = vadd.f32 %v7260, %v7261
    %v7263 = vsel %vm822, %v6142, 0.0
    %v7264 = vrot.slane %v7263, 4
    %v7265 = vadd.f32 %v7263, %v7264
    %v7266 = vrot.slane %v7265, 2
    %v7267 = vadd.f32 %v7265, %v7266
    %v7268 = vrot.slane %v7267, 1
    %v7269 = vadd.f32 %v7267, %v7268
    %v7270 = vsel %vm822, %v6143, 0.0
    %v7271 = vrot.slane %v7270, 4
    %v7272 = vadd.f32 %v7270, %v7271
    %v7273 = vrot.slane %v7272, 2
    %v7274 = vadd.f32 %v7272, %v7273
    %v7275 = vrot.slane %v7274, 1
    %v7276 = vadd.f32 %v7274, %v7275
    %v7277 = vsel %vm822, %v6144, 0.0
    %v7278 = vrot.slane %v7277, 4
    %v7279 = vadd.f32 %v7277, %v7278
    %v7280 = vrot.slane %v7279, 2
    %v7281 = vadd.f32 %v7279, %v7280
    %v7282 = vrot.slane %v7281, 1
    %v7283 = vadd.f32 %v7281, %v7282
    %v7284 = vsel %vm822, %v6145, 0.0
    %v7285 = vrot.slane %v7284, 4
    %v7286 = vadd.f32 %v7284, %v7285
    %v7287 = vrot.slane %v7286, 2
    %v7288 = vadd.f32 %v7286, %v7287
    %v7289 = vrot.slane %v7288, 1
    %v7290 = vadd.f32 %v7288, %v7289
    %v7291 = vsel %vm822, %v6146, 0.0
    %v7292 = vrot.slane %v7291, 4
    %v7293 = vadd.f32 %v7291, %v7292
    %v7294 = vrot.slane %v7293, 2
    %v7295 = vadd.f32 %v7293, %v7294
    %v7296 = vrot.slane %v7295, 1
    %v7297 = vadd.f32 %v7295, %v7296
    %v7298 = vsel %vm822, %v6147, 0.0
    %v7299 = vrot.slane %v7298, 4
    %v7300 = vadd.f32 %v7298, %v7299
    %v7301 = vrot.slane %v7300, 2
    %v7302 = vadd.f32 %v7300, %v7301
    %v7303 = vrot.slane %v7302, 1
    %v7304 = vadd.f32 %v7302, %v7303
    %v7305 = vsel %vm822, %v6148, 0.0
    %v7306 = vrot.slane %v7305, 4
    %v7307 = vadd.f32 %v7305, %v7306
    %v7308 = vrot.slane %v7307, 2
    %v7309 = vadd.f32 %v7307, %v7308
    %v7310 = vrot.slane %v7309, 1
    %v7311 = vadd.f32 %v7309, %v7310
    %v7312 = vsel %vm822, %v6149, 0.0
    %v7313 = vrot.slane %v7312, 4
    %v7314 = vadd.f32 %v7312, %v7313
    %v7315 = vrot.slane %v7314, 2
    %v7316 = vadd.f32 %v7314, %v7315
    %v7317 = vrot.slane %v7316, 1
    %v7318 = vadd.f32 %v7316, %v7317
    %v7319 = vsel %vm822, %v6150, 0.0
    %v7320 = vrot.slane %v7319, 4
    %v7321 = vadd.f32 %v7319, %v7320
    %v7322 = vrot.slane %v7321, 2
    %v7323 = vadd.f32 %v7321, %v7322
    %v7324 = vrot.slane %v7323, 1
    %v7325 = vadd.f32 %v7323, %v7324
    %v7326 = vsel %vm822, %v6151, 0.0
    %v7327 = vrot.slane %v7326, 4
    %v7328 = vadd.f32 %v7326, %v7327
    %v7329 = vrot.slane %v7328, 2
    %v7330 = vadd.f32 %v7328, %v7329
    %v7331 = vrot.slane %v7330, 1
    %v7332 = vadd.f32 %v7330, %v7331
    %v7333 = vsel %vm822, %v6152, 0.0
    %v7334 = vrot.slane %v7333, 4
    %v7335 = vadd.f32 %v7333, %v7334
    %v7336 = vrot.slane %v7335, 2
    %v7337 = vadd.f32 %v7335, %v7336
    %v7338 = vrot.slane %v7337, 1
    %v7339 = vadd.f32 %v7337, %v7338
    %v7340 = vsel %vm822, %v6153, 0.0
    %v7341 = vrot.slane %v7340, 4
    %v7342 = vadd.f32 %v7340, %v7341
    %v7343 = vrot.slane %v7342, 2
    %v7344 = vadd.f32 %v7342, %v7343
    %v7345 = vrot.slane %v7344, 1
    %v7346 = vadd.f32 %v7344, %v7345
    %v7347 = vsel %vm822, %v6154, 0.0
    %v7348 = vrot.slane %v7347, 4
    %v7349 = vadd.f32 %v7347, %v7348
    %v7350 = vrot.slane %v7349, 2
    %v7351 = vadd.f32 %v7349, %v7350
    %v7352 = vrot.slane %v7351, 1
    %v7353 = vadd.f32 %v7351, %v7352
    %v7354 = vsel %vm822, %v6155, 0.0
    %v7355 = vrot.slane %v7354, 4
    %v7356 = vadd.f32 %v7354, %v7355
    %v7357 = vrot.slane %v7356, 2
    %v7358 = vadd.f32 %v7356, %v7357
    %v7359 = vrot.slane %v7358, 1
    %v7360 = vadd.f32 %v7358, %v7359
    %vm7361 = vcmp.gt.f32.partialorder %v7255, 0.0
    %vm7362 = vcmp.gt.f32.partialorder %v7262, 0.0
    %vm7363 = vcmp.gt.f32.partialorder %v7269, 0.0
    %vm7364 = vcmp.gt.f32.partialorder %v7276, 0.0
    %vm7365 = vcmp.gt.f32.partialorder %v7283, 0.0
    %vm7366 = vcmp.gt.f32.partialorder %v7290, 0.0
    %vm7367 = vcmp.gt.f32.partialorder %v7297, 0.0
    %vm7368 = vcmp.gt.f32.partialorder %v7304, 0.0
    %vm7369 = vcmp.gt.f32.partialorder %v7311, 0.0
    %vm7370 = vcmp.gt.f32.partialorder %v7318, 0.0
    %vm7371 = vcmp.gt.f32.partialorder %v7325, 0.0
    %vm7372 = vcmp.gt.f32.partialorder %v7332, 0.0
    %vm7373 = vcmp.gt.f32.partialorder %v7339, 0.0
    %vm7374 = vcmp.gt.f32.partialorder %v7346, 0.0
    %vm7375 = vcmp.gt.f32.partialorder %v7353, 0.0
    %vm7376 = vcmp.gt.f32.partialorder %v7360, 0.0
    %v7377 = vsel %vm7361, 1, 0
    %v7378 = vsel %vm7362, 1, 0
    %v7379 = vsel %vm7363, 1, 0
    %v7380 = vsel %vm7364, 1, 0
    %v7381 = vsel %vm7365, 1, 0
    %v7382 = vsel %vm7366, 1, 0
    %v7383 = vsel %vm7367, 1, 0
    %v7384 = vsel %vm7368, 1, 0
    %v7385 = vsel %vm7369, 1, 0
    %v7386 = vsel %vm7370, 1, 0
    %v7387 = vsel %vm7371, 1, 0
    %v7388 = vsel %vm7372, 1, 0
    %v7389 = vsel %vm7373, 1, 0
    %v7390 = vsel %vm7374, 1, 0
    %v7391 = vsel %vm7375, 1, 0
    %v7392 = vsel %vm7376, 1, 0
    %v7393 = vcvt.s32.f32 %v7377
    %v7394 = vcvt.s32.f32 %v7378
    %v7395 = vcvt.s32.f32 %v7379
    %v7396 = vcvt.s32.f32 %v7380
    %v7397 = vcvt.s32.f32 %v7381
    %v7398 = vcvt.s32.f32 %v7382
    %v7399 = vcvt.s32.f32 %v7383
    %v7400 = vcvt.s32.f32 %v7384
    %v7401 = vcvt.s32.f32 %v7385
    %v7402 = vcvt.s32.f32 %v7386
    %v7403 = vcvt.s32.f32 %v7387
    %v7404 = vcvt.s32.f32 %v7388
    %v7405 = vcvt.s32.f32 %v7389
    %v7406 = vcvt.s32.f32 %v7390
    %v7407 = vcvt.s32.f32 %v7391
    %v7408 = vcvt.s32.f32 %v7392
    %v7409 = vpack.c.bf16 %v7143, %v7143
    %v7410 = vpack.c.bf16 %v7150, %v7150
    %v7411 = vpack.c.bf16 %v7157, %v7157
    %v7412 = vpack.c.bf16 %v7164, %v7164
    %v7413 = vpack.c.bf16 %v7171, %v7171
    %v7414 = vpack.c.bf16 %v7178, %v7178
    %v7415 = vpack.c.bf16 %v7185, %v7185
    %v7416 = vpack.c.bf16 %v7192, %v7192
    %v7417 = vpack.c.bf16 %v7199, %v7199
    %v7418 = vpack.c.bf16 %v7206, %v7206
    %v7419 = vpack.c.bf16 %v7213, %v7213
    %v7420 = vpack.c.bf16 %v7220, %v7220
    %v7421 = vpack.c.bf16 %v7227, %v7227
    %v7422 = vpack.c.bf16 %v7234, %v7234
    %v7423 = vpack.c.bf16 %v7241, %v7241
    %v7424 = vpack.c.bf16 %v7248, %v7248
    %v7433 = vunpack.c.l.b16 %v7409
    %v7434 = vunpack.c.l.b16 %v7410
    %v7435 = vunpack.c.l.b16 %v7411
    %v7436 = vunpack.c.l.b16 %v7412
    %v7437 = vunpack.c.l.b16 %v7413
    %v7438 = vunpack.c.l.b16 %v7414
    %v7439 = vunpack.c.l.b16 %v7415
    %v7440 = vunpack.c.l.b16 %v7416
    %v7441 = vsel %vm1459, %v7434, %v7433
    %v7442 = vsel %vm1461, %v7435, %v7441
    %v7443 = vsel %vm1463, %v7436, %v7442
    %v7444 = vsel %vm1465, %v7437, %v7443
    %v7445 = vsel %vm1467, %v7438, %v7444
    %v7446 = vsel %vm1469, %v7439, %v7445
    %v7447 = vsel %vm1471, %v7440, %v7446
    %v7448 = vpack.c.b16 %v7447, %v7447
    %v7450 = vsel %vm180, %v7448, 0
    %7452 = vmatprep.subr.bf16.mxu0 0
    %7453 = vmatpush1.bf16.msra.mxu0 0
    %7454 = vmatprep.subr.bf16.mxu0 0
    %7455 = vmatpush1.bf16.msra.mxu0 0
    %7456 = vmatprep.subr.bf16.mxu0 0
    %7457 = vmatpush1.bf16.msra.mxu0 0
    %7458 = vmatprep.subr.bf16.mxu0 0
    %7459 = vmatpush1.bf16.msra.mxu0 0
    %7460 = vmatprep.subr.bf16.mxu0 0
    %7461 = vmatpush1.bf16.msra.mxu0 0
    %7462 = vmatprep.subr.bf16.mxu0 0
    %7463 = vmatpush1.bf16.msra.mxu0 0
    %7464 = vmatprep.subr.bf16.mxu0 0
    %7465 = vmatpush1.bf16.msra.mxu0 %v1483
    %7466 = vmatprep.subr.bf16.mxu0 0
    %7467 = vmatpush1.bf16.msra.mxu0 %v1482
    %7468 = vmatprep.subr.bf16.mxu0 0
    %7469 = vmatpush2.bf16.msra.mxu0 0
    %7470 = vmatprep.subr.bf16.mxu0 0
    %7471 = vmatpush2.bf16.msra.mxu0 0
    %7472 = vmatprep.subr.bf16.mxu0 0
    %7473 = vmatpush2.bf16.msra.mxu0 0
    %7474 = vmatprep.subr.bf16.mxu0 0
    %7475 = vmatpush2.bf16.msra.mxu0 0
    %7476 = vmatprep.subr.bf16.mxu0 0
    %7477 = vmatpush2.bf16.msra.mxu0 0
    %7478 = vmatprep.subr.bf16.mxu0 0
    %7479 = vmatpush2.bf16.msra.mxu0 0
    %7480 = vmatprep.subr.bf16.mxu0 0
    %7481 = vmatpush2.bf16.msra.mxu0 0
    %7482 = vmatprep.subr.bf16.mxu0 0
    %7483 = vmatpush2.bf16.msra.mxu0 0
    %7484 = vmatprep.mubr.bf16.mxu0 0
    %7485 = vmatmul.mubr.bf16.gmra.mxu0 %v7450
    %v7486 = vpop.f32.mrf.mxu0
    %v7487 = vadd.f32 %v1436, %v7486
    %v7488 = vpop.f32.mrf.mxu0
    %v7489 = vpop.f32.mrf.mxu0
    %v7490 = vpop.f32.mrf.mxu0
    %7491 = vdwg.mxu0
    %v7500 = vunpack.c.l.b16 %v7417
    %v7501 = vunpack.c.l.b16 %v7418
    %v7502 = vunpack.c.l.b16 %v7419
    %v7503 = vunpack.c.l.b16 %v7420
    %v7504 = vunpack.c.l.b16 %v7421
    %v7505 = vunpack.c.l.b16 %v7422
    %v7506 = vunpack.c.l.b16 %v7423
    %v7507 = vunpack.c.l.b16 %v7424
    %v7508 = vsel %vm1459, %v7501, %v7500
    %v7509 = vsel %vm1461, %v7502, %v7508
    %v7510 = vsel %vm1463, %v7503, %v7509
    %v7511 = vsel %vm1465, %v7504, %v7510
    %v7512 = vsel %vm1467, %v7505, %v7511
    %v7513 = vsel %vm1469, %v7506, %v7512
    %v7514 = vsel %vm1471, %v7507, %v7513
    %v7515 = vpack.c.b16 %v7514, %v7514
    %v7517 = vsel %vm180, %v7515, 0
    %7519 = vmatprep.subr.bf16.mxu0 0
    %7520 = vmatpush1.bf16.msra.mxu0 0
    %7521 = vmatprep.subr.bf16.mxu0 0
    %7522 = vmatpush1.bf16.msra.mxu0 0
    %7523 = vmatprep.subr.bf16.mxu0 0
    %7524 = vmatpush1.bf16.msra.mxu0 0
    %7525 = vmatprep.subr.bf16.mxu0 0
    %7526 = vmatpush1.bf16.msra.mxu0 0
    %7527 = vmatprep.subr.bf16.mxu0 0
    %7528 = vmatpush1.bf16.msra.mxu0 0
    %7529 = vmatprep.subr.bf16.mxu0 0
    %7530 = vmatpush1.bf16.msra.mxu0 0
    %7531 = vmatprep.subr.bf16.mxu0 0
    %7532 = vmatpush1.bf16.msra.mxu0 %v1562
    %7533 = vmatprep.subr.bf16.mxu0 0
    %7534 = vmatpush1.bf16.msra.mxu0 %v1561
    %7535 = vmatprep.subr.bf16.mxu0 0
    %7536 = vmatpush2.bf16.msra.mxu0 0
    %7537 = vmatprep.subr.bf16.mxu0 0
    %7538 = vmatpush2.bf16.msra.mxu0 0
    %7539 = vmatprep.subr.bf16.mxu0 0
    %7540 = vmatpush2.bf16.msra.mxu0 0
    %7541 = vmatprep.subr.bf16.mxu0 0
    %7542 = vmatpush2.bf16.msra.mxu0 0
    %7543 = vmatprep.subr.bf16.mxu0 0
    %7544 = vmatpush2.bf16.msra.mxu0 0
    %7545 = vmatprep.subr.bf16.mxu0 0
    %7546 = vmatpush2.bf16.msra.mxu0 0
    %7547 = vmatprep.subr.bf16.mxu0 0
    %7548 = vmatpush2.bf16.msra.mxu0 0
    %7549 = vmatprep.subr.bf16.mxu0 0
    %7550 = vmatpush2.bf16.msra.mxu0 0
    %7551 = vmatprep.mubr.bf16.mxu0 0
    %7552 = vmatmul.mubr.bf16.gmra.mxu0 %v7517
    %v7553 = vpop.f32.mrf.mxu0
    %v7554 = vadd.f32 %v1440, %v7553
    %v7555 = vpop.f32.mrf.mxu0
    %v7556 = vpop.f32.mrf.mxu0
    %v7557 = vpop.f32.mrf.mxu0
    %7558 = vdwg.mxu0
    %7559 = vmatprep.subr.bf16.mxu0 0
    %7560 = vmatpush1.bf16.msra.mxu0 0
    %7561 = vmatprep.subr.bf16.mxu0 0
    %7562 = vmatpush1.bf16.msra.mxu0 0
    %7563 = vmatprep.subr.bf16.mxu0 0
    %7564 = vmatpush1.bf16.msra.mxu0 0
    %7565 = vmatprep.subr.bf16.mxu0 0
    %7566 = vmatpush1.bf16.msra.mxu0 0
    %7567 = vmatprep.subr.bf16.mxu0 0
    %7568 = vmatpush1.bf16.msra.mxu0 0
    %7569 = vmatprep.subr.bf16.mxu0 0
    %7570 = vmatpush1.bf16.msra.mxu0 0
    %7571 = vmatprep.subr.bf16.mxu0 0
    %7572 = vmatpush1.bf16.msra.mxu0 %v1629
    %7573 = vmatprep.subr.bf16.mxu0 0
    %7574 = vmatpush1.bf16.msra.mxu0 %v1628
    %7575 = vmatprep.subr.bf16.mxu0 0
    %7576 = vmatpush2.bf16.msra.mxu0 0
    %7577 = vmatprep.subr.bf16.mxu0 0
    %7578 = vmatpush2.bf16.msra.mxu0 0
    %7579 = vmatprep.subr.bf16.mxu0 0
    %7580 = vmatpush2.bf16.msra.mxu0 0
    %7581 = vmatprep.subr.bf16.mxu0 0
    %7582 = vmatpush2.bf16.msra.mxu0 0
    %7583 = vmatprep.subr.bf16.mxu0 0
    %7584 = vmatpush2.bf16.msra.mxu0 0
    %7585 = vmatprep.subr.bf16.mxu0 0
    %7586 = vmatpush2.bf16.msra.mxu0 0
    %7587 = vmatprep.subr.bf16.mxu0 0
    %7588 = vmatpush2.bf16.msra.mxu0 0
    %7589 = vmatprep.subr.bf16.mxu0 0
    %7590 = vmatpush2.bf16.msra.mxu0 0
    %7591 = vmatprep.mubr.bf16.mxu0 0
    %7592 = vmatmul.mubr.bf16.gmra.mxu0 %v5937
    %v7593 = vpop.f32.mrf.mxu0
    %v7594 = vadd.f32 %v1613, %v7593
    %v7595 = vpop.f32.mrf.mxu0
    %v7596 = vpop.f32.mrf.mxu0
    %v7597 = vpop.f32.mrf.mxu0
    %7598 = vdwg.mxu0
    %7599 = vmatprep.subr.bf16.mxu0 0
    %7600 = vmatpush1.bf16.msra.mxu0 0
    %7601 = vmatprep.subr.bf16.mxu0 0
    %7602 = vmatpush1.bf16.msra.mxu0 0
    %7603 = vmatprep.subr.bf16.mxu0 0
    %7604 = vmatpush1.bf16.msra.mxu0 0
    %7605 = vmatprep.subr.bf16.mxu0 0
    %7606 = vmatpush1.bf16.msra.mxu0 0
    %7607 = vmatprep.subr.bf16.mxu0 0
    %7608 = vmatpush1.bf16.msra.mxu0 0
    %7609 = vmatprep.subr.bf16.mxu0 0
    %7610 = vmatpush1.bf16.msra.mxu0 0
    %7611 = vmatprep.subr.bf16.mxu0 0
    %7612 = vmatpush1.bf16.msra.mxu0 %v1681
    %7613 = vmatprep.subr.bf16.mxu0 0
    %7614 = vmatpush1.bf16.msra.mxu0 %v1680
    %7615 = vmatprep.subr.bf16.mxu0 0
    %7616 = vmatpush2.bf16.msra.mxu0 0
    %7617 = vmatprep.subr.bf16.mxu0 0
    %7618 = vmatpush2.bf16.msra.mxu0 0
    %7619 = vmatprep.subr.bf16.mxu0 0
    %7620 = vmatpush2.bf16.msra.mxu0 0
    %7621 = vmatprep.subr.bf16.mxu0 0
    %7622 = vmatpush2.bf16.msra.mxu0 0
    %7623 = vmatprep.subr.bf16.mxu0 0
    %7624 = vmatpush2.bf16.msra.mxu0 0
    %7625 = vmatprep.subr.bf16.mxu0 0
    %7626 = vmatpush2.bf16.msra.mxu0 0
    %7627 = vmatprep.subr.bf16.mxu0 0
    %7628 = vmatpush2.bf16.msra.mxu0 0
    %7629 = vmatprep.subr.bf16.mxu0 0
    %7630 = vmatpush2.bf16.msra.mxu0 0
    %7631 = vmatprep.mubr.bf16.mxu0 0
    %7632 = vmatmul.mubr.bf16.gmra.mxu0 %v5983
    %v7633 = vpop.f32.mrf.mxu0
    %v7634 = vadd.f32 %v1617, %v7633
    %v7635 = vpop.f32.mrf.mxu0
    %v7636 = vpop.f32.mrf.mxu0
    %v7637 = vpop.f32.mrf.mxu0
    %7638 = vdwg.mxu0
    %v7639 = vadd.f32 %v7487, %v7594
    %v7640 = vadd.f32 %v7554, %v7634
    %v7641 = vxor.u32 %v7639, 2147483648
    %v7642 = vxor.u32 %v7640, 2147483648
    %v7643 = vmul.f32 %v7641, 1.442695
    %v7644 = vpow.pop %v7643
    %v7645 = vmul.f32 %v7642, 1.442695
    %v7646 = vpow.pop %v7645
    %v7647 = vadd.f32 %v7644, 1.0
    %v7648 = vadd.f32 %v7646, 1.0
    %v7649 = vrcp.pop %v7647
    %v7650 = vmul.f32 1.0, %v7649
    %v7651 = vrcp.pop %v7648
    %v7652 = vmul.f32 1.0, %v7651
    %7655 = vrot.lane.b32.xlu0 %v7594, 64
    %v7656 = vpop.permute.xlu0 %7655
    %7657 = vrot.lane.b32.xlu0 %v7634, 64
    %v7658 = vpop.permute.xlu0 %7657
    %v7661 = vmul.f32 %v7650, %v7656
    %v7662 = vmul.f32 %v7652, %v7658
    %7665 = vrot.lane.b32.xlu0 %v7661, 64
    %v7666 = vpop.permute.xlu0 %7665
    %7667 = vrot.lane.b32.xlu0 %v7662, 64
    %v7668 = vpop.permute.xlu0 %7667
    %v7671 = vadd.f32 %v7487, %v7666
    %v7672 = vadd.f32 %v7554, %v7668
    %v7673 = vtanh.pop %v7671
    %v7674 = vtanh.pop %v7672
    %v7675 = vsub.f32 1.0, %v7650
    %v7676 = vsub.f32 1.0, %v7652
    %7679 = vrot.lane.b32.xlu0 %v7673, 96
    %v7680 = vpop.permute.xlu0 %7679
    %7681 = vrot.lane.b32.xlu0 %v7674, 96
    %v7682 = vpop.permute.xlu0 %7681
    %v7685 = vmul.f32 %v7675, %v7680
    %v7686 = vmul.f32 %v7676, %v7682
    %v7687 = vmul.f32 %v7650, %v5929
    %v7688 = vmul.f32 %v7652, %v5930
    %v7689 = vadd.f32 %v7685, %v7687
    %v7690 = vadd.f32 %v7686, %v7688
    %7692 = vset.pattern.permute.xlu0 0
    %7693 = vperm.xlu0 %7692, %v7393
    %v7694 = vpop.permute.xlu0 %7693
    %7696 = vset.pattern.permute.xlu0 0
    %7697 = vperm.xlu0 %7696, %v7394
    %v7698 = vpop.permute.xlu0 %7697
    %7700 = vset.pattern.permute.xlu0 0
    %7701 = vperm.xlu0 %7700, %v7395
    %v7702 = vpop.permute.xlu0 %7701
    %7704 = vset.pattern.permute.xlu0 0
    %7705 = vperm.xlu0 %7704, %v7396
    %v7706 = vpop.permute.xlu0 %7705
    %7708 = vset.pattern.permute.xlu0 0
    %7709 = vperm.xlu0 %7708, %v7397
    %v7710 = vpop.permute.xlu0 %7709
    %7712 = vset.pattern.permute.xlu0 0
    %7713 = vperm.xlu0 %7712, %v7398
    %v7714 = vpop.permute.xlu0 %7713
    %7716 = vset.pattern.permute.xlu0 0
    %7717 = vperm.xlu0 %7716, %v7399
    %v7718 = vpop.permute.xlu0 %7717
    %7720 = vset.pattern.permute.xlu0 0
    %7721 = vperm.xlu0 %7720, %v7400
    %v7722 = vpop.permute.xlu0 %7721
    %7724 = vset.pattern.permute.xlu0 0
    %7725 = vperm.xlu0 %7724, %v7401
    %v7726 = vpop.permute.xlu0 %7725
    %7728 = vset.pattern.permute.xlu0 0
    %7729 = vperm.xlu0 %7728, %v7402
    %v7730 = vpop.permute.xlu0 %7729
    %7732 = vset.pattern.permute.xlu0 0
    %7733 = vperm.xlu0 %7732, %v7403
    %v7734 = vpop.permute.xlu0 %7733
    %7736 = vset.pattern.permute.xlu0 0
    %7737 = vperm.xlu0 %7736, %v7404
    %v7738 = vpop.permute.xlu0 %7737
    %7740 = vset.pattern.permute.xlu0 0
    %7741 = vperm.xlu0 %7740, %v7405
    %v7742 = vpop.permute.xlu0 %7741
    %7744 = vset.pattern.permute.xlu0 0
    %7745 = vperm.xlu0 %7744, %v7406
    %v7746 = vpop.permute.xlu0 %7745
    %7748 = vset.pattern.permute.xlu0 0
    %7749 = vperm.xlu0 %7748, %v7407
    %v7750 = vpop.permute.xlu0 %7749
    %7752 = vset.pattern.permute.xlu0 0
    %7753 = vperm.xlu0 %7752, %v7408
    %v7754 = vpop.permute.xlu0 %7753
    %v7755 = vsel %vm1459, %v7698, %v7694
    %v7756 = vsel %vm1461, %v7702, %v7755
    %v7757 = vsel %vm1463, %v7706, %v7756
    %v7758 = vsel %vm1465, %v7710, %v7757
    %v7759 = vsel %vm1467, %v7714, %v7758
    %v7760 = vsel %vm1469, %v7718, %v7759
    %v7761 = vsel %vm1471, %v7722, %v7760
    %v7762 = vsel %vm1459, %v7730, %v7726
    %v7763 = vsel %vm1461, %v7734, %v7762
    %v7764 = vsel %vm1463, %v7738, %v7763
    %v7765 = vsel %vm1465, %v7742, %v7764
    %v7766 = vsel %vm1467, %v7746, %v7765
    %v7767 = vsel %vm1469, %v7750, %v7766
    %v7768 = vsel %vm1471, %v7754, %v7767
    %v7771 = vmul.f32 %v7689, %v7761
    %v7772 = vmul.f32 %v7690, %v7768
    %v7773 = vsub.f32 1.0, %v7393
    %v7774 = vsub.f32 1.0, %v7394
    %v7775 = vsub.f32 1.0, %v7395
    %v7776 = vsub.f32 1.0, %v7396
    %v7777 = vsub.f32 1.0, %v7397
    %v7778 = vsub.f32 1.0, %v7398
    %v7779 = vsub.f32 1.0, %v7399
    %v7780 = vsub.f32 1.0, %v7400
    %v7781 = vsub.f32 1.0, %v7401
    %v7782 = vsub.f32 1.0, %v7402
    %v7783 = vsub.f32 1.0, %v7403
    %v7784 = vsub.f32 1.0, %v7404
    %v7785 = vsub.f32 1.0, %v7405
    %v7786 = vsub.f32 1.0, %v7406
    %v7787 = vsub.f32 1.0, %v7407
    %v7788 = vsub.f32 1.0, %v7408
    %7790 = vset.pattern.permute.xlu0 0
    %7791 = vperm.xlu0 %7790, %v7773
    %v7792 = vpop.permute.xlu0 %7791
    %7794 = vset.pattern.permute.xlu0 0
    %7795 = vperm.xlu0 %7794, %v7774
    %v7796 = vpop.permute.xlu0 %7795
    %7798 = vset.pattern.permute.xlu0 0
    %7799 = vperm.xlu0 %7798, %v7775
    %v7800 = vpop.permute.xlu0 %7799
    %7802 = vset.pattern.permute.xlu0 0
    %7803 = vperm.xlu0 %7802, %v7776
    %v7804 = vpop.permute.xlu0 %7803
    %7806 = vset.pattern.permute.xlu0 0
    %7807 = vperm.xlu0 %7806, %v7777
    %v7808 = vpop.permute.xlu0 %7807
    %7810 = vset.pattern.permute.xlu0 0
    %7811 = vperm.xlu0 %7810, %v7778
    %v7812 = vpop.permute.xlu0 %7811
    %7814 = vset.pattern.permute.xlu0 0
    %7815 = vperm.xlu0 %7814, %v7779
    %v7816 = vpop.permute.xlu0 %7815
    %7818 = vset.pattern.permute.xlu0 0
    %7819 = vperm.xlu0 %7818, %v7780
    %v7820 = vpop.permute.xlu0 %7819
    %7822 = vset.pattern.permute.xlu0 0
    %7823 = vperm.xlu0 %7822, %v7781
    %v7824 = vpop.permute.xlu0 %7823
    %7826 = vset.pattern.permute.xlu0 0
    %7827 = vperm.xlu0 %7826, %v7782
    %v7828 = vpop.permute.xlu0 %7827
    %7830 = vset.pattern.permute.xlu0 0
    %7831 = vperm.xlu0 %7830, %v7783
    %v7832 = vpop.permute.xlu0 %7831
    %7834 = vset.pattern.permute.xlu0 0
    %7835 = vperm.xlu0 %7834, %v7784
    %v7836 = vpop.permute.xlu0 %7835
    %7838 = vset.pattern.permute.xlu0 0
    %7839 = vperm.xlu0 %7838, %v7785
    %v7840 = vpop.permute.xlu0 %7839
    %7842 = vset.pattern.permute.xlu0 0
    %7843 = vperm.xlu0 %7842, %v7786
    %v7844 = vpop.permute.xlu0 %7843
    %7846 = vset.pattern.permute.xlu0 0
    %7847 = vperm.xlu0 %7846, %v7787
    %v7848 = vpop.permute.xlu0 %7847
    %7850 = vset.pattern.permute.xlu0 0
    %7851 = vperm.xlu0 %7850, %v7788
    %v7852 = vpop.permute.xlu0 %7851
    %v7853 = vsel %vm1459, %v7796, %v7792
    %v7854 = vsel %vm1461, %v7800, %v7853
    %v7855 = vsel %vm1463, %v7804, %v7854
    %v7856 = vsel %vm1465, %v7808, %v7855
    %v7857 = vsel %vm1467, %v7812, %v7856
    %v7858 = vsel %vm1469, %v7816, %v7857
    %v7859 = vsel %vm1471, %v7820, %v7858
    %v7860 = vsel %vm1459, %v7828, %v7824
    %v7861 = vsel %vm1461, %v7832, %v7860
    %v7862 = vsel %vm1463, %v7836, %v7861
    %v7863 = vsel %vm1465, %v7840, %v7862
    %v7864 = vsel %vm1467, %v7844, %v7863
    %v7865 = vsel %vm1469, %v7848, %v7864
    %v7866 = vsel %vm1471, %v7852, %v7865
    %v7869 = vmul.f32 %v5929, %v7859
    %v7870 = vmul.f32 %v5930, %v7866
    %v7871 = vadd.f32 %v7771, %v7869
    %v7872 = vadd.f32 %v7772, %v7870
    %v7873 = vpack.c.bf16 %v7871, %v7871
    %v7874 = vpack.c.bf16 %v7872, %v7872
    %7876 = vrot.lane.b32.xlu0 %v7873, 96
    %v7877 = vpop.permute.xlu0 %7876
    %v7879 = vsel %vm180, %v7877, 0
    %7881 = vmatprep.subr.bf16.mxu0 0
    %7882 = vmatpush1.bf16.msra.mxu0 0
    %7883 = vmatprep.subr.bf16.mxu0 0
    %7884 = vmatpush1.bf16.msra.mxu0 0
    %7885 = vmatprep.subr.bf16.mxu0 0
    %7886 = vmatpush1.bf16.msra.mxu0 0
    %7887 = vmatprep.subr.bf16.mxu0 0
    %7888 = vmatpush1.bf16.msra.mxu0 0
    %7889 = vmatprep.subr.bf16.mxu0 0
    %7890 = vmatpush1.bf16.msra.mxu0 0
    %7891 = vmatprep.subr.bf16.mxu0 0
    %7892 = vmatpush1.bf16.msra.mxu0 0
    %7893 = vmatprep.subr.bf16.mxu0 0
    %7894 = vmatpush1.bf16.msra.mxu0 %v2018
    %7895 = vmatprep.subr.bf16.mxu0 0
    %7896 = vmatpush1.bf16.msra.mxu0 %v2017
    %7897 = vmatprep.subr.bf16.mxu0 0
    %7898 = vmatpush2.bf16.msra.mxu0 0
    %7899 = vmatprep.subr.bf16.mxu0 0
    %7900 = vmatpush2.bf16.msra.mxu0 0
    %7901 = vmatprep.subr.bf16.mxu0 0
    %7902 = vmatpush2.bf16.msra.mxu0 0
    %7903 = vmatprep.subr.bf16.mxu0 0
    %7904 = vmatpush2.bf16.msra.mxu0 0
    %7905 = vmatprep.subr.bf16.mxu0 0
    %7906 = vmatpush2.bf16.msra.mxu0 0
    %7907 = vmatprep.subr.bf16.mxu0 0
    %7908 = vmatpush2.bf16.msra.mxu0 0
    %7909 = vmatprep.subr.bf16.mxu0 0
    %7910 = vmatpush2.bf16.msra.mxu0 0
    %7911 = vmatprep.subr.bf16.mxu0 0
    %7912 = vmatpush2.bf16.msra.mxu0 0
    %7913 = vmatprep.mubr.bf16.mxu0 0
    %7914 = vmatmul.mubr.bf16.gmra.mxu0 %v7879
    %v7915 = vpop.f32.mrf.mxu0
    %v7916 = vadd.f32 0.0, %v7915
    %v7917 = vpop.f32.mrf.mxu0
    %v7918 = vpop.f32.mrf.mxu0
    %v7919 = vpop.f32.mrf.mxu0
    %7920 = vdwg.mxu0
    %7922 = vrot.lane.b32.xlu0 %v7874, 96
    %v7923 = vpop.permute.xlu0 %7922
    %v7925 = vsel %vm180, %v7923, 0
    %7927 = vmatprep.subr.bf16.mxu0 0
    %7928 = vmatpush1.bf16.msra.mxu0 0
    %7929 = vmatprep.subr.bf16.mxu0 0
    %7930 = vmatpush1.bf16.msra.mxu0 0
    %7931 = vmatprep.subr.bf16.mxu0 0
    %7932 = vmatpush1.bf16.msra.mxu0 0
    %7933 = vmatprep.subr.bf16.mxu0 0
    %7934 = vmatpush1.bf16.msra.mxu0 0
    %7935 = vmatprep.subr.bf16.mxu0 0
    %7936 = vmatpush1.bf16.msra.mxu0 0
    %7937 = vmatprep.subr.bf16.mxu0 0
    %7938 = vmatpush1.bf16.msra.mxu0 0
    %7939 = vmatprep.subr.bf16.mxu0 0
    %7940 = vmatpush1.bf16.msra.mxu0 %v2076
    %7941 = vmatprep.subr.bf16.mxu0 0
    %7942 = vmatpush1.bf16.msra.mxu0 %v2075
    %7943 = vmatprep.subr.bf16.mxu0 0
    %7944 = vmatpush2.bf16.msra.mxu0 0
    %7945 = vmatprep.subr.bf16.mxu0 0
    %7946 = vmatpush2.bf16.msra.mxu0 0
    %7947 = vmatprep.subr.bf16.mxu0 0
    %7948 = vmatpush2.bf16.msra.mxu0 0
    %7949 = vmatprep.subr.bf16.mxu0 0
    %7950 = vmatpush2.bf16.msra.mxu0 0
    %7951 = vmatprep.subr.bf16.mxu0 0
    %7952 = vmatpush2.bf16.msra.mxu0 0
    %7953 = vmatprep.subr.bf16.mxu0 0
    %7954 = vmatpush2.bf16.msra.mxu0 0
    %7955 = vmatprep.subr.bf16.mxu0 0
    %7956 = vmatpush2.bf16.msra.mxu0 0
    %7957 = vmatprep.subr.bf16.mxu0 0
    %7958 = vmatpush2.bf16.msra.mxu0 0
    %7959 = vmatprep.mubr.bf16.mxu0 0
    %7960 = vmatmul.mubr.bf16.gmra.mxu0 %v7925
    %v7961 = vpop.f32.mrf.mxu0
    %v7962 = vadd.f32 0.0, %v7961
    %v7963 = vpop.f32.mrf.mxu0
    %v7964 = vpop.f32.mrf.mxu0
    %v7965 = vpop.f32.mrf.mxu0
    %7966 = vdwg.mxu0
    %v7967 = vsel %vm2122, %v7916, 0.0
    %v7968 = vsel %vm2122, %v7962, 0.0
    %v7969 = vadd.f32 %v7967, %v7968
    %v7970 = vadd.f32 %v7969, %v2130
    %7971 = vrot.lane.b32.xlu0 %v6113, 96
    %v7972 = vpop.permute.xlu0 %7971
    %v7974 = vsel %vm180, %v7972, 0
    %7976 = vmatprep.subr.bf16.mxu0 0
    %7977 = vmatpush1.bf16.msra.mxu0 0
    %7978 = vmatprep.subr.bf16.mxu0 0
    %7979 = vmatpush1.bf16.msra.mxu0 0
    %7980 = vmatprep.subr.bf16.mxu0 0
    %7981 = vmatpush1.bf16.msra.mxu0 0
    %7982 = vmatprep.subr.bf16.mxu0 0
    %7983 = vmatpush1.bf16.msra.mxu0 0
    %7984 = vmatprep.subr.bf16.mxu0 0
    %7985 = vmatpush1.bf16.msra.mxu0 0
    %7986 = vmatprep.subr.bf16.mxu0 0
    %7987 = vmatpush1.bf16.msra.mxu0 0
    %7988 = vmatprep.subr.bf16.mxu0 0
    %7989 = vmatpush1.bf16.msra.mxu0 %v2148
    %7990 = vmatprep.subr.bf16.mxu0 0
    %7991 = vmatpush1.bf16.msra.mxu0 %v2147
    %7992 = vmatprep.subr.bf16.mxu0 0
    %7993 = vmatpush2.bf16.msra.mxu0 0
    %7994 = vmatprep.subr.bf16.mxu0 0
    %7995 = vmatpush2.bf16.msra.mxu0 0
    %7996 = vmatprep.subr.bf16.mxu0 0
    %7997 = vmatpush2.bf16.msra.mxu0 0
    %7998 = vmatprep.subr.bf16.mxu0 0
    %7999 = vmatpush2.bf16.msra.mxu0 0
    %8000 = vmatprep.subr.bf16.mxu0 0
    %8001 = vmatpush2.bf16.msra.mxu0 0
    %8002 = vmatprep.subr.bf16.mxu0 0
    %8003 = vmatpush2.bf16.msra.mxu0 0
    %8004 = vmatprep.subr.bf16.mxu0 0
    %8005 = vmatpush2.bf16.msra.mxu0 0
    %8006 = vmatprep.subr.bf16.mxu0 0
    %8007 = vmatpush2.bf16.msra.mxu0 0
    %8008 = vmatprep.mubr.bf16.mxu0 0
    %8009 = vmatmul.mubr.bf16.gmra.mxu0 %v7974
    %v8010 = vpop.f32.mrf.mxu0
    %v8011 = vadd.f32 %v2137, %v8010
    %v8012 = vpop.f32.mrf.mxu0
    %v8013 = vpop.f32.mrf.mxu0
    %v8014 = vpop.f32.mrf.mxu0
    %8015 = vdwg.mxu0
    %v8016 = vadd.f32 %v7970, %v8011
    %v8017 = vxor.u32 %v8016, 2147483648
    %v8018 = vmul.f32 %v8017, 1.442695
    %v8019 = vpow.pop %v8018
    %v8020 = vadd.f32 %v8019, 1.0
    %v8021 = vrcp.pop %v8020
    %v8022 = vmul.f32 1.0, %v8021
    %8024 = vrot.lane.b32.xlu0 %v8011, 64
    %v8025 = vpop.permute.xlu0 %8024
    %v8027 = vmul.f32 %v8022, %v8025
    %8029 = vrot.lane.b32.xlu0 %v8027, 64
    %v8030 = vpop.permute.xlu0 %8029
    %v8032 = vadd.f32 %v7970, %v8030
    %v8033 = vtanh.pop %v8032
    %v8034 = vsub.f32 1.0, %v8022
    %8036 = vrot.lane.b32.xlu0 %v8033, 96
    %v8037 = vpop.permute.xlu0 %8036
    %v8039 = vmul.f32 %v8034, %v8037
    %v8040 = vmul.f32 %v8022, %v6099
    %v8041 = vadd.f32 %v8039, %v8040
    %v8042 = vunpack.c.l.b16 %v7873
    %v8043 = vunpack.c.l.b16 %v7874
    %v8044 = vpack.c.b16 %v8042, %v8042
    %v8045 = vpack.c.b16 %v8043, %v8043
    %8046 = vrot.lane.b32.xlu0 %v8044, 96
    %v8047 = vpop.permute.xlu0 %8046
    %8048 = vrot.lane.b32.xlu0 %v8045, 96
    %v8049 = vpop.permute.xlu0 %8048
    %s8052 = scalar_lea.vmem [#allocation2], 12
    %8053 = vst.msk [vmem:[%s8052] sm:$0xf] %vm2227, %v8047
    %8054 = vst.msk [vmem:[%s8052 + $0x10] sm:$0xf] %vm2227, %v8049
    %v8055 = vpack.c.bf16 %v8041, %v8041
    %v8057 = vunpack.c.l.b16 %v8055
    %v8058 = vpack.c.b16 %v8057, %v8057
    %8059 = vrot.lane.b32.xlu0 %v8058, 96
    %v8060 = vpop.permute.xlu0 %8059
    %s8062 = scalar_lea.vmem [#allocation4], 12
    %8063 = vst.msk [vmem:[%s8062] sm:$0xf] %vm2227, %v8060
    // Predicated region
    $region58: #{tpu_custom_call.1} parent=1 // pred_check
      _
    $region59: #{tpu_custom_call.1} parent=1 // pred_check_branch
      %8065 = sbr.rel (0) target = $region61
    $region60: #{tpu_custom_call.1} parent=1 // pred_region
      %s8067 = ssub.s32 512, 512
      %8068 = vsyncadd [#allocation3], %s8067
      %s8069 = sshll.u32 [#allocation2], 4
      %s8070 = int_to_ptr.vmem [resolvable:$true] %s8069
      %8075 = dma.vmem_to_hbm [thread:$0]  %s8070, 512, %s14, [#allocation3], 64, 64, 4
    $region61: #{tpu_custom_call.1} parent=1 // pred_fallthru
      _
    // Predicated region
    $region62: #{tpu_custom_call.1} parent=1 // pred_check
      _
    $region63: #{tpu_custom_call.1} parent=1 // pred_check_branch
      %8077 = sbr.rel (0) target = $region65
    $region64: #{tpu_custom_call.1} parent=1 // pred_region
      %s8079 = ssub.s32 256, 256
      %8080 = vsyncadd [#allocation5], %s8079
      %s8081 = sshll.u32 [#allocation4], 4
      %s8082 = int_to_ptr.vmem [resolvable:$true] %s8081
      %8087 = dma.vmem_to_hbm [thread:$0]  %s8082, 256, %s15, [#allocation5], 64, 64, 4
    $region65: #{tpu_custom_call.1} parent=1 // pred_fallthru
      _
    // Predicated region
    $region66: #{tpu_custom_call.1} parent=1 // pred_check
      _
    $region67: #{tpu_custom_call.1} parent=1 // pred_check_branch
      %8089 = sbr.rel (0) target = $region69
    $region68: #{tpu_custom_call.1} parent=1 // pred_region
      %8090 = dma.done [#allocation3], 512
    $region69: #{tpu_custom_call.1} parent=1 // pred_fallthru
      _
    // Predicated region
    $region70: #{tpu_custom_call.1} parent=1 // pred_check
      _
    $region71: #{tpu_custom_call.1} parent=1 // pred_check_branch
      %8092 = sbr.rel (0) target = $region73
    $region72: #{tpu_custom_call.1} parent=1 // pred_region
      %8093 = dma.done [#allocation5], 256
    $region73: #{tpu_custom_call.1} parent=1 // pred_fallthru
      _
    %8094 = vsyncpa [#allocation3], 1
    %8095 = vsyncpa [#allocation5], 1

</llo_original>
